<compile_context>
chip_gen: v7x
topology: tpu7x:2x2x1
jax: 0.10.0
libtpu: 0.0.40
codegen_flags: <defaults>
</compile_context>

<pallas_src>
import jax
import jax.numpy as jnp
from jax.experimental import pallas as pl
from jax.experimental.pallas import tpu as pltpu


LANES = 128                               # lane-dense padded channel width
_VMEM_TILE_BUDGET = 16 * 1024 * 1024      # conservative: fits v5e/v6e/v7x
_VMEM_LIMIT = 32 * 1024 * 1024


def _round_up(x, m):
    return ((x + m - 1) // m) * m


def _pad_axis(x, axis, size):
    if x.shape[axis] == size:
        return x
    pad = [(0, 0)] * x.ndim
    pad[axis] = (0, size - x.shape[axis])
    return jnp.pad(x, pad)


def _pick_tile_m(m, row_bytes, fixed_bytes, budget=_VMEM_TILE_BUDGET):
    """Largest row-tile (multiple of 8, <=512) whose VMEM footprint fits."""
    tm = max(8, (budget - fixed_bytes) // row_bytes)
    tm = min(512, (tm // 8) * 8)
    return min(tm, _round_up(m, 8))


# ------------------------------ Pallas kernels ------------------------------

def _conv_pool_kernel(a0_ref, a1_ref, a2_ref, a3_ref, w_ref, b_ref, o_ref):
    """out = relu(max_i(a_i @ w) + b): conv + bias + ReLU + 2x2 max-pool."""
    w = w_ref[...]
    y = jnp.dot(a0_ref[...], w, preferred_element_type=jnp.float32)
    y = jnp.maximum(y, jnp.dot(a1_ref[...], w, preferred_element_type=jnp.float32))
    y = jnp.maximum(y, jnp.dot(a2_ref[...], w, preferred_element_type=jnp.float32))
    y = jnp.maximum(y, jnp.dot(a3_ref[...], w, preferred_element_type=jnp.float32))
    o_ref[...] = jnp.maximum(y + b_ref[...], 0.0).astype(o_ref.dtype)


def _head_kernel(x_ref, w3_ref, b3_ref, w4_ref, b4_ref, w5_ref, b5_ref, o_ref):
    """Fused conv3(relu) -> fc1(relu) -> fc2 on lane-padded (128-wide) operands."""
    h = jnp.dot(x_ref[...], w3_ref[...], preferred_element_type=jnp.float32)
    h = jnp.maximum(h + b3_ref[...], 0.0)
    h = jnp.dot(h, w4_ref[...], preferred_element_type=jnp.float32)
    h = jnp.maximum(h + b4_ref[...], 0.0)
    o = jnp.dot(h, w5_ref[...], preferred_element_type=jnp.float32) + b5_ref[...]
    o_ref[...] = o.astype(o_ref.dtype)


# ------------------------------- conv plumbing ------------------------------

def _im2col_pool(x, kh, kw, dh, dw):
    """im2col for conv outputs at positions (2*ph+dh, 2*pw+dw).

    x: (N, H, W, C) -> (N*PH*PW, kh*kw*C); column index = (i*kw + j)*C + c.
    Row r corresponds to pooled output position (n, ph, pw).
    """
    n, h, w, c = x.shape
    oh, ow = h - kh + 1, w - kw + 1
    ph, pw = oh // 2, ow // 2
    slabs = []
    for i in range(kh):
        for j in range(kw):
            r0, c0 = dh + i, dw + j
            slabs.append(x[:, r0:r0 + 2 * (ph - 1) + 1:2,
                           c0:c0 + 2 * (pw - 1) + 1:2, :])      # (N,PH,PW,C)
    cols = jnp.stack(slabs, axis=3)                             # (N,PH,PW,kh*kw,C)
    return cols.reshape(n * ph * pw, kh * kw * c)


def conv_relu_pool(x, wmat, bvec, *, kh=5, kw=5, padding=0):
    """Fused Conv2d(kh,kw,stride 1) + bias + ReLU + 2x2/2 max-pool.

    x: (N, H, W, C) channel-last; wmat: (kh*kw*C, 128); bvec: (1, 128).
    Returns (N, OH//2, OW//2, 128).
    """
    if padding:
        x = jnp.pad(x, ((0, 0), (padding, padding), (padding, padding), (0, 0)))
    n, h, w, c = x.shape
    oh, ow = h - kh + 1, w - kw + 1
    ph, pw = oh // 2, ow // 2
    k = kh * kw * c
    nout = wmat.shape[1]

    a = [_im2col_pool(x, kh, kw, dh, dw) for dh in (0, 1) for dw in (0, 1)]

    m = n * ph * pw
    row_bytes = 2 * (4 * k + nout) * 4              # 4 inputs + output, dbl-buffered
    fixed_bytes = 2 * (k * nout + nout) * 4         # weights + bias
    tm = _pick_tile_m(m, row_bytes, fixed_bytes)
    m_pad = _round_up(m, tm)
    a = [_pad_axis(ai, 0, m_pad) for ai in a]

    a_spec = pl.BlockSpec((tm, k), lambda i: (i, 0))
    full = lambda i: (0, 0)
    cost = pl.CostEstimate(
        flops=2 * 4 * m_pad * k * nout,
        transcendentals=0,
        bytes_accessed=(4 * m_pad * k + k * nout + nout + m_pad * nout) * 4)

    y = pl.pallas_call(
        _conv_pool_kernel,
        out_shape=jax.ShapeDtypeStruct((m_pad, nout), jnp.float32),
        grid=(m_pad // tm,),
        in_specs=[a_spec, a_spec, a_spec, a_spec,
                  pl.BlockSpec((k, nout), full),
                  pl.BlockSpec((1, nout), full)],
        out_specs=pl.BlockSpec((tm, nout), lambda i: (i, 0)),
        compiler_params=pltpu.CompilerParams(
            dimension_semantics=("parallel",),
            vmem_limit_bytes=_VMEM_LIMIT),
        cost_estimate=cost,
    )(*a, wmat, bvec)
    return y[:m].reshape(n, ph, pw, nout)


def mlp_head(x, w3, b3, w4, b4, w5, b5):
    """Fused conv3(as matmul) + fc1 + fc2; x: (N, 3200), returns (N, 128)."""
    m, k = x.shape
    nout = w3.shape[1]
    row_bytes = 2 * (k + nout) * 4
    fixed_bytes = 2 * (k * nout + 2 * nout * nout + 3 * nout) * 4
    tm = _pick_tile_m(m, row_bytes, fixed_bytes)
    m_pad = _round_up(m, tm)
    xp = _pad_axis(x, 0, m_pad)

    full = lambda i: (0, 0)
    cost = pl.CostEstimate(
        flops=2 * m_pad * (k * nout + 2 * nout * nout),
        transcendentals=0,
        bytes_accessed=(m_pad * k + k * nout + 2 * nout * nout + 3 * nout
                        + m_pad * nout) * 4)

    y = pl.pallas_call(
        _head_kernel,
        out_shape=jax.ShapeDtypeStruct((m_pad, nout), jnp.float32),
        grid=(m_pad // tm,),
        in_specs=[pl.BlockSpec((tm, k), lambda i: (i, 0)),
                  pl.BlockSpec((k, nout), full),
                  pl.BlockSpec((1, nout), full),
                  pl.BlockSpec((nout, nout), full),
                  pl.BlockSpec((1, nout), full),
                  pl.BlockSpec((nout, nout), full),
                  pl.BlockSpec((1, nout), full)],
        out_specs=pl.BlockSpec((tm, nout), lambda i: (i, 0)),
        compiler_params=pltpu.CompilerParams(
            dimension_semantics=("parallel",),
            vmem_limit_bytes=_VMEM_LIMIT),
        cost_estimate=cost,
    )(xp, w3, b3, w4, b4, w5, b5)
    return y[:m]


# ------------------------------ params & model ------------------------------

def init_params(key):
    # PyTorch-style uniform(-1/sqrt(fan_in), 1/sqrt(fan_in)) init, deterministic.
    def u(k, shape, fan_in):
        bound = 1.0 / jnp.sqrt(jnp.float32(fan_in))
        return jax.random.uniform(k, shape, jnp.float32, -bound, bound)

    ks = jax.random.split(key, 10)
    return {
        "conv1_w": u(ks[0], (6, 1, 5, 5), 1 * 5 * 5),
        "conv1_b": u(ks[1], (6,), 1 * 5 * 5),
        "conv2_w": u(ks[2], (16, 6, 5, 5), 6 * 5 * 5),
        "conv2_b": u(ks[3], (16,), 6 * 5 * 5),
        "conv3_w": u(ks[4], (120, 16, 5, 5), 16 * 5 * 5),
        "conv3_b": u(ks[5], (120,), 16 * 5 * 5),
        "fc1_w": u(ks[6], (84, 120), 120),
        "fc1_b": u(ks[7], (84,), 120),
        "fc2_w": u(ks[8], (10, 84), 84),
        "fc2_b": u(ks[9], (10,), 84),
    }


def prepare_params(params):
    """Build lane-dense (128-padded) matmul operands once, outside the jit."""
    def conv_mat(w, cin_pad):
        o, _, kh, kw = w.shape
        wt = jnp.transpose(w, (2, 3, 1, 0))            # (kh, kw, cin, o)
        wt = _pad_axis(wt, 2, cin_pad)                 # zero-pad input channels
        wt = wt.reshape(kh * kw * cin_pad, o)
        return _pad_axis(wt, 1, LANES)                 # zero-pad output channels

    def fc_mat(w):                                     # w: (out, in) PyTorch layout
        m = jnp.zeros((LANES, LANES), jnp.float32)
        return m.at[:w.shape[1], :w.shape[0]].set(w.T)

    def bias(b):
        return _pad_axis(b.reshape(1, -1), 1, LANES)

    return {
        "w1": conv_mat(params["conv1_w"], 1),          # (25, 128)
        "b1": bias(params["conv1_b"]),
        "w2": conv_mat(params["conv2_w"], LANES),      # (3200, 128)
        "b2": bias(params["conv2_b"]),
        "w3": conv_mat(params["conv3_w"], LANES),      # (3200, 128)
        "b3": bias(params["conv3_b"]),
        "w4": fc_mat(params["fc1_w"]),                 # (128, 128)
        "b4": bias(params["fc1_b"]),
        "w5": fc_mat(params["fc2_w"]),                 # (128, 128)
        "b5": bias(params["fc2_b"]),
    }


def lenet_forward(prep, x):
    # x: (N, 1, 28, 28) NCHW (view(-1, 120) in the original forces 28x28 input).
    n = x.shape[0]
    h = jnp.transpose(x, (0, 2, 3, 1))                          # (N,28,28,1)
    h = conv_relu_pool(h, prep["w1"], prep["b1"], padding=2)    # (N,14,14,128)
    h = conv_relu_pool(h, prep["w2"], prep["b2"], padding=0)    # (N,5,5,128)
    h = h.reshape(n, 5 * 5 * LANES)                             # (N,3200)
    out = mlp_head(h, prep["w3"], prep["b3"], prep["w4"], prep["b4"],
                   prep["w5"], prep["b5"])                      # (N,128)
    return out[:, :10]


# Pure-JAX reference (correctness check only).
def lenet_reference(params, x):
    def conv(x, w, b, pad):
        y = jax.lax.conv_general_dilated(
            x, w, (1, 1), [(pad, pad), (pad, pad)],
            dimension_numbers=("NCHW", "OIHW", "NCHW"))
        return jax.nn.relu(y + b.reshape(1, -1, 1, 1))

    def pool(x):
        return jax.lax.reduce_window(x, -jnp.inf, jax.lax.max,
                                     (1, 1, 2, 2), (1, 1, 2, 2), "VALID")

    h = pool(conv(x, params["conv1_w"], params["conv1_b"], 2))
    h = pool(conv(h, params["conv2_w"], params["conv2_b"], 0))
    h = conv(h, params["conv3_w"], params["conv3_b"], 0)
    h = h.reshape(-1, 120)
    h = jax.nn.relu(h @ params["fc1_w"].T + params["fc1_b"])
    return h @ params["fc2_w"].T + params["fc2_b"]


if __name__ == "__main__":
    key = jax.random.PRNGKey(0)
    pkey, xkey = jax.random.split(key)
    params = init_params(pkey)
    prep = prepare_params(params)
    x = jax.random.normal(xkey, (2, 1, 28, 28), jnp.float32)

    out = jax.block_until_ready(jax.jit(lenet_forward)(prep, x))
    assert out.shape == (2, 10), out.shape

    ref = jax.block_until_ready(jax.jit(lenet_reference)(params, x))
    assert jnp.allclose(out, ref, atol=1e-4, rtol=1e-4), (
        float(jnp.max(jnp.abs(out - ref))))

    print("KERNEL_OK")
</pallas_src>

<mosaic_0001>
module attributes {stable_mosaic.version = 11 : i64} {
  func.func @_conv_pool_kernel(%arg0: i32, %arg1: memref<392x25xf32, #tpu.memory_space<vmem>>, %arg2: memref<392x25xf32, #tpu.memory_space<vmem>>, %arg3: memref<392x25xf32, #tpu.memory_space<vmem>>, %arg4: memref<392x25xf32, #tpu.memory_space<vmem>>, %arg5: memref<25x128xf32, #tpu.memory_space<vmem>>, %arg6: memref<1x128xf32, #tpu.memory_space<vmem>>, %arg7: memref<392x128xf32, #tpu.memory_space<vmem>>) attributes {dimension_semantics = [#tpu.dimension_semantics<parallel>], iteration_bounds = array<i64: 1>, scalar_prefetch = 0 : i64, scratch_operands = 0 : i64, tpu.core_type = #tpu.core_type<tc>, window_params = [{transform_indices = @transform_0, window_bounds = array<i64: 392, 25>}, {transform_indices = @transform_1, window_bounds = array<i64: 392, 25>}, {transform_indices = @transform_2, window_bounds = array<i64: 392, 25>}, {transform_indices = @transform_3, window_bounds = array<i64: 392, 25>}, {pipeline_mode = #tpu.pipeline_mode<synchronous>, transform_indices = @transform_4, window_bounds = array<i64: 25, 128>}, {pipeline_mode = #tpu.pipeline_mode<synchronous>, transform_indices = @transform_5, window_bounds = array<i64: 1, 128>}, {transform_indices = @transform_6, window_bounds = array<i64: 392, 128>}]} {
    %c0 = arith.constant 0 : index
    %c0_0 = arith.constant 0 : index
    %0 = vector.load %arg5[%c0, %c0_0] : memref<25x128xf32, #tpu.memory_space<vmem>>, vector<25x128xf32>
    %c0_1 = arith.constant 0 : index
    %c0_2 = arith.constant 0 : index
    %1 = vector.load %arg1[%c0_1, %c0_2] : memref<392x25xf32, #tpu.memory_space<vmem>>, vector<392x25xf32>
    %cst = arith.constant dense<0.000000e+00> : vector<392x128xf32>
    %2 = tpu.matmul %1, %0, %cst {dimension_numbers = #tpu.dot_dimension_numbers<[1], [0], [0], [1], [0, 0, 1, 1], [], []>} : vector<392x25xf32>, vector<25x128xf32>, vector<392x128xf32> -> vector<392x128xf32>
    %c0_3 = arith.constant 0 : index
    %c0_4 = arith.constant 0 : index
    %3 = vector.load %arg2[%c0_3, %c0_4] : memref<392x25xf32, #tpu.memory_space<vmem>>, vector<392x25xf32>
    %cst_5 = arith.constant dense<0.000000e+00> : vector<392x128xf32>
    %4 = tpu.matmul %3, %0, %cst_5 {dimension_numbers = #tpu.dot_dimension_numbers<[1], [0], [0], [1], [0, 0, 1, 1], [], []>} : vector<392x25xf32>, vector<25x128xf32>, vector<392x128xf32> -> vector<392x128xf32>
    %5 = arith.maximumf %2, %4 : vector<392x128xf32>
    %c0_6 = arith.constant 0 : index
    %c0_7 = arith.constant 0 : index
    %6 = vector.load %arg3[%c0_6, %c0_7] : memref<392x25xf32, #tpu.memory_space<vmem>>, vector<392x25xf32>
    %cst_8 = arith.constant dense<0.000000e+00> : vector<392x128xf32>
    %7 = tpu.matmul %6, %0, %cst_8 {dimension_numbers = #tpu.dot_dimension_numbers<[1], [0], [0], [1], [0, 0, 1, 1], [], []>} : vector<392x25xf32>, vector<25x128xf32>, vector<392x128xf32> -> vector<392x128xf32>
    %8 = arith.maximumf %5, %7 : vector<392x128xf32>
    %c0_9 = arith.constant 0 : index
    %c0_10 = arith.constant 0 : index
    %9 = vector.load %arg4[%c0_9, %c0_10] : memref<392x25xf32, #tpu.memory_space<vmem>>, vector<392x25xf32>
    %cst_11 = arith.constant dense<0.000000e+00> : vector<392x128xf32>
    %10 = tpu.matmul %9, %0, %cst_11 {dimension_numbers = #tpu.dot_dimension_numbers<[1], [0], [0], [1], [0, 0, 1, 1], [], []>} : vector<392x25xf32>, vector<25x128xf32>, vector<392x128xf32> -> vector<392x128xf32>
    %11 = arith.maximumf %8, %10 : vector<392x128xf32>
    %c0_12 = arith.constant 0 : index
    %c0_13 = arith.constant 0 : index
    %12 = vector.load %arg6[%c0_12, %c0_13] : memref<1x128xf32, #tpu.memory_space<vmem>>, vector<1x128xf32>
    %13 = vector.broadcast %12 : vector<1x128xf32> to vector<392x128xf32>
    %14 = arith.addf %11, %13 : vector<392x128xf32>
    %cst_14 = arith.constant 0.000000e+00 : f32
    %15 = vector.broadcast %cst_14 : f32 to vector<392x128xf32>
    %16 = arith.maximumf %14, %15 : vector<392x128xf32>
    %c0_15 = arith.constant 0 : index
    %c0_16 = arith.constant 0 : index
    %17 = vector.load %arg7[%c0_15, %c0_16] : memref<392x128xf32, #tpu.memory_space<vmem>>, vector<392x128xf32>
    tpu.vector_store %arg7[%c0_15, %c0_16], %16 {strides = array<i32>} : memref<392x128xf32, #tpu.memory_space<vmem>>, vector<392x128xf32>,
    return
  }
  func.func @transform_0(%arg0: i32) -> (i32, i32) {
    %c0_i32 = arith.constant 0 : i32
    %c0_i32_0 = arith.constant 0 : i32
    return %arg0, %c0_i32 : i32, i32
  }
  func.func @transform_1(%arg0: i32) -> (i32, i32) {
    %c0_i32 = arith.constant 0 : i32
    %c0_i32_0 = arith.constant 0 : i32
    return %arg0, %c0_i32 : i32, i32
  }
  func.func @transform_2(%arg0: i32) -> (i32, i32) {
    %c0_i32 = arith.constant 0 : i32
    %c0_i32_0 = arith.constant 0 : i32
    return %arg0, %c0_i32 : i32, i32
  }
  func.func @transform_3(%arg0: i32) -> (i32, i32) {
    %c0_i32 = arith.constant 0 : i32
    %c0_i32_0 = arith.constant 0 : i32
    return %arg0, %c0_i32 : i32, i32
  }
  func.func @transform_4(%arg0: i32) -> (i32, i32) {
    %c0_i32 = arith.constant 0 : i32
    %c0_i32_0 = arith.constant 0 : i32
    %c0_i32_1 = arith.constant 0 : i32
    return %c0_i32, %c0_i32_0 : i32, i32
  }
  func.func @transform_5(%arg0: i32) -> (i32, i32) {
    %c0_i32 = arith.constant 0 : i32
    %c0_i32_0 = arith.constant 0 : i32
    %c0_i32_1 = arith.constant 0 : i32
    return %c0_i32, %c0_i32_0 : i32, i32
  }
  func.func @transform_6(%arg0: i32) -> (i32, i32) {
    %c0_i32 = arith.constant 0 : i32
    %c0_i32_0 = arith.constant 0 : i32
    return %arg0, %c0_i32 : i32, i32
  }
}

module attributes {stable_mosaic.version = 11 : i64} {
  func.func @_conv_pool_kernel(%arg0: i32, %arg1: memref<56x3200xf32, #tpu.memory_space<vmem>>, %arg2: memref<56x3200xf32, #tpu.memory_space<vmem>>, %arg3: memref<56x3200xf32, #tpu.memory_space<vmem>>, %arg4: memref<56x3200xf32, #tpu.memory_space<vmem>>, %arg5: memref<3200x128xf32, #tpu.memory_space<vmem>>, %arg6: memref<1x128xf32, #tpu.memory_space<vmem>>, %arg7: memref<56x128xf32, #tpu.memory_space<vmem>>) attributes {dimension_semantics = [#tpu.dimension_semantics<parallel>], iteration_bounds = array<i64: 1>, scalar_prefetch = 0 : i64, scratch_operands = 0 : i64, tpu.core_type = #tpu.core_type<tc>, window_params = [{transform_indices = @transform_0, window_bounds = array<i64: 56, 3200>}, {transform_indices = @transform_1, window_bounds = array<i64: 56, 3200>}, {transform_indices = @transform_2, window_bounds = array<i64: 56, 3200>}, {transform_indices = @transform_3, window_bounds = array<i64: 56, 3200>}, {pipeline_mode = #tpu.pipeline_mode<synchronous>, transform_indices = @transform_4, window_bounds = array<i64: 3200, 128>}, {pipeline_mode = #tpu.pipeline_mode<synchronous>, transform_indices = @transform_5, window_bounds = array<i64: 1, 128>}, {transform_indices = @transform_6, window_bounds = array<i64: 56, 128>}]} {
    %c0 = arith.constant 0 : index
    %c0_0 = arith.constant 0 : index
    %0 = vector.load %arg5[%c0, %c0_0] : memref<3200x128xf32, #tpu.memory_space<vmem>>, vector<3200x128xf32>
    %c0_1 = arith.constant 0 : index
    %c0_2 = arith.constant 0 : index
    %1 = vector.load %arg1[%c0_1, %c0_2] : memref<56x3200xf32, #tpu.memory_space<vmem>>, vector<56x3200xf32>
    %cst = arith.constant dense<0.000000e+00> : vector<56x128xf32>
    %2 = tpu.matmul %1, %0, %cst {dimension_numbers = #tpu.dot_dimension_numbers<[1], [0], [0], [1], [0, 0, 1, 1], [], []>} : vector<56x3200xf32>, vector<3200x128xf32>, vector<56x128xf32> -> vector<56x128xf32>
    %c0_3 = arith.constant 0 : index
    %c0_4 = arith.constant 0 : index
    %3 = vector.load %arg2[%c0_3, %c0_4] : memref<56x3200xf32, #tpu.memory_space<vmem>>, vector<56x3200xf32>
    %cst_5 = arith.constant dense<0.000000e+00> : vector<56x128xf32>
    %4 = tpu.matmul %3, %0, %cst_5 {dimension_numbers = #tpu.dot_dimension_numbers<[1], [0], [0], [1], [0, 0, 1, 1], [], []>} : vector<56x3200xf32>, vector<3200x128xf32>, vector<56x128xf32> -> vector<56x128xf32>
    %5 = arith.maximumf %2, %4 : vector<56x128xf32>
    %c0_6 = arith.constant 0 : index
    %c0_7 = arith.constant 0 : index
    %6 = vector.load %arg3[%c0_6, %c0_7] : memref<56x3200xf32, #tpu.memory_space<vmem>>, vector<56x3200xf32>
    %cst_8 = arith.constant dense<0.000000e+00> : vector<56x128xf32>
    %7 = tpu.matmul %6, %0, %cst_8 {dimension_numbers = #tpu.dot_dimension_numbers<[1], [0], [0], [1], [0, 0, 1, 1], [], []>} : vector<56x3200xf32>, vector<3200x128xf32>, vector<56x128xf32> -> vector<56x128xf32>
    %8 = arith.maximumf %5, %7 : vector<56x128xf32>
    %c0_9 = arith.constant 0 : index
    %c0_10 = arith.constant 0 : index
    %9 = vector.load %arg4[%c0_9, %c0_10] : memref<56x3200xf32, #tpu.memory_space<vmem>>, vector<56x3200xf32>
    %cst_11 = arith.constant dense<0.000000e+00> : vector<56x128xf32>
    %10 = tpu.matmul %9, %0, %cst_11 {dimension_numbers = #tpu.dot_dimension_numbers<[1], [0], [0], [1], [0, 0, 1, 1], [], []>} : vector<56x3200xf32>, vector<3200x128xf32>, vector<56x128xf32> -> vector<56x128xf32>
    %11 = arith.maximumf %8, %10 : vector<56x128xf32>
    %c0_12 = arith.constant 0 : index
    %c0_13 = arith.constant 0 : index
    %12 = vector.load %arg6[%c0_12, %c0_13] : memref<1x128xf32, #tpu.memory_space<vmem>>, vector<1x128xf32>
    %13 = vector.broadcast %12 : vector<1x128xf32> to vector<56x128xf32>
    %14 = arith.addf %11, %13 : vector<56x128xf32>
    %cst_14 = arith.constant 0.000000e+00 : f32
    %15 = vector.broadcast %cst_14 : f32 to vector<56x128xf32>
    %16 = arith.maximumf %14, %15 : vector<56x128xf32>
    %c0_15 = arith.constant 0 : index
    %c0_16 = arith.constant 0 : index
    %17 = vector.load %arg7[%c0_15, %c0_16] : memref<56x128xf32, #tpu.memory_space<vmem>>, vector<56x128xf32>
    tpu.vector_store %arg7[%c0_15, %c0_16], %16 {strides = array<i32>} : memref<56x128xf32, #tpu.memory_space<vmem>>, vector<56x128xf32>,
    return
  }
  func.func @transform_0(%arg0: i32) -> (i32, i32) {
    %c0_i32 = arith.constant 0 : i32
    %c0_i32_0 = arith.constant 0 : i32
    return %arg0, %c0_i32 : i32, i32
  }
  func.func @transform_1(%arg0: i32) -> (i32, i32) {
    %c0_i32 = arith.constant 0 : i32
    %c0_i32_0 = arith.constant 0 : i32
    return %arg0, %c0_i32 : i32, i32
  }
  func.func @transform_2(%arg0: i32) -> (i32, i32) {
    %c0_i32 = arith.constant 0 : i32
    %c0_i32_0 = arith.constant 0 : i32
    return %arg0, %c0_i32 : i32, i32
  }
  func.func @transform_3(%arg0: i32) -> (i32, i32) {
    %c0_i32 = arith.constant 0 : i32
    %c0_i32_0 = arith.constant 0 : i32
    return %arg0, %c0_i32 : i32, i32
  }
  func.func @transform_4(%arg0: i32) -> (i32, i32) {
    %c0_i32 = arith.constant 0 : i32
    %c0_i32_0 = arith.constant 0 : i32
    %c0_i32_1 = arith.constant 0 : i32
    return %c0_i32, %c0_i32_0 : i32, i32
  }
  func.func @transform_5(%arg0: i32) -> (i32, i32) {
    %c0_i32 = arith.constant 0 : i32
    %c0_i32_0 = arith.constant 0 : i32
    %c0_i32_1 = arith.constant 0 : i32
    return %c0_i32, %c0_i32_0 : i32, i32
  }
  func.func @transform_6(%arg0: i32) -> (i32, i32) {
    %c0_i32 = arith.constant 0 : i32
    %c0_i32_0 = arith.constant 0 : i32
    return %arg0, %c0_i32 : i32, i32
  }
}

module attributes {stable_mosaic.version = 11 : i64} {
  func.func @_head_kernel(%arg0: i32, %arg1: memref<8x3200xf32, #tpu.memory_space<vmem>>, %arg2: memref<3200x128xf32, #tpu.memory_space<vmem>>, %arg3: memref<1x128xf32, #tpu.memory_space<vmem>>, %arg4: memref<128x128xf32, #tpu.memory_space<vmem>>, %arg5: memref<1x128xf32, #tpu.memory_space<vmem>>, %arg6: memref<128x128xf32, #tpu.memory_space<vmem>>, %arg7: memref<1x128xf32, #tpu.memory_space<vmem>>, %arg8: memref<8x128xf32, #tpu.memory_space<vmem>>) attributes {dimension_semantics = [#tpu.dimension_semantics<parallel>], iteration_bounds = array<i64: 1>, scalar_prefetch = 0 : i64, scratch_operands = 0 : i64, tpu.core_type = #tpu.core_type<tc>, window_params = [{transform_indices = @transform_0, window_bounds = array<i64: 8, 3200>}, {pipeline_mode = #tpu.pipeline_mode<synchronous>, transform_indices = @transform_1, window_bounds = array<i64: 3200, 128>}, {pipeline_mode = #tpu.pipeline_mode<synchronous>, transform_indices = @transform_2, window_bounds = array<i64: 1, 128>}, {pipeline_mode = #tpu.pipeline_mode<synchronous>, transform_indices = @transform_3, window_bounds = array<i64: 128, 128>}, {pipeline_mode = #tpu.pipeline_mode<synchronous>, transform_indices = @transform_4, window_bounds = array<i64: 1, 128>}, {pipeline_mode = #tpu.pipeline_mode<synchronous>, transform_indices = @transform_5, window_bounds = array<i64: 128, 128>}, {pipeline_mode = #tpu.pipeline_mode<synchronous>, transform_indices = @transform_6, window_bounds = array<i64: 1, 128>}, {transform_indices = @transform_7, window_bounds = array<i64: 8, 128>}]} {
    %c0 = arith.constant 0 : index
    %c0_0 = arith.constant 0 : index
    %0 = vector.load %arg1[%c0, %c0_0] : memref<8x3200xf32, #tpu.memory_space<vmem>>, vector<8x3200xf32>
    %c0_1 = arith.constant 0 : index
    %c0_2 = arith.constant 0 : index
    %1 = vector.load %arg2[%c0_1, %c0_2] : memref<3200x128xf32, #tpu.memory_space<vmem>>, vector<3200x128xf32>
    %cst = arith.constant dense<0.000000e+00> : vector<8x128xf32>
    %2 = tpu.matmul %0, %1, %cst {dimension_numbers = #tpu.dot_dimension_numbers<[1], [0], [0], [1], [0, 0, 1, 1], [], []>} : vector<8x3200xf32>, vector<3200x128xf32>, vector<8x128xf32> -> vector<8x128xf32>
    %c0_3 = arith.constant 0 : index
    %c0_4 = arith.constant 0 : index
    %3 = vector.load %arg3[%c0_3, %c0_4] : memref<1x128xf32, #tpu.memory_space<vmem>>, vector<1x128xf32>
    %4 = vector.broadcast %3 : vector<1x128xf32> to vector<8x128xf32>
    %5 = arith.addf %2, %4 : vector<8x128xf32>
    %cst_5 = arith.constant 0.000000e+00 : f32
    %6 = vector.broadcast %cst_5 : f32 to vector<8x128xf32>
    %7 = arith.maximumf %5, %6 : vector<8x128xf32>
    %c0_6 = arith.constant 0 : index
    %c0_7 = arith.constant 0 : index
    %8 = vector.load %arg4[%c0_6, %c0_7] : memref<128x128xf32, #tpu.memory_space<vmem>>, vector<128x128xf32>
    %cst_8 = arith.constant dense<0.000000e+00> : vector<8x128xf32>
    %9 = tpu.matmul %7, %8, %cst_8 {dimension_numbers = #tpu.dot_dimension_numbers<[1], [0], [0], [1], [0, 0, 1, 1], [], []>} : vector<8x128xf32>, vector<128x128xf32>, vector<8x128xf32> -> vector<8x128xf32>
    %c0_9 = arith.constant 0 : index
    %c0_10 = arith.constant 0 : index
    %10 = vector.load %arg5[%c0_9, %c0_10] : memref<1x128xf32, #tpu.memory_space<vmem>>, vector<1x128xf32>
    %11 = vector.broadcast %10 : vector<1x128xf32> to vector<8x128xf32>
    %12 = arith.addf %9, %11 : vector<8x128xf32>
    %cst_11 = arith.constant 0.000000e+00 : f32
    %13 = vector.broadcast %cst_11 : f32 to vector<8x128xf32>
    %14 = arith.maximumf %12, %13 : vector<8x128xf32>
    %c0_12 = arith.constant 0 : index
    %c0_13 = arith.constant 0 : index
    %15 = vector.load %arg6[%c0_12, %c0_13] : memref<128x128xf32, #tpu.memory_space<vmem>>, vector<128x128xf32>
    %cst_14 = arith.constant dense<0.000000e+00> : vector<8x128xf32>
    %16 = tpu.matmul %14, %15, %cst_14 {dimension_numbers = #tpu.dot_dimension_numbers<[1], [0], [0], [1], [0, 0, 1, 1], [], []>} : vector<8x128xf32>, vector<128x128xf32>, vector<8x128xf32> -> vector<8x128xf32>
    %c0_15 = arith.constant 0 : index
    %c0_16 = arith.constant 0 : index
    %17 = vector.load %arg7[%c0_15, %c0_16] : memref<1x128xf32, #tpu.memory_space<vmem>>, vector<1x128xf32>
    %18 = vector.broadcast %17 : vector<1x128xf32> to vector<8x128xf32>
    %19 = arith.addf %16, %18 : vector<8x128xf32>
    %c0_17 = arith.constant 0 : index
    %c0_18 = arith.constant 0 : index
    %20 = vector.load %arg8[%c0_17, %c0_18] : memref<8x128xf32, #tpu.memory_space<vmem>>, vector<8x128xf32>
    tpu.vector_store %arg8[%c0_17, %c0_18], %19 {strides = array<i32>} : memref<8x128xf32, #tpu.memory_space<vmem>>, vector<8x128xf32>,
    return
  }
  func.func @transform_0(%arg0: i32) -> (i32, i32) {
    %c0_i32 = arith.constant 0 : i32
    %c0_i32_0 = arith.constant 0 : i32
    return %arg0, %c0_i32 : i32, i32
  }
  func.func @transform_1(%arg0: i32) -> (i32, i32) {
    %c0_i32 = arith.constant 0 : i32
    %c0_i32_0 = arith.constant 0 : i32
    %c0_i32_1 = arith.constant 0 : i32
    return %c0_i32, %c0_i32_0 : i32, i32
  }
  func.func @transform_2(%arg0: i32) -> (i32, i32) {
    %c0_i32 = arith.constant 0 : i32
    %c0_i32_0 = arith.constant 0 : i32
    %c0_i32_1 = arith.constant 0 : i32
    return %c0_i32, %c0_i32_0 : i32, i32
  }
  func.func @transform_3(%arg0: i32) -> (i32, i32) {
    %c0_i32 = arith.constant 0 : i32
    %c0_i32_0 = arith.constant 0 : i32
    %c0_i32_1 = arith.constant 0 : i32
    return %c0_i32, %c0_i32_0 : i32, i32
  }
  func.func @transform_4(%arg0: i32) -> (i32, i32) {
    %c0_i32 = arith.constant 0 : i32
    %c0_i32_0 = arith.constant 0 : i32
    %c0_i32_1 = arith.constant 0 : i32
    return %c0_i32, %c0_i32_0 : i32, i32
  }
  func.func @transform_5(%arg0: i32) -> (i32, i32) {
    %c0_i32 = arith.constant 0 : i32
    %c0_i32_0 = arith.constant 0 : i32
    %c0_i32_1 = arith.constant 0 : i32
    return %c0_i32, %c0_i32_0 : i32, i32
  }
  func.func @transform_6(%arg0: i32) -> (i32, i32) {
    %c0_i32 = arith.constant 0 : i32
    %c0_i32_0 = arith.constant 0 : i32
    %c0_i32_1 = arith.constant 0 : i32
    return %c0_i32, %c0_i32_0 : i32, i32
  }
  func.func @transform_7(%arg0: i32) -> (i32, i32) {
    %c0_i32 = arith.constant 0 : i32
    %c0_i32_0 = arith.constant 0 : i32
    return %arg0, %c0_i32 : i32, i32
  }
}

</mosaic_0001>

<llo_original>
// kernel: lenet_forward.3
$region0: #{lenet_forward.3}
  #allocation0 [shape = 'u32[]', space=smem, size = 0x4, offset = 0x4, fixed_abs, tag = 'smem constant byte address 0x4 - core index']
  #allocation1 [shape = 'u32[144,128]{1,0:T(1,128)}', space=vmem, size = 0x12000, scoped, tag = 'internal scratch']
  %s0 = inlined_call_operand.vmem [shape: f32[392,25], index: 0, kind: input, shape index: {}]
  %s1 = inlined_call_operand.vmem [shape: f32[392,25], index: 1, kind: input, shape index: {}]
  %s2 = inlined_call_operand.vmem [shape: f32[392,25], index: 2, kind: input, shape index: {}]
  %s3 = inlined_call_operand.vmem [shape: f32[392,25], index: 3, kind: input, shape index: {}]
  %s4 = inlined_call_operand.vmem [shape: f32[25,128], index: 4, kind: input, shape index: {}]
  %s5 = inlined_call_operand.vmem [shape: f32[1,128], index: 5, kind: input, shape index: {}]
  %s6 = inlined_call_operand.vmem [shape: f32[392,128], index: 6, kind: output, shape index: {}]
  %s7 = sld [smem:[#allocation0]]
  $region34: #{lenet_forward.3} parent=0
    _
  %s9 = ssub.s32 1, %s7
  %s10 = scalar_select 0, %s9, %s7
  // Predicated region
  $region2: #{lenet_forward.3} parent=0 // pred_check
    _
  $region3: #{lenet_forward.3} parent=0 // pred_check_branch
    %12 = sbr.rel (0) target = $region5
  $region4: #{lenet_forward.3} parent=0 // pred_region
    _
  $region5: #{lenet_forward.3} parent=0 // pred_fallthru
    _
  // Predicated region
  $region6: #{lenet_forward.3} parent=0 // pred_check
    _
  $region7: #{lenet_forward.3} parent=0 // pred_check_branch
    %14 = sbr.rel (0) target = $region9
  $region8: #{lenet_forward.3} parent=0 // pred_region
    _
  $region9: #{lenet_forward.3} parent=0 // pred_fallthru
    _
  // Predicated region
  $region10: #{lenet_forward.3} parent=0 // pred_check
    _
  $region11: #{lenet_forward.3} parent=0 // pred_check_branch
    %16 = sbr.rel (0) target = $region13
  $region12: #{lenet_forward.3} parent=0 // pred_region
    _
  $region13: #{lenet_forward.3} parent=0 // pred_fallthru
    _
  // Predicated region
  $region14: #{lenet_forward.3} parent=0 // pred_check
    _
  $region15: #{lenet_forward.3} parent=0 // pred_check_branch
    %18 = sbr.rel (0) target = $region17
  $region16: #{lenet_forward.3} parent=0 // pred_region
    _
  $region17: #{lenet_forward.3} parent=0 // pred_fallthru
    _
  // Predicated region
  $region18: #{lenet_forward.3} parent=0 // pred_check
    _
  $region19: #{lenet_forward.3} parent=0 // pred_check_branch
    %20 = sbr.rel (0) target = $region21
  $region20: #{lenet_forward.3} parent=0 // pred_region
    _
  $region21: #{lenet_forward.3} parent=0 // pred_fallthru
    _
  // Predicated region
  $region22: #{lenet_forward.3} parent=0 // pred_check
    _
  $region23: #{lenet_forward.3} parent=0 // pred_check_branch
    %22 = sbr.rel (0) target = $region25
  $region24: #{lenet_forward.3} parent=0 // pred_region
    _
  $region25: #{lenet_forward.3} parent=0 // pred_fallthru
    _
  %v23 = vld [vmem:[%s4] sm:$0xff]
  %v24 = vld [vmem:[%s4 + $0x8] sm:$0xff]
  %v25 = vld [vmem:[%s4 + $0x10] sm:$0xff]
  %v26 = vld [vmem:[%s4 + $0x18] sm:$0x1]
  %v27 = vld [vmem:[%s0] sm:$0xff]
  %v28 = vld [vmem:[%s0 + $0x8] sm:$0xff]
  %v29 = vld [vmem:[%s0 + $0x10] sm:$0xff]
  %v30 = vld [vmem:[%s0 + $0x18] sm:$0xff]
  %v31 = vld [vmem:[%s0 + $0x20] sm:$0xff]
  %v32 = vld [vmem:[%s0 + $0x28] sm:$0xff]
  %v33 = vld [vmem:[%s0 + $0x30] sm:$0xff]
  %v34 = vld [vmem:[%s0 + $0x38] sm:$0xff]
  %v35 = vld [vmem:[%s0 + $0x40] sm:$0xff]
  %v36 = vld [vmem:[%s0 + $0x48] sm:$0xff]
  %v37 = vld [vmem:[%s0 + $0x50] sm:$0xff]
  %v38 = vld [vmem:[%s0 + $0x58] sm:$0xff]
  %v39 = vld [vmem:[%s0 + $0x60] sm:$0xff]
  %v40 = vld [vmem:[%s0 + $0x68] sm:$0xff]
  %v41 = vld [vmem:[%s0 + $0x70] sm:$0xff]
  %v42 = vld [vmem:[%s0 + $0x78] sm:$0xff]
  %v43 = vld [vmem:[%s0 + $0x80] sm:$0xff]
  %v44 = vld [vmem:[%s0 + $0x88] sm:$0xff]
  %v45 = vld [vmem:[%s0 + $0x90] sm:$0xff]
  %v46 = vld [vmem:[%s0 + $0x98] sm:$0xff]
  %v47 = vld [vmem:[%s0 + $0xa0] sm:$0xff]
  %v48 = vld [vmem:[%s0 + $0xa8] sm:$0xff]
  %v49 = vld [vmem:[%s0 + $0xb0] sm:$0xff]
  %v50 = vld [vmem:[%s0 + $0xb8] sm:$0xff]
  %v51 = vld [vmem:[%s0 + $0xc0] sm:$0xff]
  %v52 = vld [vmem:[%s0 + $0xc8] sm:$0xff]
  %v53 = vld [vmem:[%s0 + $0xd0] sm:$0xff]
  %v54 = vld [vmem:[%s0 + $0xd8] sm:$0xff]
  %v55 = vld [vmem:[%s0 + $0xe0] sm:$0xff]
  %v56 = vld [vmem:[%s0 + $0xe8] sm:$0xff]
  %v57 = vld [vmem:[%s0 + $0xf0] sm:$0xff]
  %v58 = vld [vmem:[%s0 + $0xf8] sm:$0xff]
  %v59 = vld [vmem:[%s0 + $0x100] sm:$0xff]
  %v60 = vld [vmem:[%s0 + $0x108] sm:$0xff]
  %v61 = vld [vmem:[%s0 + $0x110] sm:$0xff]
  %v62 = vld [vmem:[%s0 + $0x118] sm:$0xff]
  %v63 = vld [vmem:[%s0 + $0x120] sm:$0xff]
  %v64 = vld [vmem:[%s0 + $0x128] sm:$0xff]
  %v65 = vld [vmem:[%s0 + $0x130] sm:$0xff]
  %v66 = vld [vmem:[%s0 + $0x138] sm:$0xff]
  %v67 = vld [vmem:[%s0 + $0x140] sm:$0xff]
  %v68 = vld [vmem:[%s0 + $0x148] sm:$0xff]
  %v69 = vld [vmem:[%s0 + $0x150] sm:$0xff]
  %v70 = vld [vmem:[%s0 + $0x158] sm:$0xff]
  %v71 = vld [vmem:[%s0 + $0x160] sm:$0xff]
  %v72 = vld [vmem:[%s0 + $0x168] sm:$0xff]
  %v73 = vld [vmem:[%s0 + $0x170] sm:$0xff]
  %v74 = vld [vmem:[%s0 + $0x178] sm:$0xff]
  %v75 = vld [vmem:[%s0 + $0x180] sm:$0xff]
  %vm76 = vcmask 203776
  %v78 = vsel %vm76, %v27, 0
  %v81 = vsel %vm76, %v28, 0
  %v84 = vsel %vm76, %v29, 0
  %v87 = vsel %vm76, %v30, 0
  %v90 = vsel %vm76, %v31, 0
  %v93 = vsel %vm76, %v32, 0
  %v96 = vsel %vm76, %v33, 0
  %v99 = vsel %vm76, %v34, 0
  %v102 = vsel %vm76, %v35, 0
  %v105 = vsel %vm76, %v36, 0
  %v108 = vsel %vm76, %v37, 0
  %v111 = vsel %vm76, %v38, 0
  %v114 = vsel %vm76, %v39, 0
  %v117 = vsel %vm76, %v40, 0
  %v120 = vsel %vm76, %v41, 0
  %v123 = vsel %vm76, %v42, 0
  %v126 = vsel %vm76, %v43, 0
  %v129 = vsel %vm76, %v44, 0
  %v132 = vsel %vm76, %v45, 0
  %v135 = vsel %vm76, %v46, 0
  %v138 = vsel %vm76, %v47, 0
  %v141 = vsel %vm76, %v48, 0
  %v144 = vsel %vm76, %v49, 0
  %v147 = vsel %vm76, %v50, 0
  %v150 = vsel %vm76, %v51, 0
  %v153 = vsel %vm76, %v52, 0
  %v156 = vsel %vm76, %v53, 0
  %v159 = vsel %vm76, %v54, 0
  %v162 = vsel %vm76, %v55, 0
  %v165 = vsel %vm76, %v56, 0
  %v168 = vsel %vm76, %v57, 0
  %v171 = vsel %vm76, %v58, 0
  %v174 = vsel %vm76, %v59, 0
  %v177 = vsel %vm76, %v60, 0
  %v180 = vsel %vm76, %v61, 0
  %v183 = vsel %vm76, %v62, 0
  %v186 = vsel %vm76, %v63, 0
  %v189 = vsel %vm76, %v64, 0
  %v192 = vsel %vm76, %v65, 0
  %v195 = vsel %vm76, %v66, 0
  %v198 = vsel %vm76, %v67, 0
  %v201 = vsel %vm76, %v68, 0
  %v204 = vsel %vm76, %v69, 0
  %v207 = vsel %vm76, %v70, 0
  %v210 = vsel %vm76, %v71, 0
  %v213 = vsel %vm76, %v72, 0
  %v216 = vsel %vm76, %v73, 0
  %v219 = vsel %vm76, %v74, 0
  %v222 = vsel %vm76, %v75, 0
  %vm224 = vcmask 1040384
  %v226 = vsel %vm224, %v26, 0
  %228 = vmatprep.subr.mxu0 0.0
  %229 = vmatpush1.msra.mxu0 %v23
  %230 = vmatprep.subr.mxu0 0.0
  %231 = vmatpush1.msra.mxu0 %v24
  %232 = vmatprep.subr.mxu0 0.0
  %233 = vmatpush1.msra.mxu0 %v25
  %234 = vmatprep.subr.mxu0 0.0
  %235 = vmatpush1.msra.mxu0 %v226
  %236 = vmatprep.subr.mxu0 0.0
  %237 = vmatpush1.msra.mxu0 0.0
  %238 = vmatprep.subr.mxu0 0.0
  %239 = vmatpush1.msra.mxu0 0.0
  %240 = vmatprep.subr.mxu0 0.0
  %241 = vmatpush1.msra.mxu0 0.0
  %242 = vmatprep.subr.mxu0 0.0
  %243 = vmatpush1.msra.mxu0 0.0
  %244 = vmatprep.subr.mxu0 0.0
  %245 = vmatpush1.msra.mxu0 0.0
  %246 = vmatprep.subr.mxu0 0.0
  %247 = vmatpush1.msra.mxu0 0.0
  %248 = vmatprep.subr.mxu0 0.0
  %249 = vmatpush1.msra.mxu0 0.0
  %250 = vmatprep.subr.mxu0 0.0
  %251 = vmatpush1.msra.mxu0 0.0
  %252 = vmatprep.subr.mxu0 0.0
  %253 = vmatpush1.msra.mxu0 0.0
  %254 = vmatprep.subr.mxu0 0.0
  %255 = vmatpush1.msra.mxu0 0.0
  %256 = vmatprep.subr.mxu0 0.0
  %257 = vmatpush1.msra.mxu0 0.0
  %258 = vmatprep.subr.mxu0 0.0
  %259 = vmatpush1.msra.mxu0 0.0
  %260 = vmatprep.subr.mxu0 0.0
  %261 = vmatpush1.msra.mxu0 0.0
  %262 = vmatprep.subr.mxu0 0.0
  %263 = vmatpush1.msra.mxu0 0.0
  %264 = vmatprep.subr.mxu0 0.0
  %265 = vmatpush1.msra.mxu0 0.0
  %266 = vmatprep.subr.mxu0 0.0
  %267 = vmatpush1.msra.mxu0 0.0
  %268 = vmatprep.subr.mxu0 0.0
  %269 = vmatpush1.msra.mxu0 0.0
  %270 = vmatprep.subr.mxu0 0.0
  %271 = vmatpush1.msra.mxu0 0.0
  %272 = vmatprep.subr.mxu0 0.0
  %273 = vmatpush1.msra.mxu0 0.0
  %274 = vmatprep.subr.mxu0 0.0
  %275 = vmatpush1.msra.mxu0 0.0
  %276 = vmatprep.subr.mxu0 0.0
  %277 = vmatpush1.msra.mxu0 0.0
  %278 = vmatprep.subr.mxu0 0.0
  %279 = vmatpush1.msra.mxu0 0.0
  %280 = vmatprep.subr.mxu0 0.0
  %281 = vmatpush1.msra.mxu0 0.0
  %282 = vmatprep.subr.mxu0 0.0
  %283 = vmatpush1.msra.mxu0 0.0
  %284 = vmatprep.subr.mxu0 0.0
  %285 = vmatpush1.msra.mxu0 0.0
  %286 = vmatprep.subr.mxu0 0.0
  %287 = vmatpush1.msra.mxu0 0.0
  %288 = vmatprep.subr.mxu0 0.0
  %289 = vmatpush1.msra.mxu0 0.0
  %290 = vmatprep.subr.mxu0 0.0
  %291 = vmatpush1.msra.mxu0 0.0
  %292 = vmatprep.mubr.f32.mxu0 0.0
  %293 = vmatmul.mubr.f32.gmra.mrb[0].mxu0 %v78
  %v294 = vpop.f32.mrb[0].mxu0
  %v295 = vadd.f32 0.0, %v294
  %v296 = vpop.f32.mrb[0].mxu0
  %297 = vmatprep.mubr.f32.mxu0 0.0
  %298 = vmatmul.mubr.f32.gmra.mrb[0].mxu0 %v81
  %v299 = vpop.f32.mrb[0].mxu0
  %v300 = vadd.f32 0.0, %v299
  %v301 = vpop.f32.mrb[0].mxu0
  %302 = vmatprep.mubr.f32.mxu0 0.0
  %303 = vmatmul.mubr.f32.gmra.mrb[0].mxu0 %v84
  %v304 = vpop.f32.mrb[0].mxu0
  %v305 = vadd.f32 0.0, %v304
  %v306 = vpop.f32.mrb[0].mxu0
  %307 = vmatprep.mubr.f32.mxu0 0.0
  %308 = vmatmul.mubr.f32.gmra.mrb[0].mxu0 %v87
  %v309 = vpop.f32.mrb[0].mxu0
  %v310 = vadd.f32 0.0, %v309
  %v311 = vpop.f32.mrb[0].mxu0
  %312 = vmatprep.mubr.f32.mxu0 0.0
  %313 = vmatmul.mubr.f32.gmra.mrb[0].mxu0 %v90
  %v314 = vpop.f32.mrb[0].mxu0
  %v315 = vadd.f32 0.0, %v314
  %v316 = vpop.f32.mrb[0].mxu0
  %317 = vmatprep.mubr.f32.mxu0 0.0
  %318 = vmatmul.mubr.f32.gmra.mrb[0].mxu0 %v93
  %v319 = vpop.f32.mrb[0].mxu0
  %v320 = vadd.f32 0.0, %v319
  %v321 = vpop.f32.mrb[0].mxu0
  %322 = vmatprep.mubr.f32.mxu0 0.0
  %323 = vmatmul.mubr.f32.gmra.mrb[0].mxu0 %v96
  %v324 = vpop.f32.mrb[0].mxu0
  %v325 = vadd.f32 0.0, %v324
  %v326 = vpop.f32.mrb[0].mxu0
  %327 = vmatprep.mubr.f32.mxu0 0.0
  %328 = vmatmul.mubr.f32.gmra.mrb[0].mxu0 %v99
  %v329 = vpop.f32.mrb[0].mxu0
  %v330 = vadd.f32 0.0, %v329
  %v331 = vpop.f32.mrb[0].mxu0
  %332 = vmatprep.mubr.f32.mxu0 0.0
  %333 = vmatmul.mubr.f32.gmra.mrb[0].mxu0 %v102
  %v334 = vpop.f32.mrb[0].mxu0
  %v335 = vadd.f32 0.0, %v334
  %v336 = vpop.f32.mrb[0].mxu0
  %337 = vmatprep.mubr.f32.mxu0 0.0
  %338 = vmatmul.mubr.f32.gmra.mrb[0].mxu0 %v105
  %v339 = vpop.f32.mrb[0].mxu0
  %v340 = vadd.f32 0.0, %v339
  %v341 = vpop.f32.mrb[0].mxu0
  %342 = vmatprep.mubr.f32.mxu0 0.0
  %343 = vmatmul.mubr.f32.gmra.mrb[0].mxu0 %v108
  %v344 = vpop.f32.mrb[0].mxu0
  %v345 = vadd.f32 0.0, %v344
  %v346 = vpop.f32.mrb[0].mxu0
  %347 = vmatprep.mubr.f32.mxu0 0.0
  %348 = vmatmul.mubr.f32.gmra.mrb[0].mxu0 %v111
  %v349 = vpop.f32.mrb[0].mxu0
  %v350 = vadd.f32 0.0, %v349
  %v351 = vpop.f32.mrb[0].mxu0
  %352 = vmatprep.mubr.f32.mxu0 0.0
  %353 = vmatmul.mubr.f32.gmra.mrb[0].mxu0 %v114
  %v354 = vpop.f32.mrb[0].mxu0
  %v355 = vadd.f32 0.0, %v354
  %v356 = vpop.f32.mrb[0].mxu0
  %357 = vmatprep.mubr.f32.mxu0 0.0
  %358 = vmatmul.mubr.f32.gmra.mrb[0].mxu0 %v117
  %v359 = vpop.f32.mrb[0].mxu0
  %v360 = vadd.f32 0.0, %v359
  %v361 = vpop.f32.mrb[0].mxu0
  %362 = vmatprep.mubr.f32.mxu0 0.0
  %363 = vmatmul.mubr.f32.gmra.mrb[0].mxu0 %v120
  %v364 = vpop.f32.mrb[0].mxu0
  %v365 = vadd.f32 0.0, %v364
  %v366 = vpop.f32.mrb[0].mxu0
  %367 = vmatprep.mubr.f32.mxu0 0.0
  %368 = vmatmul.mubr.f32.gmra.mrb[0].mxu0 %v123
  %v369 = vpop.f32.mrb[0].mxu0
  %v370 = vadd.f32 0.0, %v369
  %v371 = vpop.f32.mrb[0].mxu0
  %372 = vmatprep.mubr.f32.mxu0 0.0
  %373 = vmatmul.mubr.f32.gmra.mrb[0].mxu0 %v126
  %v374 = vpop.f32.mrb[0].mxu0
  %v375 = vadd.f32 0.0, %v374
  %v376 = vpop.f32.mrb[0].mxu0
  %377 = vmatprep.mubr.f32.mxu0 0.0
  %378 = vmatmul.mubr.f32.gmra.mrb[0].mxu0 %v129
  %v379 = vpop.f32.mrb[0].mxu0
  %v380 = vadd.f32 0.0, %v379
  %v381 = vpop.f32.mrb[0].mxu0
  %382 = vmatprep.mubr.f32.mxu0 0.0
  %383 = vmatmul.mubr.f32.gmra.mrb[0].mxu0 %v132
  %v384 = vpop.f32.mrb[0].mxu0
  %v385 = vadd.f32 0.0, %v384
  %v386 = vpop.f32.mrb[0].mxu0
  %387 = vmatprep.mubr.f32.mxu0 0.0
  %388 = vmatmul.mubr.f32.gmra.mrb[0].mxu0 %v135
  %v389 = vpop.f32.mrb[0].mxu0
  %v390 = vadd.f32 0.0, %v389
  %v391 = vpop.f32.mrb[0].mxu0
  %392 = vmatprep.mubr.f32.mxu0 0.0
  %393 = vmatmul.mubr.f32.gmra.mrb[0].mxu0 %v138
  %v394 = vpop.f32.mrb[0].mxu0
  %v395 = vadd.f32 0.0, %v394
  %v396 = vpop.f32.mrb[0].mxu0
  %397 = vmatprep.mubr.f32.mxu0 0.0
  %398 = vmatmul.mubr.f32.gmra.mrb[0].mxu0 %v141
  %v399 = vpop.f32.mrb[0].mxu0
  %v400 = vadd.f32 0.0, %v399
  %v401 = vpop.f32.mrb[0].mxu0
  %402 = vmatprep.mubr.f32.mxu0 0.0
  %403 = vmatmul.mubr.f32.gmra.mrb[0].mxu0 %v144
  %v404 = vpop.f32.mrb[0].mxu0
  %v405 = vadd.f32 0.0, %v404
  %v406 = vpop.f32.mrb[0].mxu0
  %407 = vmatprep.mubr.f32.mxu0 0.0
  %408 = vmatmul.mubr.f32.gmra.mrb[0].mxu0 %v147
  %v409 = vpop.f32.mrb[0].mxu0
  %v410 = vadd.f32 0.0, %v409
  %v411 = vpop.f32.mrb[0].mxu0
  %412 = vmatprep.mubr.f32.mxu0 0.0
  %413 = vmatmul.mubr.f32.gmra.mrb[0].mxu0 %v150
  %v414 = vpop.f32.mrb[0].mxu0
  %v415 = vadd.f32 0.0, %v414
  %v416 = vpop.f32.mrb[0].mxu0
  %417 = vmatprep.mubr.f32.mxu0 0.0
  %418 = vmatmul.mubr.f32.gmra.mrb[0].mxu0 %v153
  %v419 = vpop.f32.mrb[0].mxu0
  %v420 = vadd.f32 0.0, %v419
  %v421 = vpop.f32.mrb[0].mxu0
  %422 = vmatprep.mubr.f32.mxu0 0.0
  %423 = vmatmul.mubr.f32.gmra.mrb[0].mxu0 %v156
  %v424 = vpop.f32.mrb[0].mxu0
  %v425 = vadd.f32 0.0, %v424
  %v426 = vpop.f32.mrb[0].mxu0
  %427 = vmatprep.mubr.f32.mxu0 0.0
  %428 = vmatmul.mubr.f32.gmra.mrb[0].mxu0 %v159
  %v429 = vpop.f32.mrb[0].mxu0
  %v430 = vadd.f32 0.0, %v429
  %v431 = vpop.f32.mrb[0].mxu0
  %432 = vmatprep.mubr.f32.mxu0 0.0
  %433 = vmatmul.mubr.f32.gmra.mrb[0].mxu0 %v162
  %v434 = vpop.f32.mrb[0].mxu0
  %v435 = vadd.f32 0.0, %v434
  %v436 = vpop.f32.mrb[0].mxu0
  %437 = vmatprep.mubr.f32.mxu0 0.0
  %438 = vmatmul.mubr.f32.gmra.mrb[0].mxu0 %v165
  %v439 = vpop.f32.mrb[0].mxu0
  %v440 = vadd.f32 0.0, %v439
  %v441 = vpop.f32.mrb[0].mxu0
  %442 = vmatprep.mubr.f32.mxu0 0.0
  %443 = vmatmul.mubr.f32.gmra.mrb[0].mxu0 %v168
  %v444 = vpop.f32.mrb[0].mxu0
  %v445 = vadd.f32 0.0, %v444
  %v446 = vpop.f32.mrb[0].mxu0
  %447 = vmatprep.mubr.f32.mxu0 0.0
  %448 = vmatmul.mubr.f32.gmra.mrb[0].mxu0 %v171
  %v449 = vpop.f32.mrb[0].mxu0
  %v450 = vadd.f32 0.0, %v449
  %v451 = vpop.f32.mrb[0].mxu0
  %452 = vmatprep.mubr.f32.mxu0 0.0
  %453 = vmatmul.mubr.f32.gmra.mrb[0].mxu0 %v174
  %v454 = vpop.f32.mrb[0].mxu0
  %v455 = vadd.f32 0.0, %v454
  %v456 = vpop.f32.mrb[0].mxu0
  %457 = vmatprep.mubr.f32.mxu0 0.0
  %458 = vmatmul.mubr.f32.gmra.mrb[0].mxu0 %v177
  %v459 = vpop.f32.mrb[0].mxu0
  %v460 = vadd.f32 0.0, %v459
  %v461 = vpop.f32.mrb[0].mxu0
  %462 = vmatprep.mubr.f32.mxu0 0.0
  %463 = vmatmul.mubr.f32.gmra.mrb[0].mxu0 %v180
  %v464 = vpop.f32.mrb[0].mxu0
  %v465 = vadd.f32 0.0, %v464
  %v466 = vpop.f32.mrb[0].mxu0
  %467 = vmatprep.mubr.f32.mxu0 0.0
  %468 = vmatmul.mubr.f32.gmra.mrb[0].mxu0 %v183
  %v469 = vpop.f32.mrb[0].mxu0
  %v470 = vadd.f32 0.0, %v469
  %v471 = vpop.f32.mrb[0].mxu0
  %472 = vmatprep.mubr.f32.mxu0 0.0
  %473 = vmatmul.mubr.f32.gmra.mrb[0].mxu0 %v186
  %v474 = vpop.f32.mrb[0].mxu0
  %v475 = vadd.f32 0.0, %v474
  %v476 = vpop.f32.mrb[0].mxu0
  %477 = vmatprep.mubr.f32.mxu0 0.0
  %478 = vmatmul.mubr.f32.gmra.mrb[0].mxu0 %v189
  %v479 = vpop.f32.mrb[0].mxu0
  %v480 = vadd.f32 0.0, %v479
  %v481 = vpop.f32.mrb[0].mxu0
  %482 = vmatprep.mubr.f32.mxu0 0.0
  %483 = vmatmul.mubr.f32.gmra.mrb[0].mxu0 %v192
  %v484 = vpop.f32.mrb[0].mxu0
  %v485 = vadd.f32 0.0, %v484
  %v486 = vpop.f32.mrb[0].mxu0
  %487 = vmatprep.mubr.f32.mxu0 0.0
  %488 = vmatmul.mubr.f32.gmra.mrb[0].mxu0 %v195
  %v489 = vpop.f32.mrb[0].mxu0
  %v490 = vadd.f32 0.0, %v489
  %v491 = vpop.f32.mrb[0].mxu0
  %492 = vmatprep.mubr.f32.mxu0 0.0
  %493 = vmatmul.mubr.f32.gmra.mrb[0].mxu0 %v198
  %v494 = vpop.f32.mrb[0].mxu0
  %v495 = vadd.f32 0.0, %v494
  %v496 = vpop.f32.mrb[0].mxu0
  %497 = vmatprep.mubr.f32.mxu0 0.0
  %498 = vmatmul.mubr.f32.gmra.mrb[0].mxu0 %v201
  %v499 = vpop.f32.mrb[0].mxu0
  %v500 = vadd.f32 0.0, %v499
  %v501 = vpop.f32.mrb[0].mxu0
  %502 = vmatprep.mubr.f32.mxu0 0.0
  %503 = vmatmul.mubr.f32.gmra.mrb[0].mxu0 %v204
  %v504 = vpop.f32.mrb[0].mxu0
  %v505 = vadd.f32 0.0, %v504
  %v506 = vpop.f32.mrb[0].mxu0
  %507 = vmatprep.mubr.f32.mxu0 0.0
  %508 = vmatmul.mubr.f32.gmra.mrb[0].mxu0 %v207
  %v509 = vpop.f32.mrb[0].mxu0
  %v510 = vadd.f32 0.0, %v509
  %v511 = vpop.f32.mrb[0].mxu0
  %512 = vmatprep.mubr.f32.mxu0 0.0
  %513 = vmatmul.mubr.f32.gmra.mrb[0].mxu0 %v210
  %v514 = vpop.f32.mrb[0].mxu0
  %v515 = vadd.f32 0.0, %v514
  %v516 = vpop.f32.mrb[0].mxu0
  %517 = vmatprep.mubr.f32.mxu0 0.0
  %518 = vmatmul.mubr.f32.gmra.mrb[0].mxu0 %v213
  %v519 = vpop.f32.mrb[0].mxu0
  %v520 = vadd.f32 0.0, %v519
  %v521 = vpop.f32.mrb[0].mxu0
  %522 = vmatprep.mubr.f32.mxu0 0.0
  %523 = vmatmul.mubr.f32.gmra.mrb[0].mxu0 %v216
  %v524 = vpop.f32.mrb[0].mxu0
  %v525 = vadd.f32 0.0, %v524
  %v526 = vpop.f32.mrb[0].mxu0
  %527 = vmatprep.mubr.f32.mxu0 0.0
  %528 = vmatmul.mubr.f32.gmra.mrb[0].mxu0 %v219
  %v529 = vpop.f32.mrb[0].mxu0
  %v530 = vadd.f32 0.0, %v529
  %v531 = vpop.f32.mrb[0].mxu0
  %532 = vmatprep.mubr.f32.mxu0 0.0
  %533 = vmatmul.mubr.f32.gmra.mrb[0].mxu0 %v222
  %v534 = vpop.f32.mrb[0].mxu0
  %v535 = vadd.f32 0.0, %v534
  %v536 = vpop.f32.mrb[0].mxu0
  %537 = vdwg.mxu0
  %v538 = vld [vmem:[%s1] sm:$0xff]
  %v539 = vld [vmem:[%s1 + $0x8] sm:$0xff]
  %v540 = vld [vmem:[%s1 + $0x10] sm:$0xff]
  %v541 = vld [vmem:[%s1 + $0x18] sm:$0xff]
  %v542 = vld [vmem:[%s1 + $0x20] sm:$0xff]
  %v543 = vld [vmem:[%s1 + $0x28] sm:$0xff]
  %v544 = vld [vmem:[%s1 + $0x30] sm:$0xff]
  %v545 = vld [vmem:[%s1 + $0x38] sm:$0xff]
  %v546 = vld [vmem:[%s1 + $0x40] sm:$0xff]
  %v547 = vld [vmem:[%s1 + $0x48] sm:$0xff]
  %v548 = vld [vmem:[%s1 + $0x50] sm:$0xff]
  %v549 = vld [vmem:[%s1 + $0x58] sm:$0xff]
  %v550 = vld [vmem:[%s1 + $0x60] sm:$0xff]
  %v551 = vld [vmem:[%s1 + $0x68] sm:$0xff]
  %v552 = vld [vmem:[%s1 + $0x70] sm:$0xff]
  %v553 = vld [vmem:[%s1 + $0x78] sm:$0xff]
  %v554 = vld [vmem:[%s1 + $0x80] sm:$0xff]
  %v555 = vld [vmem:[%s1 + $0x88] sm:$0xff]
  %v556 = vld [vmem:[%s1 + $0x90] sm:$0xff]
  %v557 = vld [vmem:[%s1 + $0x98] sm:$0xff]
  %v558 = vld [vmem:[%s1 + $0xa0] sm:$0xff]
  %v559 = vld [vmem:[%s1 + $0xa8] sm:$0xff]
  %v560 = vld [vmem:[%s1 + $0xb0] sm:$0xff]
  %v561 = vld [vmem:[%s1 + $0xb8] sm:$0xff]
  %v562 = vld [vmem:[%s1 + $0xc0] sm:$0xff]
  %v563 = vld [vmem:[%s1 + $0xc8] sm:$0xff]
  %v564 = vld [vmem:[%s1 + $0xd0] sm:$0xff]
  %v565 = vld [vmem:[%s1 + $0xd8] sm:$0xff]
  %v566 = vld [vmem:[%s1 + $0xe0] sm:$0xff]
  %v567 = vld [vmem:[%s1 + $0xe8] sm:$0xff]
  %v568 = vld [vmem:[%s1 + $0xf0] sm:$0xff]
  %v569 = vld [vmem:[%s1 + $0xf8] sm:$0xff]
  %v570 = vld [vmem:[%s1 + $0x100] sm:$0xff]
  %v571 = vld [vmem:[%s1 + $0x108] sm:$0xff]
  %v572 = vld [vmem:[%s1 + $0x110] sm:$0xff]
  %v573 = vld [vmem:[%s1 + $0x118] sm:$0xff]
  %v574 = vld [vmem:[%s1 + $0x120] sm:$0xff]
  %v575 = vld [vmem:[%s1 + $0x128] sm:$0xff]
  %v576 = vld [vmem:[%s1 + $0x130] sm:$0xff]
  %v577 = vld [vmem:[%s1 + $0x138] sm:$0xff]
  %v578 = vld [vmem:[%s1 + $0x140] sm:$0xff]
  %v579 = vld [vmem:[%s1 + $0x148] sm:$0xff]
  %v580 = vld [vmem:[%s1 + $0x150] sm:$0xff]
  %v581 = vld [vmem:[%s1 + $0x158] sm:$0xff]
  %v582 = vld [vmem:[%s1 + $0x160] sm:$0xff]
  %v583 = vld [vmem:[%s1 + $0x168] sm:$0xff]
  %v584 = vld [vmem:[%s1 + $0x170] sm:$0xff]
  %v585 = vld [vmem:[%s1 + $0x178] sm:$0xff]
  %v586 = vld [vmem:[%s1 + $0x180] sm:$0xff]
  %v588 = vsel %vm76, %v538, 0
  %v591 = vsel %vm76, %v539, 0
  %v594 = vsel %vm76, %v540, 0
  %v597 = vsel %vm76, %v541, 0
  %v600 = vsel %vm76, %v542, 0
  %v603 = vsel %vm76, %v543, 0
  %v606 = vsel %vm76, %v544, 0
  %v609 = vsel %vm76, %v545, 0
  %v612 = vsel %vm76, %v546, 0
  %v615 = vsel %vm76, %v547, 0
  %v618 = vsel %vm76, %v548, 0
  %v621 = vsel %vm76, %v549, 0
  %v624 = vsel %vm76, %v550, 0
  %v627 = vsel %vm76, %v551, 0
  %v630 = vsel %vm76, %v552, 0
  %v633 = vsel %vm76, %v553, 0
  %v636 = vsel %vm76, %v554, 0
  %v639 = vsel %vm76, %v555, 0
  %v642 = vsel %vm76, %v556, 0
  %v645 = vsel %vm76, %v557, 0
  %v648 = vsel %vm76, %v558, 0
  %v651 = vsel %vm76, %v559, 0
  %v654 = vsel %vm76, %v560, 0
  %v657 = vsel %vm76, %v561, 0
  %v660 = vsel %vm76, %v562, 0
  %v663 = vsel %vm76, %v563, 0
  %v666 = vsel %vm76, %v564, 0
  %v669 = vsel %vm76, %v565, 0
  %v672 = vsel %vm76, %v566, 0
  %v675 = vsel %vm76, %v567, 0
  %v678 = vsel %vm76, %v568, 0
  %v681 = vsel %vm76, %v569, 0
  %v684 = vsel %vm76, %v570, 0
  %v687 = vsel %vm76, %v571, 0
  %v690 = vsel %vm76, %v572, 0
  %v693 = vsel %vm76, %v573, 0
  %v696 = vsel %vm76, %v574, 0
  %v699 = vsel %vm76, %v575, 0
  %v702 = vsel %vm76, %v576, 0
  %v705 = vsel %vm76, %v577, 0
  %v708 = vsel %vm76, %v578, 0
  %v711 = vsel %vm76, %v579, 0
  %v714 = vsel %vm76, %v580, 0
  %v717 = vsel %vm76, %v581, 0
  %v720 = vsel %vm76, %v582, 0
  %v723 = vsel %vm76, %v583, 0
  %v726 = vsel %vm76, %v584, 0
  %v729 = vsel %vm76, %v585, 0
  %v732 = vsel %vm76, %v586, 0
  %734 = vmatprep.subr.mxu0 0.0
  %735 = vmatpush1.msra.mxu0 %v23
  %736 = vmatprep.subr.mxu0 0.0
  %737 = vmatpush1.msra.mxu0 %v24
  %738 = vmatprep.subr.mxu0 0.0
  %739 = vmatpush1.msra.mxu0 %v25
  %740 = vmatprep.subr.mxu0 0.0
  %741 = vmatpush1.msra.mxu0 %v226
  %742 = vmatprep.subr.mxu0 0.0
  %743 = vmatpush1.msra.mxu0 0.0
  %744 = vmatprep.subr.mxu0 0.0
  %745 = vmatpush1.msra.mxu0 0.0
  %746 = vmatprep.subr.mxu0 0.0
  %747 = vmatpush1.msra.mxu0 0.0
  %748 = vmatprep.subr.mxu0 0.0
  %749 = vmatpush1.msra.mxu0 0.0
  %750 = vmatprep.subr.mxu0 0.0
  %751 = vmatpush1.msra.mxu0 0.0
  %752 = vmatprep.subr.mxu0 0.0
  %753 = vmatpush1.msra.mxu0 0.0
  %754 = vmatprep.subr.mxu0 0.0
  %755 = vmatpush1.msra.mxu0 0.0
  %756 = vmatprep.subr.mxu0 0.0
  %757 = vmatpush1.msra.mxu0 0.0
  %758 = vmatprep.subr.mxu0 0.0
  %759 = vmatpush1.msra.mxu0 0.0
  %760 = vmatprep.subr.mxu0 0.0
  %761 = vmatpush1.msra.mxu0 0.0
  %762 = vmatprep.subr.mxu0 0.0
  %763 = vmatpush1.msra.mxu0 0.0
  %764 = vmatprep.subr.mxu0 0.0
  %765 = vmatpush1.msra.mxu0 0.0
  %766 = vmatprep.subr.mxu0 0.0
  %767 = vmatpush1.msra.mxu0 0.0
  %768 = vmatprep.subr.mxu0 0.0
  %769 = vmatpush1.msra.mxu0 0.0
  %770 = vmatprep.subr.mxu0 0.0
  %771 = vmatpush1.msra.mxu0 0.0
  %772 = vmatprep.subr.mxu0 0.0
  %773 = vmatpush1.msra.mxu0 0.0
  %774 = vmatprep.subr.mxu0 0.0
  %775 = vmatpush1.msra.mxu0 0.0
  %776 = vmatprep.subr.mxu0 0.0
  %777 = vmatpush1.msra.mxu0 0.0
  %778 = vmatprep.subr.mxu0 0.0
  %779 = vmatpush1.msra.mxu0 0.0
  %780 = vmatprep.subr.mxu0 0.0
  %781 = vmatpush1.msra.mxu0 0.0
  %782 = vmatprep.subr.mxu0 0.0
  %783 = vmatpush1.msra.mxu0 0.0
  %784 = vmatprep.subr.mxu0 0.0
  %785 = vmatpush1.msra.mxu0 0.0
  %786 = vmatprep.subr.mxu0 0.0
  %787 = vmatpush1.msra.mxu0 0.0
  %788 = vmatprep.subr.mxu0 0.0
  %789 = vmatpush1.msra.mxu0 0.0
  %790 = vmatprep.subr.mxu0 0.0
  %791 = vmatpush1.msra.mxu0 0.0
  %792 = vmatprep.subr.mxu0 0.0
  %793 = vmatpush1.msra.mxu0 0.0
  %794 = vmatprep.subr.mxu0 0.0
  %795 = vmatpush1.msra.mxu0 0.0
  %796 = vmatprep.subr.mxu0 0.0
  %797 = vmatpush1.msra.mxu0 0.0
  %798 = vmatprep.mubr.f32.mxu0 0.0
  %799 = vmatmul.mubr.f32.gmra.mrb[0].mxu0 %v588
  %v800 = vpop.f32.mrb[0].mxu0
  %v801 = vadd.f32 0.0, %v800
  %v802 = vpop.f32.mrb[0].mxu0
  %803 = vmatprep.mubr.f32.mxu0 0.0
  %804 = vmatmul.mubr.f32.gmra.mrb[0].mxu0 %v591
  %v805 = vpop.f32.mrb[0].mxu0
  %v806 = vadd.f32 0.0, %v805
  %v807 = vpop.f32.mrb[0].mxu0
  %808 = vmatprep.mubr.f32.mxu0 0.0
  %809 = vmatmul.mubr.f32.gmra.mrb[0].mxu0 %v594
  %v810 = vpop.f32.mrb[0].mxu0
  %v811 = vadd.f32 0.0, %v810
  %v812 = vpop.f32.mrb[0].mxu0
  %813 = vmatprep.mubr.f32.mxu0 0.0
  %814 = vmatmul.mubr.f32.gmra.mrb[0].mxu0 %v597
  %v815 = vpop.f32.mrb[0].mxu0
  %v816 = vadd.f32 0.0, %v815
  %v817 = vpop.f32.mrb[0].mxu0
  %818 = vmatprep.mubr.f32.mxu0 0.0
  %819 = vmatmul.mubr.f32.gmra.mrb[0].mxu0 %v600
  %v820 = vpop.f32.mrb[0].mxu0
  %v821 = vadd.f32 0.0, %v820
  %v822 = vpop.f32.mrb[0].mxu0
  %823 = vmatprep.mubr.f32.mxu0 0.0
  %824 = vmatmul.mubr.f32.gmra.mrb[0].mxu0 %v603
  %v825 = vpop.f32.mrb[0].mxu0
  %v826 = vadd.f32 0.0, %v825
  %v827 = vpop.f32.mrb[0].mxu0
  %828 = vmatprep.mubr.f32.mxu0 0.0
  %829 = vmatmul.mubr.f32.gmra.mrb[0].mxu0 %v606
  %v830 = vpop.f32.mrb[0].mxu0
  %v831 = vadd.f32 0.0, %v830
  %v832 = vpop.f32.mrb[0].mxu0
  %833 = vmatprep.mubr.f32.mxu0 0.0
  %834 = vmatmul.mubr.f32.gmra.mrb[0].mxu0 %v609
  %v835 = vpop.f32.mrb[0].mxu0
  %v836 = vadd.f32 0.0, %v835
  %v837 = vpop.f32.mrb[0].mxu0
  %838 = vmatprep.mubr.f32.mxu0 0.0
  %839 = vmatmul.mubr.f32.gmra.mrb[0].mxu0 %v612
  %v840 = vpop.f32.mrb[0].mxu0
  %v841 = vadd.f32 0.0, %v840
  %v842 = vpop.f32.mrb[0].mxu0
  %843 = vmatprep.mubr.f32.mxu0 0.0
  %844 = vmatmul.mubr.f32.gmra.mrb[0].mxu0 %v615
  %v845 = vpop.f32.mrb[0].mxu0
  %v846 = vadd.f32 0.0, %v845
  %v847 = vpop.f32.mrb[0].mxu0
  %848 = vmatprep.mubr.f32.mxu0 0.0
  %849 = vmatmul.mubr.f32.gmra.mrb[0].mxu0 %v618
  %v850 = vpop.f32.mrb[0].mxu0
  %v851 = vadd.f32 0.0, %v850
  %v852 = vpop.f32.mrb[0].mxu0
  %853 = vmatprep.mubr.f32.mxu0 0.0
  %854 = vmatmul.mubr.f32.gmra.mrb[0].mxu0 %v621
  %v855 = vpop.f32.mrb[0].mxu0
  %v856 = vadd.f32 0.0, %v855
  %v857 = vpop.f32.mrb[0].mxu0
  %858 = vmatprep.mubr.f32.mxu0 0.0
  %859 = vmatmul.mubr.f32.gmra.mrb[0].mxu0 %v624
  %v860 = vpop.f32.mrb[0].mxu0
  %v861 = vadd.f32 0.0, %v860
  %v862 = vpop.f32.mrb[0].mxu0
  %863 = vmatprep.mubr.f32.mxu0 0.0
  %864 = vmatmul.mubr.f32.gmra.mrb[0].mxu0 %v627
  %v865 = vpop.f32.mrb[0].mxu0
  %v866 = vadd.f32 0.0, %v865
  %v867 = vpop.f32.mrb[0].mxu0
  %868 = vmatprep.mubr.f32.mxu0 0.0
  %869 = vmatmul.mubr.f32.gmra.mrb[0].mxu0 %v630
  %v870 = vpop.f32.mrb[0].mxu0
  %v871 = vadd.f32 0.0, %v870
  %v872 = vpop.f32.mrb[0].mxu0
  %873 = vmatprep.mubr.f32.mxu0 0.0
  %874 = vmatmul.mubr.f32.gmra.mrb[0].mxu0 %v633
  %v875 = vpop.f32.mrb[0].mxu0
  %v876 = vadd.f32 0.0, %v875
  %v877 = vpop.f32.mrb[0].mxu0
  %878 = vmatprep.mubr.f32.mxu0 0.0
  %879 = vmatmul.mubr.f32.gmra.mrb[0].mxu0 %v636
  %v880 = vpop.f32.mrb[0].mxu0
  %v881 = vadd.f32 0.0, %v880
  %v882 = vpop.f32.mrb[0].mxu0
  %883 = vmatprep.mubr.f32.mxu0 0.0
  %884 = vmatmul.mubr.f32.gmra.mrb[0].mxu0 %v639
  %v885 = vpop.f32.mrb[0].mxu0
  %v886 = vadd.f32 0.0, %v885
  %v887 = vpop.f32.mrb[0].mxu0
  %888 = vmatprep.mubr.f32.mxu0 0.0
  %889 = vmatmul.mubr.f32.gmra.mrb[0].mxu0 %v642
  %v890 = vpop.f32.mrb[0].mxu0
  %v891 = vadd.f32 0.0, %v890
  %v892 = vpop.f32.mrb[0].mxu0
  %893 = vmatprep.mubr.f32.mxu0 0.0
  %894 = vmatmul.mubr.f32.gmra.mrb[0].mxu0 %v645
  %v895 = vpop.f32.mrb[0].mxu0
  %v896 = vadd.f32 0.0, %v895
  %v897 = vpop.f32.mrb[0].mxu0
  %898 = vmatprep.mubr.f32.mxu0 0.0
  %899 = vmatmul.mubr.f32.gmra.mrb[0].mxu0 %v648
  %v900 = vpop.f32.mrb[0].mxu0
  %v901 = vadd.f32 0.0, %v900
  %v902 = vpop.f32.mrb[0].mxu0
  %903 = vmatprep.mubr.f32.mxu0 0.0
  %904 = vmatmul.mubr.f32.gmra.mrb[0].mxu0 %v651
  %v905 = vpop.f32.mrb[0].mxu0
  %v906 = vadd.f32 0.0, %v905
  %v907 = vpop.f32.mrb[0].mxu0
  %908 = vmatprep.mubr.f32.mxu0 0.0
  %909 = vmatmul.mubr.f32.gmra.mrb[0].mxu0 %v654
  %v910 = vpop.f32.mrb[0].mxu0
  %v911 = vadd.f32 0.0, %v910
  %v912 = vpop.f32.mrb[0].mxu0
  %913 = vmatprep.mubr.f32.mxu0 0.0
  %914 = vmatmul.mubr.f32.gmra.mrb[0].mxu0 %v657
  %v915 = vpop.f32.mrb[0].mxu0
  %v916 = vadd.f32 0.0, %v915
  %v917 = vpop.f32.mrb[0].mxu0
  %918 = vmatprep.mubr.f32.mxu0 0.0
  %919 = vmatmul.mubr.f32.gmra.mrb[0].mxu0 %v660
  %v920 = vpop.f32.mrb[0].mxu0
  %v921 = vadd.f32 0.0, %v920
  %v922 = vpop.f32.mrb[0].mxu0
  %923 = vmatprep.mubr.f32.mxu0 0.0
  %924 = vmatmul.mubr.f32.gmra.mrb[0].mxu0 %v663
  %v925 = vpop.f32.mrb[0].mxu0
  %v926 = vadd.f32 0.0, %v925
  %v927 = vpop.f32.mrb[0].mxu0
  %928 = vmatprep.mubr.f32.mxu0 0.0
  %929 = vmatmul.mubr.f32.gmra.mrb[0].mxu0 %v666
  %v930 = vpop.f32.mrb[0].mxu0
  %v931 = vadd.f32 0.0, %v930
  %v932 = vpop.f32.mrb[0].mxu0
  %933 = vmatprep.mubr.f32.mxu0 0.0
  %934 = vmatmul.mubr.f32.gmra.mrb[0].mxu0 %v669
  %v935 = vpop.f32.mrb[0].mxu0
  %v936 = vadd.f32 0.0, %v935
  %v937 = vpop.f32.mrb[0].mxu0
  %938 = vmatprep.mubr.f32.mxu0 0.0
  %939 = vmatmul.mubr.f32.gmra.mrb[0].mxu0 %v672
  %v940 = vpop.f32.mrb[0].mxu0
  %v941 = vadd.f32 0.0, %v940
  %v942 = vpop.f32.mrb[0].mxu0
  %943 = vmatprep.mubr.f32.mxu0 0.0
  %944 = vmatmul.mubr.f32.gmra.mrb[0].mxu0 %v675
  %v945 = vpop.f32.mrb[0].mxu0
  %v946 = vadd.f32 0.0, %v945
  %v947 = vpop.f32.mrb[0].mxu0
  %948 = vmatprep.mubr.f32.mxu0 0.0
  %949 = vmatmul.mubr.f32.gmra.mrb[0].mxu0 %v678
  %v950 = vpop.f32.mrb[0].mxu0
  %v951 = vadd.f32 0.0, %v950
  %v952 = vpop.f32.mrb[0].mxu0
  %953 = vmatprep.mubr.f32.mxu0 0.0
  %954 = vmatmul.mubr.f32.gmra.mrb[0].mxu0 %v681
  %v955 = vpop.f32.mrb[0].mxu0
  %v956 = vadd.f32 0.0, %v955
  %v957 = vpop.f32.mrb[0].mxu0
  %958 = vmatprep.mubr.f32.mxu0 0.0
  %959 = vmatmul.mubr.f32.gmra.mrb[0].mxu0 %v684
  %v960 = vpop.f32.mrb[0].mxu0
  %v961 = vadd.f32 0.0, %v960
  %v962 = vpop.f32.mrb[0].mxu0
  %963 = vmatprep.mubr.f32.mxu0 0.0
  %964 = vmatmul.mubr.f32.gmra.mrb[0].mxu0 %v687
  %v965 = vpop.f32.mrb[0].mxu0
  %v966 = vadd.f32 0.0, %v965
  %v967 = vpop.f32.mrb[0].mxu0
  %968 = vmatprep.mubr.f32.mxu0 0.0
  %969 = vmatmul.mubr.f32.gmra.mrb[0].mxu0 %v690
  %v970 = vpop.f32.mrb[0].mxu0
  %v971 = vadd.f32 0.0, %v970
  %v972 = vpop.f32.mrb[0].mxu0
  %973 = vmatprep.mubr.f32.mxu0 0.0
  %974 = vmatmul.mubr.f32.gmra.mrb[0].mxu0 %v693
  %v975 = vpop.f32.mrb[0].mxu0
  %v976 = vadd.f32 0.0, %v975
  %v977 = vpop.f32.mrb[0].mxu0
  %978 = vmatprep.mubr.f32.mxu0 0.0
  %979 = vmatmul.mubr.f32.gmra.mrb[0].mxu0 %v696
  %v980 = vpop.f32.mrb[0].mxu0
  %v981 = vadd.f32 0.0, %v980
  %v982 = vpop.f32.mrb[0].mxu0
  %983 = vmatprep.mubr.f32.mxu0 0.0
  %984 = vmatmul.mubr.f32.gmra.mrb[0].mxu0 %v699
  %v985 = vpop.f32.mrb[0].mxu0
  %v986 = vadd.f32 0.0, %v985
  %v987 = vpop.f32.mrb[0].mxu0
  %988 = vmatprep.mubr.f32.mxu0 0.0
  %989 = vmatmul.mubr.f32.gmra.mrb[0].mxu0 %v702
  %v990 = vpop.f32.mrb[0].mxu0
  %v991 = vadd.f32 0.0, %v990
  %v992 = vpop.f32.mrb[0].mxu0
  %993 = vmatprep.mubr.f32.mxu0 0.0
  %994 = vmatmul.mubr.f32.gmra.mrb[0].mxu0 %v705
  %v995 = vpop.f32.mrb[0].mxu0
  %v996 = vadd.f32 0.0, %v995
  %v997 = vpop.f32.mrb[0].mxu0
  %998 = vmatprep.mubr.f32.mxu0 0.0
  %999 = vmatmul.mubr.f32.gmra.mrb[0].mxu0 %v708
  %v1000 = vpop.f32.mrb[0].mxu0
  %v1001 = vadd.f32 0.0, %v1000
  %v1002 = vpop.f32.mrb[0].mxu0
  %1003 = vmatprep.mubr.f32.mxu0 0.0
  %1004 = vmatmul.mubr.f32.gmra.mrb[0].mxu0 %v711
  %v1005 = vpop.f32.mrb[0].mxu0
  %v1006 = vadd.f32 0.0, %v1005
  %v1007 = vpop.f32.mrb[0].mxu0
  %1008 = vmatprep.mubr.f32.mxu0 0.0
  %1009 = vmatmul.mubr.f32.gmra.mrb[0].mxu0 %v714
  %v1010 = vpop.f32.mrb[0].mxu0
  %v1011 = vadd.f32 0.0, %v1010
  %v1012 = vpop.f32.mrb[0].mxu0
  %1013 = vmatprep.mubr.f32.mxu0 0.0
  %1014 = vmatmul.mubr.f32.gmra.mrb[0].mxu0 %v717
  %v1015 = vpop.f32.mrb[0].mxu0
  %v1016 = vadd.f32 0.0, %v1015
  %v1017 = vpop.f32.mrb[0].mxu0
  %1018 = vmatprep.mubr.f32.mxu0 0.0
  %1019 = vmatmul.mubr.f32.gmra.mrb[0].mxu0 %v720
  %v1020 = vpop.f32.mrb[0].mxu0
  %v1021 = vadd.f32 0.0, %v1020
  %v1022 = vpop.f32.mrb[0].mxu0
  %1023 = vmatprep.mubr.f32.mxu0 0.0
  %1024 = vmatmul.mubr.f32.gmra.mrb[0].mxu0 %v723
  %v1025 = vpop.f32.mrb[0].mxu0
  %v1026 = vadd.f32 0.0, %v1025
  %v1027 = vpop.f32.mrb[0].mxu0
  %1028 = vmatprep.mubr.f32.mxu0 0.0
  %1029 = vmatmul.mubr.f32.gmra.mrb[0].mxu0 %v726
  %v1030 = vpop.f32.mrb[0].mxu0
  %v1031 = vadd.f32 0.0, %v1030
  %v1032 = vpop.f32.mrb[0].mxu0
  %1033 = vmatprep.mubr.f32.mxu0 0.0
  %1034 = vmatmul.mubr.f32.gmra.mrb[0].mxu0 %v729
  %v1035 = vpop.f32.mrb[0].mxu0
  %v1036 = vadd.f32 0.0, %v1035
  %v1037 = vpop.f32.mrb[0].mxu0
  %1038 = vmatprep.mubr.f32.mxu0 0.0
  %1039 = vmatmul.mubr.f32.gmra.mrb[0].mxu0 %v732
  %v1040 = vpop.f32.mrb[0].mxu0
  %v1041 = vadd.f32 0.0, %v1040
  %v1042 = vpop.f32.mrb[0].mxu0
  %1043 = vdwg.mxu0
  %v1044 = vmax.f32 %v295, %v801
  %v1045 = vmax.f32 %v300, %v806
  %v1046 = vmax.f32 %v305, %v811
  %v1047 = vmax.f32 %v310, %v816
  %v1048 = vmax.f32 %v315, %v821
  %v1049 = vmax.f32 %v320, %v826
  %v1050 = vmax.f32 %v325, %v831
  %v1051 = vmax.f32 %v330, %v836
  %v1052 = vmax.f32 %v335, %v841
  %v1053 = vmax.f32 %v340, %v846
  %v1054 = vmax.f32 %v345, %v851
  %v1055 = vmax.f32 %v350, %v856
  %v1056 = vmax.f32 %v355, %v861
  %v1057 = vmax.f32 %v360, %v866
  %v1058 = vmax.f32 %v365, %v871
  %v1059 = vmax.f32 %v370, %v876
  %v1060 = vmax.f32 %v375, %v881
  %v1061 = vmax.f32 %v380, %v886
  %v1062 = vmax.f32 %v385, %v891
  %v1063 = vmax.f32 %v390, %v896
  %v1064 = vmax.f32 %v395, %v901
  %v1065 = vmax.f32 %v400, %v906
  %v1066 = vmax.f32 %v405, %v911
  %v1067 = vmax.f32 %v410, %v916
  %v1068 = vmax.f32 %v415, %v921
  %v1069 = vmax.f32 %v420, %v926
  %v1070 = vmax.f32 %v425, %v931
  %v1071 = vmax.f32 %v430, %v936
  %v1072 = vmax.f32 %v435, %v941
  %v1073 = vmax.f32 %v440, %v946
  %v1074 = vmax.f32 %v445, %v951
  %v1075 = vmax.f32 %v450, %v956
  %v1076 = vmax.f32 %v455, %v961
  %v1077 = vmax.f32 %v460, %v966
  %v1078 = vmax.f32 %v465, %v971
  %v1079 = vmax.f32 %v470, %v976
  %v1080 = vmax.f32 %v475, %v981
  %v1081 = vmax.f32 %v480, %v986
  %v1082 = vmax.f32 %v485, %v991
  %v1083 = vmax.f32 %v490, %v996
  %v1084 = vmax.f32 %v495, %v1001
  %v1085 = vmax.f32 %v500, %v1006
  %v1086 = vmax.f32 %v505, %v1011
  %v1087 = vmax.f32 %v510, %v1016
  %v1088 = vmax.f32 %v515, %v1021
  %v1089 = vmax.f32 %v520, %v1026
  %v1090 = vmax.f32 %v525, %v1031
  %v1091 = vmax.f32 %v530, %v1036
  %v1092 = vmax.f32 %v535, %v1041
  %v1093 = vld [vmem:[%s2] sm:$0xff]
  %v1094 = vld [vmem:[%s2 + $0x8] sm:$0xff]
  %v1095 = vld [vmem:[%s2 + $0x10] sm:$0xff]
  %v1096 = vld [vmem:[%s2 + $0x18] sm:$0xff]
  %v1097 = vld [vmem:[%s2 + $0x20] sm:$0xff]
  %v1098 = vld [vmem:[%s2 + $0x28] sm:$0xff]
  %v1099 = vld [vmem:[%s2 + $0x30] sm:$0xff]
  %v1100 = vld [vmem:[%s2 + $0x38] sm:$0xff]
  %v1101 = vld [vmem:[%s2 + $0x40] sm:$0xff]
  %v1102 = vld [vmem:[%s2 + $0x48] sm:$0xff]
  %v1103 = vld [vmem:[%s2 + $0x50] sm:$0xff]
  %v1104 = vld [vmem:[%s2 + $0x58] sm:$0xff]
  %v1105 = vld [vmem:[%s2 + $0x60] sm:$0xff]
  %v1106 = vld [vmem:[%s2 + $0x68] sm:$0xff]
  %v1107 = vld [vmem:[%s2 + $0x70] sm:$0xff]
  %v1108 = vld [vmem:[%s2 + $0x78] sm:$0xff]
  %v1109 = vld [vmem:[%s2 + $0x80] sm:$0xff]
  %v1110 = vld [vmem:[%s2 + $0x88] sm:$0xff]
  %v1111 = vld [vmem:[%s2 + $0x90] sm:$0xff]
  %v1112 = vld [vmem:[%s2 + $0x98] sm:$0xff]
  %v1113 = vld [vmem:[%s2 + $0xa0] sm:$0xff]
  %v1114 = vld [vmem:[%s2 + $0xa8] sm:$0xff]
  %v1115 = vld [vmem:[%s2 + $0xb0] sm:$0xff]
  %v1116 = vld [vmem:[%s2 + $0xb8] sm:$0xff]
  %v1117 = vld [vmem:[%s2 + $0xc0] sm:$0xff]
  %v1118 = vld [vmem:[%s2 + $0xc8] sm:$0xff]
  %v1119 = vld [vmem:[%s2 + $0xd0] sm:$0xff]
  %v1120 = vld [vmem:[%s2 + $0xd8] sm:$0xff]
  %v1121 = vld [vmem:[%s2 + $0xe0] sm:$0xff]
  %v1122 = vld [vmem:[%s2 + $0xe8] sm:$0xff]
  %v1123 = vld [vmem:[%s2 + $0xf0] sm:$0xff]
  %v1124 = vld [vmem:[%s2 + $0xf8] sm:$0xff]
  %v1125 = vld [vmem:[%s2 + $0x100] sm:$0xff]
  %v1126 = vld [vmem:[%s2 + $0x108] sm:$0xff]
  %v1127 = vld [vmem:[%s2 + $0x110] sm:$0xff]
  %v1128 = vld [vmem:[%s2 + $0x118] sm:$0xff]
  %v1129 = vld [vmem:[%s2 + $0x120] sm:$0xff]
  %v1130 = vld [vmem:[%s2 + $0x128] sm:$0xff]
  %v1131 = vld [vmem:[%s2 + $0x130] sm:$0xff]
  %v1132 = vld [vmem:[%s2 + $0x138] sm:$0xff]
  %v1133 = vld [vmem:[%s2 + $0x140] sm:$0xff]
  %v1134 = vld [vmem:[%s2 + $0x148] sm:$0xff]
  %v1135 = vld [vmem:[%s2 + $0x150] sm:$0xff]
  %v1136 = vld [vmem:[%s2 + $0x158] sm:$0xff]
  %v1137 = vld [vmem:[%s2 + $0x160] sm:$0xff]
  %v1138 = vld [vmem:[%s2 + $0x168] sm:$0xff]
  %v1139 = vld [vmem:[%s2 + $0x170] sm:$0xff]
  %v1140 = vld [vmem:[%s2 + $0x178] sm:$0xff]
  %v1141 = vld [vmem:[%s2 + $0x180] sm:$0xff]
  %v1143 = vsel %vm76, %v1093, 0
  %v1146 = vsel %vm76, %v1094, 0
  %v1149 = vsel %vm76, %v1095, 0
  %v1152 = vsel %vm76, %v1096, 0
  %v1155 = vsel %vm76, %v1097, 0
  %v1158 = vsel %vm76, %v1098, 0
  %v1161 = vsel %vm76, %v1099, 0
  %v1164 = vsel %vm76, %v1100, 0
  %v1167 = vsel %vm76, %v1101, 0
  %v1170 = vsel %vm76, %v1102, 0
  %v1173 = vsel %vm76, %v1103, 0
  %v1176 = vsel %vm76, %v1104, 0
  %v1179 = vsel %vm76, %v1105, 0
  %v1182 = vsel %vm76, %v1106, 0
  %v1185 = vsel %vm76, %v1107, 0
  %v1188 = vsel %vm76, %v1108, 0
  %v1191 = vsel %vm76, %v1109, 0
  %v1194 = vsel %vm76, %v1110, 0
  %v1197 = vsel %vm76, %v1111, 0
  %v1200 = vsel %vm76, %v1112, 0
  %v1203 = vsel %vm76, %v1113, 0
  %v1206 = vsel %vm76, %v1114, 0
  %v1209 = vsel %vm76, %v1115, 0
  %v1212 = vsel %vm76, %v1116, 0
  %v1215 = vsel %vm76, %v1117, 0
  %v1218 = vsel %vm76, %v1118, 0
  %v1221 = vsel %vm76, %v1119, 0
  %v1224 = vsel %vm76, %v1120, 0
  %v1227 = vsel %vm76, %v1121, 0
  %v1230 = vsel %vm76, %v1122, 0
  %v1233 = vsel %vm76, %v1123, 0
  %v1236 = vsel %vm76, %v1124, 0
  %v1239 = vsel %vm76, %v1125, 0
  %v1242 = vsel %vm76, %v1126, 0
  %v1245 = vsel %vm76, %v1127, 0
  %v1248 = vsel %vm76, %v1128, 0
  %v1251 = vsel %vm76, %v1129, 0
  %v1254 = vsel %vm76, %v1130, 0
  %v1257 = vsel %vm76, %v1131, 0
  %v1260 = vsel %vm76, %v1132, 0
  %v1263 = vsel %vm76, %v1133, 0
  %v1266 = vsel %vm76, %v1134, 0
  %v1269 = vsel %vm76, %v1135, 0
  %v1272 = vsel %vm76, %v1136, 0
  %v1275 = vsel %vm76, %v1137, 0
  %v1278 = vsel %vm76, %v1138, 0
  %v1281 = vsel %vm76, %v1139, 0
  %v1284 = vsel %vm76, %v1140, 0
  %v1287 = vsel %vm76, %v1141, 0
  %1289 = vmatprep.subr.mxu0 0.0
  %1290 = vmatpush1.msra.mxu0 %v23
  %1291 = vmatprep.subr.mxu0 0.0
  %1292 = vmatpush1.msra.mxu0 %v24
  %1293 = vmatprep.subr.mxu0 0.0
  %1294 = vmatpush1.msra.mxu0 %v25
  %1295 = vmatprep.subr.mxu0 0.0
  %1296 = vmatpush1.msra.mxu0 %v226
  %1297 = vmatprep.subr.mxu0 0.0
  %1298 = vmatpush1.msra.mxu0 0.0
  %1299 = vmatprep.subr.mxu0 0.0
  %1300 = vmatpush1.msra.mxu0 0.0
  %1301 = vmatprep.subr.mxu0 0.0
  %1302 = vmatpush1.msra.mxu0 0.0
  %1303 = vmatprep.subr.mxu0 0.0
  %1304 = vmatpush1.msra.mxu0 0.0
  %1305 = vmatprep.subr.mxu0 0.0
  %1306 = vmatpush1.msra.mxu0 0.0
  %1307 = vmatprep.subr.mxu0 0.0
  %1308 = vmatpush1.msra.mxu0 0.0
  %1309 = vmatprep.subr.mxu0 0.0
  %1310 = vmatpush1.msra.mxu0 0.0
  %1311 = vmatprep.subr.mxu0 0.0
  %1312 = vmatpush1.msra.mxu0 0.0
  %1313 = vmatprep.subr.mxu0 0.0
  %1314 = vmatpush1.msra.mxu0 0.0
  %1315 = vmatprep.subr.mxu0 0.0
  %1316 = vmatpush1.msra.mxu0 0.0
  %1317 = vmatprep.subr.mxu0 0.0
  %1318 = vmatpush1.msra.mxu0 0.0
  %1319 = vmatprep.subr.mxu0 0.0
  %1320 = vmatpush1.msra.mxu0 0.0
  %1321 = vmatprep.subr.mxu0 0.0
  %1322 = vmatpush1.msra.mxu0 0.0
  %1323 = vmatprep.subr.mxu0 0.0
  %1324 = vmatpush1.msra.mxu0 0.0
  %1325 = vmatprep.subr.mxu0 0.0
  %1326 = vmatpush1.msra.mxu0 0.0
  %1327 = vmatprep.subr.mxu0 0.0
  %1328 = vmatpush1.msra.mxu0 0.0
  %1329 = vmatprep.subr.mxu0 0.0
  %1330 = vmatpush1.msra.mxu0 0.0
  %1331 = vmatprep.subr.mxu0 0.0
  %1332 = vmatpush1.msra.mxu0 0.0
  %1333 = vmatprep.subr.mxu0 0.0
  %1334 = vmatpush1.msra.mxu0 0.0
  %1335 = vmatprep.subr.mxu0 0.0
  %1336 = vmatpush1.msra.mxu0 0.0
  %1337 = vmatprep.subr.mxu0 0.0
  %1338 = vmatpush1.msra.mxu0 0.0
  %1339 = vmatprep.subr.mxu0 0.0
  %1340 = vmatpush1.msra.mxu0 0.0
  %1341 = vmatprep.subr.mxu0 0.0
  %1342 = vmatpush1.msra.mxu0 0.0
  %1343 = vmatprep.subr.mxu0 0.0
  %1344 = vmatpush1.msra.mxu0 0.0
  %1345 = vmatprep.subr.mxu0 0.0
  %1346 = vmatpush1.msra.mxu0 0.0
  %1347 = vmatprep.subr.mxu0 0.0
  %1348 = vmatpush1.msra.mxu0 0.0
  %1349 = vmatprep.subr.mxu0 0.0
  %1350 = vmatpush1.msra.mxu0 0.0
  %1351 = vmatprep.subr.mxu0 0.0
  %1352 = vmatpush1.msra.mxu0 0.0
  %1353 = vmatprep.mubr.f32.mxu0 0.0
  %1354 = vmatmul.mubr.f32.gmra.mrb[0].mxu0 %v1143
  %v1355 = vpop.f32.mrb[0].mxu0
  %v1356 = vadd.f32 0.0, %v1355
  %v1357 = vpop.f32.mrb[0].mxu0
  %1358 = vmatprep.mubr.f32.mxu0 0.0
  %1359 = vmatmul.mubr.f32.gmra.mrb[0].mxu0 %v1146
  %v1360 = vpop.f32.mrb[0].mxu0
  %v1361 = vadd.f32 0.0, %v1360
  %v1362 = vpop.f32.mrb[0].mxu0
  %1363 = vmatprep.mubr.f32.mxu0 0.0
  %1364 = vmatmul.mubr.f32.gmra.mrb[0].mxu0 %v1149
  %v1365 = vpop.f32.mrb[0].mxu0
  %v1366 = vadd.f32 0.0, %v1365
  %v1367 = vpop.f32.mrb[0].mxu0
  %1368 = vmatprep.mubr.f32.mxu0 0.0
  %1369 = vmatmul.mubr.f32.gmra.mrb[0].mxu0 %v1152
  %v1370 = vpop.f32.mrb[0].mxu0
  %v1371 = vadd.f32 0.0, %v1370
  %v1372 = vpop.f32.mrb[0].mxu0
  %1373 = vmatprep.mubr.f32.mxu0 0.0
  %1374 = vmatmul.mubr.f32.gmra.mrb[0].mxu0 %v1155
  %v1375 = vpop.f32.mrb[0].mxu0
  %v1376 = vadd.f32 0.0, %v1375
  %v1377 = vpop.f32.mrb[0].mxu0
  %1378 = vmatprep.mubr.f32.mxu0 0.0
  %1379 = vmatmul.mubr.f32.gmra.mrb[0].mxu0 %v1158
  %v1380 = vpop.f32.mrb[0].mxu0
  %v1381 = vadd.f32 0.0, %v1380
  %v1382 = vpop.f32.mrb[0].mxu0
  %1383 = vmatprep.mubr.f32.mxu0 0.0
  %1384 = vmatmul.mubr.f32.gmra.mrb[0].mxu0 %v1161
  %v1385 = vpop.f32.mrb[0].mxu0
  %v1386 = vadd.f32 0.0, %v1385
  %v1387 = vpop.f32.mrb[0].mxu0
  %1388 = vmatprep.mubr.f32.mxu0 0.0
  %1389 = vmatmul.mubr.f32.gmra.mrb[0].mxu0 %v1164
  %v1390 = vpop.f32.mrb[0].mxu0
  %v1391 = vadd.f32 0.0, %v1390
  %v1392 = vpop.f32.mrb[0].mxu0
  %1393 = vmatprep.mubr.f32.mxu0 0.0
  %1394 = vmatmul.mubr.f32.gmra.mrb[0].mxu0 %v1167
  %v1395 = vpop.f32.mrb[0].mxu0
  %v1396 = vadd.f32 0.0, %v1395
  %v1397 = vpop.f32.mrb[0].mxu0
  %1398 = vmatprep.mubr.f32.mxu0 0.0
  %1399 = vmatmul.mubr.f32.gmra.mrb[0].mxu0 %v1170
  %v1400 = vpop.f32.mrb[0].mxu0
  %v1401 = vadd.f32 0.0, %v1400
  %v1402 = vpop.f32.mrb[0].mxu0
  %1403 = vmatprep.mubr.f32.mxu0 0.0
  %1404 = vmatmul.mubr.f32.gmra.mrb[0].mxu0 %v1173
  %v1405 = vpop.f32.mrb[0].mxu0
  %v1406 = vadd.f32 0.0, %v1405
  %v1407 = vpop.f32.mrb[0].mxu0
  %1408 = vmatprep.mubr.f32.mxu0 0.0
  %1409 = vmatmul.mubr.f32.gmra.mrb[0].mxu0 %v1176
  %v1410 = vpop.f32.mrb[0].mxu0
  %v1411 = vadd.f32 0.0, %v1410
  %v1412 = vpop.f32.mrb[0].mxu0
  %1413 = vmatprep.mubr.f32.mxu0 0.0
  %1414 = vmatmul.mubr.f32.gmra.mrb[0].mxu0 %v1179
  %v1415 = vpop.f32.mrb[0].mxu0
  %v1416 = vadd.f32 0.0, %v1415
  %v1417 = vpop.f32.mrb[0].mxu0
  %1418 = vmatprep.mubr.f32.mxu0 0.0
  %1419 = vmatmul.mubr.f32.gmra.mrb[0].mxu0 %v1182
  %v1420 = vpop.f32.mrb[0].mxu0
  %v1421 = vadd.f32 0.0, %v1420
  %v1422 = vpop.f32.mrb[0].mxu0
  %1423 = vmatprep.mubr.f32.mxu0 0.0
  %1424 = vmatmul.mubr.f32.gmra.mrb[0].mxu0 %v1185
  %v1425 = vpop.f32.mrb[0].mxu0
  %v1426 = vadd.f32 0.0, %v1425
  %v1427 = vpop.f32.mrb[0].mxu0
  %1428 = vmatprep.mubr.f32.mxu0 0.0
  %1429 = vmatmul.mubr.f32.gmra.mrb[0].mxu0 %v1188
  %v1430 = vpop.f32.mrb[0].mxu0
  %v1431 = vadd.f32 0.0, %v1430
  %v1432 = vpop.f32.mrb[0].mxu0
  %1433 = vmatprep.mubr.f32.mxu0 0.0
  %1434 = vmatmul.mubr.f32.gmra.mrb[0].mxu0 %v1191
  %v1435 = vpop.f32.mrb[0].mxu0
  %v1436 = vadd.f32 0.0, %v1435
  %v1437 = vpop.f32.mrb[0].mxu0
  %1438 = vmatprep.mubr.f32.mxu0 0.0
  %1439 = vmatmul.mubr.f32.gmra.mrb[0].mxu0 %v1194
  %v1440 = vpop.f32.mrb[0].mxu0
  %v1441 = vadd.f32 0.0, %v1440
  %v1442 = vpop.f32.mrb[0].mxu0
  %1443 = vmatprep.mubr.f32.mxu0 0.0
  %1444 = vmatmul.mubr.f32.gmra.mrb[0].mxu0 %v1197
  %v1445 = vpop.f32.mrb[0].mxu0
  %v1446 = vadd.f32 0.0, %v1445
  %v1447 = vpop.f32.mrb[0].mxu0
  %1448 = vmatprep.mubr.f32.mxu0 0.0
  %1449 = vmatmul.mubr.f32.gmra.mrb[0].mxu0 %v1200
  %v1450 = vpop.f32.mrb[0].mxu0
  %v1451 = vadd.f32 0.0, %v1450
  %v1452 = vpop.f32.mrb[0].mxu0
  %1453 = vmatprep.mubr.f32.mxu0 0.0
  %1454 = vmatmul.mubr.f32.gmra.mrb[0].mxu0 %v1203
  %v1455 = vpop.f32.mrb[0].mxu0
  %v1456 = vadd.f32 0.0, %v1455
  %v1457 = vpop.f32.mrb[0].mxu0
  %1458 = vmatprep.mubr.f32.mxu0 0.0
  %1459 = vmatmul.mubr.f32.gmra.mrb[0].mxu0 %v1206
  %v1460 = vpop.f32.mrb[0].mxu0
  %v1461 = vadd.f32 0.0, %v1460
  %v1462 = vpop.f32.mrb[0].mxu0
  %1463 = vmatprep.mubr.f32.mxu0 0.0
  %1464 = vmatmul.mubr.f32.gmra.mrb[0].mxu0 %v1209
  %v1465 = vpop.f32.mrb[0].mxu0
  %v1466 = vadd.f32 0.0, %v1465
  %v1467 = vpop.f32.mrb[0].mxu0
  %1468 = vmatprep.mubr.f32.mxu0 0.0
  %1469 = vmatmul.mubr.f32.gmra.mrb[0].mxu0 %v1212
  %v1470 = vpop.f32.mrb[0].mxu0
  %v1471 = vadd.f32 0.0, %v1470
  %v1472 = vpop.f32.mrb[0].mxu0
  %1473 = vmatprep.mubr.f32.mxu0 0.0
  %1474 = vmatmul.mubr.f32.gmra.mrb[0].mxu0 %v1215
  %v1475 = vpop.f32.mrb[0].mxu0
  %v1476 = vadd.f32 0.0, %v1475
  %v1477 = vpop.f32.mrb[0].mxu0
  %1478 = vmatprep.mubr.f32.mxu0 0.0
  %1479 = vmatmul.mubr.f32.gmra.mrb[0].mxu0 %v1218
  %v1480 = vpop.f32.mrb[0].mxu0
  %v1481 = vadd.f32 0.0, %v1480
  %v1482 = vpop.f32.mrb[0].mxu0
  %1483 = vmatprep.mubr.f32.mxu0 0.0
  %1484 = vmatmul.mubr.f32.gmra.mrb[0].mxu0 %v1221
  %v1485 = vpop.f32.mrb[0].mxu0
  %v1486 = vadd.f32 0.0, %v1485
  %v1487 = vpop.f32.mrb[0].mxu0
  %1488 = vmatprep.mubr.f32.mxu0 0.0
  %1489 = vmatmul.mubr.f32.gmra.mrb[0].mxu0 %v1224
  %v1490 = vpop.f32.mrb[0].mxu0
  %v1491 = vadd.f32 0.0, %v1490
  %v1492 = vpop.f32.mrb[0].mxu0
  %1493 = vmatprep.mubr.f32.mxu0 0.0
  %1494 = vmatmul.mubr.f32.gmra.mrb[0].mxu0 %v1227
  %v1495 = vpop.f32.mrb[0].mxu0
  %v1496 = vadd.f32 0.0, %v1495
  %v1497 = vpop.f32.mrb[0].mxu0
  %1498 = vmatprep.mubr.f32.mxu0 0.0
  %1499 = vmatmul.mubr.f32.gmra.mrb[0].mxu0 %v1230
  %v1500 = vpop.f32.mrb[0].mxu0
  %v1501 = vadd.f32 0.0, %v1500
  %v1502 = vpop.f32.mrb[0].mxu0
  %1503 = vmatprep.mubr.f32.mxu0 0.0
  %1504 = vmatmul.mubr.f32.gmra.mrb[0].mxu0 %v1233
  %v1505 = vpop.f32.mrb[0].mxu0
  %v1506 = vadd.f32 0.0, %v1505
  %v1507 = vpop.f32.mrb[0].mxu0
  %1508 = vmatprep.mubr.f32.mxu0 0.0
  %1509 = vmatmul.mubr.f32.gmra.mrb[0].mxu0 %v1236
  %v1510 = vpop.f32.mrb[0].mxu0
  %v1511 = vadd.f32 0.0, %v1510
  %v1512 = vpop.f32.mrb[0].mxu0
  %1513 = vmatprep.mubr.f32.mxu0 0.0
  %1514 = vmatmul.mubr.f32.gmra.mrb[0].mxu0 %v1239
  %v1515 = vpop.f32.mrb[0].mxu0
  %v1516 = vadd.f32 0.0, %v1515
  %v1517 = vpop.f32.mrb[0].mxu0
  %1518 = vmatprep.mubr.f32.mxu0 0.0
  %1519 = vmatmul.mubr.f32.gmra.mrb[0].mxu0 %v1242
  %v1520 = vpop.f32.mrb[0].mxu0
  %v1521 = vadd.f32 0.0, %v1520
  %v1522 = vpop.f32.mrb[0].mxu0
  %1523 = vmatprep.mubr.f32.mxu0 0.0
  %1524 = vmatmul.mubr.f32.gmra.mrb[0].mxu0 %v1245
  %v1525 = vpop.f32.mrb[0].mxu0
  %v1526 = vadd.f32 0.0, %v1525
  %v1527 = vpop.f32.mrb[0].mxu0
  %1528 = vmatprep.mubr.f32.mxu0 0.0
  %1529 = vmatmul.mubr.f32.gmra.mrb[0].mxu0 %v1248
  %v1530 = vpop.f32.mrb[0].mxu0
  %v1531 = vadd.f32 0.0, %v1530
  %v1532 = vpop.f32.mrb[0].mxu0
  %1533 = vmatprep.mubr.f32.mxu0 0.0
  %1534 = vmatmul.mubr.f32.gmra.mrb[0].mxu0 %v1251
  %v1535 = vpop.f32.mrb[0].mxu0
  %v1536 = vadd.f32 0.0, %v1535
  %v1537 = vpop.f32.mrb[0].mxu0
  %1538 = vmatprep.mubr.f32.mxu0 0.0
  %1539 = vmatmul.mubr.f32.gmra.mrb[0].mxu0 %v1254
  %v1540 = vpop.f32.mrb[0].mxu0
  %v1541 = vadd.f32 0.0, %v1540
  %v1542 = vpop.f32.mrb[0].mxu0
  %1543 = vmatprep.mubr.f32.mxu0 0.0
  %1544 = vmatmul.mubr.f32.gmra.mrb[0].mxu0 %v1257
  %v1545 = vpop.f32.mrb[0].mxu0
  %v1546 = vadd.f32 0.0, %v1545
  %v1547 = vpop.f32.mrb[0].mxu0
  %1548 = vmatprep.mubr.f32.mxu0 0.0
  %1549 = vmatmul.mubr.f32.gmra.mrb[0].mxu0 %v1260
  %v1550 = vpop.f32.mrb[0].mxu0
  %v1551 = vadd.f32 0.0, %v1550
  %v1552 = vpop.f32.mrb[0].mxu0
  %1553 = vmatprep.mubr.f32.mxu0 0.0
  %1554 = vmatmul.mubr.f32.gmra.mrb[0].mxu0 %v1263
  %v1555 = vpop.f32.mrb[0].mxu0
  %v1556 = vadd.f32 0.0, %v1555
  %v1557 = vpop.f32.mrb[0].mxu0
  %1558 = vmatprep.mubr.f32.mxu0 0.0
  %1559 = vmatmul.mubr.f32.gmra.mrb[0].mxu0 %v1266
  %v1560 = vpop.f32.mrb[0].mxu0
  %v1561 = vadd.f32 0.0, %v1560
  %v1562 = vpop.f32.mrb[0].mxu0
  %1563 = vmatprep.mubr.f32.mxu0 0.0
  %1564 = vmatmul.mubr.f32.gmra.mrb[0].mxu0 %v1269
  %v1565 = vpop.f32.mrb[0].mxu0
  %v1566 = vadd.f32 0.0, %v1565
  %v1567 = vpop.f32.mrb[0].mxu0
  %1568 = vmatprep.mubr.f32.mxu0 0.0
  %1569 = vmatmul.mubr.f32.gmra.mrb[0].mxu0 %v1272
  %v1570 = vpop.f32.mrb[0].mxu0
  %v1571 = vadd.f32 0.0, %v1570
  %v1572 = vpop.f32.mrb[0].mxu0
  %1573 = vmatprep.mubr.f32.mxu0 0.0
  %1574 = vmatmul.mubr.f32.gmra.mrb[0].mxu0 %v1275
  %v1575 = vpop.f32.mrb[0].mxu0
  %v1576 = vadd.f32 0.0, %v1575
  %v1577 = vpop.f32.mrb[0].mxu0
  %1578 = vmatprep.mubr.f32.mxu0 0.0
  %1579 = vmatmul.mubr.f32.gmra.mrb[0].mxu0 %v1278
  %v1580 = vpop.f32.mrb[0].mxu0
  %v1581 = vadd.f32 0.0, %v1580
  %v1582 = vpop.f32.mrb[0].mxu0
  %1583 = vmatprep.mubr.f32.mxu0 0.0
  %1584 = vmatmul.mubr.f32.gmra.mrb[0].mxu0 %v1281
  %v1585 = vpop.f32.mrb[0].mxu0
  %v1586 = vadd.f32 0.0, %v1585
  %v1587 = vpop.f32.mrb[0].mxu0
  %1588 = vmatprep.mubr.f32.mxu0 0.0
  %1589 = vmatmul.mubr.f32.gmra.mrb[0].mxu0 %v1284
  %v1590 = vpop.f32.mrb[0].mxu0
  %v1591 = vadd.f32 0.0, %v1590
  %v1592 = vpop.f32.mrb[0].mxu0
  %1593 = vmatprep.mubr.f32.mxu0 0.0
  %1594 = vmatmul.mubr.f32.gmra.mrb[0].mxu0 %v1287
  %v1595 = vpop.f32.mrb[0].mxu0
  %v1596 = vadd.f32 0.0, %v1595
  %v1597 = vpop.f32.mrb[0].mxu0
  %1598 = vdwg.mxu0
  %v1599 = vmax.f32 %v1044, %v1356
  %v1600 = vmax.f32 %v1045, %v1361
  %v1601 = vmax.f32 %v1046, %v1366
  %v1602 = vmax.f32 %v1047, %v1371
  %v1603 = vmax.f32 %v1048, %v1376
  %v1604 = vmax.f32 %v1049, %v1381
  %v1605 = vmax.f32 %v1050, %v1386
  %v1606 = vmax.f32 %v1051, %v1391
  %v1607 = vmax.f32 %v1052, %v1396
  %v1608 = vmax.f32 %v1053, %v1401
  %v1609 = vmax.f32 %v1054, %v1406
  %v1610 = vmax.f32 %v1055, %v1411
  %v1611 = vmax.f32 %v1056, %v1416
  %v1612 = vmax.f32 %v1057, %v1421
  %v1613 = vmax.f32 %v1058, %v1426
  %v1614 = vmax.f32 %v1059, %v1431
  %v1615 = vmax.f32 %v1060, %v1436
  %v1616 = vmax.f32 %v1061, %v1441
  %v1617 = vmax.f32 %v1062, %v1446
  %v1618 = vmax.f32 %v1063, %v1451
  %v1619 = vmax.f32 %v1064, %v1456
  %v1620 = vmax.f32 %v1065, %v1461
  %v1621 = vmax.f32 %v1066, %v1466
  %v1622 = vmax.f32 %v1067, %v1471
  %v1623 = vmax.f32 %v1068, %v1476
  %v1624 = vmax.f32 %v1069, %v1481
  %v1625 = vmax.f32 %v1070, %v1486
  %v1626 = vmax.f32 %v1071, %v1491
  %v1627 = vmax.f32 %v1072, %v1496
  %v1628 = vmax.f32 %v1073, %v1501
  %v1629 = vmax.f32 %v1074, %v1506
  %v1630 = vmax.f32 %v1075, %v1511
  %v1631 = vmax.f32 %v1076, %v1516
  %v1632 = vmax.f32 %v1077, %v1521
  %v1633 = vmax.f32 %v1078, %v1526
  %v1634 = vmax.f32 %v1079, %v1531
  %v1635 = vmax.f32 %v1080, %v1536
  %v1636 = vmax.f32 %v1081, %v1541
  %v1637 = vmax.f32 %v1082, %v1546
  %v1638 = vmax.f32 %v1083, %v1551
  %v1639 = vmax.f32 %v1084, %v1556
  %v1640 = vmax.f32 %v1085, %v1561
  %v1641 = vmax.f32 %v1086, %v1566
  %v1642 = vmax.f32 %v1087, %v1571
  %v1643 = vmax.f32 %v1088, %v1576
  %v1644 = vmax.f32 %v1089, %v1581
  %v1645 = vmax.f32 %v1090, %v1586
  %v1646 = vmax.f32 %v1091, %v1591
  %v1647 = vmax.f32 %v1092, %v1596
  %v1648 = vld [vmem:[%s3] sm:$0xff]
  %v1649 = vld [vmem:[%s3 + $0x8] sm:$0xff]
  %v1650 = vld [vmem:[%s3 + $0x10] sm:$0xff]
  %v1651 = vld [vmem:[%s3 + $0x18] sm:$0xff]
  %v1652 = vld [vmem:[%s3 + $0x20] sm:$0xff]
  %v1653 = vld [vmem:[%s3 + $0x28] sm:$0xff]
  %v1654 = vld [vmem:[%s3 + $0x30] sm:$0xff]
  %v1655 = vld [vmem:[%s3 + $0x38] sm:$0xff]
  %v1656 = vld [vmem:[%s3 + $0x40] sm:$0xff]
  %v1657 = vld [vmem:[%s3 + $0x48] sm:$0xff]
  %v1658 = vld [vmem:[%s3 + $0x50] sm:$0xff]
  %v1659 = vld [vmem:[%s3 + $0x58] sm:$0xff]
  %v1660 = vld [vmem:[%s3 + $0x60] sm:$0xff]
  %v1661 = vld [vmem:[%s3 + $0x68] sm:$0xff]
  %v1662 = vld [vmem:[%s3 + $0x70] sm:$0xff]
  %v1663 = vld [vmem:[%s3 + $0x78] sm:$0xff]
  %v1664 = vld [vmem:[%s3 + $0x80] sm:$0xff]
  %v1665 = vld [vmem:[%s3 + $0x88] sm:$0xff]
  %v1666 = vld [vmem:[%s3 + $0x90] sm:$0xff]
  %v1667 = vld [vmem:[%s3 + $0x98] sm:$0xff]
  %v1668 = vld [vmem:[%s3 + $0xa0] sm:$0xff]
  %v1669 = vld [vmem:[%s3 + $0xa8] sm:$0xff]
  %v1670 = vld [vmem:[%s3 + $0xb0] sm:$0xff]
  %v1671 = vld [vmem:[%s3 + $0xb8] sm:$0xff]
  %v1672 = vld [vmem:[%s3 + $0xc0] sm:$0xff]
  %v1673 = vld [vmem:[%s3 + $0xc8] sm:$0xff]
  %v1674 = vld [vmem:[%s3 + $0xd0] sm:$0xff]
  %v1675 = vld [vmem:[%s3 + $0xd8] sm:$0xff]
  %v1676 = vld [vmem:[%s3 + $0xe0] sm:$0xff]
  %v1677 = vld [vmem:[%s3 + $0xe8] sm:$0xff]
  %v1678 = vld [vmem:[%s3 + $0xf0] sm:$0xff]
  %v1679 = vld [vmem:[%s3 + $0xf8] sm:$0xff]
  %v1680 = vld [vmem:[%s3 + $0x100] sm:$0xff]
  %v1681 = vld [vmem:[%s3 + $0x108] sm:$0xff]
  %v1682 = vld [vmem:[%s3 + $0x110] sm:$0xff]
  %v1683 = vld [vmem:[%s3 + $0x118] sm:$0xff]
  %v1684 = vld [vmem:[%s3 + $0x120] sm:$0xff]
  %v1685 = vld [vmem:[%s3 + $0x128] sm:$0xff]
  %v1686 = vld [vmem:[%s3 + $0x130] sm:$0xff]
  %v1687 = vld [vmem:[%s3 + $0x138] sm:$0xff]
  %v1688 = vld [vmem:[%s3 + $0x140] sm:$0xff]
  %v1689 = vld [vmem:[%s3 + $0x148] sm:$0xff]
  %v1690 = vld [vmem:[%s3 + $0x150] sm:$0xff]
  %v1691 = vld [vmem:[%s3 + $0x158] sm:$0xff]
  %v1692 = vld [vmem:[%s3 + $0x160] sm:$0xff]
  %v1693 = vld [vmem:[%s3 + $0x168] sm:$0xff]
  %v1694 = vld [vmem:[%s3 + $0x170] sm:$0xff]
  %v1695 = vld [vmem:[%s3 + $0x178] sm:$0xff]
  %v1696 = vld [vmem:[%s3 + $0x180] sm:$0xff]
  %v1698 = vsel %vm76, %v1648, 0
  %v1701 = vsel %vm76, %v1649, 0
  %v1704 = vsel %vm76, %v1650, 0
  %v1707 = vsel %vm76, %v1651, 0
  %v1710 = vsel %vm76, %v1652, 0
  %v1713 = vsel %vm76, %v1653, 0
  %v1716 = vsel %vm76, %v1654, 0
  %v1719 = vsel %vm76, %v1655, 0
  %v1722 = vsel %vm76, %v1656, 0
  %v1725 = vsel %vm76, %v1657, 0
  %v1728 = vsel %vm76, %v1658, 0
  %v1731 = vsel %vm76, %v1659, 0
  %v1734 = vsel %vm76, %v1660, 0
  %v1737 = vsel %vm76, %v1661, 0
  %v1740 = vsel %vm76, %v1662, 0
  %v1743 = vsel %vm76, %v1663, 0
  %v1746 = vsel %vm76, %v1664, 0
  %v1749 = vsel %vm76, %v1665, 0
  %v1752 = vsel %vm76, %v1666, 0
  %v1755 = vsel %vm76, %v1667, 0
  %v1758 = vsel %vm76, %v1668, 0
  %v1761 = vsel %vm76, %v1669, 0
  %v1764 = vsel %vm76, %v1670, 0
  %v1767 = vsel %vm76, %v1671, 0
  %v1770 = vsel %vm76, %v1672, 0
  %v1773 = vsel %vm76, %v1673, 0
  %v1776 = vsel %vm76, %v1674, 0
  %v1779 = vsel %vm76, %v1675, 0
  %v1782 = vsel %vm76, %v1676, 0
  %v1785 = vsel %vm76, %v1677, 0
  %v1788 = vsel %vm76, %v1678, 0
  %v1791 = vsel %vm76, %v1679, 0
  %v1794 = vsel %vm76, %v1680, 0
  %v1797 = vsel %vm76, %v1681, 0
  %v1800 = vsel %vm76, %v1682, 0
  %v1803 = vsel %vm76, %v1683, 0
  %v1806 = vsel %vm76, %v1684, 0
  %v1809 = vsel %vm76, %v1685, 0
  %v1812 = vsel %vm76, %v1686, 0
  %v1815 = vsel %vm76, %v1687, 0
  %v1818 = vsel %vm76, %v1688, 0
  %v1821 = vsel %vm76, %v1689, 0
  %v1824 = vsel %vm76, %v1690, 0
  %v1827 = vsel %vm76, %v1691, 0
  %v1830 = vsel %vm76, %v1692, 0
  %v1833 = vsel %vm76, %v1693, 0
  %v1836 = vsel %vm76, %v1694, 0
  %v1839 = vsel %vm76, %v1695, 0
  %v1842 = vsel %vm76, %v1696, 0
  %1844 = vmatprep.subr.mxu0 0.0
  %1845 = vmatpush1.msra.mxu0 %v23
  %1846 = vmatprep.subr.mxu0 0.0
  %1847 = vmatpush1.msra.mxu0 %v24
  %1848 = vmatprep.subr.mxu0 0.0
  %1849 = vmatpush1.msra.mxu0 %v25
  %1850 = vmatprep.subr.mxu0 0.0
  %1851 = vmatpush1.msra.mxu0 %v226
  %1852 = vmatprep.subr.mxu0 0.0
  %1853 = vmatpush1.msra.mxu0 0.0
  %1854 = vmatprep.subr.mxu0 0.0
  %1855 = vmatpush1.msra.mxu0 0.0
  %1856 = vmatprep.subr.mxu0 0.0
  %1857 = vmatpush1.msra.mxu0 0.0
  %1858 = vmatprep.subr.mxu0 0.0
  %1859 = vmatpush1.msra.mxu0 0.0
  %1860 = vmatprep.subr.mxu0 0.0
  %1861 = vmatpush1.msra.mxu0 0.0
  %1862 = vmatprep.subr.mxu0 0.0
  %1863 = vmatpush1.msra.mxu0 0.0
  %1864 = vmatprep.subr.mxu0 0.0
  %1865 = vmatpush1.msra.mxu0 0.0
  %1866 = vmatprep.subr.mxu0 0.0
  %1867 = vmatpush1.msra.mxu0 0.0
  %1868 = vmatprep.subr.mxu0 0.0
  %1869 = vmatpush1.msra.mxu0 0.0
  %1870 = vmatprep.subr.mxu0 0.0
  %1871 = vmatpush1.msra.mxu0 0.0
  %1872 = vmatprep.subr.mxu0 0.0
  %1873 = vmatpush1.msra.mxu0 0.0
  %1874 = vmatprep.subr.mxu0 0.0
  %1875 = vmatpush1.msra.mxu0 0.0
  %1876 = vmatprep.subr.mxu0 0.0
  %1877 = vmatpush1.msra.mxu0 0.0
  %1878 = vmatprep.subr.mxu0 0.0
  %1879 = vmatpush1.msra.mxu0 0.0
  %1880 = vmatprep.subr.mxu0 0.0
  %1881 = vmatpush1.msra.mxu0 0.0
  %1882 = vmatprep.subr.mxu0 0.0
  %1883 = vmatpush1.msra.mxu0 0.0
  %1884 = vmatprep.subr.mxu0 0.0
  %1885 = vmatpush1.msra.mxu0 0.0
  %1886 = vmatprep.subr.mxu0 0.0
  %1887 = vmatpush1.msra.mxu0 0.0
  %1888 = vmatprep.subr.mxu0 0.0
  %1889 = vmatpush1.msra.mxu0 0.0
  %1890 = vmatprep.subr.mxu0 0.0
  %1891 = vmatpush1.msra.mxu0 0.0
  %1892 = vmatprep.subr.mxu0 0.0
  %1893 = vmatpush1.msra.mxu0 0.0
  %1894 = vmatprep.subr.mxu0 0.0
  %1895 = vmatpush1.msra.mxu0 0.0
  %1896 = vmatprep.subr.mxu0 0.0
  %1897 = vmatpush1.msra.mxu0 0.0
  %1898 = vmatprep.subr.mxu0 0.0
  %1899 = vmatpush1.msra.mxu0 0.0
  %1900 = vmatprep.subr.mxu0 0.0
  %1901 = vmatpush1.msra.mxu0 0.0
  %1902 = vmatprep.subr.mxu0 0.0
  %1903 = vmatpush1.msra.mxu0 0.0
  %1904 = vmatprep.subr.mxu0 0.0
  %1905 = vmatpush1.msra.mxu0 0.0
  %1906 = vmatprep.subr.mxu0 0.0
  %1907 = vmatpush1.msra.mxu0 0.0
  %1908 = vmatprep.mubr.f32.mxu0 0.0
  %1909 = vmatmul.mubr.f32.gmra.mrb[0].mxu0 %v1698
  %v1910 = vpop.f32.mrb[0].mxu0
  %v1911 = vadd.f32 0.0, %v1910
  %v1912 = vpop.f32.mrb[0].mxu0
  %1913 = vmatprep.mubr.f32.mxu0 0.0
  %1914 = vmatmul.mubr.f32.gmra.mrb[0].mxu0 %v1701
  %v1915 = vpop.f32.mrb[0].mxu0
  %v1916 = vadd.f32 0.0, %v1915
  %v1917 = vpop.f32.mrb[0].mxu0
  %1918 = vmatprep.mubr.f32.mxu0 0.0
  %1919 = vmatmul.mubr.f32.gmra.mrb[0].mxu0 %v1704
  %v1920 = vpop.f32.mrb[0].mxu0
  %v1921 = vadd.f32 0.0, %v1920
  %v1922 = vpop.f32.mrb[0].mxu0
  %1923 = vmatprep.mubr.f32.mxu0 0.0
  %1924 = vmatmul.mubr.f32.gmra.mrb[0].mxu0 %v1707
  %v1925 = vpop.f32.mrb[0].mxu0
  %v1926 = vadd.f32 0.0, %v1925
  %v1927 = vpop.f32.mrb[0].mxu0
  %1928 = vmatprep.mubr.f32.mxu0 0.0
  %1929 = vmatmul.mubr.f32.gmra.mrb[0].mxu0 %v1710
  %v1930 = vpop.f32.mrb[0].mxu0
  %v1931 = vadd.f32 0.0, %v1930
  %v1932 = vpop.f32.mrb[0].mxu0
  %1933 = vmatprep.mubr.f32.mxu0 0.0
  %1934 = vmatmul.mubr.f32.gmra.mrb[0].mxu0 %v1713
  %v1935 = vpop.f32.mrb[0].mxu0
  %v1936 = vadd.f32 0.0, %v1935
  %v1937 = vpop.f32.mrb[0].mxu0
  %1938 = vmatprep.mubr.f32.mxu0 0.0
  %1939 = vmatmul.mubr.f32.gmra.mrb[0].mxu0 %v1716
  %v1940 = vpop.f32.mrb[0].mxu0
  %v1941 = vadd.f32 0.0, %v1940
  %v1942 = vpop.f32.mrb[0].mxu0
  %1943 = vmatprep.mubr.f32.mxu0 0.0
  %1944 = vmatmul.mubr.f32.gmra.mrb[0].mxu0 %v1719
  %v1945 = vpop.f32.mrb[0].mxu0
  %v1946 = vadd.f32 0.0, %v1945
  %v1947 = vpop.f32.mrb[0].mxu0
  %1948 = vmatprep.mubr.f32.mxu0 0.0
  %1949 = vmatmul.mubr.f32.gmra.mrb[0].mxu0 %v1722
  %v1950 = vpop.f32.mrb[0].mxu0
  %v1951 = vadd.f32 0.0, %v1950
  %v1952 = vpop.f32.mrb[0].mxu0
  %1953 = vmatprep.mubr.f32.mxu0 0.0
  %1954 = vmatmul.mubr.f32.gmra.mrb[0].mxu0 %v1725
  %v1955 = vpop.f32.mrb[0].mxu0
  %v1956 = vadd.f32 0.0, %v1955
  %v1957 = vpop.f32.mrb[0].mxu0
  %1958 = vmatprep.mubr.f32.mxu0 0.0
  %1959 = vmatmul.mubr.f32.gmra.mrb[0].mxu0 %v1728
  %v1960 = vpop.f32.mrb[0].mxu0
  %v1961 = vadd.f32 0.0, %v1960
  %v1962 = vpop.f32.mrb[0].mxu0
  %1963 = vmatprep.mubr.f32.mxu0 0.0
  %1964 = vmatmul.mubr.f32.gmra.mrb[0].mxu0 %v1731
  %v1965 = vpop.f32.mrb[0].mxu0
  %v1966 = vadd.f32 0.0, %v1965
  %v1967 = vpop.f32.mrb[0].mxu0
  %1968 = vmatprep.mubr.f32.mxu0 0.0
  %1969 = vmatmul.mubr.f32.gmra.mrb[0].mxu0 %v1734
  %v1970 = vpop.f32.mrb[0].mxu0
  %v1971 = vadd.f32 0.0, %v1970
  %v1972 = vpop.f32.mrb[0].mxu0
  %1973 = vmatprep.mubr.f32.mxu0 0.0
  %1974 = vmatmul.mubr.f32.gmra.mrb[0].mxu0 %v1737
  %v1975 = vpop.f32.mrb[0].mxu0
  %v1976 = vadd.f32 0.0, %v1975
  %v1977 = vpop.f32.mrb[0].mxu0
  %1978 = vmatprep.mubr.f32.mxu0 0.0
  %1979 = vmatmul.mubr.f32.gmra.mrb[0].mxu0 %v1740
  %v1980 = vpop.f32.mrb[0].mxu0
  %v1981 = vadd.f32 0.0, %v1980
  %v1982 = vpop.f32.mrb[0].mxu0
  %1983 = vmatprep.mubr.f32.mxu0 0.0
  %1984 = vmatmul.mubr.f32.gmra.mrb[0].mxu0 %v1743
  %v1985 = vpop.f32.mrb[0].mxu0
  %v1986 = vadd.f32 0.0, %v1985
  %v1987 = vpop.f32.mrb[0].mxu0
  %1988 = vmatprep.mubr.f32.mxu0 0.0
  %1989 = vmatmul.mubr.f32.gmra.mrb[0].mxu0 %v1746
  %v1990 = vpop.f32.mrb[0].mxu0
  %v1991 = vadd.f32 0.0, %v1990
  %v1992 = vpop.f32.mrb[0].mxu0
  %1993 = vmatprep.mubr.f32.mxu0 0.0
  %1994 = vmatmul.mubr.f32.gmra.mrb[0].mxu0 %v1749
  %v1995 = vpop.f32.mrb[0].mxu0
  %v1996 = vadd.f32 0.0, %v1995
  %v1997 = vpop.f32.mrb[0].mxu0
  %1998 = vmatprep.mubr.f32.mxu0 0.0
  %1999 = vmatmul.mubr.f32.gmra.mrb[0].mxu0 %v1752
  %v2000 = vpop.f32.mrb[0].mxu0
  %v2001 = vadd.f32 0.0, %v2000
  %v2002 = vpop.f32.mrb[0].mxu0
  %2003 = vmatprep.mubr.f32.mxu0 0.0
  %2004 = vmatmul.mubr.f32.gmra.mrb[0].mxu0 %v1755
  %v2005 = vpop.f32.mrb[0].mxu0
  %v2006 = vadd.f32 0.0, %v2005
  %v2007 = vpop.f32.mrb[0].mxu0
  %2008 = vmatprep.mubr.f32.mxu0 0.0
  %2009 = vmatmul.mubr.f32.gmra.mrb[0].mxu0 %v1758
  %v2010 = vpop.f32.mrb[0].mxu0
  %v2011 = vadd.f32 0.0, %v2010
  %v2012 = vpop.f32.mrb[0].mxu0
  %2013 = vmatprep.mubr.f32.mxu0 0.0
  %2014 = vmatmul.mubr.f32.gmra.mrb[0].mxu0 %v1761
  %v2015 = vpop.f32.mrb[0].mxu0
  %v2016 = vadd.f32 0.0, %v2015
  %v2017 = vpop.f32.mrb[0].mxu0
  %2018 = vmatprep.mubr.f32.mxu0 0.0
  %2019 = vmatmul.mubr.f32.gmra.mrb[0].mxu0 %v1764
  %v2020 = vpop.f32.mrb[0].mxu0
  %v2021 = vadd.f32 0.0, %v2020
  %v2022 = vpop.f32.mrb[0].mxu0
  %2023 = vmatprep.mubr.f32.mxu0 0.0
  %2024 = vmatmul.mubr.f32.gmra.mrb[0].mxu0 %v1767
  %v2025 = vpop.f32.mrb[0].mxu0
  %v2026 = vadd.f32 0.0, %v2025
  %v2027 = vpop.f32.mrb[0].mxu0
  %2028 = vmatprep.mubr.f32.mxu0 0.0
  %2029 = vmatmul.mubr.f32.gmra.mrb[0].mxu0 %v1770
  %v2030 = vpop.f32.mrb[0].mxu0
  %v2031 = vadd.f32 0.0, %v2030
  %v2032 = vpop.f32.mrb[0].mxu0
  %2033 = vmatprep.mubr.f32.mxu0 0.0
  %2034 = vmatmul.mubr.f32.gmra.mrb[0].mxu0 %v1773
  %v2035 = vpop.f32.mrb[0].mxu0
  %v2036 = vadd.f32 0.0, %v2035
  %v2037 = vpop.f32.mrb[0].mxu0
  %2038 = vmatprep.mubr.f32.mxu0 0.0
  %2039 = vmatmul.mubr.f32.gmra.mrb[0].mxu0 %v1776
  %v2040 = vpop.f32.mrb[0].mxu0
  %v2041 = vadd.f32 0.0, %v2040
  %v2042 = vpop.f32.mrb[0].mxu0
  %2043 = vmatprep.mubr.f32.mxu0 0.0
  %2044 = vmatmul.mubr.f32.gmra.mrb[0].mxu0 %v1779
  %v2045 = vpop.f32.mrb[0].mxu0
  %v2046 = vadd.f32 0.0, %v2045
  %v2047 = vpop.f32.mrb[0].mxu0
  %2048 = vmatprep.mubr.f32.mxu0 0.0
  %2049 = vmatmul.mubr.f32.gmra.mrb[0].mxu0 %v1782
  %v2050 = vpop.f32.mrb[0].mxu0
  %v2051 = vadd.f32 0.0, %v2050
  %v2052 = vpop.f32.mrb[0].mxu0
  %2053 = vmatprep.mubr.f32.mxu0 0.0
  %2054 = vmatmul.mubr.f32.gmra.mrb[0].mxu0 %v1785
  %v2055 = vpop.f32.mrb[0].mxu0
  %v2056 = vadd.f32 0.0, %v2055
  %v2057 = vpop.f32.mrb[0].mxu0
  %2058 = vmatprep.mubr.f32.mxu0 0.0
  %2059 = vmatmul.mubr.f32.gmra.mrb[0].mxu0 %v1788
  %v2060 = vpop.f32.mrb[0].mxu0
  %v2061 = vadd.f32 0.0, %v2060
  %v2062 = vpop.f32.mrb[0].mxu0
  %2063 = vmatprep.mubr.f32.mxu0 0.0
  %2064 = vmatmul.mubr.f32.gmra.mrb[0].mxu0 %v1791
  %v2065 = vpop.f32.mrb[0].mxu0
  %v2066 = vadd.f32 0.0, %v2065
  %v2067 = vpop.f32.mrb[0].mxu0
  %2068 = vmatprep.mubr.f32.mxu0 0.0
  %2069 = vmatmul.mubr.f32.gmra.mrb[0].mxu0 %v1794
  %v2070 = vpop.f32.mrb[0].mxu0
  %v2071 = vadd.f32 0.0, %v2070
  %v2072 = vpop.f32.mrb[0].mxu0
  %2073 = vmatprep.mubr.f32.mxu0 0.0
  %2074 = vmatmul.mubr.f32.gmra.mrb[0].mxu0 %v1797
  %v2075 = vpop.f32.mrb[0].mxu0
  %v2076 = vadd.f32 0.0, %v2075
  %v2077 = vpop.f32.mrb[0].mxu0
  %2078 = vmatprep.mubr.f32.mxu0 0.0
  %2079 = vmatmul.mubr.f32.gmra.mrb[0].mxu0 %v1800
  %v2080 = vpop.f32.mrb[0].mxu0
  %v2081 = vadd.f32 0.0, %v2080
  %v2082 = vpop.f32.mrb[0].mxu0
  %2083 = vmatprep.mubr.f32.mxu0 0.0
  %2084 = vmatmul.mubr.f32.gmra.mrb[0].mxu0 %v1803
  %v2085 = vpop.f32.mrb[0].mxu0
  %v2086 = vadd.f32 0.0, %v2085
  %v2087 = vpop.f32.mrb[0].mxu0
  %2088 = vmatprep.mubr.f32.mxu0 0.0
  %2089 = vmatmul.mubr.f32.gmra.mrb[0].mxu0 %v1806
  %v2090 = vpop.f32.mrb[0].mxu0
  %v2091 = vadd.f32 0.0, %v2090
  %v2092 = vpop.f32.mrb[0].mxu0
  %2093 = vmatprep.mubr.f32.mxu0 0.0
  %2094 = vmatmul.mubr.f32.gmra.mrb[0].mxu0 %v1809
  %v2095 = vpop.f32.mrb[0].mxu0
  %v2096 = vadd.f32 0.0, %v2095
  %v2097 = vpop.f32.mrb[0].mxu0
  %2098 = vmatprep.mubr.f32.mxu0 0.0
  %2099 = vmatmul.mubr.f32.gmra.mrb[0].mxu0 %v1812
  %v2100 = vpop.f32.mrb[0].mxu0
  %v2101 = vadd.f32 0.0, %v2100
  %v2102 = vpop.f32.mrb[0].mxu0
  %2103 = vmatprep.mubr.f32.mxu0 0.0
  %2104 = vmatmul.mubr.f32.gmra.mrb[0].mxu0 %v1815
  %v2105 = vpop.f32.mrb[0].mxu0
  %v2106 = vadd.f32 0.0, %v2105
  %v2107 = vpop.f32.mrb[0].mxu0
  %2108 = vmatprep.mubr.f32.mxu0 0.0
  %2109 = vmatmul.mubr.f32.gmra.mrb[0].mxu0 %v1818
  %v2110 = vpop.f32.mrb[0].mxu0
  %v2111 = vadd.f32 0.0, %v2110
  %v2112 = vpop.f32.mrb[0].mxu0
  %2113 = vmatprep.mubr.f32.mxu0 0.0
  %2114 = vmatmul.mubr.f32.gmra.mrb[0].mxu0 %v1821
  %v2115 = vpop.f32.mrb[0].mxu0
  %v2116 = vadd.f32 0.0, %v2115
  %v2117 = vpop.f32.mrb[0].mxu0
  %2118 = vmatprep.mubr.f32.mxu0 0.0
  %2119 = vmatmul.mubr.f32.gmra.mrb[0].mxu0 %v1824
  %v2120 = vpop.f32.mrb[0].mxu0
  %v2121 = vadd.f32 0.0, %v2120
  %v2122 = vpop.f32.mrb[0].mxu0
  %2123 = vmatprep.mubr.f32.mxu0 0.0
  %2124 = vmatmul.mubr.f32.gmra.mrb[0].mxu0 %v1827
  %v2125 = vpop.f32.mrb[0].mxu0
  %v2126 = vadd.f32 0.0, %v2125
  %v2127 = vpop.f32.mrb[0].mxu0
  %2128 = vmatprep.mubr.f32.mxu0 0.0
  %2129 = vmatmul.mubr.f32.gmra.mrb[0].mxu0 %v1830
  %v2130 = vpop.f32.mrb[0].mxu0
  %v2131 = vadd.f32 0.0, %v2130
  %v2132 = vpop.f32.mrb[0].mxu0
  %2133 = vmatprep.mubr.f32.mxu0 0.0
  %2134 = vmatmul.mubr.f32.gmra.mrb[0].mxu0 %v1833
  %v2135 = vpop.f32.mrb[0].mxu0
  %v2136 = vadd.f32 0.0, %v2135
  %v2137 = vpop.f32.mrb[0].mxu0
  %2138 = vmatprep.mubr.f32.mxu0 0.0
  %2139 = vmatmul.mubr.f32.gmra.mrb[0].mxu0 %v1836
  %v2140 = vpop.f32.mrb[0].mxu0
  %v2141 = vadd.f32 0.0, %v2140
  %v2142 = vpop.f32.mrb[0].mxu0
  %2143 = vmatprep.mubr.f32.mxu0 0.0
  %2144 = vmatmul.mubr.f32.gmra.mrb[0].mxu0 %v1839
  %v2145 = vpop.f32.mrb[0].mxu0
  %v2146 = vadd.f32 0.0, %v2145
  %v2147 = vpop.f32.mrb[0].mxu0
  %2148 = vmatprep.mubr.f32.mxu0 0.0
  %2149 = vmatmul.mubr.f32.gmra.mrb[0].mxu0 %v1842
  %v2150 = vpop.f32.mrb[0].mxu0
  %v2151 = vadd.f32 0.0, %v2150
  %v2152 = vpop.f32.mrb[0].mxu0
  %2153 = vdwg.mxu0
  %v2154 = vmax.f32 %v1599, %v1911
  %v2155 = vmax.f32 %v1600, %v1916
  %v2156 = vmax.f32 %v1601, %v1921
  %v2157 = vmax.f32 %v1602, %v1926
  %v2158 = vmax.f32 %v1603, %v1931
  %v2159 = vmax.f32 %v1604, %v1936
  %v2160 = vmax.f32 %v1605, %v1941
  %v2161 = vmax.f32 %v1606, %v1946
  %v2162 = vmax.f32 %v1607, %v1951
  %v2163 = vmax.f32 %v1608, %v1956
  %v2164 = vmax.f32 %v1609, %v1961
  %v2165 = vmax.f32 %v1610, %v1966
  %v2166 = vmax.f32 %v1611, %v1971
  %v2167 = vmax.f32 %v1612, %v1976
  %v2168 = vmax.f32 %v1613, %v1981
  %v2169 = vmax.f32 %v1614, %v1986
  %v2170 = vmax.f32 %v1615, %v1991
  %v2171 = vmax.f32 %v1616, %v1996
  %v2172 = vmax.f32 %v1617, %v2001
  %v2173 = vmax.f32 %v1618, %v2006
  %v2174 = vmax.f32 %v1619, %v2011
  %v2175 = vmax.f32 %v1620, %v2016
  %v2176 = vmax.f32 %v1621, %v2021
  %v2177 = vmax.f32 %v1622, %v2026
  %v2178 = vmax.f32 %v1623, %v2031
  %v2179 = vmax.f32 %v1624, %v2036
  %v2180 = vmax.f32 %v1625, %v2041
  %v2181 = vmax.f32 %v1626, %v2046
  %v2182 = vmax.f32 %v1627, %v2051
  %v2183 = vmax.f32 %v1628, %v2056
  %v2184 = vmax.f32 %v1629, %v2061
  %v2185 = vmax.f32 %v1630, %v2066
  %v2186 = vmax.f32 %v1631, %v2071
  %v2187 = vmax.f32 %v1632, %v2076
  %v2188 = vmax.f32 %v1633, %v2081
  %v2189 = vmax.f32 %v1634, %v2086
  %v2190 = vmax.f32 %v1635, %v2091
  %v2191 = vmax.f32 %v1636, %v2096
  %v2192 = vmax.f32 %v1637, %v2101
  %v2193 = vmax.f32 %v1638, %v2106
  %v2194 = vmax.f32 %v1639, %v2111
  %v2195 = vmax.f32 %v1640, %v2116
  %v2196 = vmax.f32 %v1641, %v2121
  %v2197 = vmax.f32 %v1642, %v2126
  %v2198 = vmax.f32 %v1643, %v2131
  %v2199 = vmax.f32 %v1644, %v2136
  %v2200 = vmax.f32 %v1645, %v2141
  %v2201 = vmax.f32 %v1646, %v2146
  %v2202 = vmax.f32 %v1647, %v2151
  %v2203 = vld [vmem:[%s5] sm:$0x1]
  %v2205 = vlaneseq
  %v2206 = vshrl.u32 %v2205, 7
  %v2207 = vsub.s32 0, %v2206
  %v2208 = vrot.slane %v2203, %v2207
  %v2210 = vadd.f32 %v2154, %v2208
  %v2211 = vadd.f32 %v2155, %v2208
  %v2212 = vadd.f32 %v2156, %v2208
  %v2213 = vadd.f32 %v2157, %v2208
  %v2214 = vadd.f32 %v2158, %v2208
  %v2215 = vadd.f32 %v2159, %v2208
  %v2216 = vadd.f32 %v2160, %v2208
  %v2217 = vadd.f32 %v2161, %v2208
  %v2218 = vadd.f32 %v2162, %v2208
  %v2219 = vadd.f32 %v2163, %v2208
  %v2220 = vadd.f32 %v2164, %v2208
  %v2221 = vadd.f32 %v2165, %v2208
  %v2222 = vadd.f32 %v2166, %v2208
  %v2223 = vadd.f32 %v2167, %v2208
  %v2224 = vadd.f32 %v2168, %v2208
  %v2225 = vadd.f32 %v2169, %v2208
  %v2226 = vadd.f32 %v2170, %v2208
  %v2227 = vadd.f32 %v2171, %v2208
  %v2228 = vadd.f32 %v2172, %v2208
  %v2229 = vadd.f32 %v2173, %v2208
  %v2230 = vadd.f32 %v2174, %v2208
  %v2231 = vadd.f32 %v2175, %v2208
  %v2232 = vadd.f32 %v2176, %v2208
  %v2233 = vadd.f32 %v2177, %v2208
  %v2234 = vadd.f32 %v2178, %v2208
  %v2235 = vadd.f32 %v2179, %v2208
  %v2236 = vadd.f32 %v2180, %v2208
  %v2237 = vadd.f32 %v2181, %v2208
  %v2238 = vadd.f32 %v2182, %v2208
  %v2239 = vadd.f32 %v2183, %v2208
  %v2240 = vadd.f32 %v2184, %v2208
  %v2241 = vadd.f32 %v2185, %v2208
  %v2242 = vadd.f32 %v2186, %v2208
  %v2243 = vadd.f32 %v2187, %v2208
  %v2244 = vadd.f32 %v2188, %v2208
  %v2245 = vadd.f32 %v2189, %v2208
  %v2246 = vadd.f32 %v2190, %v2208
  %v2247 = vadd.f32 %v2191, %v2208
  %v2248 = vadd.f32 %v2192, %v2208
  %v2249 = vadd.f32 %v2193, %v2208
  %v2250 = vadd.f32 %v2194, %v2208
  %v2251 = vadd.f32 %v2195, %v2208
  %v2252 = vadd.f32 %v2196, %v2208
  %v2253 = vadd.f32 %v2197, %v2208
  %v2254 = vadd.f32 %v2198, %v2208
  %v2255 = vadd.f32 %v2199, %v2208
  %v2256 = vadd.f32 %v2200, %v2208
  %v2257 = vadd.f32 %v2201, %v2208
  %v2258 = vadd.f32 %v2202, %v2208
  %v2259 = vmax.f32 %v2210, 0.0
  %v2260 = vmax.f32 %v2211, 0.0
  %v2261 = vmax.f32 %v2212, 0.0
  %v2262 = vmax.f32 %v2213, 0.0
  %v2263 = vmax.f32 %v2214, 0.0
  %v2264 = vmax.f32 %v2215, 0.0
  %v2265 = vmax.f32 %v2216, 0.0
  %v2266 = vmax.f32 %v2217, 0.0
  %v2267 = vmax.f32 %v2218, 0.0
  %v2268 = vmax.f32 %v2219, 0.0
  %v2269 = vmax.f32 %v2220, 0.0
  %v2270 = vmax.f32 %v2221, 0.0
  %v2271 = vmax.f32 %v2222, 0.0
  %v2272 = vmax.f32 %v2223, 0.0
  %v2273 = vmax.f32 %v2224, 0.0
  %v2274 = vmax.f32 %v2225, 0.0
  %v2275 = vmax.f32 %v2226, 0.0
  %v2276 = vmax.f32 %v2227, 0.0
  %v2277 = vmax.f32 %v2228, 0.0
  %v2278 = vmax.f32 %v2229, 0.0
  %v2279 = vmax.f32 %v2230, 0.0
  %v2280 = vmax.f32 %v2231, 0.0
  %v2281 = vmax.f32 %v2232, 0.0
  %v2282 = vmax.f32 %v2233, 0.0
  %v2283 = vmax.f32 %v2234, 0.0
  %v2284 = vmax.f32 %v2235, 0.0
  %v2285 = vmax.f32 %v2236, 0.0
  %v2286 = vmax.f32 %v2237, 0.0
  %v2287 = vmax.f32 %v2238, 0.0
  %v2288 = vmax.f32 %v2239, 0.0
  %v2289 = vmax.f32 %v2240, 0.0
  %v2290 = vmax.f32 %v2241, 0.0
  %v2291 = vmax.f32 %v2242, 0.0
  %v2292 = vmax.f32 %v2243, 0.0
  %v2293 = vmax.f32 %v2244, 0.0
  %v2294 = vmax.f32 %v2245, 0.0
  %v2295 = vmax.f32 %v2246, 0.0
  %v2296 = vmax.f32 %v2247, 0.0
  %v2297 = vmax.f32 %v2248, 0.0
  %v2298 = vmax.f32 %v2249, 0.0
  %v2299 = vmax.f32 %v2250, 0.0
  %v2300 = vmax.f32 %v2251, 0.0
  %v2301 = vmax.f32 %v2252, 0.0
  %v2302 = vmax.f32 %v2253, 0.0
  %v2303 = vmax.f32 %v2254, 0.0
  %v2304 = vmax.f32 %v2255, 0.0
  %v2305 = vmax.f32 %v2256, 0.0
  %v2306 = vmax.f32 %v2257, 0.0
  %v2307 = vmax.f32 %v2258, 0.0
  %2308 = vst [vmem:[%s6] sm:$0xff] %v2259
  %2309 = vst [vmem:[%s6 + $0x8] sm:$0xff] %v2260
  %2310 = vst [vmem:[%s6 + $0x10] sm:$0xff] %v2261
  %2311 = vst [vmem:[%s6 + $0x18] sm:$0xff] %v2262
  %2312 = vst [vmem:[%s6 + $0x20] sm:$0xff] %v2263
  %2313 = vst [vmem:[%s6 + $0x28] sm:$0xff] %v2264
  %2314 = vst [vmem:[%s6 + $0x30] sm:$0xff] %v2265
  %2315 = vst [vmem:[%s6 + $0x38] sm:$0xff] %v2266
  %2316 = vst [vmem:[%s6 + $0x40] sm:$0xff] %v2267
  %2317 = vst [vmem:[%s6 + $0x48] sm:$0xff] %v2268
  %2318 = vst [vmem:[%s6 + $0x50] sm:$0xff] %v2269
  %2319 = vst [vmem:[%s6 + $0x58] sm:$0xff] %v2270
  %2320 = vst [vmem:[%s6 + $0x60] sm:$0xff] %v2271
  %2321 = vst [vmem:[%s6 + $0x68] sm:$0xff] %v2272
  %2322 = vst [vmem:[%s6 + $0x70] sm:$0xff] %v2273
  %2323 = vst [vmem:[%s6 + $0x78] sm:$0xff] %v2274
  %2324 = vst [vmem:[%s6 + $0x80] sm:$0xff] %v2275
  %2325 = vst [vmem:[%s6 + $0x88] sm:$0xff] %v2276
  %2326 = vst [vmem:[%s6 + $0x90] sm:$0xff] %v2277
  %2327 = vst [vmem:[%s6 + $0x98] sm:$0xff] %v2278
  %2328 = vst [vmem:[%s6 + $0xa0] sm:$0xff] %v2279
  %2329 = vst [vmem:[%s6 + $0xa8] sm:$0xff] %v2280
  %2330 = vst [vmem:[%s6 + $0xb0] sm:$0xff] %v2281
  %2331 = vst [vmem:[%s6 + $0xb8] sm:$0xff] %v2282
  %2332 = vst [vmem:[%s6 + $0xc0] sm:$0xff] %v2283
  %2333 = vst [vmem:[%s6 + $0xc8] sm:$0xff] %v2284
  %2334 = vst [vmem:[%s6 + $0xd0] sm:$0xff] %v2285
  %2335 = vst [vmem:[%s6 + $0xd8] sm:$0xff] %v2286
  %2336 = vst [vmem:[%s6 + $0xe0] sm:$0xff] %v2287
  %2337 = vst [vmem:[%s6 + $0xe8] sm:$0xff] %v2288
  %2338 = vst [vmem:[%s6 + $0xf0] sm:$0xff] %v2289
  %2339 = vst [vmem:[%s6 + $0xf8] sm:$0xff] %v2290
  %2340 = vst [vmem:[%s6 + $0x100] sm:$0xff] %v2291
  %2341 = vst [vmem:[%s6 + $0x108] sm:$0xff] %v2292
  %2342 = vst [vmem:[%s6 + $0x110] sm:$0xff] %v2293
  %2343 = vst [vmem:[%s6 + $0x118] sm:$0xff] %v2294
  %2344 = vst [vmem:[%s6 + $0x120] sm:$0xff] %v2295
  %2345 = vst [vmem:[%s6 + $0x128] sm:$0xff] %v2296
  %2346 = vst [vmem:[%s6 + $0x130] sm:$0xff] %v2297
  %2347 = vst [vmem:[%s6 + $0x138] sm:$0xff] %v2298
  %2348 = vst [vmem:[%s6 + $0x140] sm:$0xff] %v2299
  %2349 = vst [vmem:[%s6 + $0x148] sm:$0xff] %v2300
  %2350 = vst [vmem:[%s6 + $0x150] sm:$0xff] %v2301
  %2351 = vst [vmem:[%s6 + $0x158] sm:$0xff] %v2302
  %2352 = vst [vmem:[%s6 + $0x160] sm:$0xff] %v2303
  %2353 = vst [vmem:[%s6 + $0x168] sm:$0xff] %v2304
  %2354 = vst [vmem:[%s6 + $0x170] sm:$0xff] %v2305
  %2355 = vst [vmem:[%s6 + $0x178] sm:$0xff] %v2306
  %2356 = vst [vmem:[%s6 + $0x180] sm:$0xff] %v2307
  // Predicated region
  $region26: #{lenet_forward.3} parent=0 // pred_check
    _
  $region27: #{lenet_forward.3} parent=0 // pred_check_branch
    %2358 = sbr.rel (0) target = $region29
  $region28: #{lenet_forward.3} parent=0 // pred_region
    _
  $region29: #{lenet_forward.3} parent=0 // pred_fallthru
    _
  // Predicated region
  $region30: #{lenet_forward.3} parent=0 // pred_check
    _
  $region31: #{lenet_forward.3} parent=0 // pred_check_branch
    %2360 = sbr.rel (0) target = $region33
  $region32: #{lenet_forward.3} parent=0 // pred_region
    _
  $region33: #{lenet_forward.3} parent=0 // pred_fallthru
    _

// kernel: lenet_forward.5
$region0: #{lenet_forward.5}
  #allocation0 [shape = 'u32[]', space=smem, size = 0x4, offset = 0x4, fixed_abs, tag = 'smem constant byte address 0x4 - core index']
  #allocation1 [shape = 'u32[144,128]{1,0:T(1,128)}', space=vmem, size = 0x12000, scoped, tag = 'internal scratch']
  %s0 = inlined_call_operand.vmem [shape: f32[8,3200], index: 0, kind: input, shape index: {}]
  %s1 = inlined_call_operand.vmem [shape: f32[3200,128], index: 1, kind: input, shape index: {}]
  %s2 = inlined_call_operand.vmem [shape: f32[1,128], index: 2, kind: input, shape index: {}]
  %s3 = inlined_call_operand.vmem [shape: f32[128,128], index: 3, kind: input, shape index: {}]
  %s4 = inlined_call_operand.vmem [shape: f32[1,128], index: 4, kind: input, shape index: {}]
  %s5 = inlined_call_operand.vmem [shape: f32[128,128], index: 5, kind: input, shape index: {}]
  %s6 = inlined_call_operand.vmem [shape: f32[1,128], index: 6, kind: input, shape index: {}]
  %s7 = inlined_call_operand.vmem [shape: f32[8,128], index: 7, kind: output, shape index: {}]
  %s8 = sld [smem:[#allocation0]]
  $region38: #{lenet_forward.5} parent=0
    _
  %s10 = ssub.s32 1, %s8
  %s11 = scalar_select 0, %s10, %s8
  // Predicated region
  $region2: #{lenet_forward.5} parent=0 // pred_check
    _
  $region3: #{lenet_forward.5} parent=0 // pred_check_branch
    %13 = sbr.rel (0) target = $region5
  $region4: #{lenet_forward.5} parent=0 // pred_region
    _
  $region5: #{lenet_forward.5} parent=0 // pred_fallthru
    _
  // Predicated region
  $region6: #{lenet_forward.5} parent=0 // pred_check
    _
  $region7: #{lenet_forward.5} parent=0 // pred_check_branch
    %15 = sbr.rel (0) target = $region9
  $region8: #{lenet_forward.5} parent=0 // pred_region
    _
  $region9: #{lenet_forward.5} parent=0 // pred_fallthru
    _
  // Predicated region
  $region10: #{lenet_forward.5} parent=0 // pred_check
    _
  $region11: #{lenet_forward.5} parent=0 // pred_check_branch
    %17 = sbr.rel (0) target = $region13
  $region12: #{lenet_forward.5} parent=0 // pred_region
    _
  $region13: #{lenet_forward.5} parent=0 // pred_fallthru
    _
  // Predicated region
  $region14: #{lenet_forward.5} parent=0 // pred_check
    _
  $region15: #{lenet_forward.5} parent=0 // pred_check_branch
    %19 = sbr.rel (0) target = $region17
  $region16: #{lenet_forward.5} parent=0 // pred_region
    _
  $region17: #{lenet_forward.5} parent=0 // pred_fallthru
    _
  // Predicated region
  $region18: #{lenet_forward.5} parent=0 // pred_check
    _
  $region19: #{lenet_forward.5} parent=0 // pred_check_branch
    %21 = sbr.rel (0) target = $region21
  $region20: #{lenet_forward.5} parent=0 // pred_region
    _
  $region21: #{lenet_forward.5} parent=0 // pred_fallthru
    _
  // Predicated region
  $region22: #{lenet_forward.5} parent=0 // pred_check
    _
  $region23: #{lenet_forward.5} parent=0 // pred_check_branch
    %23 = sbr.rel (0) target = $region25
  $region24: #{lenet_forward.5} parent=0 // pred_region
    _
  $region25: #{lenet_forward.5} parent=0 // pred_fallthru
    _
  // Predicated region
  $region26: #{lenet_forward.5} parent=0 // pred_check
    _
  $region27: #{lenet_forward.5} parent=0 // pred_check_branch
    %25 = sbr.rel (0) target = $region29
  $region28: #{lenet_forward.5} parent=0 // pred_region
    _
  $region29: #{lenet_forward.5} parent=0 // pred_fallthru
    _
  %v26 = vld [vmem:[%s0] sm:$0xff]
  %v27 = vld [vmem:[%s0 + $0x8] sm:$0xff]
  %v28 = vld [vmem:[%s0 + $0x10] sm:$0xff]
  %v29 = vld [vmem:[%s0 + $0x18] sm:$0xff]
  %v30 = vld [vmem:[%s0 + $0x20] sm:$0xff]
  %v31 = vld [vmem:[%s0 + $0x28] sm:$0xff]
  %v32 = vld [vmem:[%s0 + $0x30] sm:$0xff]
  %v33 = vld [vmem:[%s0 + $0x38] sm:$0xff]
  %v34 = vld [vmem:[%s0 + $0x40] sm:$0xff]
  %v35 = vld [vmem:[%s0 + $0x48] sm:$0xff]
  %v36 = vld [vmem:[%s0 + $0x50] sm:$0xff]
  %v37 = vld [vmem:[%s0 + $0x58] sm:$0xff]
  %v38 = vld [vmem:[%s0 + $0x60] sm:$0xff]
  %v39 = vld [vmem:[%s0 + $0x68] sm:$0xff]
  %v40 = vld [vmem:[%s0 + $0x70] sm:$0xff]
  %v41 = vld [vmem:[%s0 + $0x78] sm:$0xff]
  %v42 = vld [vmem:[%s0 + $0x80] sm:$0xff]
  %v43 = vld [vmem:[%s0 + $0x88] sm:$0xff]
  %v44 = vld [vmem:[%s0 + $0x90] sm:$0xff]
  %v45 = vld [vmem:[%s0 + $0x98] sm:$0xff]
  %v46 = vld [vmem:[%s0 + $0xa0] sm:$0xff]
  %v47 = vld [vmem:[%s0 + $0xa8] sm:$0xff]
  %v48 = vld [vmem:[%s0 + $0xb0] sm:$0xff]
  %v49 = vld [vmem:[%s0 + $0xb8] sm:$0xff]
  %v50 = vld [vmem:[%s0 + $0xc0] sm:$0xff]
  %v51 = vld [vmem:[%s1] sm:$0xff]
  %v52 = vld [vmem:[%s1 + $0x8] sm:$0xff]
  %v53 = vld [vmem:[%s1 + $0x10] sm:$0xff]
  %v54 = vld [vmem:[%s1 + $0x18] sm:$0xff]
  %v55 = vld [vmem:[%s1 + $0x20] sm:$0xff]
  %v56 = vld [vmem:[%s1 + $0x28] sm:$0xff]
  %v57 = vld [vmem:[%s1 + $0x30] sm:$0xff]
  %v58 = vld [vmem:[%s1 + $0x38] sm:$0xff]
  %v59 = vld [vmem:[%s1 + $0x40] sm:$0xff]
  %v60 = vld [vmem:[%s1 + $0x48] sm:$0xff]
  %v61 = vld [vmem:[%s1 + $0x50] sm:$0xff]
  %v62 = vld [vmem:[%s1 + $0x58] sm:$0xff]
  %v63 = vld [vmem:[%s1 + $0x60] sm:$0xff]
  %v64 = vld [vmem:[%s1 + $0x68] sm:$0xff]
  %v65 = vld [vmem:[%s1 + $0x70] sm:$0xff]
  %v66 = vld [vmem:[%s1 + $0x78] sm:$0xff]
  %v67 = vld [vmem:[%s1 + $0x80] sm:$0xff]
  %v68 = vld [vmem:[%s1 + $0x88] sm:$0xff]
  %v69 = vld [vmem:[%s1 + $0x90] sm:$0xff]
  %v70 = vld [vmem:[%s1 + $0x98] sm:$0xff]
  %v71 = vld [vmem:[%s1 + $0xa0] sm:$0xff]
  %v72 = vld [vmem:[%s1 + $0xa8] sm:$0xff]
  %v73 = vld [vmem:[%s1 + $0xb0] sm:$0xff]
  %v74 = vld [vmem:[%s1 + $0xb8] sm:$0xff]
  %v75 = vld [vmem:[%s1 + $0xc0] sm:$0xff]
  %v76 = vld [vmem:[%s1 + $0xc8] sm:$0xff]
  %v77 = vld [vmem:[%s1 + $0xd0] sm:$0xff]
  %v78 = vld [vmem:[%s1 + $0xd8] sm:$0xff]
  %v79 = vld [vmem:[%s1 + $0xe0] sm:$0xff]
  %v80 = vld [vmem:[%s1 + $0xe8] sm:$0xff]
  %v81 = vld [vmem:[%s1 + $0xf0] sm:$0xff]
  %v82 = vld [vmem:[%s1 + $0xf8] sm:$0xff]
  %v83 = vld [vmem:[%s1 + $0x100] sm:$0xff]
  %v84 = vld [vmem:[%s1 + $0x108] sm:$0xff]
  %v85 = vld [vmem:[%s1 + $0x110] sm:$0xff]
  %v86 = vld [vmem:[%s1 + $0x118] sm:$0xff]
  %v87 = vld [vmem:[%s1 + $0x120] sm:$0xff]
  %v88 = vld [vmem:[%s1 + $0x128] sm:$0xff]
  %v89 = vld [vmem:[%s1 + $0x130] sm:$0xff]
  %v90 = vld [vmem:[%s1 + $0x138] sm:$0xff]
  %v91 = vld [vmem:[%s1 + $0x140] sm:$0xff]
  %v92 = vld [vmem:[%s1 + $0x148] sm:$0xff]
  %v93 = vld [vmem:[%s1 + $0x150] sm:$0xff]
  %v94 = vld [vmem:[%s1 + $0x158] sm:$0xff]
  %v95 = vld [vmem:[%s1 + $0x160] sm:$0xff]
  %v96 = vld [vmem:[%s1 + $0x168] sm:$0xff]
  %v97 = vld [vmem:[%s1 + $0x170] sm:$0xff]
  %v98 = vld [vmem:[%s1 + $0x178] sm:$0xff]
  %v99 = vld [vmem:[%s1 + $0x180] sm:$0xff]
  %v100 = vld [vmem:[%s1 + $0x188] sm:$0xff]
  %v101 = vld [vmem:[%s1 + $0x190] sm:$0xff]
  %v102 = vld [vmem:[%s1 + $0x198] sm:$0xff]
  %v103 = vld [vmem:[%s1 + $0x1a0] sm:$0xff]
  %v104 = vld [vmem:[%s1 + $0x1a8] sm:$0xff]
  %v105 = vld [vmem:[%s1 + $0x1b0] sm:$0xff]
  %v106 = vld [vmem:[%s1 + $0x1b8] sm:$0xff]
  %v107 = vld [vmem:[%s1 + $0x1c0] sm:$0xff]
  %v108 = vld [vmem:[%s1 + $0x1c8] sm:$0xff]
  %v109 = vld [vmem:[%s1 + $0x1d0] sm:$0xff]
  %v110 = vld [vmem:[%s1 + $0x1d8] sm:$0xff]
  %v111 = vld [vmem:[%s1 + $0x1e0] sm:$0xff]
  %v112 = vld [vmem:[%s1 + $0x1e8] sm:$0xff]
  %v113 = vld [vmem:[%s1 + $0x1f0] sm:$0xff]
  %v114 = vld [vmem:[%s1 + $0x1f8] sm:$0xff]
  %v115 = vld [vmem:[%s1 + $0x200] sm:$0xff]
  %v116 = vld [vmem:[%s1 + $0x208] sm:$0xff]
  %v117 = vld [vmem:[%s1 + $0x210] sm:$0xff]
  %v118 = vld [vmem:[%s1 + $0x218] sm:$0xff]
  %v119 = vld [vmem:[%s1 + $0x220] sm:$0xff]
  %v120 = vld [vmem:[%s1 + $0x228] sm:$0xff]
  %v121 = vld [vmem:[%s1 + $0x230] sm:$0xff]
  %v122 = vld [vmem:[%s1 + $0x238] sm:$0xff]
  %v123 = vld [vmem:[%s1 + $0x240] sm:$0xff]
  %v124 = vld [vmem:[%s1 + $0x248] sm:$0xff]
  %v125 = vld [vmem:[%s1 + $0x250] sm:$0xff]
  %v126 = vld [vmem:[%s1 + $0x258] sm:$0xff]
  %v127 = vld [vmem:[%s1 + $0x260] sm:$0xff]
  %v128 = vld [vmem:[%s1 + $0x268] sm:$0xff]
  %v129 = vld [vmem:[%s1 + $0x270] sm:$0xff]
  %v130 = vld [vmem:[%s1 + $0x278] sm:$0xff]
  %v131 = vld [vmem:[%s1 + $0x280] sm:$0xff]
  %v132 = vld [vmem:[%s1 + $0x288] sm:$0xff]
  %v133 = vld [vmem:[%s1 + $0x290] sm:$0xff]
  %v134 = vld [vmem:[%s1 + $0x298] sm:$0xff]
  %v135 = vld [vmem:[%s1 + $0x2a0] sm:$0xff]
  %v136 = vld [vmem:[%s1 + $0x2a8] sm:$0xff]
  %v137 = vld [vmem:[%s1 + $0x2b0] sm:$0xff]
  %v138 = vld [vmem:[%s1 + $0x2b8] sm:$0xff]
  %v139 = vld [vmem:[%s1 + $0x2c0] sm:$0xff]
  %v140 = vld [vmem:[%s1 + $0x2c8] sm:$0xff]
  %v141 = vld [vmem:[%s1 + $0x2d0] sm:$0xff]
  %v142 = vld [vmem:[%s1 + $0x2d8] sm:$0xff]
  %v143 = vld [vmem:[%s1 + $0x2e0] sm:$0xff]
  %v144 = vld [vmem:[%s1 + $0x2e8] sm:$0xff]
  %v145 = vld [vmem:[%s1 + $0x2f0] sm:$0xff]
  %v146 = vld [vmem:[%s1 + $0x2f8] sm:$0xff]
  %v147 = vld [vmem:[%s1 + $0x300] sm:$0xff]
  %v148 = vld [vmem:[%s1 + $0x308] sm:$0xff]
  %v149 = vld [vmem:[%s1 + $0x310] sm:$0xff]
  %v150 = vld [vmem:[%s1 + $0x318] sm:$0xff]
  %v151 = vld [vmem:[%s1 + $0x320] sm:$0xff]
  %v152 = vld [vmem:[%s1 + $0x328] sm:$0xff]
  %v153 = vld [vmem:[%s1 + $0x330] sm:$0xff]
  %v154 = vld [vmem:[%s1 + $0x338] sm:$0xff]
  %v155 = vld [vmem:[%s1 + $0x340] sm:$0xff]
  %v156 = vld [vmem:[%s1 + $0x348] sm:$0xff]
  %v157 = vld [vmem:[%s1 + $0x350] sm:$0xff]
  %v158 = vld [vmem:[%s1 + $0x358] sm:$0xff]
  %v159 = vld [vmem:[%s1 + $0x360] sm:$0xff]
  %v160 = vld [vmem:[%s1 + $0x368] sm:$0xff]
  %v161 = vld [vmem:[%s1 + $0x370] sm:$0xff]
  %v162 = vld [vmem:[%s1 + $0x378] sm:$0xff]
  %v163 = vld [vmem:[%s1 + $0x380] sm:$0xff]
  %v164 = vld [vmem:[%s1 + $0x388] sm:$0xff]
  %v165 = vld [vmem:[%s1 + $0x390] sm:$0xff]
  %v166 = vld [vmem:[%s1 + $0x398] sm:$0xff]
  %v167 = vld [vmem:[%s1 + $0x3a0] sm:$0xff]
  %v168 = vld [vmem:[%s1 + $0x3a8] sm:$0xff]
  %v169 = vld [vmem:[%s1 + $0x3b0] sm:$0xff]
  %v170 = vld [vmem:[%s1 + $0x3b8] sm:$0xff]
  %v171 = vld [vmem:[%s1 + $0x3c0] sm:$0xff]
  %v172 = vld [vmem:[%s1 + $0x3c8] sm:$0xff]
  %v173 = vld [vmem:[%s1 + $0x3d0] sm:$0xff]
  %v174 = vld [vmem:[%s1 + $0x3d8] sm:$0xff]
  %v175 = vld [vmem:[%s1 + $0x3e0] sm:$0xff]
  %v176 = vld [vmem:[%s1 + $0x3e8] sm:$0xff]
  %v177 = vld [vmem:[%s1 + $0x3f0] sm:$0xff]
  %v178 = vld [vmem:[%s1 + $0x3f8] sm:$0xff]
  %v179 = vld [vmem:[%s1 + $0x400] sm:$0xff]
  %v180 = vld [vmem:[%s1 + $0x408] sm:$0xff]
  %v181 = vld [vmem:[%s1 + $0x410] sm:$0xff]
  %v182 = vld [vmem:[%s1 + $0x418] sm:$0xff]
  %v183 = vld [vmem:[%s1 + $0x420] sm:$0xff]
  %v184 = vld [vmem:[%s1 + $0x428] sm:$0xff]
  %v185 = vld [vmem:[%s1 + $0x430] sm:$0xff]
  %v186 = vld [vmem:[%s1 + $0x438] sm:$0xff]
  %v187 = vld [vmem:[%s1 + $0x440] sm:$0xff]
  %v188 = vld [vmem:[%s1 + $0x448] sm:$0xff]
  %v189 = vld [vmem:[%s1 + $0x450] sm:$0xff]
  %v190 = vld [vmem:[%s1 + $0x458] sm:$0xff]
  %v191 = vld [vmem:[%s1 + $0x460] sm:$0xff]
  %v192 = vld [vmem:[%s1 + $0x468] sm:$0xff]
  %v193 = vld [vmem:[%s1 + $0x470] sm:$0xff]
  %v194 = vld [vmem:[%s1 + $0x478] sm:$0xff]
  %v195 = vld [vmem:[%s1 + $0x480] sm:$0xff]
  %v196 = vld [vmem:[%s1 + $0x488] sm:$0xff]
  %v197 = vld [vmem:[%s1 + $0x490] sm:$0xff]
  %v198 = vld [vmem:[%s1 + $0x498] sm:$0xff]
  %v199 = vld [vmem:[%s1 + $0x4a0] sm:$0xff]
  %v200 = vld [vmem:[%s1 + $0x4a8] sm:$0xff]
  %v201 = vld [vmem:[%s1 + $0x4b0] sm:$0xff]
  %v202 = vld [vmem:[%s1 + $0x4b8] sm:$0xff]
  %v203 = vld [vmem:[%s1 + $0x4c0] sm:$0xff]
  %v204 = vld [vmem:[%s1 + $0x4c8] sm:$0xff]
  %v205 = vld [vmem:[%s1 + $0x4d0] sm:$0xff]
  %v206 = vld [vmem:[%s1 + $0x4d8] sm:$0xff]
  %v207 = vld [vmem:[%s1 + $0x4e0] sm:$0xff]
  %v208 = vld [vmem:[%s1 + $0x4e8] sm:$0xff]
  %v209 = vld [vmem:[%s1 + $0x4f0] sm:$0xff]
  %v210 = vld [vmem:[%s1 + $0x4f8] sm:$0xff]
  %v211 = vld [vmem:[%s1 + $0x500] sm:$0xff]
  %v212 = vld [vmem:[%s1 + $0x508] sm:$0xff]
  %v213 = vld [vmem:[%s1 + $0x510] sm:$0xff]
  %v214 = vld [vmem:[%s1 + $0x518] sm:$0xff]
  %v215 = vld [vmem:[%s1 + $0x520] sm:$0xff]
  %v216 = vld [vmem:[%s1 + $0x528] sm:$0xff]
  %v217 = vld [vmem:[%s1 + $0x530] sm:$0xff]
  %v218 = vld [vmem:[%s1 + $0x538] sm:$0xff]
  %v219 = vld [vmem:[%s1 + $0x540] sm:$0xff]
  %v220 = vld [vmem:[%s1 + $0x548] sm:$0xff]
  %v221 = vld [vmem:[%s1 + $0x550] sm:$0xff]
  %v222 = vld [vmem:[%s1 + $0x558] sm:$0xff]
  %v223 = vld [vmem:[%s1 + $0x560] sm:$0xff]
  %v224 = vld [vmem:[%s1 + $0x568] sm:$0xff]
  %v225 = vld [vmem:[%s1 + $0x570] sm:$0xff]
  %v226 = vld [vmem:[%s1 + $0x578] sm:$0xff]
  %v227 = vld [vmem:[%s1 + $0x580] sm:$0xff]
  %v228 = vld [vmem:[%s1 + $0x588] sm:$0xff]
  %v229 = vld [vmem:[%s1 + $0x590] sm:$0xff]
  %v230 = vld [vmem:[%s1 + $0x598] sm:$0xff]
  %v231 = vld [vmem:[%s1 + $0x5a0] sm:$0xff]
  %v232 = vld [vmem:[%s1 + $0x5a8] sm:$0xff]
  %v233 = vld [vmem:[%s1 + $0x5b0] sm:$0xff]
  %v234 = vld [vmem:[%s1 + $0x5b8] sm:$0xff]
  %v235 = vld [vmem:[%s1 + $0x5c0] sm:$0xff]
  %v236 = vld [vmem:[%s1 + $0x5c8] sm:$0xff]
  %v237 = vld [vmem:[%s1 + $0x5d0] sm:$0xff]
  %v238 = vld [vmem:[%s1 + $0x5d8] sm:$0xff]
  %v239 = vld [vmem:[%s1 + $0x5e0] sm:$0xff]
  %v240 = vld [vmem:[%s1 + $0x5e8] sm:$0xff]
  %v241 = vld [vmem:[%s1 + $0x5f0] sm:$0xff]
  %v242 = vld [vmem:[%s1 + $0x5f8] sm:$0xff]
  %v243 = vld [vmem:[%s1 + $0x600] sm:$0xff]
  %v244 = vld [vmem:[%s1 + $0x608] sm:$0xff]
  %v245 = vld [vmem:[%s1 + $0x610] sm:$0xff]
  %v246 = vld [vmem:[%s1 + $0x618] sm:$0xff]
  %v247 = vld [vmem:[%s1 + $0x620] sm:$0xff]
  %v248 = vld [vmem:[%s1 + $0x628] sm:$0xff]
  %v249 = vld [vmem:[%s1 + $0x630] sm:$0xff]
  %v250 = vld [vmem:[%s1 + $0x638] sm:$0xff]
  %v251 = vld [vmem:[%s1 + $0x640] sm:$0xff]
  %v252 = vld [vmem:[%s1 + $0x648] sm:$0xff]
  %v253 = vld [vmem:[%s1 + $0x650] sm:$0xff]
  %v254 = vld [vmem:[%s1 + $0x658] sm:$0xff]
  %v255 = vld [vmem:[%s1 + $0x660] sm:$0xff]
  %v256 = vld [vmem:[%s1 + $0x668] sm:$0xff]
  %v257 = vld [vmem:[%s1 + $0x670] sm:$0xff]
  %v258 = vld [vmem:[%s1 + $0x678] sm:$0xff]
  %v259 = vld [vmem:[%s1 + $0x680] sm:$0xff]
  %v260 = vld [vmem:[%s1 + $0x688] sm:$0xff]
  %v261 = vld [vmem:[%s1 + $0x690] sm:$0xff]
  %v262 = vld [vmem:[%s1 + $0x698] sm:$0xff]
  %v263 = vld [vmem:[%s1 + $0x6a0] sm:$0xff]
  %v264 = vld [vmem:[%s1 + $0x6a8] sm:$0xff]
  %v265 = vld [vmem:[%s1 + $0x6b0] sm:$0xff]
  %v266 = vld [vmem:[%s1 + $0x6b8] sm:$0xff]
  %v267 = vld [vmem:[%s1 + $0x6c0] sm:$0xff]
  %v268 = vld [vmem:[%s1 + $0x6c8] sm:$0xff]
  %v269 = vld [vmem:[%s1 + $0x6d0] sm:$0xff]
  %v270 = vld [vmem:[%s1 + $0x6d8] sm:$0xff]
  %v271 = vld [vmem:[%s1 + $0x6e0] sm:$0xff]
  %v272 = vld [vmem:[%s1 + $0x6e8] sm:$0xff]
  %v273 = vld [vmem:[%s1 + $0x6f0] sm:$0xff]
  %v274 = vld [vmem:[%s1 + $0x6f8] sm:$0xff]
  %v275 = vld [vmem:[%s1 + $0x700] sm:$0xff]
  %v276 = vld [vmem:[%s1 + $0x708] sm:$0xff]
  %v277 = vld [vmem:[%s1 + $0x710] sm:$0xff]
  %v278 = vld [vmem:[%s1 + $0x718] sm:$0xff]
  %v279 = vld [vmem:[%s1 + $0x720] sm:$0xff]
  %v280 = vld [vmem:[%s1 + $0x728] sm:$0xff]
  %v281 = vld [vmem:[%s1 + $0x730] sm:$0xff]
  %v282 = vld [vmem:[%s1 + $0x738] sm:$0xff]
  %v283 = vld [vmem:[%s1 + $0x740] sm:$0xff]
  %v284 = vld [vmem:[%s1 + $0x748] sm:$0xff]
  %v285 = vld [vmem:[%s1 + $0x750] sm:$0xff]
  %v286 = vld [vmem:[%s1 + $0x758] sm:$0xff]
  %v287 = vld [vmem:[%s1 + $0x760] sm:$0xff]
  %v288 = vld [vmem:[%s1 + $0x768] sm:$0xff]
  %v289 = vld [vmem:[%s1 + $0x770] sm:$0xff]
  %v290 = vld [vmem:[%s1 + $0x778] sm:$0xff]
  %v291 = vld [vmem:[%s1 + $0x780] sm:$0xff]
  %v292 = vld [vmem:[%s1 + $0x788] sm:$0xff]
  %v293 = vld [vmem:[%s1 + $0x790] sm:$0xff]
  %v294 = vld [vmem:[%s1 + $0x798] sm:$0xff]
  %v295 = vld [vmem:[%s1 + $0x7a0] sm:$0xff]
  %v296 = vld [vmem:[%s1 + $0x7a8] sm:$0xff]
  %v297 = vld [vmem:[%s1 + $0x7b0] sm:$0xff]
  %v298 = vld [vmem:[%s1 + $0x7b8] sm:$0xff]
  %v299 = vld [vmem:[%s1 + $0x7c0] sm:$0xff]
  %v300 = vld [vmem:[%s1 + $0x7c8] sm:$0xff]
  %v301 = vld [vmem:[%s1 + $0x7d0] sm:$0xff]
  %v302 = vld [vmem:[%s1 + $0x7d8] sm:$0xff]
  %v303 = vld [vmem:[%s1 + $0x7e0] sm:$0xff]
  %v304 = vld [vmem:[%s1 + $0x7e8] sm:$0xff]
  %v305 = vld [vmem:[%s1 + $0x7f0] sm:$0xff]
  %v306 = vld [vmem:[%s1 + $0x7f8] sm:$0xff]
  %v307 = vld [vmem:[%s1 + $0x800] sm:$0xff]
  %v308 = vld [vmem:[%s1 + $0x808] sm:$0xff]
  %v309 = vld [vmem:[%s1 + $0x810] sm:$0xff]
  %v310 = vld [vmem:[%s1 + $0x818] sm:$0xff]
  %v311 = vld [vmem:[%s1 + $0x820] sm:$0xff]
  %v312 = vld [vmem:[%s1 + $0x828] sm:$0xff]
  %v313 = vld [vmem:[%s1 + $0x830] sm:$0xff]
  %v314 = vld [vmem:[%s1 + $0x838] sm:$0xff]
  %v315 = vld [vmem:[%s1 + $0x840] sm:$0xff]
  %v316 = vld [vmem:[%s1 + $0x848] sm:$0xff]
  %v317 = vld [vmem:[%s1 + $0x850] sm:$0xff]
  %v318 = vld [vmem:[%s1 + $0x858] sm:$0xff]
  %v319 = vld [vmem:[%s1 + $0x860] sm:$0xff]
  %v320 = vld [vmem:[%s1 + $0x868] sm:$0xff]
  %v321 = vld [vmem:[%s1 + $0x870] sm:$0xff]
  %v322 = vld [vmem:[%s1 + $0x878] sm:$0xff]
  %v323 = vld [vmem:[%s1 + $0x880] sm:$0xff]
  %v324 = vld [vmem:[%s1 + $0x888] sm:$0xff]
  %v325 = vld [vmem:[%s1 + $0x890] sm:$0xff]
  %v326 = vld [vmem:[%s1 + $0x898] sm:$0xff]
  %v327 = vld [vmem:[%s1 + $0x8a0] sm:$0xff]
  %v328 = vld [vmem:[%s1 + $0x8a8] sm:$0xff]
  %v329 = vld [vmem:[%s1 + $0x8b0] sm:$0xff]
  %v330 = vld [vmem:[%s1 + $0x8b8] sm:$0xff]
  %v331 = vld [vmem:[%s1 + $0x8c0] sm:$0xff]
  %v332 = vld [vmem:[%s1 + $0x8c8] sm:$0xff]
  %v333 = vld [vmem:[%s1 + $0x8d0] sm:$0xff]
  %v334 = vld [vmem:[%s1 + $0x8d8] sm:$0xff]
  %v335 = vld [vmem:[%s1 + $0x8e0] sm:$0xff]
  %v336 = vld [vmem:[%s1 + $0x8e8] sm:$0xff]
  %v337 = vld [vmem:[%s1 + $0x8f0] sm:$0xff]
  %v338 = vld [vmem:[%s1 + $0x8f8] sm:$0xff]
  %v339 = vld [vmem:[%s1 + $0x900] sm:$0xff]
  %v340 = vld [vmem:[%s1 + $0x908] sm:$0xff]
  %v341 = vld [vmem:[%s1 + $0x910] sm:$0xff]
  %v342 = vld [vmem:[%s1 + $0x918] sm:$0xff]
  %v343 = vld [vmem:[%s1 + $0x920] sm:$0xff]
  %v344 = vld [vmem:[%s1 + $0x928] sm:$0xff]
  %v345 = vld [vmem:[%s1 + $0x930] sm:$0xff]
  %v346 = vld [vmem:[%s1 + $0x938] sm:$0xff]
  %v347 = vld [vmem:[%s1 + $0x940] sm:$0xff]
  %v348 = vld [vmem:[%s1 + $0x948] sm:$0xff]
  %v349 = vld [vmem:[%s1 + $0x950] sm:$0xff]
  %v350 = vld [vmem:[%s1 + $0x958] sm:$0xff]
  %v351 = vld [vmem:[%s1 + $0x960] sm:$0xff]
  %v352 = vld [vmem:[%s1 + $0x968] sm:$0xff]
  %v353 = vld [vmem:[%s1 + $0x970] sm:$0xff]
  %v354 = vld [vmem:[%s1 + $0x978] sm:$0xff]
  %v355 = vld [vmem:[%s1 + $0x980] sm:$0xff]
  %v356 = vld [vmem:[%s1 + $0x988] sm:$0xff]
  %v357 = vld [vmem:[%s1 + $0x990] sm:$0xff]
  %v358 = vld [vmem:[%s1 + $0x998] sm:$0xff]
  %v359 = vld [vmem:[%s1 + $0x9a0] sm:$0xff]
  %v360 = vld [vmem:[%s1 + $0x9a8] sm:$0xff]
  %v361 = vld [vmem:[%s1 + $0x9b0] sm:$0xff]
  %v362 = vld [vmem:[%s1 + $0x9b8] sm:$0xff]
  %v363 = vld [vmem:[%s1 + $0x9c0] sm:$0xff]
  %v364 = vld [vmem:[%s1 + $0x9c8] sm:$0xff]
  %v365 = vld [vmem:[%s1 + $0x9d0] sm:$0xff]
  %v366 = vld [vmem:[%s1 + $0x9d8] sm:$0xff]
  %v367 = vld [vmem:[%s1 + $0x9e0] sm:$0xff]
  %v368 = vld [vmem:[%s1 + $0x9e8] sm:$0xff]
  %v369 = vld [vmem:[%s1 + $0x9f0] sm:$0xff]
  %v370 = vld [vmem:[%s1 + $0x9f8] sm:$0xff]
  %v371 = vld [vmem:[%s1 + $0xa00] sm:$0xff]
  %v372 = vld [vmem:[%s1 + $0xa08] sm:$0xff]
  %v373 = vld [vmem:[%s1 + $0xa10] sm:$0xff]
  %v374 = vld [vmem:[%s1 + $0xa18] sm:$0xff]
  %v375 = vld [vmem:[%s1 + $0xa20] sm:$0xff]
  %v376 = vld [vmem:[%s1 + $0xa28] sm:$0xff]
  %v377 = vld [vmem:[%s1 + $0xa30] sm:$0xff]
  %v378 = vld [vmem:[%s1 + $0xa38] sm:$0xff]
  %v379 = vld [vmem:[%s1 + $0xa40] sm:$0xff]
  %v380 = vld [vmem:[%s1 + $0xa48] sm:$0xff]
  %v381 = vld [vmem:[%s1 + $0xa50] sm:$0xff]
  %v382 = vld [vmem:[%s1 + $0xa58] sm:$0xff]
  %v383 = vld [vmem:[%s1 + $0xa60] sm:$0xff]
  %v384 = vld [vmem:[%s1 + $0xa68] sm:$0xff]
  %v385 = vld [vmem:[%s1 + $0xa70] sm:$0xff]
  %v386 = vld [vmem:[%s1 + $0xa78] sm:$0xff]
  %v387 = vld [vmem:[%s1 + $0xa80] sm:$0xff]
  %v388 = vld [vmem:[%s1 + $0xa88] sm:$0xff]
  %v389 = vld [vmem:[%s1 + $0xa90] sm:$0xff]
  %v390 = vld [vmem:[%s1 + $0xa98] sm:$0xff]
  %v391 = vld [vmem:[%s1 + $0xaa0] sm:$0xff]
  %v392 = vld [vmem:[%s1 + $0xaa8] sm:$0xff]
  %v393 = vld [vmem:[%s1 + $0xab0] sm:$0xff]
  %v394 = vld [vmem:[%s1 + $0xab8] sm:$0xff]
  %v395 = vld [vmem:[%s1 + $0xac0] sm:$0xff]
  %v396 = vld [vmem:[%s1 + $0xac8] sm:$0xff]
  %v397 = vld [vmem:[%s1 + $0xad0] sm:$0xff]
  %v398 = vld [vmem:[%s1 + $0xad8] sm:$0xff]
  %v399 = vld [vmem:[%s1 + $0xae0] sm:$0xff]
  %v400 = vld [vmem:[%s1 + $0xae8] sm:$0xff]
  %v401 = vld [vmem:[%s1 + $0xaf0] sm:$0xff]
  %v402 = vld [vmem:[%s1 + $0xaf8] sm:$0xff]
  %v403 = vld [vmem:[%s1 + $0xb00] sm:$0xff]
  %v404 = vld [vmem:[%s1 + $0xb08] sm:$0xff]
  %v405 = vld [vmem:[%s1 + $0xb10] sm:$0xff]
  %v406 = vld [vmem:[%s1 + $0xb18] sm:$0xff]
  %v407 = vld [vmem:[%s1 + $0xb20] sm:$0xff]
  %v408 = vld [vmem:[%s1 + $0xb28] sm:$0xff]
  %v409 = vld [vmem:[%s1 + $0xb30] sm:$0xff]
  %v410 = vld [vmem:[%s1 + $0xb38] sm:$0xff]
  %v411 = vld [vmem:[%s1 + $0xb40] sm:$0xff]
  %v412 = vld [vmem:[%s1 + $0xb48] sm:$0xff]
  %v413 = vld [vmem:[%s1 + $0xb50] sm:$0xff]
  %v414 = vld [vmem:[%s1 + $0xb58] sm:$0xff]
  %v415 = vld [vmem:[%s1 + $0xb60] sm:$0xff]
  %v416 = vld [vmem:[%s1 + $0xb68] sm:$0xff]
  %v417 = vld [vmem:[%s1 + $0xb70] sm:$0xff]
  %v418 = vld [vmem:[%s1 + $0xb78] sm:$0xff]
  %v419 = vld [vmem:[%s1 + $0xb80] sm:$0xff]
  %v420 = vld [vmem:[%s1 + $0xb88] sm:$0xff]
  %v421 = vld [vmem:[%s1 + $0xb90] sm:$0xff]
  %v422 = vld [vmem:[%s1 + $0xb98] sm:$0xff]
  %v423 = vld [vmem:[%s1 + $0xba0] sm:$0xff]
  %v424 = vld [vmem:[%s1 + $0xba8] sm:$0xff]
  %v425 = vld [vmem:[%s1 + $0xbb0] sm:$0xff]
  %v426 = vld [vmem:[%s1 + $0xbb8] sm:$0xff]
  %v427 = vld [vmem:[%s1 + $0xbc0] sm:$0xff]
  %v428 = vld [vmem:[%s1 + $0xbc8] sm:$0xff]
  %v429 = vld [vmem:[%s1 + $0xbd0] sm:$0xff]
  %v430 = vld [vmem:[%s1 + $0xbd8] sm:$0xff]
  %v431 = vld [vmem:[%s1 + $0xbe0] sm:$0xff]
  %v432 = vld [vmem:[%s1 + $0xbe8] sm:$0xff]
  %v433 = vld [vmem:[%s1 + $0xbf0] sm:$0xff]
  %v434 = vld [vmem:[%s1 + $0xbf8] sm:$0xff]
  %v435 = vld [vmem:[%s1 + $0xc00] sm:$0xff]
  %v436 = vld [vmem:[%s1 + $0xc08] sm:$0xff]
  %v437 = vld [vmem:[%s1 + $0xc10] sm:$0xff]
  %v438 = vld [vmem:[%s1 + $0xc18] sm:$0xff]
  %v439 = vld [vmem:[%s1 + $0xc20] sm:$0xff]
  %v440 = vld [vmem:[%s1 + $0xc28] sm:$0xff]
  %v441 = vld [vmem:[%s1 + $0xc30] sm:$0xff]
  %v442 = vld [vmem:[%s1 + $0xc38] sm:$0xff]
  %v443 = vld [vmem:[%s1 + $0xc40] sm:$0xff]
  %v444 = vld [vmem:[%s1 + $0xc48] sm:$0xff]
  %v445 = vld [vmem:[%s1 + $0xc50] sm:$0xff]
  %v446 = vld [vmem:[%s1 + $0xc58] sm:$0xff]
  %v447 = vld [vmem:[%s1 + $0xc60] sm:$0xff]
  %v448 = vld [vmem:[%s1 + $0xc68] sm:$0xff]
  %v449 = vld [vmem:[%s1 + $0xc70] sm:$0xff]
  %v450 = vld [vmem:[%s1 + $0xc78] sm:$0xff]
  %v451 = vld [vmem:[%s2] sm:$0x1]
  %v453 = vlaneseq
  %v454 = vshrl.u32 %v453, 7
  %v455 = vsub.s32 0, %v454
  %v456 = vrot.slane %v451, %v455
  %458 = vmatprep.subr.mxu0 0.0
  %459 = vmatpush1.msra.mxu0 %v51
  %460 = vmatprep.subr.mxu0 0.0
  %461 = vmatpush1.msra.mxu0 %v52
  %462 = vmatprep.subr.mxu0 0.0
  %463 = vmatpush1.msra.mxu0 %v53
  %464 = vmatprep.subr.mxu0 0.0
  %465 = vmatpush1.msra.mxu0 %v54
  %466 = vmatprep.subr.mxu0 0.0
  %467 = vmatpush1.msra.mxu0 %v55
  %468 = vmatprep.subr.mxu0 0.0
  %469 = vmatpush1.msra.mxu0 %v56
  %470 = vmatprep.subr.mxu0 0.0
  %471 = vmatpush1.msra.mxu0 %v57
  %472 = vmatprep.subr.mxu0 0.0
  %473 = vmatpush1.msra.mxu0 %v58
  %474 = vmatprep.subr.mxu0 0.0
  %475 = vmatpush1.msra.mxu0 %v59
  %476 = vmatprep.subr.mxu0 0.0
  %477 = vmatpush1.msra.mxu0 %v60
  %478 = vmatprep.subr.mxu0 0.0
  %479 = vmatpush1.msra.mxu0 %v61
  %480 = vmatprep.subr.mxu0 0.0
  %481 = vmatpush1.msra.mxu0 %v62
  %482 = vmatprep.subr.mxu0 0.0
  %483 = vmatpush1.msra.mxu0 %v63
  %484 = vmatprep.subr.mxu0 0.0
  %485 = vmatpush1.msra.mxu0 %v64
  %486 = vmatprep.subr.mxu0 0.0
  %487 = vmatpush1.msra.mxu0 %v65
  %488 = vmatprep.subr.mxu0 0.0
  %489 = vmatpush1.msra.mxu0 %v66
  %490 = vmatprep.subr.mxu0 0.0
  %491 = vmatpush1.msra.mxu0 %v67
  %492 = vmatprep.subr.mxu0 0.0
  %493 = vmatpush1.msra.mxu0 %v68
  %494 = vmatprep.subr.mxu0 0.0
  %495 = vmatpush1.msra.mxu0 %v69
  %496 = vmatprep.subr.mxu0 0.0
  %497 = vmatpush1.msra.mxu0 %v70
  %498 = vmatprep.subr.mxu0 0.0
  %499 = vmatpush1.msra.mxu0 %v71
  %500 = vmatprep.subr.mxu0 0.0
  %501 = vmatpush1.msra.mxu0 %v72
  %502 = vmatprep.subr.mxu0 0.0
  %503 = vmatpush1.msra.mxu0 %v73
  %504 = vmatprep.subr.mxu0 0.0
  %505 = vmatpush1.msra.mxu0 %v74
  %506 = vmatprep.subr.mxu0 0.0
  %507 = vmatpush1.msra.mxu0 %v75
  %508 = vmatprep.subr.mxu0 0.0
  %509 = vmatpush1.msra.mxu0 %v76
  %510 = vmatprep.subr.mxu0 0.0
  %511 = vmatpush1.msra.mxu0 %v77
  %512 = vmatprep.subr.mxu0 0.0
  %513 = vmatpush1.msra.mxu0 %v78
  %514 = vmatprep.subr.mxu0 0.0
  %515 = vmatpush1.msra.mxu0 %v79
  %516 = vmatprep.subr.mxu0 0.0
  %517 = vmatpush1.msra.mxu0 %v80
  %518 = vmatprep.subr.mxu0 0.0
  %519 = vmatpush1.msra.mxu0 %v81
  %520 = vmatprep.subr.mxu0 0.0
  %521 = vmatpush1.msra.mxu0 %v82
  %522 = vmatprep.mubr.f32.mxu0 %v27
  %523 = vmatmul.mubr.f32.gmra.mrb[0].mxu0 %v26
  %v524 = vpop.f32.mrb[0].mxu0
  %v525 = vadd.f32 %v456, %v524
  %v526 = vpop.f32.mrb[0].mxu0
  %527 = vdwg.mxu0
  %528 = vmatprep.subr.mxu0 0.0
  %529 = vmatpush1.msra.mxu0 %v83
  %530 = vmatprep.subr.mxu0 0.0
  %531 = vmatpush1.msra.mxu0 %v84
  %532 = vmatprep.subr.mxu0 0.0
  %533 = vmatpush1.msra.mxu0 %v85
  %534 = vmatprep.subr.mxu0 0.0
  %535 = vmatpush1.msra.mxu0 %v86
  %536 = vmatprep.subr.mxu0 0.0
  %537 = vmatpush1.msra.mxu0 %v87
  %538 = vmatprep.subr.mxu0 0.0
  %539 = vmatpush1.msra.mxu0 %v88
  %540 = vmatprep.subr.mxu0 0.0
  %541 = vmatpush1.msra.mxu0 %v89
  %542 = vmatprep.subr.mxu0 0.0
  %543 = vmatpush1.msra.mxu0 %v90
  %544 = vmatprep.subr.mxu0 0.0
  %545 = vmatpush1.msra.mxu0 %v91
  %546 = vmatprep.subr.mxu0 0.0
  %547 = vmatpush1.msra.mxu0 %v92
  %548 = vmatprep.subr.mxu0 0.0
  %549 = vmatpush1.msra.mxu0 %v93
  %550 = vmatprep.subr.mxu0 0.0
  %551 = vmatpush1.msra.mxu0 %v94
  %552 = vmatprep.subr.mxu0 0.0
  %553 = vmatpush1.msra.mxu0 %v95
  %554 = vmatprep.subr.mxu0 0.0
  %555 = vmatpush1.msra.mxu0 %v96
  %556 = vmatprep.subr.mxu0 0.0
  %557 = vmatpush1.msra.mxu0 %v97
  %558 = vmatprep.subr.mxu0 0.0
  %559 = vmatpush1.msra.mxu0 %v98
  %560 = vmatprep.subr.mxu0 0.0
  %561 = vmatpush1.msra.mxu0 %v99
  %562 = vmatprep.subr.mxu0 0.0
  %563 = vmatpush1.msra.mxu0 %v100
  %564 = vmatprep.subr.mxu0 0.0
  %565 = vmatpush1.msra.mxu0 %v101
  %566 = vmatprep.subr.mxu0 0.0
  %567 = vmatpush1.msra.mxu0 %v102
  %568 = vmatprep.subr.mxu0 0.0
  %569 = vmatpush1.msra.mxu0 %v103
  %570 = vmatprep.subr.mxu0 0.0
  %571 = vmatpush1.msra.mxu0 %v104
  %572 = vmatprep.subr.mxu0 0.0
  %573 = vmatpush1.msra.mxu0 %v105
  %574 = vmatprep.subr.mxu0 0.0
  %575 = vmatpush1.msra.mxu0 %v106
  %576 = vmatprep.subr.mxu0 0.0
  %577 = vmatpush1.msra.mxu0 %v107
  %578 = vmatprep.subr.mxu0 0.0
  %579 = vmatpush1.msra.mxu0 %v108
  %580 = vmatprep.subr.mxu0 0.0
  %581 = vmatpush1.msra.mxu0 %v109
  %582 = vmatprep.subr.mxu0 0.0
  %583 = vmatpush1.msra.mxu0 %v110
  %584 = vmatprep.subr.mxu0 0.0
  %585 = vmatpush1.msra.mxu0 %v111
  %586 = vmatprep.subr.mxu0 0.0
  %587 = vmatpush1.msra.mxu0 %v112
  %588 = vmatprep.subr.mxu0 0.0
  %589 = vmatpush1.msra.mxu0 %v113
  %590 = vmatprep.subr.mxu0 0.0
  %591 = vmatpush1.msra.mxu0 %v114
  %592 = vmatprep.mubr.f32.mxu0 %v29
  %593 = vmatmul.mubr.f32.gmra.mrb[0].mxu0 %v28
  %v594 = vpop.f32.mrb[0].mxu0
  %v595 = vadd.f32 %v525, %v594
  %v596 = vpop.f32.mrb[0].mxu0
  %597 = vdwg.mxu0
  %598 = vmatprep.subr.mxu0 0.0
  %599 = vmatpush1.msra.mxu0 %v115
  %600 = vmatprep.subr.mxu0 0.0
  %601 = vmatpush1.msra.mxu0 %v116
  %602 = vmatprep.subr.mxu0 0.0
  %603 = vmatpush1.msra.mxu0 %v117
  %604 = vmatprep.subr.mxu0 0.0
  %605 = vmatpush1.msra.mxu0 %v118
  %606 = vmatprep.subr.mxu0 0.0
  %607 = vmatpush1.msra.mxu0 %v119
  %608 = vmatprep.subr.mxu0 0.0
  %609 = vmatpush1.msra.mxu0 %v120
  %610 = vmatprep.subr.mxu0 0.0
  %611 = vmatpush1.msra.mxu0 %v121
  %612 = vmatprep.subr.mxu0 0.0
  %613 = vmatpush1.msra.mxu0 %v122
  %614 = vmatprep.subr.mxu0 0.0
  %615 = vmatpush1.msra.mxu0 %v123
  %616 = vmatprep.subr.mxu0 0.0
  %617 = vmatpush1.msra.mxu0 %v124
  %618 = vmatprep.subr.mxu0 0.0
  %619 = vmatpush1.msra.mxu0 %v125
  %620 = vmatprep.subr.mxu0 0.0
  %621 = vmatpush1.msra.mxu0 %v126
  %622 = vmatprep.subr.mxu0 0.0
  %623 = vmatpush1.msra.mxu0 %v127
  %624 = vmatprep.subr.mxu0 0.0
  %625 = vmatpush1.msra.mxu0 %v128
  %626 = vmatprep.subr.mxu0 0.0
  %627 = vmatpush1.msra.mxu0 %v129
  %628 = vmatprep.subr.mxu0 0.0
  %629 = vmatpush1.msra.mxu0 %v130
  %630 = vmatprep.subr.mxu0 0.0
  %631 = vmatpush1.msra.mxu0 %v131
  %632 = vmatprep.subr.mxu0 0.0
  %633 = vmatpush1.msra.mxu0 %v132
  %634 = vmatprep.subr.mxu0 0.0
  %635 = vmatpush1.msra.mxu0 %v133
  %636 = vmatprep.subr.mxu0 0.0
  %637 = vmatpush1.msra.mxu0 %v134
  %638 = vmatprep.subr.mxu0 0.0
  %639 = vmatpush1.msra.mxu0 %v135
  %640 = vmatprep.subr.mxu0 0.0
  %641 = vmatpush1.msra.mxu0 %v136
  %642 = vmatprep.subr.mxu0 0.0
  %643 = vmatpush1.msra.mxu0 %v137
  %644 = vmatprep.subr.mxu0 0.0
  %645 = vmatpush1.msra.mxu0 %v138
  %646 = vmatprep.subr.mxu0 0.0
  %647 = vmatpush1.msra.mxu0 %v139
  %648 = vmatprep.subr.mxu0 0.0
  %649 = vmatpush1.msra.mxu0 %v140
  %650 = vmatprep.subr.mxu0 0.0
  %651 = vmatpush1.msra.mxu0 %v141
  %652 = vmatprep.subr.mxu0 0.0
  %653 = vmatpush1.msra.mxu0 %v142
  %654 = vmatprep.subr.mxu0 0.0
  %655 = vmatpush1.msra.mxu0 %v143
  %656 = vmatprep.subr.mxu0 0.0
  %657 = vmatpush1.msra.mxu0 %v144
  %658 = vmatprep.subr.mxu0 0.0
  %659 = vmatpush1.msra.mxu0 %v145
  %660 = vmatprep.subr.mxu0 0.0
  %661 = vmatpush1.msra.mxu0 %v146
  %662 = vmatprep.mubr.f32.mxu0 %v31
  %663 = vmatmul.mubr.f32.gmra.mrb[0].mxu0 %v30
  %v664 = vpop.f32.mrb[0].mxu0
  %v665 = vadd.f32 %v595, %v664
  %v666 = vpop.f32.mrb[0].mxu0
  %667 = vdwg.mxu0
  %668 = vmatprep.subr.mxu0 0.0
  %669 = vmatpush1.msra.mxu0 %v147
  %670 = vmatprep.subr.mxu0 0.0
  %671 = vmatpush1.msra.mxu0 %v148
  %672 = vmatprep.subr.mxu0 0.0
  %673 = vmatpush1.msra.mxu0 %v149
  %674 = vmatprep.subr.mxu0 0.0
  %675 = vmatpush1.msra.mxu0 %v150
  %676 = vmatprep.subr.mxu0 0.0
  %677 = vmatpush1.msra.mxu0 %v151
  %678 = vmatprep.subr.mxu0 0.0
  %679 = vmatpush1.msra.mxu0 %v152
  %680 = vmatprep.subr.mxu0 0.0
  %681 = vmatpush1.msra.mxu0 %v153
  %682 = vmatprep.subr.mxu0 0.0
  %683 = vmatpush1.msra.mxu0 %v154
  %684 = vmatprep.subr.mxu0 0.0
  %685 = vmatpush1.msra.mxu0 %v155
  %686 = vmatprep.subr.mxu0 0.0
  %687 = vmatpush1.msra.mxu0 %v156
  %688 = vmatprep.subr.mxu0 0.0
  %689 = vmatpush1.msra.mxu0 %v157
  %690 = vmatprep.subr.mxu0 0.0
  %691 = vmatpush1.msra.mxu0 %v158
  %692 = vmatprep.subr.mxu0 0.0
  %693 = vmatpush1.msra.mxu0 %v159
  %694 = vmatprep.subr.mxu0 0.0
  %695 = vmatpush1.msra.mxu0 %v160
  %696 = vmatprep.subr.mxu0 0.0
  %697 = vmatpush1.msra.mxu0 %v161
  %698 = vmatprep.subr.mxu0 0.0
  %699 = vmatpush1.msra.mxu0 %v162
  %700 = vmatprep.subr.mxu0 0.0
  %701 = vmatpush1.msra.mxu0 %v163
  %702 = vmatprep.subr.mxu0 0.0
  %703 = vmatpush1.msra.mxu0 %v164
  %704 = vmatprep.subr.mxu0 0.0
  %705 = vmatpush1.msra.mxu0 %v165
  %706 = vmatprep.subr.mxu0 0.0
  %707 = vmatpush1.msra.mxu0 %v166
  %708 = vmatprep.subr.mxu0 0.0
  %709 = vmatpush1.msra.mxu0 %v167
  %710 = vmatprep.subr.mxu0 0.0
  %711 = vmatpush1.msra.mxu0 %v168
  %712 = vmatprep.subr.mxu0 0.0
  %713 = vmatpush1.msra.mxu0 %v169
  %714 = vmatprep.subr.mxu0 0.0
  %715 = vmatpush1.msra.mxu0 %v170
  %716 = vmatprep.subr.mxu0 0.0
  %717 = vmatpush1.msra.mxu0 %v171
  %718 = vmatprep.subr.mxu0 0.0
  %719 = vmatpush1.msra.mxu0 %v172
  %720 = vmatprep.subr.mxu0 0.0
  %721 = vmatpush1.msra.mxu0 %v173
  %722 = vmatprep.subr.mxu0 0.0
  %723 = vmatpush1.msra.mxu0 %v174
  %724 = vmatprep.subr.mxu0 0.0
  %725 = vmatpush1.msra.mxu0 %v175
  %726 = vmatprep.subr.mxu0 0.0
  %727 = vmatpush1.msra.mxu0 %v176
  %728 = vmatprep.subr.mxu0 0.0
  %729 = vmatpush1.msra.mxu0 %v177
  %730 = vmatprep.subr.mxu0 0.0
  %731 = vmatpush1.msra.mxu0 %v178
  %732 = vmatprep.mubr.f32.mxu0 %v33
  %733 = vmatmul.mubr.f32.gmra.mrb[0].mxu0 %v32
  %v734 = vpop.f32.mrb[0].mxu0
  %v735 = vadd.f32 %v665, %v734
  %v736 = vpop.f32.mrb[0].mxu0
  %737 = vdwg.mxu0
  %738 = vmatprep.subr.mxu0 0.0
  %739 = vmatpush1.msra.mxu0 %v179
  %740 = vmatprep.subr.mxu0 0.0
  %741 = vmatpush1.msra.mxu0 %v180
  %742 = vmatprep.subr.mxu0 0.0
  %743 = vmatpush1.msra.mxu0 %v181
  %744 = vmatprep.subr.mxu0 0.0
  %745 = vmatpush1.msra.mxu0 %v182
  %746 = vmatprep.subr.mxu0 0.0
  %747 = vmatpush1.msra.mxu0 %v183
  %748 = vmatprep.subr.mxu0 0.0
  %749 = vmatpush1.msra.mxu0 %v184
  %750 = vmatprep.subr.mxu0 0.0
  %751 = vmatpush1.msra.mxu0 %v185
  %752 = vmatprep.subr.mxu0 0.0
  %753 = vmatpush1.msra.mxu0 %v186
  %754 = vmatprep.subr.mxu0 0.0
  %755 = vmatpush1.msra.mxu0 %v187
  %756 = vmatprep.subr.mxu0 0.0
  %757 = vmatpush1.msra.mxu0 %v188
  %758 = vmatprep.subr.mxu0 0.0
  %759 = vmatpush1.msra.mxu0 %v189
  %760 = vmatprep.subr.mxu0 0.0
  %761 = vmatpush1.msra.mxu0 %v190
  %762 = vmatprep.subr.mxu0 0.0
  %763 = vmatpush1.msra.mxu0 %v191
  %764 = vmatprep.subr.mxu0 0.0
  %765 = vmatpush1.msra.mxu0 %v192
  %766 = vmatprep.subr.mxu0 0.0
  %767 = vmatpush1.msra.mxu0 %v193
  %768 = vmatprep.subr.mxu0 0.0
  %769 = vmatpush1.msra.mxu0 %v194
  %770 = vmatprep.subr.mxu0 0.0
  %771 = vmatpush1.msra.mxu0 %v195
  %772 = vmatprep.subr.mxu0 0.0
  %773 = vmatpush1.msra.mxu0 %v196
  %774 = vmatprep.subr.mxu0 0.0
  %775 = vmatpush1.msra.mxu0 %v197
  %776 = vmatprep.subr.mxu0 0.0
  %777 = vmatpush1.msra.mxu0 %v198
  %778 = vmatprep.subr.mxu0 0.0
  %779 = vmatpush1.msra.mxu0 %v199
  %780 = vmatprep.subr.mxu0 0.0
  %781 = vmatpush1.msra.mxu0 %v200
  %782 = vmatprep.subr.mxu0 0.0
  %783 = vmatpush1.msra.mxu0 %v201
  %784 = vmatprep.subr.mxu0 0.0
  %785 = vmatpush1.msra.mxu0 %v202
  %786 = vmatprep.subr.mxu0 0.0
  %787 = vmatpush1.msra.mxu0 %v203
  %788 = vmatprep.subr.mxu0 0.0
  %789 = vmatpush1.msra.mxu0 %v204
  %790 = vmatprep.subr.mxu0 0.0
  %791 = vmatpush1.msra.mxu0 %v205
  %792 = vmatprep.subr.mxu0 0.0
  %793 = vmatpush1.msra.mxu0 %v206
  %794 = vmatprep.subr.mxu0 0.0
  %795 = vmatpush1.msra.mxu0 %v207
  %796 = vmatprep.subr.mxu0 0.0
  %797 = vmatpush1.msra.mxu0 %v208
  %798 = vmatprep.subr.mxu0 0.0
  %799 = vmatpush1.msra.mxu0 %v209
  %800 = vmatprep.subr.mxu0 0.0
  %801 = vmatpush1.msra.mxu0 %v210
  %802 = vmatprep.mubr.f32.mxu0 %v35
  %803 = vmatmul.mubr.f32.gmra.mrb[0].mxu0 %v34
  %v804 = vpop.f32.mrb[0].mxu0
  %v805 = vadd.f32 %v735, %v804
  %v806 = vpop.f32.mrb[0].mxu0
  %807 = vdwg.mxu0
  %808 = vmatprep.subr.mxu0 0.0
  %809 = vmatpush1.msra.mxu0 %v211
  %810 = vmatprep.subr.mxu0 0.0
  %811 = vmatpush1.msra.mxu0 %v212
  %812 = vmatprep.subr.mxu0 0.0
  %813 = vmatpush1.msra.mxu0 %v213
  %814 = vmatprep.subr.mxu0 0.0
  %815 = vmatpush1.msra.mxu0 %v214
  %816 = vmatprep.subr.mxu0 0.0
  %817 = vmatpush1.msra.mxu0 %v215
  %818 = vmatprep.subr.mxu0 0.0
  %819 = vmatpush1.msra.mxu0 %v216
  %820 = vmatprep.subr.mxu0 0.0
  %821 = vmatpush1.msra.mxu0 %v217
  %822 = vmatprep.subr.mxu0 0.0
  %823 = vmatpush1.msra.mxu0 %v218
  %824 = vmatprep.subr.mxu0 0.0
  %825 = vmatpush1.msra.mxu0 %v219
  %826 = vmatprep.subr.mxu0 0.0
  %827 = vmatpush1.msra.mxu0 %v220
  %828 = vmatprep.subr.mxu0 0.0
  %829 = vmatpush1.msra.mxu0 %v221
  %830 = vmatprep.subr.mxu0 0.0
  %831 = vmatpush1.msra.mxu0 %v222
  %832 = vmatprep.subr.mxu0 0.0
  %833 = vmatpush1.msra.mxu0 %v223
  %834 = vmatprep.subr.mxu0 0.0
  %835 = vmatpush1.msra.mxu0 %v224
  %836 = vmatprep.subr.mxu0 0.0
  %837 = vmatpush1.msra.mxu0 %v225
  %838 = vmatprep.subr.mxu0 0.0
  %839 = vmatpush1.msra.mxu0 %v226
  %840 = vmatprep.subr.mxu0 0.0
  %841 = vmatpush1.msra.mxu0 %v227
  %842 = vmatprep.subr.mxu0 0.0
  %843 = vmatpush1.msra.mxu0 %v228
  %844 = vmatprep.subr.mxu0 0.0
  %845 = vmatpush1.msra.mxu0 %v229
  %846 = vmatprep.subr.mxu0 0.0
  %847 = vmatpush1.msra.mxu0 %v230
  %848 = vmatprep.subr.mxu0 0.0
  %849 = vmatpush1.msra.mxu0 %v231
  %850 = vmatprep.subr.mxu0 0.0
  %851 = vmatpush1.msra.mxu0 %v232
  %852 = vmatprep.subr.mxu0 0.0
  %853 = vmatpush1.msra.mxu0 %v233
  %854 = vmatprep.subr.mxu0 0.0
  %855 = vmatpush1.msra.mxu0 %v234
  %856 = vmatprep.subr.mxu0 0.0
  %857 = vmatpush1.msra.mxu0 %v235
  %858 = vmatprep.subr.mxu0 0.0
  %859 = vmatpush1.msra.mxu0 %v236
  %860 = vmatprep.subr.mxu0 0.0
  %861 = vmatpush1.msra.mxu0 %v237
  %862 = vmatprep.subr.mxu0 0.0
  %863 = vmatpush1.msra.mxu0 %v238
  %864 = vmatprep.subr.mxu0 0.0
  %865 = vmatpush1.msra.mxu0 %v239
  %866 = vmatprep.subr.mxu0 0.0
  %867 = vmatpush1.msra.mxu0 %v240
  %868 = vmatprep.subr.mxu0 0.0
  %869 = vmatpush1.msra.mxu0 %v241
  %870 = vmatprep.subr.mxu0 0.0
  %871 = vmatpush1.msra.mxu0 %v242
  %872 = vmatprep.mubr.f32.mxu0 %v37
  %873 = vmatmul.mubr.f32.gmra.mrb[0].mxu0 %v36
  %v874 = vpop.f32.mrb[0].mxu0
  %v875 = vadd.f32 %v805, %v874
  %v876 = vpop.f32.mrb[0].mxu0
  %877 = vdwg.mxu0
  %878 = vmatprep.subr.mxu0 0.0
  %879 = vmatpush1.msra.mxu0 %v243
  %880 = vmatprep.subr.mxu0 0.0
  %881 = vmatpush1.msra.mxu0 %v244
  %882 = vmatprep.subr.mxu0 0.0
  %883 = vmatpush1.msra.mxu0 %v245
  %884 = vmatprep.subr.mxu0 0.0
  %885 = vmatpush1.msra.mxu0 %v246
  %886 = vmatprep.subr.mxu0 0.0
  %887 = vmatpush1.msra.mxu0 %v247
  %888 = vmatprep.subr.mxu0 0.0
  %889 = vmatpush1.msra.mxu0 %v248
  %890 = vmatprep.subr.mxu0 0.0
  %891 = vmatpush1.msra.mxu0 %v249
  %892 = vmatprep.subr.mxu0 0.0
  %893 = vmatpush1.msra.mxu0 %v250
  %894 = vmatprep.subr.mxu0 0.0
  %895 = vmatpush1.msra.mxu0 %v251
  %896 = vmatprep.subr.mxu0 0.0
  %897 = vmatpush1.msra.mxu0 %v252
  %898 = vmatprep.subr.mxu0 0.0
  %899 = vmatpush1.msra.mxu0 %v253
  %900 = vmatprep.subr.mxu0 0.0
  %901 = vmatpush1.msra.mxu0 %v254
  %902 = vmatprep.subr.mxu0 0.0
  %903 = vmatpush1.msra.mxu0 %v255
  %904 = vmatprep.subr.mxu0 0.0
  %905 = vmatpush1.msra.mxu0 %v256
  %906 = vmatprep.subr.mxu0 0.0
  %907 = vmatpush1.msra.mxu0 %v257
  %908 = vmatprep.subr.mxu0 0.0
  %909 = vmatpush1.msra.mxu0 %v258
  %910 = vmatprep.subr.mxu0 0.0
  %911 = vmatpush1.msra.mxu0 %v259
  %912 = vmatprep.subr.mxu0 0.0
  %913 = vmatpush1.msra.mxu0 %v260
  %914 = vmatprep.subr.mxu0 0.0
  %915 = vmatpush1.msra.mxu0 %v261
  %916 = vmatprep.subr.mxu0 0.0
  %917 = vmatpush1.msra.mxu0 %v262
  %918 = vmatprep.subr.mxu0 0.0
  %919 = vmatpush1.msra.mxu0 %v263
  %920 = vmatprep.subr.mxu0 0.0
  %921 = vmatpush1.msra.mxu0 %v264
  %922 = vmatprep.subr.mxu0 0.0
  %923 = vmatpush1.msra.mxu0 %v265
  %924 = vmatprep.subr.mxu0 0.0
  %925 = vmatpush1.msra.mxu0 %v266
  %926 = vmatprep.subr.mxu0 0.0
  %927 = vmatpush1.msra.mxu0 %v267
  %928 = vmatprep.subr.mxu0 0.0
  %929 = vmatpush1.msra.mxu0 %v268
  %930 = vmatprep.subr.mxu0 0.0
  %931 = vmatpush1.msra.mxu0 %v269
  %932 = vmatprep.subr.mxu0 0.0
  %933 = vmatpush1.msra.mxu0 %v270
  %934 = vmatprep.subr.mxu0 0.0
  %935 = vmatpush1.msra.mxu0 %v271
  %936 = vmatprep.subr.mxu0 0.0
  %937 = vmatpush1.msra.mxu0 %v272
  %938 = vmatprep.subr.mxu0 0.0
  %939 = vmatpush1.msra.mxu0 %v273
  %940 = vmatprep.subr.mxu0 0.0
  %941 = vmatpush1.msra.mxu0 %v274
  %942 = vmatprep.mubr.f32.mxu0 %v39
  %943 = vmatmul.mubr.f32.gmra.mrb[0].mxu0 %v38
  %v944 = vpop.f32.mrb[0].mxu0
  %v945 = vadd.f32 %v875, %v944
  %v946 = vpop.f32.mrb[0].mxu0
  %947 = vdwg.mxu0
  %948 = vmatprep.subr.mxu0 0.0
  %949 = vmatpush1.msra.mxu0 %v275
  %950 = vmatprep.subr.mxu0 0.0
  %951 = vmatpush1.msra.mxu0 %v276
  %952 = vmatprep.subr.mxu0 0.0
  %953 = vmatpush1.msra.mxu0 %v277
  %954 = vmatprep.subr.mxu0 0.0
  %955 = vmatpush1.msra.mxu0 %v278
  %956 = vmatprep.subr.mxu0 0.0
  %957 = vmatpush1.msra.mxu0 %v279
  %958 = vmatprep.subr.mxu0 0.0
  %959 = vmatpush1.msra.mxu0 %v280
  %960 = vmatprep.subr.mxu0 0.0
  %961 = vmatpush1.msra.mxu0 %v281
  %962 = vmatprep.subr.mxu0 0.0
  %963 = vmatpush1.msra.mxu0 %v282
  %964 = vmatprep.subr.mxu0 0.0
  %965 = vmatpush1.msra.mxu0 %v283
  %966 = vmatprep.subr.mxu0 0.0
  %967 = vmatpush1.msra.mxu0 %v284
  %968 = vmatprep.subr.mxu0 0.0
  %969 = vmatpush1.msra.mxu0 %v285
  %970 = vmatprep.subr.mxu0 0.0
  %971 = vmatpush1.msra.mxu0 %v286
  %972 = vmatprep.subr.mxu0 0.0
  %973 = vmatpush1.msra.mxu0 %v287
  %974 = vmatprep.subr.mxu0 0.0
  %975 = vmatpush1.msra.mxu0 %v288
  %976 = vmatprep.subr.mxu0 0.0
  %977 = vmatpush1.msra.mxu0 %v289
  %978 = vmatprep.subr.mxu0 0.0
  %979 = vmatpush1.msra.mxu0 %v290
  %980 = vmatprep.subr.mxu0 0.0
  %981 = vmatpush1.msra.mxu0 %v291
  %982 = vmatprep.subr.mxu0 0.0
  %983 = vmatpush1.msra.mxu0 %v292
  %984 = vmatprep.subr.mxu0 0.0
  %985 = vmatpush1.msra.mxu0 %v293
  %986 = vmatprep.subr.mxu0 0.0
  %987 = vmatpush1.msra.mxu0 %v294
  %988 = vmatprep.subr.mxu0 0.0
  %989 = vmatpush1.msra.mxu0 %v295
  %990 = vmatprep.subr.mxu0 0.0
  %991 = vmatpush1.msra.mxu0 %v296
  %992 = vmatprep.subr.mxu0 0.0
  %993 = vmatpush1.msra.mxu0 %v297
  %994 = vmatprep.subr.mxu0 0.0
  %995 = vmatpush1.msra.mxu0 %v298
  %996 = vmatprep.subr.mxu0 0.0
  %997 = vmatpush1.msra.mxu0 %v299
  %998 = vmatprep.subr.mxu0 0.0
  %999 = vmatpush1.msra.mxu0 %v300
  %1000 = vmatprep.subr.mxu0 0.0
  %1001 = vmatpush1.msra.mxu0 %v301
  %1002 = vmatprep.subr.mxu0 0.0
  %1003 = vmatpush1.msra.mxu0 %v302
  %1004 = vmatprep.subr.mxu0 0.0
  %1005 = vmatpush1.msra.mxu0 %v303
  %1006 = vmatprep.subr.mxu0 0.0
  %1007 = vmatpush1.msra.mxu0 %v304
  %1008 = vmatprep.subr.mxu0 0.0
  %1009 = vmatpush1.msra.mxu0 %v305
  %1010 = vmatprep.subr.mxu0 0.0
  %1011 = vmatpush1.msra.mxu0 %v306
  %1012 = vmatprep.mubr.f32.mxu0 %v41
  %1013 = vmatmul.mubr.f32.gmra.mrb[0].mxu0 %v40
  %v1014 = vpop.f32.mrb[0].mxu0
  %v1015 = vadd.f32 %v945, %v1014
  %v1016 = vpop.f32.mrb[0].mxu0
  %1017 = vdwg.mxu0
  %1018 = vmatprep.subr.mxu0 0.0
  %1019 = vmatpush1.msra.mxu0 %v307
  %1020 = vmatprep.subr.mxu0 0.0
  %1021 = vmatpush1.msra.mxu0 %v308
  %1022 = vmatprep.subr.mxu0 0.0
  %1023 = vmatpush1.msra.mxu0 %v309
  %1024 = vmatprep.subr.mxu0 0.0
  %1025 = vmatpush1.msra.mxu0 %v310
  %1026 = vmatprep.subr.mxu0 0.0
  %1027 = vmatpush1.msra.mxu0 %v311
  %1028 = vmatprep.subr.mxu0 0.0
  %1029 = vmatpush1.msra.mxu0 %v312
  %1030 = vmatprep.subr.mxu0 0.0
  %1031 = vmatpush1.msra.mxu0 %v313
  %1032 = vmatprep.subr.mxu0 0.0
  %1033 = vmatpush1.msra.mxu0 %v314
  %1034 = vmatprep.subr.mxu0 0.0
  %1035 = vmatpush1.msra.mxu0 %v315
  %1036 = vmatprep.subr.mxu0 0.0
  %1037 = vmatpush1.msra.mxu0 %v316
  %1038 = vmatprep.subr.mxu0 0.0
  %1039 = vmatpush1.msra.mxu0 %v317
  %1040 = vmatprep.subr.mxu0 0.0
  %1041 = vmatpush1.msra.mxu0 %v318
  %1042 = vmatprep.subr.mxu0 0.0
  %1043 = vmatpush1.msra.mxu0 %v319
  %1044 = vmatprep.subr.mxu0 0.0
  %1045 = vmatpush1.msra.mxu0 %v320
  %1046 = vmatprep.subr.mxu0 0.0
  %1047 = vmatpush1.msra.mxu0 %v321
  %1048 = vmatprep.subr.mxu0 0.0
  %1049 = vmatpush1.msra.mxu0 %v322
  %1050 = vmatprep.subr.mxu0 0.0
  %1051 = vmatpush1.msra.mxu0 %v323
  %1052 = vmatprep.subr.mxu0 0.0
  %1053 = vmatpush1.msra.mxu0 %v324
  %1054 = vmatprep.subr.mxu0 0.0
  %1055 = vmatpush1.msra.mxu0 %v325
  %1056 = vmatprep.subr.mxu0 0.0
  %1057 = vmatpush1.msra.mxu0 %v326
  %1058 = vmatprep.subr.mxu0 0.0
  %1059 = vmatpush1.msra.mxu0 %v327
  %1060 = vmatprep.subr.mxu0 0.0
  %1061 = vmatpush1.msra.mxu0 %v328
  %1062 = vmatprep.subr.mxu0 0.0
  %1063 = vmatpush1.msra.mxu0 %v329
  %1064 = vmatprep.subr.mxu0 0.0
  %1065 = vmatpush1.msra.mxu0 %v330
  %1066 = vmatprep.subr.mxu0 0.0
  %1067 = vmatpush1.msra.mxu0 %v331
  %1068 = vmatprep.subr.mxu0 0.0
  %1069 = vmatpush1.msra.mxu0 %v332
  %1070 = vmatprep.subr.mxu0 0.0
  %1071 = vmatpush1.msra.mxu0 %v333
  %1072 = vmatprep.subr.mxu0 0.0
  %1073 = vmatpush1.msra.mxu0 %v334
  %1074 = vmatprep.subr.mxu0 0.0
  %1075 = vmatpush1.msra.mxu0 %v335
  %1076 = vmatprep.subr.mxu0 0.0
  %1077 = vmatpush1.msra.mxu0 %v336
  %1078 = vmatprep.subr.mxu0 0.0
  %1079 = vmatpush1.msra.mxu0 %v337
  %1080 = vmatprep.subr.mxu0 0.0
  %1081 = vmatpush1.msra.mxu0 %v338
  %1082 = vmatprep.mubr.f32.mxu0 %v43
  %1083 = vmatmul.mubr.f32.gmra.mrb[0].mxu0 %v42
  %v1084 = vpop.f32.mrb[0].mxu0
  %v1085 = vadd.f32 %v1015, %v1084
  %v1086 = vpop.f32.mrb[0].mxu0
  %1087 = vdwg.mxu0
  %1088 = vmatprep.subr.mxu0 0.0
  %1089 = vmatpush1.msra.mxu0 %v339
  %1090 = vmatprep.subr.mxu0 0.0
  %1091 = vmatpush1.msra.mxu0 %v340
  %1092 = vmatprep.subr.mxu0 0.0
  %1093 = vmatpush1.msra.mxu0 %v341
  %1094 = vmatprep.subr.mxu0 0.0
  %1095 = vmatpush1.msra.mxu0 %v342
  %1096 = vmatprep.subr.mxu0 0.0
  %1097 = vmatpush1.msra.mxu0 %v343
  %1098 = vmatprep.subr.mxu0 0.0
  %1099 = vmatpush1.msra.mxu0 %v344
  %1100 = vmatprep.subr.mxu0 0.0
  %1101 = vmatpush1.msra.mxu0 %v345
  %1102 = vmatprep.subr.mxu0 0.0
  %1103 = vmatpush1.msra.mxu0 %v346
  %1104 = vmatprep.subr.mxu0 0.0
  %1105 = vmatpush1.msra.mxu0 %v347
  %1106 = vmatprep.subr.mxu0 0.0
  %1107 = vmatpush1.msra.mxu0 %v348
  %1108 = vmatprep.subr.mxu0 0.0
  %1109 = vmatpush1.msra.mxu0 %v349
  %1110 = vmatprep.subr.mxu0 0.0
  %1111 = vmatpush1.msra.mxu0 %v350
  %1112 = vmatprep.subr.mxu0 0.0
  %1113 = vmatpush1.msra.mxu0 %v351
  %1114 = vmatprep.subr.mxu0 0.0
  %1115 = vmatpush1.msra.mxu0 %v352
  %1116 = vmatprep.subr.mxu0 0.0
  %1117 = vmatpush1.msra.mxu0 %v353
  %1118 = vmatprep.subr.mxu0 0.0
  %1119 = vmatpush1.msra.mxu0 %v354
  %1120 = vmatprep.subr.mxu0 0.0
  %1121 = vmatpush1.msra.mxu0 %v355
  %1122 = vmatprep.subr.mxu0 0.0
  %1123 = vmatpush1.msra.mxu0 %v356
  %1124 = vmatprep.subr.mxu0 0.0
  %1125 = vmatpush1.msra.mxu0 %v357
  %1126 = vmatprep.subr.mxu0 0.0
  %1127 = vmatpush1.msra.mxu0 %v358
  %1128 = vmatprep.subr.mxu0 0.0
  %1129 = vmatpush1.msra.mxu0 %v359
  %1130 = vmatprep.subr.mxu0 0.0
  %1131 = vmatpush1.msra.mxu0 %v360
  %1132 = vmatprep.subr.mxu0 0.0
  %1133 = vmatpush1.msra.mxu0 %v361
  %1134 = vmatprep.subr.mxu0 0.0
  %1135 = vmatpush1.msra.mxu0 %v362
  %1136 = vmatprep.subr.mxu0 0.0
  %1137 = vmatpush1.msra.mxu0 %v363
  %1138 = vmatprep.subr.mxu0 0.0
  %1139 = vmatpush1.msra.mxu0 %v364
  %1140 = vmatprep.subr.mxu0 0.0
  %1141 = vmatpush1.msra.mxu0 %v365
  %1142 = vmatprep.subr.mxu0 0.0
  %1143 = vmatpush1.msra.mxu0 %v366
  %1144 = vmatprep.subr.mxu0 0.0
  %1145 = vmatpush1.msra.mxu0 %v367
  %1146 = vmatprep.subr.mxu0 0.0
  %1147 = vmatpush1.msra.mxu0 %v368
  %1148 = vmatprep.subr.mxu0 0.0
  %1149 = vmatpush1.msra.mxu0 %v369
  %1150 = vmatprep.subr.mxu0 0.0
  %1151 = vmatpush1.msra.mxu0 %v370
  %1152 = vmatprep.mubr.f32.mxu0 %v45
  %1153 = vmatmul.mubr.f32.gmra.mrb[0].mxu0 %v44
  %v1154 = vpop.f32.mrb[0].mxu0
  %v1155 = vadd.f32 %v1085, %v1154
  %v1156 = vpop.f32.mrb[0].mxu0
  %1157 = vdwg.mxu0
  %1158 = vmatprep.subr.mxu0 0.0
  %1159 = vmatpush1.msra.mxu0 %v371
  %1160 = vmatprep.subr.mxu0 0.0
  %1161 = vmatpush1.msra.mxu0 %v372
  %1162 = vmatprep.subr.mxu0 0.0
  %1163 = vmatpush1.msra.mxu0 %v373
  %1164 = vmatprep.subr.mxu0 0.0
  %1165 = vmatpush1.msra.mxu0 %v374
  %1166 = vmatprep.subr.mxu0 0.0
  %1167 = vmatpush1.msra.mxu0 %v375
  %1168 = vmatprep.subr.mxu0 0.0
  %1169 = vmatpush1.msra.mxu0 %v376
  %1170 = vmatprep.subr.mxu0 0.0
  %1171 = vmatpush1.msra.mxu0 %v377
  %1172 = vmatprep.subr.mxu0 0.0
  %1173 = vmatpush1.msra.mxu0 %v378
  %1174 = vmatprep.subr.mxu0 0.0
  %1175 = vmatpush1.msra.mxu0 %v379
  %1176 = vmatprep.subr.mxu0 0.0
  %1177 = vmatpush1.msra.mxu0 %v380
  %1178 = vmatprep.subr.mxu0 0.0
  %1179 = vmatpush1.msra.mxu0 %v381
  %1180 = vmatprep.subr.mxu0 0.0
  %1181 = vmatpush1.msra.mxu0 %v382
  %1182 = vmatprep.subr.mxu0 0.0
  %1183 = vmatpush1.msra.mxu0 %v383
  %1184 = vmatprep.subr.mxu0 0.0
  %1185 = vmatpush1.msra.mxu0 %v384
  %1186 = vmatprep.subr.mxu0 0.0
  %1187 = vmatpush1.msra.mxu0 %v385
  %1188 = vmatprep.subr.mxu0 0.0
  %1189 = vmatpush1.msra.mxu0 %v386
  %1190 = vmatprep.subr.mxu0 0.0
  %1191 = vmatpush1.msra.mxu0 %v387
  %1192 = vmatprep.subr.mxu0 0.0
  %1193 = vmatpush1.msra.mxu0 %v388
  %1194 = vmatprep.subr.mxu0 0.0
  %1195 = vmatpush1.msra.mxu0 %v389
  %1196 = vmatprep.subr.mxu0 0.0
  %1197 = vmatpush1.msra.mxu0 %v390
  %1198 = vmatprep.subr.mxu0 0.0
  %1199 = vmatpush1.msra.mxu0 %v391
  %1200 = vmatprep.subr.mxu0 0.0
  %1201 = vmatpush1.msra.mxu0 %v392
  %1202 = vmatprep.subr.mxu0 0.0
  %1203 = vmatpush1.msra.mxu0 %v393
  %1204 = vmatprep.subr.mxu0 0.0
  %1205 = vmatpush1.msra.mxu0 %v394
  %1206 = vmatprep.subr.mxu0 0.0
  %1207 = vmatpush1.msra.mxu0 %v395
  %1208 = vmatprep.subr.mxu0 0.0
  %1209 = vmatpush1.msra.mxu0 %v396
  %1210 = vmatprep.subr.mxu0 0.0
  %1211 = vmatpush1.msra.mxu0 %v397
  %1212 = vmatprep.subr.mxu0 0.0
  %1213 = vmatpush1.msra.mxu0 %v398
  %1214 = vmatprep.subr.mxu0 0.0
  %1215 = vmatpush1.msra.mxu0 %v399
  %1216 = vmatprep.subr.mxu0 0.0
  %1217 = vmatpush1.msra.mxu0 %v400
  %1218 = vmatprep.subr.mxu0 0.0
  %1219 = vmatpush1.msra.mxu0 %v401
  %1220 = vmatprep.subr.mxu0 0.0
  %1221 = vmatpush1.msra.mxu0 %v402
  %1222 = vmatprep.mubr.f32.mxu0 %v47
  %1223 = vmatmul.mubr.f32.gmra.mrb[0].mxu0 %v46
  %v1224 = vpop.f32.mrb[0].mxu0
  %v1225 = vadd.f32 %v1155, %v1224
  %v1226 = vpop.f32.mrb[0].mxu0
  %1227 = vdwg.mxu0
  %1228 = vmatprep.subr.mxu0 0.0
  %1229 = vmatpush1.msra.mxu0 %v403
  %1230 = vmatprep.subr.mxu0 0.0
  %1231 = vmatpush1.msra.mxu0 %v404
  %1232 = vmatprep.subr.mxu0 0.0
  %1233 = vmatpush1.msra.mxu0 %v405
  %1234 = vmatprep.subr.mxu0 0.0
  %1235 = vmatpush1.msra.mxu0 %v406
  %1236 = vmatprep.subr.mxu0 0.0
  %1237 = vmatpush1.msra.mxu0 %v407
  %1238 = vmatprep.subr.mxu0 0.0
  %1239 = vmatpush1.msra.mxu0 %v408
  %1240 = vmatprep.subr.mxu0 0.0
  %1241 = vmatpush1.msra.mxu0 %v409
  %1242 = vmatprep.subr.mxu0 0.0
  %1243 = vmatpush1.msra.mxu0 %v410
  %1244 = vmatprep.subr.mxu0 0.0
  %1245 = vmatpush1.msra.mxu0 %v411
  %1246 = vmatprep.subr.mxu0 0.0
  %1247 = vmatpush1.msra.mxu0 %v412
  %1248 = vmatprep.subr.mxu0 0.0
  %1249 = vmatpush1.msra.mxu0 %v413
  %1250 = vmatprep.subr.mxu0 0.0
  %1251 = vmatpush1.msra.mxu0 %v414
  %1252 = vmatprep.subr.mxu0 0.0
  %1253 = vmatpush1.msra.mxu0 %v415
  %1254 = vmatprep.subr.mxu0 0.0
  %1255 = vmatpush1.msra.mxu0 %v416
  %1256 = vmatprep.subr.mxu0 0.0
  %1257 = vmatpush1.msra.mxu0 %v417
  %1258 = vmatprep.subr.mxu0 0.0
  %1259 = vmatpush1.msra.mxu0 %v418
  %1260 = vmatprep.subr.mxu0 0.0
  %1261 = vmatpush1.msra.mxu0 %v419
  %1262 = vmatprep.subr.mxu0 0.0
  %1263 = vmatpush1.msra.mxu0 %v420
  %1264 = vmatprep.subr.mxu0 0.0
  %1265 = vmatpush1.msra.mxu0 %v421
  %1266 = vmatprep.subr.mxu0 0.0
  %1267 = vmatpush1.msra.mxu0 %v422
  %1268 = vmatprep.subr.mxu0 0.0
  %1269 = vmatpush1.msra.mxu0 %v423
  %1270 = vmatprep.subr.mxu0 0.0
  %1271 = vmatpush1.msra.mxu0 %v424
  %1272 = vmatprep.subr.mxu0 0.0
  %1273 = vmatpush1.msra.mxu0 %v425
  %1274 = vmatprep.subr.mxu0 0.0
  %1275 = vmatpush1.msra.mxu0 %v426
  %1276 = vmatprep.subr.mxu0 0.0
  %1277 = vmatpush1.msra.mxu0 %v427
  %1278 = vmatprep.subr.mxu0 0.0
  %1279 = vmatpush1.msra.mxu0 %v428
  %1280 = vmatprep.subr.mxu0 0.0
  %1281 = vmatpush1.msra.mxu0 %v429
  %1282 = vmatprep.subr.mxu0 0.0
  %1283 = vmatpush1.msra.mxu0 %v430
  %1284 = vmatprep.subr.mxu0 0.0
  %1285 = vmatpush1.msra.mxu0 %v431
  %1286 = vmatprep.subr.mxu0 0.0
  %1287 = vmatpush1.msra.mxu0 %v432
  %1288 = vmatprep.subr.mxu0 0.0
  %1289 = vmatpush1.msra.mxu0 %v433
  %1290 = vmatprep.subr.mxu0 0.0
  %1291 = vmatpush1.msra.mxu0 %v434
  %1292 = vmatprep.mubr.f32.mxu0 %v49
  %1293 = vmatmul.mubr.f32.gmra.mrb[0].mxu0 %v48
  %v1294 = vpop.f32.mrb[0].mxu0
  %v1295 = vadd.f32 %v1225, %v1294
  %v1296 = vpop.f32.mrb[0].mxu0
  %1297 = vdwg.mxu0
  %1298 = vmatprep.subr.mxu0 0.0
  %1299 = vmatpush1.msra.mxu0 %v435
  %1300 = vmatprep.subr.mxu0 0.0
  %1301 = vmatpush1.msra.mxu0 %v436
  %1302 = vmatprep.subr.mxu0 0.0
  %1303 = vmatpush1.msra.mxu0 %v437
  %1304 = vmatprep.subr.mxu0 0.0
  %1305 = vmatpush1.msra.mxu0 %v438
  %1306 = vmatprep.subr.mxu0 0.0
  %1307 = vmatpush1.msra.mxu0 %v439
  %1308 = vmatprep.subr.mxu0 0.0
  %1309 = vmatpush1.msra.mxu0 %v440
  %1310 = vmatprep.subr.mxu0 0.0
  %1311 = vmatpush1.msra.mxu0 %v441
  %1312 = vmatprep.subr.mxu0 0.0
  %1313 = vmatpush1.msra.mxu0 %v442
  %1314 = vmatprep.subr.mxu0 0.0
  %1315 = vmatpush1.msra.mxu0 %v443
  %1316 = vmatprep.subr.mxu0 0.0
  %1317 = vmatpush1.msra.mxu0 %v444
  %1318 = vmatprep.subr.mxu0 0.0
  %1319 = vmatpush1.msra.mxu0 %v445
  %1320 = vmatprep.subr.mxu0 0.0
  %1321 = vmatpush1.msra.mxu0 %v446
  %1322 = vmatprep.subr.mxu0 0.0
  %1323 = vmatpush1.msra.mxu0 %v447
  %1324 = vmatprep.subr.mxu0 0.0
  %1325 = vmatpush1.msra.mxu0 %v448
  %1326 = vmatprep.subr.mxu0 0.0
  %1327 = vmatpush1.msra.mxu0 %v449
  %1328 = vmatprep.subr.mxu0 0.0
  %1329 = vmatpush1.msra.mxu0 %v450
  %1330 = vmatprep.subr.mxu0 0.0
  %1331 = vmatpush1.msra.mxu0 0.0
  %1332 = vmatprep.subr.mxu0 0.0
  %1333 = vmatpush1.msra.mxu0 0.0
  %1334 = vmatprep.subr.mxu0 0.0
  %1335 = vmatpush1.msra.mxu0 0.0
  %1336 = vmatprep.subr.mxu0 0.0
  %1337 = vmatpush1.msra.mxu0 0.0
  %1338 = vmatprep.subr.mxu0 0.0
  %1339 = vmatpush1.msra.mxu0 0.0
  %1340 = vmatprep.subr.mxu0 0.0
  %1341 = vmatpush1.msra.mxu0 0.0
  %1342 = vmatprep.subr.mxu0 0.0
  %1343 = vmatpush1.msra.mxu0 0.0
  %1344 = vmatprep.subr.mxu0 0.0
  %1345 = vmatpush1.msra.mxu0 0.0
  %1346 = vmatprep.subr.mxu0 0.0
  %1347 = vmatpush1.msra.mxu0 0.0
  %1348 = vmatprep.subr.mxu0 0.0
  %1349 = vmatpush1.msra.mxu0 0.0
  %1350 = vmatprep.subr.mxu0 0.0
  %1351 = vmatpush1.msra.mxu0 0.0
  %1352 = vmatprep.subr.mxu0 0.0
  %1353 = vmatpush1.msra.mxu0 0.0
  %1354 = vmatprep.subr.mxu0 0.0
  %1355 = vmatpush1.msra.mxu0 0.0
  %1356 = vmatprep.subr.mxu0 0.0
  %1357 = vmatpush1.msra.mxu0 0.0
  %1358 = vmatprep.subr.mxu0 0.0
  %1359 = vmatpush1.msra.mxu0 0.0
  %1360 = vmatprep.subr.mxu0 0.0
  %1361 = vmatpush1.msra.mxu0 0.0
  %1362 = vmatprep.mubr.f32.mxu0 0.0
  %1363 = vmatmul.mubr.f32.gmra.mrb[0].mxu0 %v50
  %v1364 = vpop.f32.mrb[0].mxu0
  %v1365 = vadd.f32 %v1295, %v1364
  %v1366 = vpop.f32.mrb[0].mxu0
  %1367 = vdwg.mxu0
  %v1368 = vmax.f32 %v1365, 0.0
  %v1369 = vld [vmem:[%s3] sm:$0xff]
  %v1370 = vld [vmem:[%s3 + $0x8] sm:$0xff]
  %v1371 = vld [vmem:[%s3 + $0x10] sm:$0xff]
  %v1372 = vld [vmem:[%s3 + $0x18] sm:$0xff]
  %v1373 = vld [vmem:[%s3 + $0x20] sm:$0xff]
  %v1374 = vld [vmem:[%s3 + $0x28] sm:$0xff]
  %v1375 = vld [vmem:[%s3 + $0x30] sm:$0xff]
  %v1376 = vld [vmem:[%s3 + $0x38] sm:$0xff]
  %v1377 = vld [vmem:[%s3 + $0x40] sm:$0xff]
  %v1378 = vld [vmem:[%s3 + $0x48] sm:$0xff]
  %v1379 = vld [vmem:[%s3 + $0x50] sm:$0xff]
  %v1380 = vld [vmem:[%s3 + $0x58] sm:$0xff]
  %v1381 = vld [vmem:[%s3 + $0x60] sm:$0xff]
  %v1382 = vld [vmem:[%s3 + $0x68] sm:$0xff]
  %v1383 = vld [vmem:[%s3 + $0x70] sm:$0xff]
  %v1384 = vld [vmem:[%s3 + $0x78] sm:$0xff]
  %v1385 = vld [vmem:[%s4] sm:$0x1]
  %v1387 = vlaneseq
  %v1388 = vshrl.u32 %v1387, 7
  %v1389 = vsub.s32 0, %v1388
  %v1390 = vrot.slane %v1385, %v1389
  %1392 = vmatprep.subr.mxu0 0.0
  %1393 = vmatpush1.msra.mxu0 %v1369
  %1394 = vmatprep.subr.mxu0 0.0
  %1395 = vmatpush1.msra.mxu0 %v1370
  %1396 = vmatprep.subr.mxu0 0.0
  %1397 = vmatpush1.msra.mxu0 %v1371
  %1398 = vmatprep.subr.mxu0 0.0
  %1399 = vmatpush1.msra.mxu0 %v1372
  %1400 = vmatprep.subr.mxu0 0.0
  %1401 = vmatpush1.msra.mxu0 %v1373
  %1402 = vmatprep.subr.mxu0 0.0
  %1403 = vmatpush1.msra.mxu0 %v1374
  %1404 = vmatprep.subr.mxu0 0.0
  %1405 = vmatpush1.msra.mxu0 %v1375
  %1406 = vmatprep.subr.mxu0 0.0
  %1407 = vmatpush1.msra.mxu0 %v1376
  %1408 = vmatprep.subr.mxu0 0.0
  %1409 = vmatpush1.msra.mxu0 %v1377
  %1410 = vmatprep.subr.mxu0 0.0
  %1411 = vmatpush1.msra.mxu0 %v1378
  %1412 = vmatprep.subr.mxu0 0.0
  %1413 = vmatpush1.msra.mxu0 %v1379
  %1414 = vmatprep.subr.mxu0 0.0
  %1415 = vmatpush1.msra.mxu0 %v1380
  %1416 = vmatprep.subr.mxu0 0.0
  %1417 = vmatpush1.msra.mxu0 %v1381
  %1418 = vmatprep.subr.mxu0 0.0
  %1419 = vmatpush1.msra.mxu0 %v1382
  %1420 = vmatprep.subr.mxu0 0.0
  %1421 = vmatpush1.msra.mxu0 %v1383
  %1422 = vmatprep.subr.mxu0 0.0
  %1423 = vmatpush1.msra.mxu0 %v1384
  %1424 = vmatprep.subr.mxu0 0.0
  %1425 = vmatpush1.msra.mxu0 0.0
  %1426 = vmatprep.subr.mxu0 0.0
  %1427 = vmatpush1.msra.mxu0 0.0
  %1428 = vmatprep.subr.mxu0 0.0
  %1429 = vmatpush1.msra.mxu0 0.0
  %1430 = vmatprep.subr.mxu0 0.0
  %1431 = vmatpush1.msra.mxu0 0.0
  %1432 = vmatprep.subr.mxu0 0.0
  %1433 = vmatpush1.msra.mxu0 0.0
  %1434 = vmatprep.subr.mxu0 0.0
  %1435 = vmatpush1.msra.mxu0 0.0
  %1436 = vmatprep.subr.mxu0 0.0
  %1437 = vmatpush1.msra.mxu0 0.0
  %1438 = vmatprep.subr.mxu0 0.0
  %1439 = vmatpush1.msra.mxu0 0.0
  %1440 = vmatprep.subr.mxu0 0.0
  %1441 = vmatpush1.msra.mxu0 0.0
  %1442 = vmatprep.subr.mxu0 0.0
  %1443 = vmatpush1.msra.mxu0 0.0
  %1444 = vmatprep.subr.mxu0 0.0
  %1445 = vmatpush1.msra.mxu0 0.0
  %1446 = vmatprep.subr.mxu0 0.0
  %1447 = vmatpush1.msra.mxu0 0.0
  %1448 = vmatprep.subr.mxu0 0.0
  %1449 = vmatpush1.msra.mxu0 0.0
  %1450 = vmatprep.subr.mxu0 0.0
  %1451 = vmatpush1.msra.mxu0 0.0
  %1452 = vmatprep.subr.mxu0 0.0
  %1453 = vmatpush1.msra.mxu0 0.0
  %1454 = vmatprep.subr.mxu0 0.0
  %1455 = vmatpush1.msra.mxu0 0.0
  %1456 = vmatprep.mubr.f32.mxu0 0.0
  %1457 = vmatmul.mubr.f32.gmra.mrb[0].mxu0 %v1368
  %v1458 = vpop.f32.mrb[0].mxu0
  %v1459 = vadd.f32 %v1390, %v1458
  %v1460 = vpop.f32.mrb[0].mxu0
  %1461 = vdwg.mxu0
  %v1462 = vmax.f32 %v1459, 0.0
  %v1463 = vld [vmem:[%s5] sm:$0xff]
  %v1464 = vld [vmem:[%s5 + $0x8] sm:$0xff]
  %v1465 = vld [vmem:[%s5 + $0x10] sm:$0xff]
  %v1466 = vld [vmem:[%s5 + $0x18] sm:$0xff]
  %v1467 = vld [vmem:[%s5 + $0x20] sm:$0xff]
  %v1468 = vld [vmem:[%s5 + $0x28] sm:$0xff]
  %v1469 = vld [vmem:[%s5 + $0x30] sm:$0xff]
  %v1470 = vld [vmem:[%s5 + $0x38] sm:$0xff]
  %v1471 = vld [vmem:[%s5 + $0x40] sm:$0xff]
  %v1472 = vld [vmem:[%s5 + $0x48] sm:$0xff]
  %v1473 = vld [vmem:[%s5 + $0x50] sm:$0xff]
  %v1474 = vld [vmem:[%s5 + $0x58] sm:$0xff]
  %v1475 = vld [vmem:[%s5 + $0x60] sm:$0xff]
  %v1476 = vld [vmem:[%s5 + $0x68] sm:$0xff]
  %v1477 = vld [vmem:[%s5 + $0x70] sm:$0xff]
  %v1478 = vld [vmem:[%s5 + $0x78] sm:$0xff]
  %v1479 = vld [vmem:[%s6] sm:$0x1]
  %v1481 = vlaneseq
  %v1482 = vshrl.u32 %v1481, 7
  %v1483 = vsub.s32 0, %v1482
  %v1484 = vrot.slane %v1479, %v1483
  %1486 = vmatprep.subr.mxu0 0.0
  %1487 = vmatpush1.msra.mxu0 %v1463
  %1488 = vmatprep.subr.mxu0 0.0
  %1489 = vmatpush1.msra.mxu0 %v1464
  %1490 = vmatprep.subr.mxu0 0.0
  %1491 = vmatpush1.msra.mxu0 %v1465
  %1492 = vmatprep.subr.mxu0 0.0
  %1493 = vmatpush1.msra.mxu0 %v1466
  %1494 = vmatprep.subr.mxu0 0.0
  %1495 = vmatpush1.msra.mxu0 %v1467
  %1496 = vmatprep.subr.mxu0 0.0
  %1497 = vmatpush1.msra.mxu0 %v1468
  %1498 = vmatprep.subr.mxu0 0.0
  %1499 = vmatpush1.msra.mxu0 %v1469
  %1500 = vmatprep.subr.mxu0 0.0
  %1501 = vmatpush1.msra.mxu0 %v1470
  %1502 = vmatprep.subr.mxu0 0.0
  %1503 = vmatpush1.msra.mxu0 %v1471
  %1504 = vmatprep.subr.mxu0 0.0
  %1505 = vmatpush1.msra.mxu0 %v1472
  %1506 = vmatprep.subr.mxu0 0.0
  %1507 = vmatpush1.msra.mxu0 %v1473
  %1508 = vmatprep.subr.mxu0 0.0
  %1509 = vmatpush1.msra.mxu0 %v1474
  %1510 = vmatprep.subr.mxu0 0.0
  %1511 = vmatpush1.msra.mxu0 %v1475
  %1512 = vmatprep.subr.mxu0 0.0
  %1513 = vmatpush1.msra.mxu0 %v1476
  %1514 = vmatprep.subr.mxu0 0.0
  %1515 = vmatpush1.msra.mxu0 %v1477
  %1516 = vmatprep.subr.mxu0 0.0
  %1517 = vmatpush1.msra.mxu0 %v1478
  %1518 = vmatprep.subr.mxu0 0.0
  %1519 = vmatpush1.msra.mxu0 0.0
  %1520 = vmatprep.subr.mxu0 0.0
  %1521 = vmatpush1.msra.mxu0 0.0
  %1522 = vmatprep.subr.mxu0 0.0
  %1523 = vmatpush1.msra.mxu0 0.0
  %1524 = vmatprep.subr.mxu0 0.0
  %1525 = vmatpush1.msra.mxu0 0.0
  %1526 = vmatprep.subr.mxu0 0.0
  %1527 = vmatpush1.msra.mxu0 0.0
  %1528 = vmatprep.subr.mxu0 0.0
  %1529 = vmatpush1.msra.mxu0 0.0
  %1530 = vmatprep.subr.mxu0 0.0
  %1531 = vmatpush1.msra.mxu0 0.0
  %1532 = vmatprep.subr.mxu0 0.0
  %1533 = vmatpush1.msra.mxu0 0.0
  %1534 = vmatprep.subr.mxu0 0.0
  %1535 = vmatpush1.msra.mxu0 0.0
  %1536 = vmatprep.subr.mxu0 0.0
  %1537 = vmatpush1.msra.mxu0 0.0
  %1538 = vmatprep.subr.mxu0 0.0
  %1539 = vmatpush1.msra.mxu0 0.0
  %1540 = vmatprep.subr.mxu0 0.0
  %1541 = vmatpush1.msra.mxu0 0.0
  %1542 = vmatprep.subr.mxu0 0.0
  %1543 = vmatpush1.msra.mxu0 0.0
  %1544 = vmatprep.subr.mxu0 0.0
  %1545 = vmatpush1.msra.mxu0 0.0
  %1546 = vmatprep.subr.mxu0 0.0
  %1547 = vmatpush1.msra.mxu0 0.0
  %1548 = vmatprep.subr.mxu0 0.0
  %1549 = vmatpush1.msra.mxu0 0.0
  %1550 = vmatprep.mubr.f32.mxu0 0.0
  %1551 = vmatmul.mubr.f32.gmra.mrb[0].mxu0 %v1462
  %v1552 = vpop.f32.mrb[0].mxu0
  %v1553 = vadd.f32 %v1484, %v1552
  %v1554 = vpop.f32.mrb[0].mxu0
  %1555 = vdwg.mxu0
  %1556 = vst [vmem:[%s7] sm:$0xff] %v1553
  // Predicated region
  $region30: #{lenet_forward.5} parent=0 // pred_check
    _
  $region31: #{lenet_forward.5} parent=0 // pred_check_branch
    %1558 = sbr.rel (0) target = $region33
  $region32: #{lenet_forward.5} parent=0 // pred_region
    _
  $region33: #{lenet_forward.5} parent=0 // pred_fallthru
    _
  // Predicated region
  $region34: #{lenet_forward.5} parent=0 // pred_check
    _
  $region35: #{lenet_forward.5} parent=0 // pred_check_branch
    %1560 = sbr.rel (0) target = $region37
  $region36: #{lenet_forward.5} parent=0 // pred_region
    _
  $region37: #{lenet_forward.5} parent=0 // pred_fallthru
    _

// kernel: lenet_forward.4
$region0: #{lenet_forward.4}
  #allocation0 [shape = 'u32[]', space=smem, size = 0x4, offset = 0x4, fixed_abs, tag = 'smem constant byte address 0x4 - core index']
  #allocation1 [shape = 'u32[144,128]{1,0:T(1,128)}', space=vmem, size = 0x12000, scoped, tag = 'internal scratch']
  %s0 = inlined_call_operand.vmem [shape: f32[56,3200], index: 0, kind: input, shape index: {}]
  %s1 = inlined_call_operand.vmem [shape: f32[56,3200], index: 1, kind: input, shape index: {}]
  %s2 = inlined_call_operand.vmem [shape: f32[56,3200], index: 2, kind: input, shape index: {}]
  %s3 = inlined_call_operand.vmem [shape: f32[56,3200], index: 3, kind: input, shape index: {}]
  %s4 = inlined_call_operand.vmem [shape: f32[3200,128], index: 4, kind: input, shape index: {}]
  %s5 = inlined_call_operand.vmem [shape: f32[1,128], index: 5, kind: input, shape index: {}]
  %s6 = inlined_call_operand.vmem [shape: f32[56,128], index: 6, kind: output, shape index: {}]
  %s7 = sld [smem:[#allocation0]]
  $region34: #{lenet_forward.4} parent=0
    _
  %s9 = ssub.s32 1, %s7
  %s10 = scalar_select 0, %s9, %s7
  // Predicated region
  $region2: #{lenet_forward.4} parent=0 // pred_check
    _
  $region3: #{lenet_forward.4} parent=0 // pred_check_branch
    %12 = sbr.rel (0) target = $region5
  $region4: #{lenet_forward.4} parent=0 // pred_region
    _
  $region5: #{lenet_forward.4} parent=0 // pred_fallthru
    _
  // Predicated region
  $region6: #{lenet_forward.4} parent=0 // pred_check
    _
  $region7: #{lenet_forward.4} parent=0 // pred_check_branch
    %14 = sbr.rel (0) target = $region9
  $region8: #{lenet_forward.4} parent=0 // pred_region
    _
  $region9: #{lenet_forward.4} parent=0 // pred_fallthru
    _
  // Predicated region
  $region10: #{lenet_forward.4} parent=0 // pred_check
    _
  $region11: #{lenet_forward.4} parent=0 // pred_check_branch
    %16 = sbr.rel (0) target = $region13
  $region12: #{lenet_forward.4} parent=0 // pred_region
    _
  $region13: #{lenet_forward.4} parent=0 // pred_fallthru
    _
  // Predicated region
  $region14: #{lenet_forward.4} parent=0 // pred_check
    _
  $region15: #{lenet_forward.4} parent=0 // pred_check_branch
    %18 = sbr.rel (0) target = $region17
  $region16: #{lenet_forward.4} parent=0 // pred_region
    _
  $region17: #{lenet_forward.4} parent=0 // pred_fallthru
    _
  // Predicated region
  $region18: #{lenet_forward.4} parent=0 // pred_check
    _
  $region19: #{lenet_forward.4} parent=0 // pred_check_branch
    %20 = sbr.rel (0) target = $region21
  $region20: #{lenet_forward.4} parent=0 // pred_region
    _
  $region21: #{lenet_forward.4} parent=0 // pred_fallthru
    _
  // Predicated region
  $region22: #{lenet_forward.4} parent=0 // pred_check
    _
  $region23: #{lenet_forward.4} parent=0 // pred_check_branch
    %22 = sbr.rel (0) target = $region25
  $region24: #{lenet_forward.4} parent=0 // pred_region
    _
  $region25: #{lenet_forward.4} parent=0 // pred_fallthru
    _
  %v23 = vld [vmem:[%s4] sm:$0xff]
  %v24 = vld [vmem:[%s4 + $0x8] sm:$0xff]
  %v25 = vld [vmem:[%s4 + $0x10] sm:$0xff]
  %v26 = vld [vmem:[%s4 + $0x18] sm:$0xff]
  %v27 = vld [vmem:[%s4 + $0x20] sm:$0xff]
  %v28 = vld [vmem:[%s4 + $0x28] sm:$0xff]
  %v29 = vld [vmem:[%s4 + $0x30] sm:$0xff]
  %v30 = vld [vmem:[%s4 + $0x38] sm:$0xff]
  %v31 = vld [vmem:[%s4 + $0x40] sm:$0xff]
  %v32 = vld [vmem:[%s4 + $0x48] sm:$0xff]
  %v33 = vld [vmem:[%s4 + $0x50] sm:$0xff]
  %v34 = vld [vmem:[%s4 + $0x58] sm:$0xff]
  %v35 = vld [vmem:[%s4 + $0x60] sm:$0xff]
  %v36 = vld [vmem:[%s4 + $0x68] sm:$0xff]
  %v37 = vld [vmem:[%s4 + $0x70] sm:$0xff]
  %v38 = vld [vmem:[%s4 + $0x78] sm:$0xff]
  %v39 = vld [vmem:[%s4 + $0x80] sm:$0xff]
  %v40 = vld [vmem:[%s4 + $0x88] sm:$0xff]
  %v41 = vld [vmem:[%s4 + $0x90] sm:$0xff]
  %v42 = vld [vmem:[%s4 + $0x98] sm:$0xff]
  %v43 = vld [vmem:[%s4 + $0xa0] sm:$0xff]
  %v44 = vld [vmem:[%s4 + $0xa8] sm:$0xff]
  %v45 = vld [vmem:[%s4 + $0xb0] sm:$0xff]
  %v46 = vld [vmem:[%s4 + $0xb8] sm:$0xff]
  %v47 = vld [vmem:[%s4 + $0xc0] sm:$0xff]
  %v48 = vld [vmem:[%s4 + $0xc8] sm:$0xff]
  %v49 = vld [vmem:[%s4 + $0xd0] sm:$0xff]
  %v50 = vld [vmem:[%s4 + $0xd8] sm:$0xff]
  %v51 = vld [vmem:[%s4 + $0xe0] sm:$0xff]
  %v52 = vld [vmem:[%s4 + $0xe8] sm:$0xff]
  %v53 = vld [vmem:[%s4 + $0xf0] sm:$0xff]
  %v54 = vld [vmem:[%s4 + $0xf8] sm:$0xff]
  %v55 = vld [vmem:[%s4 + $0x100] sm:$0xff]
  %v56 = vld [vmem:[%s4 + $0x108] sm:$0xff]
  %v57 = vld [vmem:[%s4 + $0x110] sm:$0xff]
  %v58 = vld [vmem:[%s4 + $0x118] sm:$0xff]
  %v59 = vld [vmem:[%s4 + $0x120] sm:$0xff]
  %v60 = vld [vmem:[%s4 + $0x128] sm:$0xff]
  %v61 = vld [vmem:[%s4 + $0x130] sm:$0xff]
  %v62 = vld [vmem:[%s4 + $0x138] sm:$0xff]
  %v63 = vld [vmem:[%s4 + $0x140] sm:$0xff]
  %v64 = vld [vmem:[%s4 + $0x148] sm:$0xff]
  %v65 = vld [vmem:[%s4 + $0x150] sm:$0xff]
  %v66 = vld [vmem:[%s4 + $0x158] sm:$0xff]
  %v67 = vld [vmem:[%s4 + $0x160] sm:$0xff]
  %v68 = vld [vmem:[%s4 + $0x168] sm:$0xff]
  %v69 = vld [vmem:[%s4 + $0x170] sm:$0xff]
  %v70 = vld [vmem:[%s4 + $0x178] sm:$0xff]
  %v71 = vld [vmem:[%s4 + $0x180] sm:$0xff]
  %v72 = vld [vmem:[%s4 + $0x188] sm:$0xff]
  %v73 = vld [vmem:[%s4 + $0x190] sm:$0xff]
  %v74 = vld [vmem:[%s4 + $0x198] sm:$0xff]
  %v75 = vld [vmem:[%s4 + $0x1a0] sm:$0xff]
  %v76 = vld [vmem:[%s4 + $0x1a8] sm:$0xff]
  %v77 = vld [vmem:[%s4 + $0x1b0] sm:$0xff]
  %v78 = vld [vmem:[%s4 + $0x1b8] sm:$0xff]
  %v79 = vld [vmem:[%s4 + $0x1c0] sm:$0xff]
  %v80 = vld [vmem:[%s4 + $0x1c8] sm:$0xff]
  %v81 = vld [vmem:[%s4 + $0x1d0] sm:$0xff]
  %v82 = vld [vmem:[%s4 + $0x1d8] sm:$0xff]
  %v83 = vld [vmem:[%s4 + $0x1e0] sm:$0xff]
  %v84 = vld [vmem:[%s4 + $0x1e8] sm:$0xff]
  %v85 = vld [vmem:[%s4 + $0x1f0] sm:$0xff]
  %v86 = vld [vmem:[%s4 + $0x1f8] sm:$0xff]
  %v87 = vld [vmem:[%s4 + $0x200] sm:$0xff]
  %v88 = vld [vmem:[%s4 + $0x208] sm:$0xff]
  %v89 = vld [vmem:[%s4 + $0x210] sm:$0xff]
  %v90 = vld [vmem:[%s4 + $0x218] sm:$0xff]
  %v91 = vld [vmem:[%s4 + $0x220] sm:$0xff]
  %v92 = vld [vmem:[%s4 + $0x228] sm:$0xff]
  %v93 = vld [vmem:[%s4 + $0x230] sm:$0xff]
  %v94 = vld [vmem:[%s4 + $0x238] sm:$0xff]
  %v95 = vld [vmem:[%s4 + $0x240] sm:$0xff]
  %v96 = vld [vmem:[%s4 + $0x248] sm:$0xff]
  %v97 = vld [vmem:[%s4 + $0x250] sm:$0xff]
  %v98 = vld [vmem:[%s4 + $0x258] sm:$0xff]
  %v99 = vld [vmem:[%s4 + $0x260] sm:$0xff]
  %v100 = vld [vmem:[%s4 + $0x268] sm:$0xff]
  %v101 = vld [vmem:[%s4 + $0x270] sm:$0xff]
  %v102 = vld [vmem:[%s4 + $0x278] sm:$0xff]
  %v103 = vld [vmem:[%s4 + $0x280] sm:$0xff]
  %v104 = vld [vmem:[%s4 + $0x288] sm:$0xff]
  %v105 = vld [vmem:[%s4 + $0x290] sm:$0xff]
  %v106 = vld [vmem:[%s4 + $0x298] sm:$0xff]
  %v107 = vld [vmem:[%s4 + $0x2a0] sm:$0xff]
  %v108 = vld [vmem:[%s4 + $0x2a8] sm:$0xff]
  %v109 = vld [vmem:[%s4 + $0x2b0] sm:$0xff]
  %v110 = vld [vmem:[%s4 + $0x2b8] sm:$0xff]
  %v111 = vld [vmem:[%s4 + $0x2c0] sm:$0xff]
  %v112 = vld [vmem:[%s4 + $0x2c8] sm:$0xff]
  %v113 = vld [vmem:[%s4 + $0x2d0] sm:$0xff]
  %v114 = vld [vmem:[%s4 + $0x2d8] sm:$0xff]
  %v115 = vld [vmem:[%s4 + $0x2e0] sm:$0xff]
  %v116 = vld [vmem:[%s4 + $0x2e8] sm:$0xff]
  %v117 = vld [vmem:[%s4 + $0x2f0] sm:$0xff]
  %v118 = vld [vmem:[%s4 + $0x2f8] sm:$0xff]
  %v119 = vld [vmem:[%s4 + $0x300] sm:$0xff]
  %v120 = vld [vmem:[%s4 + $0x308] sm:$0xff]
  %v121 = vld [vmem:[%s4 + $0x310] sm:$0xff]
  %v122 = vld [vmem:[%s4 + $0x318] sm:$0xff]
  %v123 = vld [vmem:[%s4 + $0x320] sm:$0xff]
  %v124 = vld [vmem:[%s4 + $0x328] sm:$0xff]
  %v125 = vld [vmem:[%s4 + $0x330] sm:$0xff]
  %v126 = vld [vmem:[%s4 + $0x338] sm:$0xff]
  %v127 = vld [vmem:[%s4 + $0x340] sm:$0xff]
  %v128 = vld [vmem:[%s4 + $0x348] sm:$0xff]
  %v129 = vld [vmem:[%s4 + $0x350] sm:$0xff]
  %v130 = vld [vmem:[%s4 + $0x358] sm:$0xff]
  %v131 = vld [vmem:[%s4 + $0x360] sm:$0xff]
  %v132 = vld [vmem:[%s4 + $0x368] sm:$0xff]
  %v133 = vld [vmem:[%s4 + $0x370] sm:$0xff]
  %v134 = vld [vmem:[%s4 + $0x378] sm:$0xff]
  %v135 = vld [vmem:[%s4 + $0x380] sm:$0xff]
  %v136 = vld [vmem:[%s4 + $0x388] sm:$0xff]
  %v137 = vld [vmem:[%s4 + $0x390] sm:$0xff]
  %v138 = vld [vmem:[%s4 + $0x398] sm:$0xff]
  %v139 = vld [vmem:[%s4 + $0x3a0] sm:$0xff]
  %v140 = vld [vmem:[%s4 + $0x3a8] sm:$0xff]
  %v141 = vld [vmem:[%s4 + $0x3b0] sm:$0xff]
  %v142 = vld [vmem:[%s4 + $0x3b8] sm:$0xff]
  %v143 = vld [vmem:[%s4 + $0x3c0] sm:$0xff]
  %v144 = vld [vmem:[%s4 + $0x3c8] sm:$0xff]
  %v145 = vld [vmem:[%s4 + $0x3d0] sm:$0xff]
  %v146 = vld [vmem:[%s4 + $0x3d8] sm:$0xff]
  %v147 = vld [vmem:[%s4 + $0x3e0] sm:$0xff]
  %v148 = vld [vmem:[%s4 + $0x3e8] sm:$0xff]
  %v149 = vld [vmem:[%s4 + $0x3f0] sm:$0xff]
  %v150 = vld [vmem:[%s4 + $0x3f8] sm:$0xff]
  %v151 = vld [vmem:[%s4 + $0x400] sm:$0xff]
  %v152 = vld [vmem:[%s4 + $0x408] sm:$0xff]
  %v153 = vld [vmem:[%s4 + $0x410] sm:$0xff]
  %v154 = vld [vmem:[%s4 + $0x418] sm:$0xff]
  %v155 = vld [vmem:[%s4 + $0x420] sm:$0xff]
  %v156 = vld [vmem:[%s4 + $0x428] sm:$0xff]
  %v157 = vld [vmem:[%s4 + $0x430] sm:$0xff]
  %v158 = vld [vmem:[%s4 + $0x438] sm:$0xff]
  %v159 = vld [vmem:[%s4 + $0x440] sm:$0xff]
  %v160 = vld [vmem:[%s4 + $0x448] sm:$0xff]
  %v161 = vld [vmem:[%s4 + $0x450] sm:$0xff]
  %v162 = vld [vmem:[%s4 + $0x458] sm:$0xff]
  %v163 = vld [vmem:[%s4 + $0x460] sm:$0xff]
  %v164 = vld [vmem:[%s4 + $0x468] sm:$0xff]
  %v165 = vld [vmem:[%s4 + $0x470] sm:$0xff]
  %v166 = vld [vmem:[%s4 + $0x478] sm:$0xff]
  %v167 = vld [vmem:[%s4 + $0x480] sm:$0xff]
  %v168 = vld [vmem:[%s4 + $0x488] sm:$0xff]
  %v169 = vld [vmem:[%s4 + $0x490] sm:$0xff]
  %v170 = vld [vmem:[%s4 + $0x498] sm:$0xff]
  %v171 = vld [vmem:[%s4 + $0x4a0] sm:$0xff]
  %v172 = vld [vmem:[%s4 + $0x4a8] sm:$0xff]
  %v173 = vld [vmem:[%s4 + $0x4b0] sm:$0xff]
  %v174 = vld [vmem:[%s4 + $0x4b8] sm:$0xff]
  %v175 = vld [vmem:[%s4 + $0x4c0] sm:$0xff]
  %v176 = vld [vmem:[%s4 + $0x4c8] sm:$0xff]
  %v177 = vld [vmem:[%s4 + $0x4d0] sm:$0xff]
  %v178 = vld [vmem:[%s4 + $0x4d8] sm:$0xff]
  %v179 = vld [vmem:[%s4 + $0x4e0] sm:$0xff]
  %v180 = vld [vmem:[%s4 + $0x4e8] sm:$0xff]
  %v181 = vld [vmem:[%s4 + $0x4f0] sm:$0xff]
  %v182 = vld [vmem:[%s4 + $0x4f8] sm:$0xff]
  %v183 = vld [vmem:[%s4 + $0x500] sm:$0xff]
  %v184 = vld [vmem:[%s4 + $0x508] sm:$0xff]
  %v185 = vld [vmem:[%s4 + $0x510] sm:$0xff]
  %v186 = vld [vmem:[%s4 + $0x518] sm:$0xff]
  %v187 = vld [vmem:[%s4 + $0x520] sm:$0xff]
  %v188 = vld [vmem:[%s4 + $0x528] sm:$0xff]
  %v189 = vld [vmem:[%s4 + $0x530] sm:$0xff]
  %v190 = vld [vmem:[%s4 + $0x538] sm:$0xff]
  %v191 = vld [vmem:[%s4 + $0x540] sm:$0xff]
  %v192 = vld [vmem:[%s4 + $0x548] sm:$0xff]
  %v193 = vld [vmem:[%s4 + $0x550] sm:$0xff]
  %v194 = vld [vmem:[%s4 + $0x558] sm:$0xff]
  %v195 = vld [vmem:[%s4 + $0x560] sm:$0xff]
  %v196 = vld [vmem:[%s4 + $0x568] sm:$0xff]
  %v197 = vld [vmem:[%s4 + $0x570] sm:$0xff]
  %v198 = vld [vmem:[%s4 + $0x578] sm:$0xff]
  %v199 = vld [vmem:[%s4 + $0x580] sm:$0xff]
  %v200 = vld [vmem:[%s4 + $0x588] sm:$0xff]
  %v201 = vld [vmem:[%s4 + $0x590] sm:$0xff]
  %v202 = vld [vmem:[%s4 + $0x598] sm:$0xff]
  %v203 = vld [vmem:[%s4 + $0x5a0] sm:$0xff]
  %v204 = vld [vmem:[%s4 + $0x5a8] sm:$0xff]
  %v205 = vld [vmem:[%s4 + $0x5b0] sm:$0xff]
  %v206 = vld [vmem:[%s4 + $0x5b8] sm:$0xff]
  %v207 = vld [vmem:[%s4 + $0x5c0] sm:$0xff]
  %v208 = vld [vmem:[%s4 + $0x5c8] sm:$0xff]
  %v209 = vld [vmem:[%s4 + $0x5d0] sm:$0xff]
  %v210 = vld [vmem:[%s4 + $0x5d8] sm:$0xff]
  %v211 = vld [vmem:[%s4 + $0x5e0] sm:$0xff]
  %v212 = vld [vmem:[%s4 + $0x5e8] sm:$0xff]
  %v213 = vld [vmem:[%s4 + $0x5f0] sm:$0xff]
  %v214 = vld [vmem:[%s4 + $0x5f8] sm:$0xff]
  %v215 = vld [vmem:[%s4 + $0x600] sm:$0xff]
  %v216 = vld [vmem:[%s4 + $0x608] sm:$0xff]
  %v217 = vld [vmem:[%s4 + $0x610] sm:$0xff]
  %v218 = vld [vmem:[%s4 + $0x618] sm:$0xff]
  %v219 = vld [vmem:[%s4 + $0x620] sm:$0xff]
  %v220 = vld [vmem:[%s4 + $0x628] sm:$0xff]
  %v221 = vld [vmem:[%s4 + $0x630] sm:$0xff]
  %v222 = vld [vmem:[%s4 + $0x638] sm:$0xff]
  %v223 = vld [vmem:[%s4 + $0x640] sm:$0xff]
  %v224 = vld [vmem:[%s4 + $0x648] sm:$0xff]
  %v225 = vld [vmem:[%s4 + $0x650] sm:$0xff]
  %v226 = vld [vmem:[%s4 + $0x658] sm:$0xff]
  %v227 = vld [vmem:[%s4 + $0x660] sm:$0xff]
  %v228 = vld [vmem:[%s4 + $0x668] sm:$0xff]
  %v229 = vld [vmem:[%s4 + $0x670] sm:$0xff]
  %v230 = vld [vmem:[%s4 + $0x678] sm:$0xff]
  %v231 = vld [vmem:[%s4 + $0x680] sm:$0xff]
  %v232 = vld [vmem:[%s4 + $0x688] sm:$0xff]
  %v233 = vld [vmem:[%s4 + $0x690] sm:$0xff]
  %v234 = vld [vmem:[%s4 + $0x698] sm:$0xff]
  %v235 = vld [vmem:[%s4 + $0x6a0] sm:$0xff]
  %v236 = vld [vmem:[%s4 + $0x6a8] sm:$0xff]
  %v237 = vld [vmem:[%s4 + $0x6b0] sm:$0xff]
  %v238 = vld [vmem:[%s4 + $0x6b8] sm:$0xff]
  %v239 = vld [vmem:[%s4 + $0x6c0] sm:$0xff]
  %v240 = vld [vmem:[%s4 + $0x6c8] sm:$0xff]
  %v241 = vld [vmem:[%s4 + $0x6d0] sm:$0xff]
  %v242 = vld [vmem:[%s4 + $0x6d8] sm:$0xff]
  %v243 = vld [vmem:[%s4 + $0x6e0] sm:$0xff]
  %v244 = vld [vmem:[%s4 + $0x6e8] sm:$0xff]
  %v245 = vld [vmem:[%s4 + $0x6f0] sm:$0xff]
  %v246 = vld [vmem:[%s4 + $0x6f8] sm:$0xff]
  %v247 = vld [vmem:[%s4 + $0x700] sm:$0xff]
  %v248 = vld [vmem:[%s4 + $0x708] sm:$0xff]
  %v249 = vld [vmem:[%s4 + $0x710] sm:$0xff]
  %v250 = vld [vmem:[%s4 + $0x718] sm:$0xff]
  %v251 = vld [vmem:[%s4 + $0x720] sm:$0xff]
  %v252 = vld [vmem:[%s4 + $0x728] sm:$0xff]
  %v253 = vld [vmem:[%s4 + $0x730] sm:$0xff]
  %v254 = vld [vmem:[%s4 + $0x738] sm:$0xff]
  %v255 = vld [vmem:[%s4 + $0x740] sm:$0xff]
  %v256 = vld [vmem:[%s4 + $0x748] sm:$0xff]
  %v257 = vld [vmem:[%s4 + $0x750] sm:$0xff]
  %v258 = vld [vmem:[%s4 + $0x758] sm:$0xff]
  %v259 = vld [vmem:[%s4 + $0x760] sm:$0xff]
  %v260 = vld [vmem:[%s4 + $0x768] sm:$0xff]
  %v261 = vld [vmem:[%s4 + $0x770] sm:$0xff]
  %v262 = vld [vmem:[%s4 + $0x778] sm:$0xff]
  %v263 = vld [vmem:[%s4 + $0x780] sm:$0xff]
  %v264 = vld [vmem:[%s4 + $0x788] sm:$0xff]
  %v265 = vld [vmem:[%s4 + $0x790] sm:$0xff]
  %v266 = vld [vmem:[%s4 + $0x798] sm:$0xff]
  %v267 = vld [vmem:[%s4 + $0x7a0] sm:$0xff]
  %v268 = vld [vmem:[%s4 + $0x7a8] sm:$0xff]
  %v269 = vld [vmem:[%s4 + $0x7b0] sm:$0xff]
  %v270 = vld [vmem:[%s4 + $0x7b8] sm:$0xff]
  %v271 = vld [vmem:[%s4 + $0x7c0] sm:$0xff]
  %v272 = vld [vmem:[%s4 + $0x7c8] sm:$0xff]
  %v273 = vld [vmem:[%s4 + $0x7d0] sm:$0xff]
  %v274 = vld [vmem:[%s4 + $0x7d8] sm:$0xff]
  %v275 = vld [vmem:[%s4 + $0x7e0] sm:$0xff]
  %v276 = vld [vmem:[%s4 + $0x7e8] sm:$0xff]
  %v277 = vld [vmem:[%s4 + $0x7f0] sm:$0xff]
  %v278 = vld [vmem:[%s4 + $0x7f8] sm:$0xff]
  %v279 = vld [vmem:[%s4 + $0x800] sm:$0xff]
  %v280 = vld [vmem:[%s4 + $0x808] sm:$0xff]
  %v281 = vld [vmem:[%s4 + $0x810] sm:$0xff]
  %v282 = vld [vmem:[%s4 + $0x818] sm:$0xff]
  %v283 = vld [vmem:[%s4 + $0x820] sm:$0xff]
  %v284 = vld [vmem:[%s4 + $0x828] sm:$0xff]
  %v285 = vld [vmem:[%s4 + $0x830] sm:$0xff]
  %v286 = vld [vmem:[%s4 + $0x838] sm:$0xff]
  %v287 = vld [vmem:[%s4 + $0x840] sm:$0xff]
  %v288 = vld [vmem:[%s4 + $0x848] sm:$0xff]
  %v289 = vld [vmem:[%s4 + $0x850] sm:$0xff]
  %v290 = vld [vmem:[%s4 + $0x858] sm:$0xff]
  %v291 = vld [vmem:[%s4 + $0x860] sm:$0xff]
  %v292 = vld [vmem:[%s4 + $0x868] sm:$0xff]
  %v293 = vld [vmem:[%s4 + $0x870] sm:$0xff]
  %v294 = vld [vmem:[%s4 + $0x878] sm:$0xff]
  %v295 = vld [vmem:[%s4 + $0x880] sm:$0xff]
  %v296 = vld [vmem:[%s4 + $0x888] sm:$0xff]
  %v297 = vld [vmem:[%s4 + $0x890] sm:$0xff]
  %v298 = vld [vmem:[%s4 + $0x898] sm:$0xff]
  %v299 = vld [vmem:[%s4 + $0x8a0] sm:$0xff]
  %v300 = vld [vmem:[%s4 + $0x8a8] sm:$0xff]
  %v301 = vld [vmem:[%s4 + $0x8b0] sm:$0xff]
  %v302 = vld [vmem:[%s4 + $0x8b8] sm:$0xff]
  %v303 = vld [vmem:[%s4 + $0x8c0] sm:$0xff]
  %v304 = vld [vmem:[%s4 + $0x8c8] sm:$0xff]
  %v305 = vld [vmem:[%s4 + $0x8d0] sm:$0xff]
  %v306 = vld [vmem:[%s4 + $0x8d8] sm:$0xff]
  %v307 = vld [vmem:[%s4 + $0x8e0] sm:$0xff]
  %v308 = vld [vmem:[%s4 + $0x8e8] sm:$0xff]
  %v309 = vld [vmem:[%s4 + $0x8f0] sm:$0xff]
  %v310 = vld [vmem:[%s4 + $0x8f8] sm:$0xff]
  %v311 = vld [vmem:[%s4 + $0x900] sm:$0xff]
  %v312 = vld [vmem:[%s4 + $0x908] sm:$0xff]
  %v313 = vld [vmem:[%s4 + $0x910] sm:$0xff]
  %v314 = vld [vmem:[%s4 + $0x918] sm:$0xff]
  %v315 = vld [vmem:[%s4 + $0x920] sm:$0xff]
  %v316 = vld [vmem:[%s4 + $0x928] sm:$0xff]
  %v317 = vld [vmem:[%s4 + $0x930] sm:$0xff]
  %v318 = vld [vmem:[%s4 + $0x938] sm:$0xff]
  %v319 = vld [vmem:[%s4 + $0x940] sm:$0xff]
  %v320 = vld [vmem:[%s4 + $0x948] sm:$0xff]
  %v321 = vld [vmem:[%s4 + $0x950] sm:$0xff]
  %v322 = vld [vmem:[%s4 + $0x958] sm:$0xff]
  %v323 = vld [vmem:[%s4 + $0x960] sm:$0xff]
  %v324 = vld [vmem:[%s4 + $0x968] sm:$0xff]
  %v325 = vld [vmem:[%s4 + $0x970] sm:$0xff]
  %v326 = vld [vmem:[%s4 + $0x978] sm:$0xff]
  %v327 = vld [vmem:[%s4 + $0x980] sm:$0xff]
  %v328 = vld [vmem:[%s4 + $0x988] sm:$0xff]
  %v329 = vld [vmem:[%s4 + $0x990] sm:$0xff]
  %v330 = vld [vmem:[%s4 + $0x998] sm:$0xff]
  %v331 = vld [vmem:[%s4 + $0x9a0] sm:$0xff]
  %v332 = vld [vmem:[%s4 + $0x9a8] sm:$0xff]
  %v333 = vld [vmem:[%s4 + $0x9b0] sm:$0xff]
  %v334 = vld [vmem:[%s4 + $0x9b8] sm:$0xff]
  %v335 = vld [vmem:[%s4 + $0x9c0] sm:$0xff]
  %v336 = vld [vmem:[%s4 + $0x9c8] sm:$0xff]
  %v337 = vld [vmem:[%s4 + $0x9d0] sm:$0xff]
  %v338 = vld [vmem:[%s4 + $0x9d8] sm:$0xff]
  %v339 = vld [vmem:[%s4 + $0x9e0] sm:$0xff]
  %v340 = vld [vmem:[%s4 + $0x9e8] sm:$0xff]
  %v341 = vld [vmem:[%s4 + $0x9f0] sm:$0xff]
  %v342 = vld [vmem:[%s4 + $0x9f8] sm:$0xff]
  %v343 = vld [vmem:[%s4 + $0xa00] sm:$0xff]
  %v344 = vld [vmem:[%s4 + $0xa08] sm:$0xff]
  %v345 = vld [vmem:[%s4 + $0xa10] sm:$0xff]
  %v346 = vld [vmem:[%s4 + $0xa18] sm:$0xff]
  %v347 = vld [vmem:[%s4 + $0xa20] sm:$0xff]
  %v348 = vld [vmem:[%s4 + $0xa28] sm:$0xff]
  %v349 = vld [vmem:[%s4 + $0xa30] sm:$0xff]
  %v350 = vld [vmem:[%s4 + $0xa38] sm:$0xff]
  %v351 = vld [vmem:[%s4 + $0xa40] sm:$0xff]
  %v352 = vld [vmem:[%s4 + $0xa48] sm:$0xff]
  %v353 = vld [vmem:[%s4 + $0xa50] sm:$0xff]
  %v354 = vld [vmem:[%s4 + $0xa58] sm:$0xff]
  %v355 = vld [vmem:[%s4 + $0xa60] sm:$0xff]
  %v356 = vld [vmem:[%s4 + $0xa68] sm:$0xff]
  %v357 = vld [vmem:[%s4 + $0xa70] sm:$0xff]
  %v358 = vld [vmem:[%s4 + $0xa78] sm:$0xff]
  %v359 = vld [vmem:[%s4 + $0xa80] sm:$0xff]
  %v360 = vld [vmem:[%s4 + $0xa88] sm:$0xff]
  %v361 = vld [vmem:[%s4 + $0xa90] sm:$0xff]
  %v362 = vld [vmem:[%s4 + $0xa98] sm:$0xff]
  %v363 = vld [vmem:[%s4 + $0xaa0] sm:$0xff]
  %v364 = vld [vmem:[%s4 + $0xaa8] sm:$0xff]
  %v365 = vld [vmem:[%s4 + $0xab0] sm:$0xff]
  %v366 = vld [vmem:[%s4 + $0xab8] sm:$0xff]
  %v367 = vld [vmem:[%s4 + $0xac0] sm:$0xff]
  %v368 = vld [vmem:[%s4 + $0xac8] sm:$0xff]
  %v369 = vld [vmem:[%s4 + $0xad0] sm:$0xff]
  %v370 = vld [vmem:[%s4 + $0xad8] sm:$0xff]
  %v371 = vld [vmem:[%s4 + $0xae0] sm:$0xff]
  %v372 = vld [vmem:[%s4 + $0xae8] sm:$0xff]
  %v373 = vld [vmem:[%s4 + $0xaf0] sm:$0xff]
  %v374 = vld [vmem:[%s4 + $0xaf8] sm:$0xff]
  %v375 = vld [vmem:[%s4 + $0xb00] sm:$0xff]
  %v376 = vld [vmem:[%s4 + $0xb08] sm:$0xff]
  %v377 = vld [vmem:[%s4 + $0xb10] sm:$0xff]
  %v378 = vld [vmem:[%s4 + $0xb18] sm:$0xff]
  %v379 = vld [vmem:[%s4 + $0xb20] sm:$0xff]
  %v380 = vld [vmem:[%s4 + $0xb28] sm:$0xff]
  %v381 = vld [vmem:[%s4 + $0xb30] sm:$0xff]
  %v382 = vld [vmem:[%s4 + $0xb38] sm:$0xff]
  %v383 = vld [vmem:[%s4 + $0xb40] sm:$0xff]
  %v384 = vld [vmem:[%s4 + $0xb48] sm:$0xff]
  %v385 = vld [vmem:[%s4 + $0xb50] sm:$0xff]
  %v386 = vld [vmem:[%s4 + $0xb58] sm:$0xff]
  %v387 = vld [vmem:[%s4 + $0xb60] sm:$0xff]
  %v388 = vld [vmem:[%s4 + $0xb68] sm:$0xff]
  %v389 = vld [vmem:[%s4 + $0xb70] sm:$0xff]
  %v390 = vld [vmem:[%s4 + $0xb78] sm:$0xff]
  %v391 = vld [vmem:[%s4 + $0xb80] sm:$0xff]
  %v392 = vld [vmem:[%s4 + $0xb88] sm:$0xff]
  %v393 = vld [vmem:[%s4 + $0xb90] sm:$0xff]
  %v394 = vld [vmem:[%s4 + $0xb98] sm:$0xff]
  %v395 = vld [vmem:[%s4 + $0xba0] sm:$0xff]
  %v396 = vld [vmem:[%s4 + $0xba8] sm:$0xff]
  %v397 = vld [vmem:[%s4 + $0xbb0] sm:$0xff]
  %v398 = vld [vmem:[%s4 + $0xbb8] sm:$0xff]
  %v399 = vld [vmem:[%s4 + $0xbc0] sm:$0xff]
  %v400 = vld [vmem:[%s4 + $0xbc8] sm:$0xff]
  %v401 = vld [vmem:[%s4 + $0xbd0] sm:$0xff]
  %v402 = vld [vmem:[%s4 + $0xbd8] sm:$0xff]
  %v403 = vld [vmem:[%s4 + $0xbe0] sm:$0xff]
  %v404 = vld [vmem:[%s4 + $0xbe8] sm:$0xff]
  %v405 = vld [vmem:[%s4 + $0xbf0] sm:$0xff]
  %v406 = vld [vmem:[%s4 + $0xbf8] sm:$0xff]
  %v407 = vld [vmem:[%s4 + $0xc00] sm:$0xff]
  %v408 = vld [vmem:[%s4 + $0xc08] sm:$0xff]
  %v409 = vld [vmem:[%s4 + $0xc10] sm:$0xff]
  %v410 = vld [vmem:[%s4 + $0xc18] sm:$0xff]
  %v411 = vld [vmem:[%s4 + $0xc20] sm:$0xff]
  %v412 = vld [vmem:[%s4 + $0xc28] sm:$0xff]
  %v413 = vld [vmem:[%s4 + $0xc30] sm:$0xff]
  %v414 = vld [vmem:[%s4 + $0xc38] sm:$0xff]
  %v415 = vld [vmem:[%s4 + $0xc40] sm:$0xff]
  %v416 = vld [vmem:[%s4 + $0xc48] sm:$0xff]
  %v417 = vld [vmem:[%s4 + $0xc50] sm:$0xff]
  %v418 = vld [vmem:[%s4 + $0xc58] sm:$0xff]
  %v419 = vld [vmem:[%s4 + $0xc60] sm:$0xff]
  %v420 = vld [vmem:[%s4 + $0xc68] sm:$0xff]
  %v421 = vld [vmem:[%s4 + $0xc70] sm:$0xff]
  %v422 = vld [vmem:[%s4 + $0xc78] sm:$0xff]
  %v423 = vld [vmem:[%s0] sm:$0xff]
  %v424 = vld [vmem:[%s0 + $0x8] sm:$0xff]
  %v425 = vld [vmem:[%s0 + $0x10] sm:$0xff]
  %v426 = vld [vmem:[%s0 + $0x18] sm:$0xff]
  %v427 = vld [vmem:[%s0 + $0x20] sm:$0xff]
  %v428 = vld [vmem:[%s0 + $0x28] sm:$0xff]
  %v429 = vld [vmem:[%s0 + $0x30] sm:$0xff]
  %v430 = vld [vmem:[%s0 + $0x38] sm:$0xff]
  %v431 = vld [vmem:[%s0 + $0x40] sm:$0xff]
  %v432 = vld [vmem:[%s0 + $0x48] sm:$0xff]
  %v433 = vld [vmem:[%s0 + $0x50] sm:$0xff]
  %v434 = vld [vmem:[%s0 + $0x58] sm:$0xff]
  %v435 = vld [vmem:[%s0 + $0x60] sm:$0xff]
  %v436 = vld [vmem:[%s0 + $0x68] sm:$0xff]
  %v437 = vld [vmem:[%s0 + $0x70] sm:$0xff]
  %v438 = vld [vmem:[%s0 + $0x78] sm:$0xff]
  %v439 = vld [vmem:[%s0 + $0x80] sm:$0xff]
  %v440 = vld [vmem:[%s0 + $0x88] sm:$0xff]
  %v441 = vld [vmem:[%s0 + $0x90] sm:$0xff]
  %v442 = vld [vmem:[%s0 + $0x98] sm:$0xff]
  %v443 = vld [vmem:[%s0 + $0xa0] sm:$0xff]
  %v444 = vld [vmem:[%s0 + $0xa8] sm:$0xff]
  %v445 = vld [vmem:[%s0 + $0xb0] sm:$0xff]
  %v446 = vld [vmem:[%s0 + $0xb8] sm:$0xff]
  %v447 = vld [vmem:[%s0 + $0xc0] sm:$0xff]
  %v448 = vld [vmem:[%s0 + $0xc8] sm:$0xff]
  %v449 = vld [vmem:[%s0 + $0xd0] sm:$0xff]
  %v450 = vld [vmem:[%s0 + $0xd8] sm:$0xff]
  %v451 = vld [vmem:[%s0 + $0xe0] sm:$0xff]
  %v452 = vld [vmem:[%s0 + $0xe8] sm:$0xff]
  %v453 = vld [vmem:[%s0 + $0xf0] sm:$0xff]
  %v454 = vld [vmem:[%s0 + $0xf8] sm:$0xff]
  %v455 = vld [vmem:[%s0 + $0x100] sm:$0xff]
  %v456 = vld [vmem:[%s0 + $0x108] sm:$0xff]
  %v457 = vld [vmem:[%s0 + $0x110] sm:$0xff]
  %v458 = vld [vmem:[%s0 + $0x118] sm:$0xff]
  %v459 = vld [vmem:[%s0 + $0x120] sm:$0xff]
  %v460 = vld [vmem:[%s0 + $0x128] sm:$0xff]
  %v461 = vld [vmem:[%s0 + $0x130] sm:$0xff]
  %v462 = vld [vmem:[%s0 + $0x138] sm:$0xff]
  %v463 = vld [vmem:[%s0 + $0x140] sm:$0xff]
  %v464 = vld [vmem:[%s0 + $0x148] sm:$0xff]
  %v465 = vld [vmem:[%s0 + $0x150] sm:$0xff]
  %v466 = vld [vmem:[%s0 + $0x158] sm:$0xff]
  %v467 = vld [vmem:[%s0 + $0x160] sm:$0xff]
  %v468 = vld [vmem:[%s0 + $0x168] sm:$0xff]
  %v469 = vld [vmem:[%s0 + $0x170] sm:$0xff]
  %v470 = vld [vmem:[%s0 + $0x178] sm:$0xff]
  %v471 = vld [vmem:[%s0 + $0x180] sm:$0xff]
  %v472 = vld [vmem:[%s0 + $0x188] sm:$0xff]
  %v473 = vld [vmem:[%s0 + $0x190] sm:$0xff]
  %v474 = vld [vmem:[%s0 + $0x198] sm:$0xff]
  %v475 = vld [vmem:[%s0 + $0x1a0] sm:$0xff]
  %v476 = vld [vmem:[%s0 + $0x1a8] sm:$0xff]
  %v477 = vld [vmem:[%s0 + $0x1b0] sm:$0xff]
  %v478 = vld [vmem:[%s0 + $0x1b8] sm:$0xff]
  %v479 = vld [vmem:[%s0 + $0x1c0] sm:$0xff]
  %v480 = vld [vmem:[%s0 + $0x1c8] sm:$0xff]
  %v481 = vld [vmem:[%s0 + $0x1d0] sm:$0xff]
  %v482 = vld [vmem:[%s0 + $0x1d8] sm:$0xff]
  %v483 = vld [vmem:[%s0 + $0x1e0] sm:$0xff]
  %v484 = vld [vmem:[%s0 + $0x1e8] sm:$0xff]
  %v485 = vld [vmem:[%s0 + $0x1f0] sm:$0xff]
  %v486 = vld [vmem:[%s0 + $0x1f8] sm:$0xff]
  %v487 = vld [vmem:[%s0 + $0x200] sm:$0xff]
  %v488 = vld [vmem:[%s0 + $0x208] sm:$0xff]
  %v489 = vld [vmem:[%s0 + $0x210] sm:$0xff]
  %v490 = vld [vmem:[%s0 + $0x218] sm:$0xff]
  %v491 = vld [vmem:[%s0 + $0x220] sm:$0xff]
  %v492 = vld [vmem:[%s0 + $0x228] sm:$0xff]
  %v493 = vld [vmem:[%s0 + $0x230] sm:$0xff]
  %v494 = vld [vmem:[%s0 + $0x238] sm:$0xff]
  %v495 = vld [vmem:[%s0 + $0x240] sm:$0xff]
  %v496 = vld [vmem:[%s0 + $0x248] sm:$0xff]
  %v497 = vld [vmem:[%s0 + $0x250] sm:$0xff]
  %v498 = vld [vmem:[%s0 + $0x258] sm:$0xff]
  %v499 = vld [vmem:[%s0 + $0x260] sm:$0xff]
  %v500 = vld [vmem:[%s0 + $0x268] sm:$0xff]
  %v501 = vld [vmem:[%s0 + $0x270] sm:$0xff]
  %v502 = vld [vmem:[%s0 + $0x278] sm:$0xff]
  %v503 = vld [vmem:[%s0 + $0x280] sm:$0xff]
  %v504 = vld [vmem:[%s0 + $0x288] sm:$0xff]
  %v505 = vld [vmem:[%s0 + $0x290] sm:$0xff]
  %v506 = vld [vmem:[%s0 + $0x298] sm:$0xff]
  %v507 = vld [vmem:[%s0 + $0x2a0] sm:$0xff]
  %v508 = vld [vmem:[%s0 + $0x2a8] sm:$0xff]
  %v509 = vld [vmem:[%s0 + $0x2b0] sm:$0xff]
  %v510 = vld [vmem:[%s0 + $0x2b8] sm:$0xff]
  %v511 = vld [vmem:[%s0 + $0x2c0] sm:$0xff]
  %v512 = vld [vmem:[%s0 + $0x2c8] sm:$0xff]
  %v513 = vld [vmem:[%s0 + $0x2d0] sm:$0xff]
  %v514 = vld [vmem:[%s0 + $0x2d8] sm:$0xff]
  %v515 = vld [vmem:[%s0 + $0x2e0] sm:$0xff]
  %v516 = vld [vmem:[%s0 + $0x2e8] sm:$0xff]
  %v517 = vld [vmem:[%s0 + $0x2f0] sm:$0xff]
  %v518 = vld [vmem:[%s0 + $0x2f8] sm:$0xff]
  %v519 = vld [vmem:[%s0 + $0x300] sm:$0xff]
  %v520 = vld [vmem:[%s0 + $0x308] sm:$0xff]
  %v521 = vld [vmem:[%s0 + $0x310] sm:$0xff]
  %v522 = vld [vmem:[%s0 + $0x318] sm:$0xff]
  %v523 = vld [vmem:[%s0 + $0x320] sm:$0xff]
  %v524 = vld [vmem:[%s0 + $0x328] sm:$0xff]
  %v525 = vld [vmem:[%s0 + $0x330] sm:$0xff]
  %v526 = vld [vmem:[%s0 + $0x338] sm:$0xff]
  %v527 = vld [vmem:[%s0 + $0x340] sm:$0xff]
  %v528 = vld [vmem:[%s0 + $0x348] sm:$0xff]
  %v529 = vld [vmem:[%s0 + $0x350] sm:$0xff]
  %v530 = vld [vmem:[%s0 + $0x358] sm:$0xff]
  %v531 = vld [vmem:[%s0 + $0x360] sm:$0xff]
  %v532 = vld [vmem:[%s0 + $0x368] sm:$0xff]
  %v533 = vld [vmem:[%s0 + $0x370] sm:$0xff]
  %v534 = vld [vmem:[%s0 + $0x378] sm:$0xff]
  %v535 = vld [vmem:[%s0 + $0x380] sm:$0xff]
  %v536 = vld [vmem:[%s0 + $0x388] sm:$0xff]
  %v537 = vld [vmem:[%s0 + $0x390] sm:$0xff]
  %v538 = vld [vmem:[%s0 + $0x398] sm:$0xff]
  %v539 = vld [vmem:[%s0 + $0x3a0] sm:$0xff]
  %v540 = vld [vmem:[%s0 + $0x3a8] sm:$0xff]
  %v541 = vld [vmem:[%s0 + $0x3b0] sm:$0xff]
  %v542 = vld [vmem:[%s0 + $0x3b8] sm:$0xff]
  %v543 = vld [vmem:[%s0 + $0x3c0] sm:$0xff]
  %v544 = vld [vmem:[%s0 + $0x3c8] sm:$0xff]
  %v545 = vld [vmem:[%s0 + $0x3d0] sm:$0xff]
  %v546 = vld [vmem:[%s0 + $0x3d8] sm:$0xff]
  %v547 = vld [vmem:[%s0 + $0x3e0] sm:$0xff]
  %v548 = vld [vmem:[%s0 + $0x3e8] sm:$0xff]
  %v549 = vld [vmem:[%s0 + $0x3f0] sm:$0xff]
  %v550 = vld [vmem:[%s0 + $0x3f8] sm:$0xff]
  %v551 = vld [vmem:[%s0 + $0x400] sm:$0xff]
  %v552 = vld [vmem:[%s0 + $0x408] sm:$0xff]
  %v553 = vld [vmem:[%s0 + $0x410] sm:$0xff]
  %v554 = vld [vmem:[%s0 + $0x418] sm:$0xff]
  %v555 = vld [vmem:[%s0 + $0x420] sm:$0xff]
  %v556 = vld [vmem:[%s0 + $0x428] sm:$0xff]
  %v557 = vld [vmem:[%s0 + $0x430] sm:$0xff]
  %v558 = vld [vmem:[%s0 + $0x438] sm:$0xff]
  %v559 = vld [vmem:[%s0 + $0x440] sm:$0xff]
  %v560 = vld [vmem:[%s0 + $0x448] sm:$0xff]
  %v561 = vld [vmem:[%s0 + $0x450] sm:$0xff]
  %v562 = vld [vmem:[%s0 + $0x458] sm:$0xff]
  %v563 = vld [vmem:[%s0 + $0x460] sm:$0xff]
  %v564 = vld [vmem:[%s0 + $0x468] sm:$0xff]
  %v565 = vld [vmem:[%s0 + $0x470] sm:$0xff]
  %v566 = vld [vmem:[%s0 + $0x478] sm:$0xff]
  %v567 = vld [vmem:[%s0 + $0x480] sm:$0xff]
  %v568 = vld [vmem:[%s0 + $0x488] sm:$0xff]
  %v569 = vld [vmem:[%s0 + $0x490] sm:$0xff]
  %v570 = vld [vmem:[%s0 + $0x498] sm:$0xff]
  %v571 = vld [vmem:[%s0 + $0x4a0] sm:$0xff]
  %v572 = vld [vmem:[%s0 + $0x4a8] sm:$0xff]
  %v573 = vld [vmem:[%s0 + $0x4b0] sm:$0xff]
  %v574 = vld [vmem:[%s0 + $0x4b8] sm:$0xff]
  %v575 = vld [vmem:[%s0 + $0x4c0] sm:$0xff]
  %v576 = vld [vmem:[%s0 + $0x4c8] sm:$0xff]
  %v577 = vld [vmem:[%s0 + $0x4d0] sm:$0xff]
  %v578 = vld [vmem:[%s0 + $0x4d8] sm:$0xff]
  %v579 = vld [vmem:[%s0 + $0x4e0] sm:$0xff]
  %v580 = vld [vmem:[%s0 + $0x4e8] sm:$0xff]
  %v581 = vld [vmem:[%s0 + $0x4f0] sm:$0xff]
  %v582 = vld [vmem:[%s0 + $0x4f8] sm:$0xff]
  %v583 = vld [vmem:[%s0 + $0x500] sm:$0xff]
  %v584 = vld [vmem:[%s0 + $0x508] sm:$0xff]
  %v585 = vld [vmem:[%s0 + $0x510] sm:$0xff]
  %v586 = vld [vmem:[%s0 + $0x518] sm:$0xff]
  %v587 = vld [vmem:[%s0 + $0x520] sm:$0xff]
  %v588 = vld [vmem:[%s0 + $0x528] sm:$0xff]
  %v589 = vld [vmem:[%s0 + $0x530] sm:$0xff]
  %v590 = vld [vmem:[%s0 + $0x538] sm:$0xff]
  %v591 = vld [vmem:[%s0 + $0x540] sm:$0xff]
  %v592 = vld [vmem:[%s0 + $0x548] sm:$0xff]
  %v593 = vld [vmem:[%s0 + $0x550] sm:$0xff]
  %v594 = vld [vmem:[%s0 + $0x558] sm:$0xff]
  %v595 = vld [vmem:[%s0 + $0x560] sm:$0xff]
  %v596 = vld [vmem:[%s0 + $0x568] sm:$0xff]
  %v597 = vld [vmem:[%s0 + $0x570] sm:$0xff]
  %598 = vmatprep.subr.mxu0 0.0
  %599 = vmatpush1.msra.mxu0 %v23
  %600 = vmatprep.subr.mxu0 0.0
  %601 = vmatpush1.msra.mxu0 %v24
  %602 = vmatprep.subr.mxu0 0.0
  %603 = vmatpush1.msra.mxu0 %v25
  %604 = vmatprep.subr.mxu0 0.0
  %605 = vmatpush1.msra.mxu0 %v26
  %606 = vmatprep.subr.mxu0 0.0
  %607 = vmatpush1.msra.mxu0 %v27
  %608 = vmatprep.subr.mxu0 0.0
  %609 = vmatpush1.msra.mxu0 %v28
  %610 = vmatprep.subr.mxu0 0.0
  %611 = vmatpush1.msra.mxu0 %v29
  %612 = vmatprep.subr.mxu0 0.0
  %613 = vmatpush1.msra.mxu0 %v30
  %614 = vmatprep.subr.mxu0 0.0
  %615 = vmatpush1.msra.mxu0 %v31
  %616 = vmatprep.subr.mxu0 0.0
  %617 = vmatpush1.msra.mxu0 %v32
  %618 = vmatprep.subr.mxu0 0.0
  %619 = vmatpush1.msra.mxu0 %v33
  %620 = vmatprep.subr.mxu0 0.0
  %621 = vmatpush1.msra.mxu0 %v34
  %622 = vmatprep.subr.mxu0 0.0
  %623 = vmatpush1.msra.mxu0 %v35
  %624 = vmatprep.subr.mxu0 0.0
  %625 = vmatpush1.msra.mxu0 %v36
  %626 = vmatprep.subr.mxu0 0.0
  %627 = vmatpush1.msra.mxu0 %v37
  %628 = vmatprep.subr.mxu0 0.0
  %629 = vmatpush1.msra.mxu0 %v38
  %630 = vmatprep.subr.mxu0 0.0
  %631 = vmatpush1.msra.mxu0 %v39
  %632 = vmatprep.subr.mxu0 0.0
  %633 = vmatpush1.msra.mxu0 %v40
  %634 = vmatprep.subr.mxu0 0.0
  %635 = vmatpush1.msra.mxu0 %v41
  %636 = vmatprep.subr.mxu0 0.0
  %637 = vmatpush1.msra.mxu0 %v42
  %638 = vmatprep.subr.mxu0 0.0
  %639 = vmatpush1.msra.mxu0 %v43
  %640 = vmatprep.subr.mxu0 0.0
  %641 = vmatpush1.msra.mxu0 %v44
  %642 = vmatprep.subr.mxu0 0.0
  %643 = vmatpush1.msra.mxu0 %v45
  %644 = vmatprep.subr.mxu0 0.0
  %645 = vmatpush1.msra.mxu0 %v46
  %646 = vmatprep.subr.mxu0 0.0
  %647 = vmatpush1.msra.mxu0 %v47
  %648 = vmatprep.subr.mxu0 0.0
  %649 = vmatpush1.msra.mxu0 %v48
  %650 = vmatprep.subr.mxu0 0.0
  %651 = vmatpush1.msra.mxu0 %v49
  %652 = vmatprep.subr.mxu0 0.0
  %653 = vmatpush1.msra.mxu0 %v50
  %654 = vmatprep.subr.mxu0 0.0
  %655 = vmatpush1.msra.mxu0 %v51
  %656 = vmatprep.subr.mxu0 0.0
  %657 = vmatpush1.msra.mxu0 %v52
  %658 = vmatprep.subr.mxu0 0.0
  %659 = vmatpush1.msra.mxu0 %v53
  %660 = vmatprep.subr.mxu0 0.0
  %661 = vmatpush1.msra.mxu0 %v54
  %662 = vmatprep.mubr.f32.mxu0 %v424
  %663 = vmatmul.mubr.f32.gmra.mrb[0].mxu0 %v423
  %v664 = vpop.f32.mrb[0].mxu0
  %v665 = vadd.f32 0.0, %v664
  %v666 = vpop.f32.mrb[0].mxu0
  %667 = vmatprep.mubr.f32.mxu0 %v449
  %668 = vmatmul.mubr.f32.gmra.mrb[0].mxu0 %v448
  %v669 = vpop.f32.mrb[0].mxu0
  %v670 = vadd.f32 0.0, %v669
  %v671 = vpop.f32.mrb[0].mxu0
  %672 = vmatprep.mubr.f32.mxu0 %v474
  %673 = vmatmul.mubr.f32.gmra.mrb[0].mxu0 %v473
  %v674 = vpop.f32.mrb[0].mxu0
  %v675 = vadd.f32 0.0, %v674
  %v676 = vpop.f32.mrb[0].mxu0
  %677 = vmatprep.mubr.f32.mxu0 %v499
  %678 = vmatmul.mubr.f32.gmra.mrb[0].mxu0 %v498
  %v679 = vpop.f32.mrb[0].mxu0
  %v680 = vadd.f32 0.0, %v679
  %v681 = vpop.f32.mrb[0].mxu0
  %682 = vmatprep.mubr.f32.mxu0 %v524
  %683 = vmatmul.mubr.f32.gmra.mrb[0].mxu0 %v523
  %v684 = vpop.f32.mrb[0].mxu0
  %v685 = vadd.f32 0.0, %v684
  %v686 = vpop.f32.mrb[0].mxu0
  %687 = vmatprep.mubr.f32.mxu0 %v549
  %688 = vmatmul.mubr.f32.gmra.mrb[0].mxu0 %v548
  %v689 = vpop.f32.mrb[0].mxu0
  %v690 = vadd.f32 0.0, %v689
  %v691 = vpop.f32.mrb[0].mxu0
  %692 = vmatprep.mubr.f32.mxu0 %v574
  %693 = vmatmul.mubr.f32.gmra.mrb[0].mxu0 %v573
  %v694 = vpop.f32.mrb[0].mxu0
  %v695 = vadd.f32 0.0, %v694
  %v696 = vpop.f32.mrb[0].mxu0
  %697 = vdwg.mxu0
  %698 = vmatprep.subr.mxu0 0.0
  %699 = vmatpush1.msra.mxu0 %v55
  %700 = vmatprep.subr.mxu0 0.0
  %701 = vmatpush1.msra.mxu0 %v56
  %702 = vmatprep.subr.mxu0 0.0
  %703 = vmatpush1.msra.mxu0 %v57
  %704 = vmatprep.subr.mxu0 0.0
  %705 = vmatpush1.msra.mxu0 %v58
  %706 = vmatprep.subr.mxu0 0.0
  %707 = vmatpush1.msra.mxu0 %v59
  %708 = vmatprep.subr.mxu0 0.0
  %709 = vmatpush1.msra.mxu0 %v60
  %710 = vmatprep.subr.mxu0 0.0
  %711 = vmatpush1.msra.mxu0 %v61
  %712 = vmatprep.subr.mxu0 0.0
  %713 = vmatpush1.msra.mxu0 %v62
  %714 = vmatprep.subr.mxu0 0.0
  %715 = vmatpush1.msra.mxu0 %v63
  %716 = vmatprep.subr.mxu0 0.0
  %717 = vmatpush1.msra.mxu0 %v64
  %718 = vmatprep.subr.mxu0 0.0
  %719 = vmatpush1.msra.mxu0 %v65
  %720 = vmatprep.subr.mxu0 0.0
  %721 = vmatpush1.msra.mxu0 %v66
  %722 = vmatprep.subr.mxu0 0.0
  %723 = vmatpush1.msra.mxu0 %v67
  %724 = vmatprep.subr.mxu0 0.0
  %725 = vmatpush1.msra.mxu0 %v68
  %726 = vmatprep.subr.mxu0 0.0
  %727 = vmatpush1.msra.mxu0 %v69
  %728 = vmatprep.subr.mxu0 0.0
  %729 = vmatpush1.msra.mxu0 %v70
  %730 = vmatprep.subr.mxu0 0.0
  %731 = vmatpush1.msra.mxu0 %v71
  %732 = vmatprep.subr.mxu0 0.0
  %733 = vmatpush1.msra.mxu0 %v72
  %734 = vmatprep.subr.mxu0 0.0
  %735 = vmatpush1.msra.mxu0 %v73
  %736 = vmatprep.subr.mxu0 0.0
  %737 = vmatpush1.msra.mxu0 %v74
  %738 = vmatprep.subr.mxu0 0.0
  %739 = vmatpush1.msra.mxu0 %v75
  %740 = vmatprep.subr.mxu0 0.0
  %741 = vmatpush1.msra.mxu0 %v76
  %742 = vmatprep.subr.mxu0 0.0
  %743 = vmatpush1.msra.mxu0 %v77
  %744 = vmatprep.subr.mxu0 0.0
  %745 = vmatpush1.msra.mxu0 %v78
  %746 = vmatprep.subr.mxu0 0.0
  %747 = vmatpush1.msra.mxu0 %v79
  %748 = vmatprep.subr.mxu0 0.0
  %749 = vmatpush1.msra.mxu0 %v80
  %750 = vmatprep.subr.mxu0 0.0
  %751 = vmatpush1.msra.mxu0 %v81
  %752 = vmatprep.subr.mxu0 0.0
  %753 = vmatpush1.msra.mxu0 %v82
  %754 = vmatprep.subr.mxu0 0.0
  %755 = vmatpush1.msra.mxu0 %v83
  %756 = vmatprep.subr.mxu0 0.0
  %757 = vmatpush1.msra.mxu0 %v84
  %758 = vmatprep.subr.mxu0 0.0
  %759 = vmatpush1.msra.mxu0 %v85
  %760 = vmatprep.subr.mxu0 0.0
  %761 = vmatpush1.msra.mxu0 %v86
  %762 = vmatprep.mubr.f32.mxu0 %v426
  %763 = vmatmul.mubr.f32.gmra.mrb[0].mxu0 %v425
  %v764 = vpop.f32.mrb[0].mxu0
  %v765 = vadd.f32 %v665, %v764
  %v766 = vpop.f32.mrb[0].mxu0
  %767 = vmatprep.mubr.f32.mxu0 %v451
  %768 = vmatmul.mubr.f32.gmra.mrb[0].mxu0 %v450
  %v769 = vpop.f32.mrb[0].mxu0
  %v770 = vadd.f32 %v670, %v769
  %v771 = vpop.f32.mrb[0].mxu0
  %772 = vmatprep.mubr.f32.mxu0 %v476
  %773 = vmatmul.mubr.f32.gmra.mrb[0].mxu0 %v475
  %v774 = vpop.f32.mrb[0].mxu0
  %v775 = vadd.f32 %v675, %v774
  %v776 = vpop.f32.mrb[0].mxu0
  %777 = vmatprep.mubr.f32.mxu0 %v501
  %778 = vmatmul.mubr.f32.gmra.mrb[0].mxu0 %v500
  %v779 = vpop.f32.mrb[0].mxu0
  %v780 = vadd.f32 %v680, %v779
  %v781 = vpop.f32.mrb[0].mxu0
  %782 = vmatprep.mubr.f32.mxu0 %v526
  %783 = vmatmul.mubr.f32.gmra.mrb[0].mxu0 %v525
  %v784 = vpop.f32.mrb[0].mxu0
  %v785 = vadd.f32 %v685, %v784
  %v786 = vpop.f32.mrb[0].mxu0
  %787 = vmatprep.mubr.f32.mxu0 %v551
  %788 = vmatmul.mubr.f32.gmra.mrb[0].mxu0 %v550
  %v789 = vpop.f32.mrb[0].mxu0
  %v790 = vadd.f32 %v690, %v789
  %v791 = vpop.f32.mrb[0].mxu0
  %792 = vmatprep.mubr.f32.mxu0 %v576
  %793 = vmatmul.mubr.f32.gmra.mrb[0].mxu0 %v575
  %v794 = vpop.f32.mrb[0].mxu0
  %v795 = vadd.f32 %v695, %v794
  %v796 = vpop.f32.mrb[0].mxu0
  %797 = vdwg.mxu0
  %798 = vmatprep.subr.mxu0 0.0
  %799 = vmatpush1.msra.mxu0 %v87
  %800 = vmatprep.subr.mxu0 0.0
  %801 = vmatpush1.msra.mxu0 %v88
  %802 = vmatprep.subr.mxu0 0.0
  %803 = vmatpush1.msra.mxu0 %v89
  %804 = vmatprep.subr.mxu0 0.0
  %805 = vmatpush1.msra.mxu0 %v90
  %806 = vmatprep.subr.mxu0 0.0
  %807 = vmatpush1.msra.mxu0 %v91
  %808 = vmatprep.subr.mxu0 0.0
  %809 = vmatpush1.msra.mxu0 %v92
  %810 = vmatprep.subr.mxu0 0.0
  %811 = vmatpush1.msra.mxu0 %v93
  %812 = vmatprep.subr.mxu0 0.0
  %813 = vmatpush1.msra.mxu0 %v94
  %814 = vmatprep.subr.mxu0 0.0
  %815 = vmatpush1.msra.mxu0 %v95
  %816 = vmatprep.subr.mxu0 0.0
  %817 = vmatpush1.msra.mxu0 %v96
  %818 = vmatprep.subr.mxu0 0.0
  %819 = vmatpush1.msra.mxu0 %v97
  %820 = vmatprep.subr.mxu0 0.0
  %821 = vmatpush1.msra.mxu0 %v98
  %822 = vmatprep.subr.mxu0 0.0
  %823 = vmatpush1.msra.mxu0 %v99
  %824 = vmatprep.subr.mxu0 0.0
  %825 = vmatpush1.msra.mxu0 %v100
  %826 = vmatprep.subr.mxu0 0.0
  %827 = vmatpush1.msra.mxu0 %v101
  %828 = vmatprep.subr.mxu0 0.0
  %829 = vmatpush1.msra.mxu0 %v102
  %830 = vmatprep.subr.mxu0 0.0
  %831 = vmatpush1.msra.mxu0 %v103
  %832 = vmatprep.subr.mxu0 0.0
  %833 = vmatpush1.msra.mxu0 %v104
  %834 = vmatprep.subr.mxu0 0.0
  %835 = vmatpush1.msra.mxu0 %v105
  %836 = vmatprep.subr.mxu0 0.0
  %837 = vmatpush1.msra.mxu0 %v106
  %838 = vmatprep.subr.mxu0 0.0
  %839 = vmatpush1.msra.mxu0 %v107
  %840 = vmatprep.subr.mxu0 0.0
  %841 = vmatpush1.msra.mxu0 %v108
  %842 = vmatprep.subr.mxu0 0.0
  %843 = vmatpush1.msra.mxu0 %v109
  %844 = vmatprep.subr.mxu0 0.0
  %845 = vmatpush1.msra.mxu0 %v110
  %846 = vmatprep.subr.mxu0 0.0
  %847 = vmatpush1.msra.mxu0 %v111
  %848 = vmatprep.subr.mxu0 0.0
  %849 = vmatpush1.msra.mxu0 %v112
  %850 = vmatprep.subr.mxu0 0.0
  %851 = vmatpush1.msra.mxu0 %v113
  %852 = vmatprep.subr.mxu0 0.0
  %853 = vmatpush1.msra.mxu0 %v114
  %854 = vmatprep.subr.mxu0 0.0
  %855 = vmatpush1.msra.mxu0 %v115
  %856 = vmatprep.subr.mxu0 0.0
  %857 = vmatpush1.msra.mxu0 %v116
  %858 = vmatprep.subr.mxu0 0.0
  %859 = vmatpush1.msra.mxu0 %v117
  %860 = vmatprep.subr.mxu0 0.0
  %861 = vmatpush1.msra.mxu0 %v118
  %862 = vmatprep.mubr.f32.mxu0 %v428
  %863 = vmatmul.mubr.f32.gmra.mrb[0].mxu0 %v427
  %v864 = vpop.f32.mrb[0].mxu0
  %v865 = vadd.f32 %v765, %v864
  %v866 = vpop.f32.mrb[0].mxu0
  %867 = vmatprep.mubr.f32.mxu0 %v453
  %868 = vmatmul.mubr.f32.gmra.mrb[0].mxu0 %v452
  %v869 = vpop.f32.mrb[0].mxu0
  %v870 = vadd.f32 %v770, %v869
  %v871 = vpop.f32.mrb[0].mxu0
  %872 = vmatprep.mubr.f32.mxu0 %v478
  %873 = vmatmul.mubr.f32.gmra.mrb[0].mxu0 %v477
  %v874 = vpop.f32.mrb[0].mxu0
  %v875 = vadd.f32 %v775, %v874
  %v876 = vpop.f32.mrb[0].mxu0
  %877 = vmatprep.mubr.f32.mxu0 %v503
  %878 = vmatmul.mubr.f32.gmra.mrb[0].mxu0 %v502
  %v879 = vpop.f32.mrb[0].mxu0
  %v880 = vadd.f32 %v780, %v879
  %v881 = vpop.f32.mrb[0].mxu0
  %882 = vmatprep.mubr.f32.mxu0 %v528
  %883 = vmatmul.mubr.f32.gmra.mrb[0].mxu0 %v527
  %v884 = vpop.f32.mrb[0].mxu0
  %v885 = vadd.f32 %v785, %v884
  %v886 = vpop.f32.mrb[0].mxu0
  %887 = vmatprep.mubr.f32.mxu0 %v553
  %888 = vmatmul.mubr.f32.gmra.mrb[0].mxu0 %v552
  %v889 = vpop.f32.mrb[0].mxu0
  %v890 = vadd.f32 %v790, %v889
  %v891 = vpop.f32.mrb[0].mxu0
  %892 = vmatprep.mubr.f32.mxu0 %v578
  %893 = vmatmul.mubr.f32.gmra.mrb[0].mxu0 %v577
  %v894 = vpop.f32.mrb[0].mxu0
  %v895 = vadd.f32 %v795, %v894
  %v896 = vpop.f32.mrb[0].mxu0
  %897 = vdwg.mxu0
  %898 = vmatprep.subr.mxu0 0.0
  %899 = vmatpush1.msra.mxu0 %v119
  %900 = vmatprep.subr.mxu0 0.0
  %901 = vmatpush1.msra.mxu0 %v120
  %902 = vmatprep.subr.mxu0 0.0
  %903 = vmatpush1.msra.mxu0 %v121
  %904 = vmatprep.subr.mxu0 0.0
  %905 = vmatpush1.msra.mxu0 %v122
  %906 = vmatprep.subr.mxu0 0.0
  %907 = vmatpush1.msra.mxu0 %v123
  %908 = vmatprep.subr.mxu0 0.0
  %909 = vmatpush1.msra.mxu0 %v124
  %910 = vmatprep.subr.mxu0 0.0
  %911 = vmatpush1.msra.mxu0 %v125
  %912 = vmatprep.subr.mxu0 0.0
  %913 = vmatpush1.msra.mxu0 %v126
  %914 = vmatprep.subr.mxu0 0.0
  %915 = vmatpush1.msra.mxu0 %v127
  %916 = vmatprep.subr.mxu0 0.0
  %917 = vmatpush1.msra.mxu0 %v128
  %918 = vmatprep.subr.mxu0 0.0
  %919 = vmatpush1.msra.mxu0 %v129
  %920 = vmatprep.subr.mxu0 0.0
  %921 = vmatpush1.msra.mxu0 %v130
  %922 = vmatprep.subr.mxu0 0.0
  %923 = vmatpush1.msra.mxu0 %v131
  %924 = vmatprep.subr.mxu0 0.0
  %925 = vmatpush1.msra.mxu0 %v132
  %926 = vmatprep.subr.mxu0 0.0
  %927 = vmatpush1.msra.mxu0 %v133
  %928 = vmatprep.subr.mxu0 0.0
  %929 = vmatpush1.msra.mxu0 %v134
  %930 = vmatprep.subr.mxu0 0.0
  %931 = vmatpush1.msra.mxu0 %v135
  %932 = vmatprep.subr.mxu0 0.0
  %933 = vmatpush1.msra.mxu0 %v136
  %934 = vmatprep.subr.mxu0 0.0
  %935 = vmatpush1.msra.mxu0 %v137
  %936 = vmatprep.subr.mxu0 0.0
  %937 = vmatpush1.msra.mxu0 %v138
  %938 = vmatprep.subr.mxu0 0.0
  %939 = vmatpush1.msra.mxu0 %v139
  %940 = vmatprep.subr.mxu0 0.0
  %941 = vmatpush1.msra.mxu0 %v140
  %942 = vmatprep.subr.mxu0 0.0
  %943 = vmatpush1.msra.mxu0 %v141
  %944 = vmatprep.subr.mxu0 0.0
  %945 = vmatpush1.msra.mxu0 %v142
  %946 = vmatprep.subr.mxu0 0.0
  %947 = vmatpush1.msra.mxu0 %v143
  %948 = vmatprep.subr.mxu0 0.0
  %949 = vmatpush1.msra.mxu0 %v144
  %950 = vmatprep.subr.mxu0 0.0
  %951 = vmatpush1.msra.mxu0 %v145
  %952 = vmatprep.subr.mxu0 0.0
  %953 = vmatpush1.msra.mxu0 %v146
  %954 = vmatprep.subr.mxu0 0.0
  %955 = vmatpush1.msra.mxu0 %v147
  %956 = vmatprep.subr.mxu0 0.0
  %957 = vmatpush1.msra.mxu0 %v148
  %958 = vmatprep.subr.mxu0 0.0
  %959 = vmatpush1.msra.mxu0 %v149
  %960 = vmatprep.subr.mxu0 0.0
  %961 = vmatpush1.msra.mxu0 %v150
  %962 = vmatprep.mubr.f32.mxu0 %v430
  %963 = vmatmul.mubr.f32.gmra.mrb[0].mxu0 %v429
  %v964 = vpop.f32.mrb[0].mxu0
  %v965 = vadd.f32 %v865, %v964
  %v966 = vpop.f32.mrb[0].mxu0
  %967 = vmatprep.mubr.f32.mxu0 %v455
  %968 = vmatmul.mubr.f32.gmra.mrb[0].mxu0 %v454
  %v969 = vpop.f32.mrb[0].mxu0
  %v970 = vadd.f32 %v870, %v969
  %v971 = vpop.f32.mrb[0].mxu0
  %972 = vmatprep.mubr.f32.mxu0 %v480
  %973 = vmatmul.mubr.f32.gmra.mrb[0].mxu0 %v479
  %v974 = vpop.f32.mrb[0].mxu0
  %v975 = vadd.f32 %v875, %v974
  %v976 = vpop.f32.mrb[0].mxu0
  %977 = vmatprep.mubr.f32.mxu0 %v505
  %978 = vmatmul.mubr.f32.gmra.mrb[0].mxu0 %v504
  %v979 = vpop.f32.mrb[0].mxu0
  %v980 = vadd.f32 %v880, %v979
  %v981 = vpop.f32.mrb[0].mxu0
  %982 = vmatprep.mubr.f32.mxu0 %v530
  %983 = vmatmul.mubr.f32.gmra.mrb[0].mxu0 %v529
  %v984 = vpop.f32.mrb[0].mxu0
  %v985 = vadd.f32 %v885, %v984
  %v986 = vpop.f32.mrb[0].mxu0
  %987 = vmatprep.mubr.f32.mxu0 %v555
  %988 = vmatmul.mubr.f32.gmra.mrb[0].mxu0 %v554
  %v989 = vpop.f32.mrb[0].mxu0
  %v990 = vadd.f32 %v890, %v989
  %v991 = vpop.f32.mrb[0].mxu0
  %992 = vmatprep.mubr.f32.mxu0 %v580
  %993 = vmatmul.mubr.f32.gmra.mrb[0].mxu0 %v579
  %v994 = vpop.f32.mrb[0].mxu0
  %v995 = vadd.f32 %v895, %v994
  %v996 = vpop.f32.mrb[0].mxu0
  %997 = vdwg.mxu0
  %998 = vmatprep.subr.mxu0 0.0
  %999 = vmatpush1.msra.mxu0 %v151
  %1000 = vmatprep.subr.mxu0 0.0
  %1001 = vmatpush1.msra.mxu0 %v152
  %1002 = vmatprep.subr.mxu0 0.0
  %1003 = vmatpush1.msra.mxu0 %v153
  %1004 = vmatprep.subr.mxu0 0.0
  %1005 = vmatpush1.msra.mxu0 %v154
  %1006 = vmatprep.subr.mxu0 0.0
  %1007 = vmatpush1.msra.mxu0 %v155
  %1008 = vmatprep.subr.mxu0 0.0
  %1009 = vmatpush1.msra.mxu0 %v156
  %1010 = vmatprep.subr.mxu0 0.0
  %1011 = vmatpush1.msra.mxu0 %v157
  %1012 = vmatprep.subr.mxu0 0.0
  %1013 = vmatpush1.msra.mxu0 %v158
  %1014 = vmatprep.subr.mxu0 0.0
  %1015 = vmatpush1.msra.mxu0 %v159
  %1016 = vmatprep.subr.mxu0 0.0
  %1017 = vmatpush1.msra.mxu0 %v160
  %1018 = vmatprep.subr.mxu0 0.0
  %1019 = vmatpush1.msra.mxu0 %v161
  %1020 = vmatprep.subr.mxu0 0.0
  %1021 = vmatpush1.msra.mxu0 %v162
  %1022 = vmatprep.subr.mxu0 0.0
  %1023 = vmatpush1.msra.mxu0 %v163
  %1024 = vmatprep.subr.mxu0 0.0
  %1025 = vmatpush1.msra.mxu0 %v164
  %1026 = vmatprep.subr.mxu0 0.0
  %1027 = vmatpush1.msra.mxu0 %v165
  %1028 = vmatprep.subr.mxu0 0.0
  %1029 = vmatpush1.msra.mxu0 %v166
  %1030 = vmatprep.subr.mxu0 0.0
  %1031 = vmatpush1.msra.mxu0 %v167
  %1032 = vmatprep.subr.mxu0 0.0
  %1033 = vmatpush1.msra.mxu0 %v168
  %1034 = vmatprep.subr.mxu0 0.0
  %1035 = vmatpush1.msra.mxu0 %v169
  %1036 = vmatprep.subr.mxu0 0.0
  %1037 = vmatpush1.msra.mxu0 %v170
  %1038 = vmatprep.subr.mxu0 0.0
  %1039 = vmatpush1.msra.mxu0 %v171
  %1040 = vmatprep.subr.mxu0 0.0
  %1041 = vmatpush1.msra.mxu0 %v172
  %1042 = vmatprep.subr.mxu0 0.0
  %1043 = vmatpush1.msra.mxu0 %v173
  %1044 = vmatprep.subr.mxu0 0.0
  %1045 = vmatpush1.msra.mxu0 %v174
  %1046 = vmatprep.subr.mxu0 0.0
  %1047 = vmatpush1.msra.mxu0 %v175
  %1048 = vmatprep.subr.mxu0 0.0
  %1049 = vmatpush1.msra.mxu0 %v176
  %1050 = vmatprep.subr.mxu0 0.0
  %1051 = vmatpush1.msra.mxu0 %v177
  %1052 = vmatprep.subr.mxu0 0.0
  %1053 = vmatpush1.msra.mxu0 %v178
  %1054 = vmatprep.subr.mxu0 0.0
  %1055 = vmatpush1.msra.mxu0 %v179
  %1056 = vmatprep.subr.mxu0 0.0
  %1057 = vmatpush1.msra.mxu0 %v180
  %1058 = vmatprep.subr.mxu0 0.0
  %1059 = vmatpush1.msra.mxu0 %v181
  %1060 = vmatprep.subr.mxu0 0.0
  %1061 = vmatpush1.msra.mxu0 %v182
  %1062 = vmatprep.mubr.f32.mxu0 %v432
  %1063 = vmatmul.mubr.f32.gmra.mrb[0].mxu0 %v431
  %v1064 = vpop.f32.mrb[0].mxu0
  %v1065 = vadd.f32 %v965, %v1064
  %v1066 = vpop.f32.mrb[0].mxu0
  %1067 = vmatprep.mubr.f32.mxu0 %v457
  %1068 = vmatmul.mubr.f32.gmra.mrb[0].mxu0 %v456
  %v1069 = vpop.f32.mrb[0].mxu0
  %v1070 = vadd.f32 %v970, %v1069
  %v1071 = vpop.f32.mrb[0].mxu0
  %1072 = vmatprep.mubr.f32.mxu0 %v482
  %1073 = vmatmul.mubr.f32.gmra.mrb[0].mxu0 %v481
  %v1074 = vpop.f32.mrb[0].mxu0
  %v1075 = vadd.f32 %v975, %v1074
  %v1076 = vpop.f32.mrb[0].mxu0
  %1077 = vmatprep.mubr.f32.mxu0 %v507
  %1078 = vmatmul.mubr.f32.gmra.mrb[0].mxu0 %v506
  %v1079 = vpop.f32.mrb[0].mxu0
  %v1080 = vadd.f32 %v980, %v1079
  %v1081 = vpop.f32.mrb[0].mxu0
  %1082 = vmatprep.mubr.f32.mxu0 %v532
  %1083 = vmatmul.mubr.f32.gmra.mrb[0].mxu0 %v531
  %v1084 = vpop.f32.mrb[0].mxu0
  %v1085 = vadd.f32 %v985, %v1084
  %v1086 = vpop.f32.mrb[0].mxu0
  %1087 = vmatprep.mubr.f32.mxu0 %v557
  %1088 = vmatmul.mubr.f32.gmra.mrb[0].mxu0 %v556
  %v1089 = vpop.f32.mrb[0].mxu0
  %v1090 = vadd.f32 %v990, %v1089
  %v1091 = vpop.f32.mrb[0].mxu0
  %1092 = vmatprep.mubr.f32.mxu0 %v582
  %1093 = vmatmul.mubr.f32.gmra.mrb[0].mxu0 %v581
  %v1094 = vpop.f32.mrb[0].mxu0
  %v1095 = vadd.f32 %v995, %v1094
  %v1096 = vpop.f32.mrb[0].mxu0
  %1097 = vdwg.mxu0
  %1098 = vmatprep.subr.mxu0 0.0
  %1099 = vmatpush1.msra.mxu0 %v183
  %1100 = vmatprep.subr.mxu0 0.0
  %1101 = vmatpush1.msra.mxu0 %v184
  %1102 = vmatprep.subr.mxu0 0.0
  %1103 = vmatpush1.msra.mxu0 %v185
  %1104 = vmatprep.subr.mxu0 0.0
  %1105 = vmatpush1.msra.mxu0 %v186
  %1106 = vmatprep.subr.mxu0 0.0
  %1107 = vmatpush1.msra.mxu0 %v187
  %1108 = vmatprep.subr.mxu0 0.0
  %1109 = vmatpush1.msra.mxu0 %v188
  %1110 = vmatprep.subr.mxu0 0.0
  %1111 = vmatpush1.msra.mxu0 %v189
  %1112 = vmatprep.subr.mxu0 0.0
  %1113 = vmatpush1.msra.mxu0 %v190
  %1114 = vmatprep.subr.mxu0 0.0
  %1115 = vmatpush1.msra.mxu0 %v191
  %1116 = vmatprep.subr.mxu0 0.0
  %1117 = vmatpush1.msra.mxu0 %v192
  %1118 = vmatprep.subr.mxu0 0.0
  %1119 = vmatpush1.msra.mxu0 %v193
  %1120 = vmatprep.subr.mxu0 0.0
  %1121 = vmatpush1.msra.mxu0 %v194
  %1122 = vmatprep.subr.mxu0 0.0
  %1123 = vmatpush1.msra.mxu0 %v195
  %1124 = vmatprep.subr.mxu0 0.0
  %1125 = vmatpush1.msra.mxu0 %v196
  %1126 = vmatprep.subr.mxu0 0.0
  %1127 = vmatpush1.msra.mxu0 %v197
  %1128 = vmatprep.subr.mxu0 0.0
  %1129 = vmatpush1.msra.mxu0 %v198
  %1130 = vmatprep.subr.mxu0 0.0
  %1131 = vmatpush1.msra.mxu0 %v199
  %1132 = vmatprep.subr.mxu0 0.0
  %1133 = vmatpush1.msra.mxu0 %v200
  %1134 = vmatprep.subr.mxu0 0.0
  %1135 = vmatpush1.msra.mxu0 %v201
  %1136 = vmatprep.subr.mxu0 0.0
  %1137 = vmatpush1.msra.mxu0 %v202
  %1138 = vmatprep.subr.mxu0 0.0
  %1139 = vmatpush1.msra.mxu0 %v203
  %1140 = vmatprep.subr.mxu0 0.0
  %1141 = vmatpush1.msra.mxu0 %v204
  %1142 = vmatprep.subr.mxu0 0.0
  %1143 = vmatpush1.msra.mxu0 %v205
  %1144 = vmatprep.subr.mxu0 0.0
  %1145 = vmatpush1.msra.mxu0 %v206
  %1146 = vmatprep.subr.mxu0 0.0
  %1147 = vmatpush1.msra.mxu0 %v207
  %1148 = vmatprep.subr.mxu0 0.0
  %1149 = vmatpush1.msra.mxu0 %v208
  %1150 = vmatprep.subr.mxu0 0.0
  %1151 = vmatpush1.msra.mxu0 %v209
  %1152 = vmatprep.subr.mxu0 0.0
  %1153 = vmatpush1.msra.mxu0 %v210
  %1154 = vmatprep.subr.mxu0 0.0
  %1155 = vmatpush1.msra.mxu0 %v211
  %1156 = vmatprep.subr.mxu0 0.0
  %1157 = vmatpush1.msra.mxu0 %v212
  %1158 = vmatprep.subr.mxu0 0.0
  %1159 = vmatpush1.msra.mxu0 %v213
  %1160 = vmatprep.subr.mxu0 0.0
  %1161 = vmatpush1.msra.mxu0 %v214
  %1162 = vmatprep.mubr.f32.mxu0 %v434
  %1163 = vmatmul.mubr.f32.gmra.mrb[0].mxu0 %v433
  %v1164 = vpop.f32.mrb[0].mxu0
  %v1165 = vadd.f32 %v1065, %v1164
  %v1166 = vpop.f32.mrb[0].mxu0
  %1167 = vmatprep.mubr.f32.mxu0 %v459
  %1168 = vmatmul.mubr.f32.gmra.mrb[0].mxu0 %v458
  %v1169 = vpop.f32.mrb[0].mxu0
  %v1170 = vadd.f32 %v1070, %v1169
  %v1171 = vpop.f32.mrb[0].mxu0
  %1172 = vmatprep.mubr.f32.mxu0 %v484
  %1173 = vmatmul.mubr.f32.gmra.mrb[0].mxu0 %v483
  %v1174 = vpop.f32.mrb[0].mxu0
  %v1175 = vadd.f32 %v1075, %v1174
  %v1176 = vpop.f32.mrb[0].mxu0
  %1177 = vmatprep.mubr.f32.mxu0 %v509
  %1178 = vmatmul.mubr.f32.gmra.mrb[0].mxu0 %v508
  %v1179 = vpop.f32.mrb[0].mxu0
  %v1180 = vadd.f32 %v1080, %v1179
  %v1181 = vpop.f32.mrb[0].mxu0
  %1182 = vmatprep.mubr.f32.mxu0 %v534
  %1183 = vmatmul.mubr.f32.gmra.mrb[0].mxu0 %v533
  %v1184 = vpop.f32.mrb[0].mxu0
  %v1185 = vadd.f32 %v1085, %v1184
  %v1186 = vpop.f32.mrb[0].mxu0
  %1187 = vmatprep.mubr.f32.mxu0 %v559
  %1188 = vmatmul.mubr.f32.gmra.mrb[0].mxu0 %v558
  %v1189 = vpop.f32.mrb[0].mxu0
  %v1190 = vadd.f32 %v1090, %v1189
  %v1191 = vpop.f32.mrb[0].mxu0
  %1192 = vmatprep.mubr.f32.mxu0 %v584
  %1193 = vmatmul.mubr.f32.gmra.mrb[0].mxu0 %v583
  %v1194 = vpop.f32.mrb[0].mxu0
  %v1195 = vadd.f32 %v1095, %v1194
  %v1196 = vpop.f32.mrb[0].mxu0
  %1197 = vdwg.mxu0
  %1198 = vmatprep.subr.mxu0 0.0
  %1199 = vmatpush1.msra.mxu0 %v215
  %1200 = vmatprep.subr.mxu0 0.0
  %1201 = vmatpush1.msra.mxu0 %v216
  %1202 = vmatprep.subr.mxu0 0.0
  %1203 = vmatpush1.msra.mxu0 %v217
  %1204 = vmatprep.subr.mxu0 0.0
  %1205 = vmatpush1.msra.mxu0 %v218
  %1206 = vmatprep.subr.mxu0 0.0
  %1207 = vmatpush1.msra.mxu0 %v219
  %1208 = vmatprep.subr.mxu0 0.0
  %1209 = vmatpush1.msra.mxu0 %v220
  %1210 = vmatprep.subr.mxu0 0.0
  %1211 = vmatpush1.msra.mxu0 %v221
  %1212 = vmatprep.subr.mxu0 0.0
  %1213 = vmatpush1.msra.mxu0 %v222
  %1214 = vmatprep.subr.mxu0 0.0
  %1215 = vmatpush1.msra.mxu0 %v223
  %1216 = vmatprep.subr.mxu0 0.0
  %1217 = vmatpush1.msra.mxu0 %v224
  %1218 = vmatprep.subr.mxu0 0.0
  %1219 = vmatpush1.msra.mxu0 %v225
  %1220 = vmatprep.subr.mxu0 0.0
  %1221 = vmatpush1.msra.mxu0 %v226
  %1222 = vmatprep.subr.mxu0 0.0
  %1223 = vmatpush1.msra.mxu0 %v227
  %1224 = vmatprep.subr.mxu0 0.0
  %1225 = vmatpush1.msra.mxu0 %v228
  %1226 = vmatprep.subr.mxu0 0.0
  %1227 = vmatpush1.msra.mxu0 %v229
  %1228 = vmatprep.subr.mxu0 0.0
  %1229 = vmatpush1.msra.mxu0 %v230
  %1230 = vmatprep.subr.mxu0 0.0
  %1231 = vmatpush1.msra.mxu0 %v231
  %1232 = vmatprep.subr.mxu0 0.0
  %1233 = vmatpush1.msra.mxu0 %v232
  %1234 = vmatprep.subr.mxu0 0.0
  %1235 = vmatpush1.msra.mxu0 %v233
  %1236 = vmatprep.subr.mxu0 0.0
  %1237 = vmatpush1.msra.mxu0 %v234
  %1238 = vmatprep.subr.mxu0 0.0
  %1239 = vmatpush1.msra.mxu0 %v235
  %1240 = vmatprep.subr.mxu0 0.0
  %1241 = vmatpush1.msra.mxu0 %v236
  %1242 = vmatprep.subr.mxu0 0.0
  %1243 = vmatpush1.msra.mxu0 %v237
  %1244 = vmatprep.subr.mxu0 0.0
  %1245 = vmatpush1.msra.mxu0 %v238
  %1246 = vmatprep.subr.mxu0 0.0
  %1247 = vmatpush1.msra.mxu0 %v239
  %1248 = vmatprep.subr.mxu0 0.0
  %1249 = vmatpush1.msra.mxu0 %v240
  %1250 = vmatprep.subr.mxu0 0.0
  %1251 = vmatpush1.msra.mxu0 %v241
  %1252 = vmatprep.subr.mxu0 0.0
  %1253 = vmatpush1.msra.mxu0 %v242
  %1254 = vmatprep.subr.mxu0 0.0
  %1255 = vmatpush1.msra.mxu0 %v243
  %1256 = vmatprep.subr.mxu0 0.0
  %1257 = vmatpush1.msra.mxu0 %v244
  %1258 = vmatprep.subr.mxu0 0.0
  %1259 = vmatpush1.msra.mxu0 %v245
  %1260 = vmatprep.subr.mxu0 0.0
  %1261 = vmatpush1.msra.mxu0 %v246
  %1262 = vmatprep.mubr.f32.mxu0 %v436
  %1263 = vmatmul.mubr.f32.gmra.mrb[0].mxu0 %v435
  %v1264 = vpop.f32.mrb[0].mxu0
  %v1265 = vadd.f32 %v1165, %v1264
  %v1266 = vpop.f32.mrb[0].mxu0
  %1267 = vmatprep.mubr.f32.mxu0 %v461
  %1268 = vmatmul.mubr.f32.gmra.mrb[0].mxu0 %v460
  %v1269 = vpop.f32.mrb[0].mxu0
  %v1270 = vadd.f32 %v1170, %v1269
  %v1271 = vpop.f32.mrb[0].mxu0
  %1272 = vmatprep.mubr.f32.mxu0 %v486
  %1273 = vmatmul.mubr.f32.gmra.mrb[0].mxu0 %v485
  %v1274 = vpop.f32.mrb[0].mxu0
  %v1275 = vadd.f32 %v1175, %v1274
  %v1276 = vpop.f32.mrb[0].mxu0
  %1277 = vmatprep.mubr.f32.mxu0 %v511
  %1278 = vmatmul.mubr.f32.gmra.mrb[0].mxu0 %v510
  %v1279 = vpop.f32.mrb[0].mxu0
  %v1280 = vadd.f32 %v1180, %v1279
  %v1281 = vpop.f32.mrb[0].mxu0
  %1282 = vmatprep.mubr.f32.mxu0 %v536
  %1283 = vmatmul.mubr.f32.gmra.mrb[0].mxu0 %v535
  %v1284 = vpop.f32.mrb[0].mxu0
  %v1285 = vadd.f32 %v1185, %v1284
  %v1286 = vpop.f32.mrb[0].mxu0
  %1287 = vmatprep.mubr.f32.mxu0 %v561
  %1288 = vmatmul.mubr.f32.gmra.mrb[0].mxu0 %v560
  %v1289 = vpop.f32.mrb[0].mxu0
  %v1290 = vadd.f32 %v1190, %v1289
  %v1291 = vpop.f32.mrb[0].mxu0
  %1292 = vmatprep.mubr.f32.mxu0 %v586
  %1293 = vmatmul.mubr.f32.gmra.mrb[0].mxu0 %v585
  %v1294 = vpop.f32.mrb[0].mxu0
  %v1295 = vadd.f32 %v1195, %v1294
  %v1296 = vpop.f32.mrb[0].mxu0
  %1297 = vdwg.mxu0
  %1298 = vmatprep.subr.mxu0 0.0
  %1299 = vmatpush1.msra.mxu0 %v247
  %1300 = vmatprep.subr.mxu0 0.0
  %1301 = vmatpush1.msra.mxu0 %v248
  %1302 = vmatprep.subr.mxu0 0.0
  %1303 = vmatpush1.msra.mxu0 %v249
  %1304 = vmatprep.subr.mxu0 0.0
  %1305 = vmatpush1.msra.mxu0 %v250
  %1306 = vmatprep.subr.mxu0 0.0
  %1307 = vmatpush1.msra.mxu0 %v251
  %1308 = vmatprep.subr.mxu0 0.0
  %1309 = vmatpush1.msra.mxu0 %v252
  %1310 = vmatprep.subr.mxu0 0.0
  %1311 = vmatpush1.msra.mxu0 %v253
  %1312 = vmatprep.subr.mxu0 0.0
  %1313 = vmatpush1.msra.mxu0 %v254
  %1314 = vmatprep.subr.mxu0 0.0
  %1315 = vmatpush1.msra.mxu0 %v255
  %1316 = vmatprep.subr.mxu0 0.0
  %1317 = vmatpush1.msra.mxu0 %v256
  %1318 = vmatprep.subr.mxu0 0.0
  %1319 = vmatpush1.msra.mxu0 %v257
  %1320 = vmatprep.subr.mxu0 0.0
  %1321 = vmatpush1.msra.mxu0 %v258
  %1322 = vmatprep.subr.mxu0 0.0
  %1323 = vmatpush1.msra.mxu0 %v259
  %1324 = vmatprep.subr.mxu0 0.0
  %1325 = vmatpush1.msra.mxu0 %v260
  %1326 = vmatprep.subr.mxu0 0.0
  %1327 = vmatpush1.msra.mxu0 %v261
  %1328 = vmatprep.subr.mxu0 0.0
  %1329 = vmatpush1.msra.mxu0 %v262
  %1330 = vmatprep.subr.mxu0 0.0
  %1331 = vmatpush1.msra.mxu0 %v263
  %1332 = vmatprep.subr.mxu0 0.0
  %1333 = vmatpush1.msra.mxu0 %v264
  %1334 = vmatprep.subr.mxu0 0.0
  %1335 = vmatpush1.msra.mxu0 %v265
  %1336 = vmatprep.subr.mxu0 0.0
  %1337 = vmatpush1.msra.mxu0 %v266
  %1338 = vmatprep.subr.mxu0 0.0
  %1339 = vmatpush1.msra.mxu0 %v267
  %1340 = vmatprep.subr.mxu0 0.0
  %1341 = vmatpush1.msra.mxu0 %v268
  %1342 = vmatprep.subr.mxu0 0.0
  %1343 = vmatpush1.msra.mxu0 %v269
  %1344 = vmatprep.subr.mxu0 0.0
  %1345 = vmatpush1.msra.mxu0 %v270
  %1346 = vmatprep.subr.mxu0 0.0
  %1347 = vmatpush1.msra.mxu0 %v271
  %1348 = vmatprep.subr.mxu0 0.0
  %1349 = vmatpush1.msra.mxu0 %v272
  %1350 = vmatprep.subr.mxu0 0.0
  %1351 = vmatpush1.msra.mxu0 %v273
  %1352 = vmatprep.subr.mxu0 0.0
  %1353 = vmatpush1.msra.mxu0 %v274
  %1354 = vmatprep.subr.mxu0 0.0
  %1355 = vmatpush1.msra.mxu0 %v275
  %1356 = vmatprep.subr.mxu0 0.0
  %1357 = vmatpush1.msra.mxu0 %v276
  %1358 = vmatprep.subr.mxu0 0.0
  %1359 = vmatpush1.msra.mxu0 %v277
  %1360 = vmatprep.subr.mxu0 0.0
  %1361 = vmatpush1.msra.mxu0 %v278
  %1362 = vmatprep.mubr.f32.mxu0 %v438
  %1363 = vmatmul.mubr.f32.gmra.mrb[0].mxu0 %v437
  %v1364 = vpop.f32.mrb[0].mxu0
  %v1365 = vadd.f32 %v1265, %v1364
  %v1366 = vpop.f32.mrb[0].mxu0
  %1367 = vmatprep.mubr.f32.mxu0 %v463
  %1368 = vmatmul.mubr.f32.gmra.mrb[0].mxu0 %v462
  %v1369 = vpop.f32.mrb[0].mxu0
  %v1370 = vadd.f32 %v1270, %v1369
  %v1371 = vpop.f32.mrb[0].mxu0
  %1372 = vmatprep.mubr.f32.mxu0 %v488
  %1373 = vmatmul.mubr.f32.gmra.mrb[0].mxu0 %v487
  %v1374 = vpop.f32.mrb[0].mxu0
  %v1375 = vadd.f32 %v1275, %v1374
  %v1376 = vpop.f32.mrb[0].mxu0
  %1377 = vmatprep.mubr.f32.mxu0 %v513
  %1378 = vmatmul.mubr.f32.gmra.mrb[0].mxu0 %v512
  %v1379 = vpop.f32.mrb[0].mxu0
  %v1380 = vadd.f32 %v1280, %v1379
  %v1381 = vpop.f32.mrb[0].mxu0
  %1382 = vmatprep.mubr.f32.mxu0 %v538
  %1383 = vmatmul.mubr.f32.gmra.mrb[0].mxu0 %v537
  %v1384 = vpop.f32.mrb[0].mxu0
  %v1385 = vadd.f32 %v1285, %v1384
  %v1386 = vpop.f32.mrb[0].mxu0
  %1387 = vmatprep.mubr.f32.mxu0 %v563
  %1388 = vmatmul.mubr.f32.gmra.mrb[0].mxu0 %v562
  %v1389 = vpop.f32.mrb[0].mxu0
  %v1390 = vadd.f32 %v1290, %v1389
  %v1391 = vpop.f32.mrb[0].mxu0
  %1392 = vmatprep.mubr.f32.mxu0 %v588
  %1393 = vmatmul.mubr.f32.gmra.mrb[0].mxu0 %v587
  %v1394 = vpop.f32.mrb[0].mxu0
  %v1395 = vadd.f32 %v1295, %v1394
  %v1396 = vpop.f32.mrb[0].mxu0
  %1397 = vdwg.mxu0
  %1398 = vmatprep.subr.mxu0 0.0
  %1399 = vmatpush1.msra.mxu0 %v279
  %1400 = vmatprep.subr.mxu0 0.0
  %1401 = vmatpush1.msra.mxu0 %v280
  %1402 = vmatprep.subr.mxu0 0.0
  %1403 = vmatpush1.msra.mxu0 %v281
  %1404 = vmatprep.subr.mxu0 0.0
  %1405 = vmatpush1.msra.mxu0 %v282
  %1406 = vmatprep.subr.mxu0 0.0
  %1407 = vmatpush1.msra.mxu0 %v283
  %1408 = vmatprep.subr.mxu0 0.0
  %1409 = vmatpush1.msra.mxu0 %v284
  %1410 = vmatprep.subr.mxu0 0.0
  %1411 = vmatpush1.msra.mxu0 %v285
  %1412 = vmatprep.subr.mxu0 0.0
  %1413 = vmatpush1.msra.mxu0 %v286
  %1414 = vmatprep.subr.mxu0 0.0
  %1415 = vmatpush1.msra.mxu0 %v287
  %1416 = vmatprep.subr.mxu0 0.0
  %1417 = vmatpush1.msra.mxu0 %v288
  %1418 = vmatprep.subr.mxu0 0.0
  %1419 = vmatpush1.msra.mxu0 %v289
  %1420 = vmatprep.subr.mxu0 0.0
  %1421 = vmatpush1.msra.mxu0 %v290
  %1422 = vmatprep.subr.mxu0 0.0
  %1423 = vmatpush1.msra.mxu0 %v291
  %1424 = vmatprep.subr.mxu0 0.0
  %1425 = vmatpush1.msra.mxu0 %v292
  %1426 = vmatprep.subr.mxu0 0.0
  %1427 = vmatpush1.msra.mxu0 %v293
  %1428 = vmatprep.subr.mxu0 0.0
  %1429 = vmatpush1.msra.mxu0 %v294
  %1430 = vmatprep.subr.mxu0 0.0
  %1431 = vmatpush1.msra.mxu0 %v295
  %1432 = vmatprep.subr.mxu0 0.0
  %1433 = vmatpush1.msra.mxu0 %v296
  %1434 = vmatprep.subr.mxu0 0.0
  %1435 = vmatpush1.msra.mxu0 %v297
  %1436 = vmatprep.subr.mxu0 0.0
  %1437 = vmatpush1.msra.mxu0 %v298
  %1438 = vmatprep.subr.mxu0 0.0
  %1439 = vmatpush1.msra.mxu0 %v299
  %1440 = vmatprep.subr.mxu0 0.0
  %1441 = vmatpush1.msra.mxu0 %v300
  %1442 = vmatprep.subr.mxu0 0.0
  %1443 = vmatpush1.msra.mxu0 %v301
  %1444 = vmatprep.subr.mxu0 0.0
  %1445 = vmatpush1.msra.mxu0 %v302
  %1446 = vmatprep.subr.mxu0 0.0
  %1447 = vmatpush1.msra.mxu0 %v303
  %1448 = vmatprep.subr.mxu0 0.0
  %1449 = vmatpush1.msra.mxu0 %v304
  %1450 = vmatprep.subr.mxu0 0.0
  %1451 = vmatpush1.msra.mxu0 %v305
  %1452 = vmatprep.subr.mxu0 0.0
  %1453 = vmatpush1.msra.mxu0 %v306
  %1454 = vmatprep.subr.mxu0 0.0
  %1455 = vmatpush1.msra.mxu0 %v307
  %1456 = vmatprep.subr.mxu0 0.0
  %1457 = vmatpush1.msra.mxu0 %v308
  %1458 = vmatprep.subr.mxu0 0.0
  %1459 = vmatpush1.msra.mxu0 %v309
  %1460 = vmatprep.subr.mxu0 0.0
  %1461 = vmatpush1.msra.mxu0 %v310
  %1462 = vmatprep.mubr.f32.mxu0 %v440
  %1463 = vmatmul.mubr.f32.gmra.mrb[0].mxu0 %v439
  %v1464 = vpop.f32.mrb[0].mxu0
  %v1465 = vadd.f32 %v1365, %v1464
  %v1466 = vpop.f32.mrb[0].mxu0
  %1467 = vmatprep.mubr.f32.mxu0 %v465
  %1468 = vmatmul.mubr.f32.gmra.mrb[0].mxu0 %v464
  %v1469 = vpop.f32.mrb[0].mxu0
  %v1470 = vadd.f32 %v1370, %v1469
  %v1471 = vpop.f32.mrb[0].mxu0
  %1472 = vmatprep.mubr.f32.mxu0 %v490
  %1473 = vmatmul.mubr.f32.gmra.mrb[0].mxu0 %v489
  %v1474 = vpop.f32.mrb[0].mxu0
  %v1475 = vadd.f32 %v1375, %v1474
  %v1476 = vpop.f32.mrb[0].mxu0
  %1477 = vmatprep.mubr.f32.mxu0 %v515
  %1478 = vmatmul.mubr.f32.gmra.mrb[0].mxu0 %v514
  %v1479 = vpop.f32.mrb[0].mxu0
  %v1480 = vadd.f32 %v1380, %v1479
  %v1481 = vpop.f32.mrb[0].mxu0
  %1482 = vmatprep.mubr.f32.mxu0 %v540
  %1483 = vmatmul.mubr.f32.gmra.mrb[0].mxu0 %v539
  %v1484 = vpop.f32.mrb[0].mxu0
  %v1485 = vadd.f32 %v1385, %v1484
  %v1486 = vpop.f32.mrb[0].mxu0
  %1487 = vmatprep.mubr.f32.mxu0 %v565
  %1488 = vmatmul.mubr.f32.gmra.mrb[0].mxu0 %v564
  %v1489 = vpop.f32.mrb[0].mxu0
  %v1490 = vadd.f32 %v1390, %v1489
  %v1491 = vpop.f32.mrb[0].mxu0
  %1492 = vmatprep.mubr.f32.mxu0 %v590
  %1493 = vmatmul.mubr.f32.gmra.mrb[0].mxu0 %v589
  %v1494 = vpop.f32.mrb[0].mxu0
  %v1495 = vadd.f32 %v1395, %v1494
  %v1496 = vpop.f32.mrb[0].mxu0
  %1497 = vdwg.mxu0
  %1498 = vmatprep.subr.mxu0 0.0
  %1499 = vmatpush1.msra.mxu0 %v311
  %1500 = vmatprep.subr.mxu0 0.0
  %1501 = vmatpush1.msra.mxu0 %v312
  %1502 = vmatprep.subr.mxu0 0.0
  %1503 = vmatpush1.msra.mxu0 %v313
  %1504 = vmatprep.subr.mxu0 0.0
  %1505 = vmatpush1.msra.mxu0 %v314
  %1506 = vmatprep.subr.mxu0 0.0
  %1507 = vmatpush1.msra.mxu0 %v315
  %1508 = vmatprep.subr.mxu0 0.0
  %1509 = vmatpush1.msra.mxu0 %v316
  %1510 = vmatprep.subr.mxu0 0.0
  %1511 = vmatpush1.msra.mxu0 %v317
  %1512 = vmatprep.subr.mxu0 0.0
  %1513 = vmatpush1.msra.mxu0 %v318
  %1514 = vmatprep.subr.mxu0 0.0
  %1515 = vmatpush1.msra.mxu0 %v319
  %1516 = vmatprep.subr.mxu0 0.0
  %1517 = vmatpush1.msra.mxu0 %v320
  %1518 = vmatprep.subr.mxu0 0.0
  %1519 = vmatpush1.msra.mxu0 %v321
  %1520 = vmatprep.subr.mxu0 0.0
  %1521 = vmatpush1.msra.mxu0 %v322
  %1522 = vmatprep.subr.mxu0 0.0
  %1523 = vmatpush1.msra.mxu0 %v323
  %1524 = vmatprep.subr.mxu0 0.0
  %1525 = vmatpush1.msra.mxu0 %v324
  %1526 = vmatprep.subr.mxu0 0.0
  %1527 = vmatpush1.msra.mxu0 %v325
  %1528 = vmatprep.subr.mxu0 0.0
  %1529 = vmatpush1.msra.mxu0 %v326
  %1530 = vmatprep.subr.mxu0 0.0
  %1531 = vmatpush1.msra.mxu0 %v327
  %1532 = vmatprep.subr.mxu0 0.0
  %1533 = vmatpush1.msra.mxu0 %v328
  %1534 = vmatprep.subr.mxu0 0.0
  %1535 = vmatpush1.msra.mxu0 %v329
  %1536 = vmatprep.subr.mxu0 0.0
  %1537 = vmatpush1.msra.mxu0 %v330
  %1538 = vmatprep.subr.mxu0 0.0
  %1539 = vmatpush1.msra.mxu0 %v331
  %1540 = vmatprep.subr.mxu0 0.0
  %1541 = vmatpush1.msra.mxu0 %v332
  %1542 = vmatprep.subr.mxu0 0.0
  %1543 = vmatpush1.msra.mxu0 %v333
  %1544 = vmatprep.subr.mxu0 0.0
  %1545 = vmatpush1.msra.mxu0 %v334
  %1546 = vmatprep.subr.mxu0 0.0
  %1547 = vmatpush1.msra.mxu0 %v335
  %1548 = vmatprep.subr.mxu0 0.0
  %1549 = vmatpush1.msra.mxu0 %v336
  %1550 = vmatprep.subr.mxu0 0.0
  %1551 = vmatpush1.msra.mxu0 %v337
  %1552 = vmatprep.subr.mxu0 0.0
  %1553 = vmatpush1.msra.mxu0 %v338
  %1554 = vmatprep.subr.mxu0 0.0
  %1555 = vmatpush1.msra.mxu0 %v339
  %1556 = vmatprep.subr.mxu0 0.0
  %1557 = vmatpush1.msra.mxu0 %v340
  %1558 = vmatprep.subr.mxu0 0.0
  %1559 = vmatpush1.msra.mxu0 %v341
  %1560 = vmatprep.subr.mxu0 0.0
  %1561 = vmatpush1.msra.mxu0 %v342
  %1562 = vmatprep.mubr.f32.mxu0 %v442
  %1563 = vmatmul.mubr.f32.gmra.mrb[0].mxu0 %v441
  %v1564 = vpop.f32.mrb[0].mxu0
  %v1565 = vadd.f32 %v1465, %v1564
  %v1566 = vpop.f32.mrb[0].mxu0
  %1567 = vmatprep.mubr.f32.mxu0 %v467
  %1568 = vmatmul.mubr.f32.gmra.mrb[0].mxu0 %v466
  %v1569 = vpop.f32.mrb[0].mxu0
  %v1570 = vadd.f32 %v1470, %v1569
  %v1571 = vpop.f32.mrb[0].mxu0
  %1572 = vmatprep.mubr.f32.mxu0 %v492
  %1573 = vmatmul.mubr.f32.gmra.mrb[0].mxu0 %v491
  %v1574 = vpop.f32.mrb[0].mxu0
  %v1575 = vadd.f32 %v1475, %v1574
  %v1576 = vpop.f32.mrb[0].mxu0
  %1577 = vmatprep.mubr.f32.mxu0 %v517
  %1578 = vmatmul.mubr.f32.gmra.mrb[0].mxu0 %v516
  %v1579 = vpop.f32.mrb[0].mxu0
  %v1580 = vadd.f32 %v1480, %v1579
  %v1581 = vpop.f32.mrb[0].mxu0
  %1582 = vmatprep.mubr.f32.mxu0 %v542
  %1583 = vmatmul.mubr.f32.gmra.mrb[0].mxu0 %v541
  %v1584 = vpop.f32.mrb[0].mxu0
  %v1585 = vadd.f32 %v1485, %v1584
  %v1586 = vpop.f32.mrb[0].mxu0
  %1587 = vmatprep.mubr.f32.mxu0 %v567
  %1588 = vmatmul.mubr.f32.gmra.mrb[0].mxu0 %v566
  %v1589 = vpop.f32.mrb[0].mxu0
  %v1590 = vadd.f32 %v1490, %v1589
  %v1591 = vpop.f32.mrb[0].mxu0
  %1592 = vmatprep.mubr.f32.mxu0 %v592
  %1593 = vmatmul.mubr.f32.gmra.mrb[0].mxu0 %v591
  %v1594 = vpop.f32.mrb[0].mxu0
  %v1595 = vadd.f32 %v1495, %v1594
  %v1596 = vpop.f32.mrb[0].mxu0
  %1597 = vdwg.mxu0
  %1598 = vmatprep.subr.mxu0 0.0
  %1599 = vmatpush1.msra.mxu0 %v343
  %1600 = vmatprep.subr.mxu0 0.0
  %1601 = vmatpush1.msra.mxu0 %v344
  %1602 = vmatprep.subr.mxu0 0.0
  %1603 = vmatpush1.msra.mxu0 %v345
  %1604 = vmatprep.subr.mxu0 0.0
  %1605 = vmatpush1.msra.mxu0 %v346
  %1606 = vmatprep.subr.mxu0 0.0
  %1607 = vmatpush1.msra.mxu0 %v347
  %1608 = vmatprep.subr.mxu0 0.0
  %1609 = vmatpush1.msra.mxu0 %v348
  %1610 = vmatprep.subr.mxu0 0.0
  %1611 = vmatpush1.msra.mxu0 %v349
  %1612 = vmatprep.subr.mxu0 0.0
  %1613 = vmatpush1.msra.mxu0 %v350
  %1614 = vmatprep.subr.mxu0 0.0
  %1615 = vmatpush1.msra.mxu0 %v351
  %1616 = vmatprep.subr.mxu0 0.0
  %1617 = vmatpush1.msra.mxu0 %v352
  %1618 = vmatprep.subr.mxu0 0.0
  %1619 = vmatpush1.msra.mxu0 %v353
  %1620 = vmatprep.subr.mxu0 0.0
  %1621 = vmatpush1.msra.mxu0 %v354
  %1622 = vmatprep.subr.mxu0 0.0
  %1623 = vmatpush1.msra.mxu0 %v355
  %1624 = vmatprep.subr.mxu0 0.0
  %1625 = vmatpush1.msra.mxu0 %v356
  %1626 = vmatprep.subr.mxu0 0.0
  %1627 = vmatpush1.msra.mxu0 %v357
  %1628 = vmatprep.subr.mxu0 0.0
  %1629 = vmatpush1.msra.mxu0 %v358
  %1630 = vmatprep.subr.mxu0 0.0
  %1631 = vmatpush1.msra.mxu0 %v359
  %1632 = vmatprep.subr.mxu0 0.0
  %1633 = vmatpush1.msra.mxu0 %v360
  %1634 = vmatprep.subr.mxu0 0.0
  %1635 = vmatpush1.msra.mxu0 %v361
  %1636 = vmatprep.subr.mxu0 0.0
  %1637 = vmatpush1.msra.mxu0 %v362
  %1638 = vmatprep.subr.mxu0 0.0
  %1639 = vmatpush1.msra.mxu0 %v363
  %1640 = vmatprep.subr.mxu0 0.0
  %1641 = vmatpush1.msra.mxu0 %v364
  %1642 = vmatprep.subr.mxu0 0.0
  %1643 = vmatpush1.msra.mxu0 %v365
  %1644 = vmatprep.subr.mxu0 0.0
  %1645 = vmatpush1.msra.mxu0 %v366
  %1646 = vmatprep.subr.mxu0 0.0
  %1647 = vmatpush1.msra.mxu0 %v367
  %1648 = vmatprep.subr.mxu0 0.0
  %1649 = vmatpush1.msra.mxu0 %v368
  %1650 = vmatprep.subr.mxu0 0.0
  %1651 = vmatpush1.msra.mxu0 %v369
  %1652 = vmatprep.subr.mxu0 0.0
  %1653 = vmatpush1.msra.mxu0 %v370
  %1654 = vmatprep.subr.mxu0 0.0
  %1655 = vmatpush1.msra.mxu0 %v371
  %1656 = vmatprep.subr.mxu0 0.0
  %1657 = vmatpush1.msra.mxu0 %v372
  %1658 = vmatprep.subr.mxu0 0.0
  %1659 = vmatpush1.msra.mxu0 %v373
  %1660 = vmatprep.subr.mxu0 0.0
  %1661 = vmatpush1.msra.mxu0 %v374
  %1662 = vmatprep.mubr.f32.mxu0 %v444
  %1663 = vmatmul.mubr.f32.gmra.mrb[0].mxu0 %v443
  %v1664 = vpop.f32.mrb[0].mxu0
  %v1665 = vadd.f32 %v1565, %v1664
  %v1666 = vpop.f32.mrb[0].mxu0
  %1667 = vmatprep.mubr.f32.mxu0 %v469
  %1668 = vmatmul.mubr.f32.gmra.mrb[0].mxu0 %v468
  %v1669 = vpop.f32.mrb[0].mxu0
  %v1670 = vadd.f32 %v1570, %v1669
  %v1671 = vpop.f32.mrb[0].mxu0
  %1672 = vmatprep.mubr.f32.mxu0 %v494
  %1673 = vmatmul.mubr.f32.gmra.mrb[0].mxu0 %v493
  %v1674 = vpop.f32.mrb[0].mxu0
  %v1675 = vadd.f32 %v1575, %v1674
  %v1676 = vpop.f32.mrb[0].mxu0
  %1677 = vmatprep.mubr.f32.mxu0 %v519
  %1678 = vmatmul.mubr.f32.gmra.mrb[0].mxu0 %v518
  %v1679 = vpop.f32.mrb[0].mxu0
  %v1680 = vadd.f32 %v1580, %v1679
  %v1681 = vpop.f32.mrb[0].mxu0
  %1682 = vmatprep.mubr.f32.mxu0 %v544
  %1683 = vmatmul.mubr.f32.gmra.mrb[0].mxu0 %v543
  %v1684 = vpop.f32.mrb[0].mxu0
  %v1685 = vadd.f32 %v1585, %v1684
  %v1686 = vpop.f32.mrb[0].mxu0
  %1687 = vmatprep.mubr.f32.mxu0 %v569
  %1688 = vmatmul.mubr.f32.gmra.mrb[0].mxu0 %v568
  %v1689 = vpop.f32.mrb[0].mxu0
  %v1690 = vadd.f32 %v1590, %v1689
  %v1691 = vpop.f32.mrb[0].mxu0
  %1692 = vmatprep.mubr.f32.mxu0 %v594
  %1693 = vmatmul.mubr.f32.gmra.mrb[0].mxu0 %v593
  %v1694 = vpop.f32.mrb[0].mxu0
  %v1695 = vadd.f32 %v1595, %v1694
  %v1696 = vpop.f32.mrb[0].mxu0
  %1697 = vdwg.mxu0
  %1698 = vmatprep.subr.mxu0 0.0
  %1699 = vmatpush1.msra.mxu0 %v375
  %1700 = vmatprep.subr.mxu0 0.0
  %1701 = vmatpush1.msra.mxu0 %v376
  %1702 = vmatprep.subr.mxu0 0.0
  %1703 = vmatpush1.msra.mxu0 %v377
  %1704 = vmatprep.subr.mxu0 0.0
  %1705 = vmatpush1.msra.mxu0 %v378
  %1706 = vmatprep.subr.mxu0 0.0
  %1707 = vmatpush1.msra.mxu0 %v379
  %1708 = vmatprep.subr.mxu0 0.0
  %1709 = vmatpush1.msra.mxu0 %v380
  %1710 = vmatprep.subr.mxu0 0.0
  %1711 = vmatpush1.msra.mxu0 %v381
  %1712 = vmatprep.subr.mxu0 0.0
  %1713 = vmatpush1.msra.mxu0 %v382
  %1714 = vmatprep.subr.mxu0 0.0
  %1715 = vmatpush1.msra.mxu0 %v383
  %1716 = vmatprep.subr.mxu0 0.0
  %1717 = vmatpush1.msra.mxu0 %v384
  %1718 = vmatprep.subr.mxu0 0.0
  %1719 = vmatpush1.msra.mxu0 %v385
  %1720 = vmatprep.subr.mxu0 0.0
  %1721 = vmatpush1.msra.mxu0 %v386
  %1722 = vmatprep.subr.mxu0 0.0
  %1723 = vmatpush1.msra.mxu0 %v387
  %1724 = vmatprep.subr.mxu0 0.0
  %1725 = vmatpush1.msra.mxu0 %v388
  %1726 = vmatprep.subr.mxu0 0.0
  %1727 = vmatpush1.msra.mxu0 %v389
  %1728 = vmatprep.subr.mxu0 0.0
  %1729 = vmatpush1.msra.mxu0 %v390
  %1730 = vmatprep.subr.mxu0 0.0
  %1731 = vmatpush1.msra.mxu0 %v391
  %1732 = vmatprep.subr.mxu0 0.0
  %1733 = vmatpush1.msra.mxu0 %v392
  %1734 = vmatprep.subr.mxu0 0.0
  %1735 = vmatpush1.msra.mxu0 %v393
  %1736 = vmatprep.subr.mxu0 0.0
  %1737 = vmatpush1.msra.mxu0 %v394
  %1738 = vmatprep.subr.mxu0 0.0
  %1739 = vmatpush1.msra.mxu0 %v395
  %1740 = vmatprep.subr.mxu0 0.0
  %1741 = vmatpush1.msra.mxu0 %v396
  %1742 = vmatprep.subr.mxu0 0.0
  %1743 = vmatpush1.msra.mxu0 %v397
  %1744 = vmatprep.subr.mxu0 0.0
  %1745 = vmatpush1.msra.mxu0 %v398
  %1746 = vmatprep.subr.mxu0 0.0
  %1747 = vmatpush1.msra.mxu0 %v399
  %1748 = vmatprep.subr.mxu0 0.0
  %1749 = vmatpush1.msra.mxu0 %v400
  %1750 = vmatprep.subr.mxu0 0.0
  %1751 = vmatpush1.msra.mxu0 %v401
  %1752 = vmatprep.subr.mxu0 0.0
  %1753 = vmatpush1.msra.mxu0 %v402
  %1754 = vmatprep.subr.mxu0 0.0
  %1755 = vmatpush1.msra.mxu0 %v403
  %1756 = vmatprep.subr.mxu0 0.0
  %1757 = vmatpush1.msra.mxu0 %v404
  %1758 = vmatprep.subr.mxu0 0.0
  %1759 = vmatpush1.msra.mxu0 %v405
  %1760 = vmatprep.subr.mxu0 0.0
  %1761 = vmatpush1.msra.mxu0 %v406
  %1762 = vmatprep.mubr.f32.mxu0 %v446
  %1763 = vmatmul.mubr.f32.gmra.mrb[0].mxu0 %v445
  %v1764 = vpop.f32.mrb[0].mxu0
  %v1765 = vadd.f32 %v1665, %v1764
  %v1766 = vpop.f32.mrb[0].mxu0
  %1767 = vmatprep.mubr.f32.mxu0 %v471
  %1768 = vmatmul.mubr.f32.gmra.mrb[0].mxu0 %v470
  %v1769 = vpop.f32.mrb[0].mxu0
  %v1770 = vadd.f32 %v1670, %v1769
  %v1771 = vpop.f32.mrb[0].mxu0
  %1772 = vmatprep.mubr.f32.mxu0 %v496
  %1773 = vmatmul.mubr.f32.gmra.mrb[0].mxu0 %v495
  %v1774 = vpop.f32.mrb[0].mxu0
  %v1775 = vadd.f32 %v1675, %v1774
  %v1776 = vpop.f32.mrb[0].mxu0
  %1777 = vmatprep.mubr.f32.mxu0 %v521
  %1778 = vmatmul.mubr.f32.gmra.mrb[0].mxu0 %v520
  %v1779 = vpop.f32.mrb[0].mxu0
  %v1780 = vadd.f32 %v1680, %v1779
  %v1781 = vpop.f32.mrb[0].mxu0
  %1782 = vmatprep.mubr.f32.mxu0 %v546
  %1783 = vmatmul.mubr.f32.gmra.mrb[0].mxu0 %v545
  %v1784 = vpop.f32.mrb[0].mxu0
  %v1785 = vadd.f32 %v1685, %v1784
  %v1786 = vpop.f32.mrb[0].mxu0
  %1787 = vmatprep.mubr.f32.mxu0 %v571
  %1788 = vmatmul.mubr.f32.gmra.mrb[0].mxu0 %v570
  %v1789 = vpop.f32.mrb[0].mxu0
  %v1790 = vadd.f32 %v1690, %v1789
  %v1791 = vpop.f32.mrb[0].mxu0
  %1792 = vmatprep.mubr.f32.mxu0 %v596
  %1793 = vmatmul.mubr.f32.gmra.mrb[0].mxu0 %v595
  %v1794 = vpop.f32.mrb[0].mxu0
  %v1795 = vadd.f32 %v1695, %v1794
  %v1796 = vpop.f32.mrb[0].mxu0
  %1797 = vdwg.mxu0
  %1798 = vmatprep.subr.mxu0 0.0
  %1799 = vmatpush1.msra.mxu0 %v407
  %1800 = vmatprep.subr.mxu0 0.0
  %1801 = vmatpush1.msra.mxu0 %v408
  %1802 = vmatprep.subr.mxu0 0.0
  %1803 = vmatpush1.msra.mxu0 %v409
  %1804 = vmatprep.subr.mxu0 0.0
  %1805 = vmatpush1.msra.mxu0 %v410
  %1806 = vmatprep.subr.mxu0 0.0
  %1807 = vmatpush1.msra.mxu0 %v411
  %1808 = vmatprep.subr.mxu0 0.0
  %1809 = vmatpush1.msra.mxu0 %v412
  %1810 = vmatprep.subr.mxu0 0.0
  %1811 = vmatpush1.msra.mxu0 %v413
  %1812 = vmatprep.subr.mxu0 0.0
  %1813 = vmatpush1.msra.mxu0 %v414
  %1814 = vmatprep.subr.mxu0 0.0
  %1815 = vmatpush1.msra.mxu0 %v415
  %1816 = vmatprep.subr.mxu0 0.0
  %1817 = vmatpush1.msra.mxu0 %v416
  %1818 = vmatprep.subr.mxu0 0.0
  %1819 = vmatpush1.msra.mxu0 %v417
  %1820 = vmatprep.subr.mxu0 0.0
  %1821 = vmatpush1.msra.mxu0 %v418
  %1822 = vmatprep.subr.mxu0 0.0
  %1823 = vmatpush1.msra.mxu0 %v419
  %1824 = vmatprep.subr.mxu0 0.0
  %1825 = vmatpush1.msra.mxu0 %v420
  %1826 = vmatprep.subr.mxu0 0.0
  %1827 = vmatpush1.msra.mxu0 %v421
  %1828 = vmatprep.subr.mxu0 0.0
  %1829 = vmatpush1.msra.mxu0 %v422
  %1830 = vmatprep.subr.mxu0 0.0
  %1831 = vmatpush1.msra.mxu0 0.0
  %1832 = vmatprep.subr.mxu0 0.0
  %1833 = vmatpush1.msra.mxu0 0.0
  %1834 = vmatprep.subr.mxu0 0.0
  %1835 = vmatpush1.msra.mxu0 0.0
  %1836 = vmatprep.subr.mxu0 0.0
  %1837 = vmatpush1.msra.mxu0 0.0
  %1838 = vmatprep.subr.mxu0 0.0
  %1839 = vmatpush1.msra.mxu0 0.0
  %1840 = vmatprep.subr.mxu0 0.0
  %1841 = vmatpush1.msra.mxu0 0.0
  %1842 = vmatprep.subr.mxu0 0.0
  %1843 = vmatpush1.msra.mxu0 0.0
  %1844 = vmatprep.subr.mxu0 0.0
  %1845 = vmatpush1.msra.mxu0 0.0
  %1846 = vmatprep.subr.mxu0 0.0
  %1847 = vmatpush1.msra.mxu0 0.0
  %1848 = vmatprep.subr.mxu0 0.0
  %1849 = vmatpush1.msra.mxu0 0.0
  %1850 = vmatprep.subr.mxu0 0.0
  %1851 = vmatpush1.msra.mxu0 0.0
  %1852 = vmatprep.subr.mxu0 0.0
  %1853 = vmatpush1.msra.mxu0 0.0
  %1854 = vmatprep.subr.mxu0 0.0
  %1855 = vmatpush1.msra.mxu0 0.0
  %1856 = vmatprep.subr.mxu0 0.0
  %1857 = vmatpush1.msra.mxu0 0.0
  %1858 = vmatprep.subr.mxu0 0.0
  %1859 = vmatpush1.msra.mxu0 0.0
  %1860 = vmatprep.subr.mxu0 0.0
  %1861 = vmatpush1.msra.mxu0 0.0
  %1862 = vmatprep.mubr.f32.mxu0 0.0
  %1863 = vmatmul.mubr.f32.gmra.mrb[0].mxu0 %v447
  %v1864 = vpop.f32.mrb[0].mxu0
  %v1865 = vadd.f32 %v1765, %v1864
  %v1866 = vpop.f32.mrb[0].mxu0
  %1867 = vmatprep.mubr.f32.mxu0 0.0
  %1868 = vmatmul.mubr.f32.gmra.mrb[0].mxu0 %v472
  %v1869 = vpop.f32.mrb[0].mxu0
  %v1870 = vadd.f32 %v1770, %v1869
  %v1871 = vpop.f32.mrb[0].mxu0
  %1872 = vmatprep.mubr.f32.mxu0 0.0
  %1873 = vmatmul.mubr.f32.gmra.mrb[0].mxu0 %v497
  %v1874 = vpop.f32.mrb[0].mxu0
  %v1875 = vadd.f32 %v1775, %v1874
  %v1876 = vpop.f32.mrb[0].mxu0
  %1877 = vmatprep.mubr.f32.mxu0 0.0
  %1878 = vmatmul.mubr.f32.gmra.mrb[0].mxu0 %v522
  %v1879 = vpop.f32.mrb[0].mxu0
  %v1880 = vadd.f32 %v1780, %v1879
  %v1881 = vpop.f32.mrb[0].mxu0
  %1882 = vmatprep.mubr.f32.mxu0 0.0
  %1883 = vmatmul.mubr.f32.gmra.mrb[0].mxu0 %v547
  %v1884 = vpop.f32.mrb[0].mxu0
  %v1885 = vadd.f32 %v1785, %v1884
  %v1886 = vpop.f32.mrb[0].mxu0
  %1887 = vmatprep.mubr.f32.mxu0 0.0
  %1888 = vmatmul.mubr.f32.gmra.mrb[0].mxu0 %v572
  %v1889 = vpop.f32.mrb[0].mxu0
  %v1890 = vadd.f32 %v1790, %v1889
  %v1891 = vpop.f32.mrb[0].mxu0
  %1892 = vmatprep.mubr.f32.mxu0 0.0
  %1893 = vmatmul.mubr.f32.gmra.mrb[0].mxu0 %v597
  %v1894 = vpop.f32.mrb[0].mxu0
  %v1895 = vadd.f32 %v1795, %v1894
  %v1896 = vpop.f32.mrb[0].mxu0
  %1897 = vdwg.mxu0
  %v1898 = vld [vmem:[%s1] sm:$0xff]
  %v1899 = vld [vmem:[%s1 + $0x8] sm:$0xff]
  %v1900 = vld [vmem:[%s1 + $0x10] sm:$0xff]
  %v1901 = vld [vmem:[%s1 + $0x18] sm:$0xff]
  %v1902 = vld [vmem:[%s1 + $0x20] sm:$0xff]
  %v1903 = vld [vmem:[%s1 + $0x28] sm:$0xff]
  %v1904 = vld [vmem:[%s1 + $0x30] sm:$0xff]
  %v1905 = vld [vmem:[%s1 + $0x38] sm:$0xff]
  %v1906 = vld [vmem:[%s1 + $0x40] sm:$0xff]
  %v1907 = vld [vmem:[%s1 + $0x48] sm:$0xff]
  %v1908 = vld [vmem:[%s1 + $0x50] sm:$0xff]
  %v1909 = vld [vmem:[%s1 + $0x58] sm:$0xff]
  %v1910 = vld [vmem:[%s1 + $0x60] sm:$0xff]
  %v1911 = vld [vmem:[%s1 + $0x68] sm:$0xff]
  %v1912 = vld [vmem:[%s1 + $0x70] sm:$0xff]
  %v1913 = vld [vmem:[%s1 + $0x78] sm:$0xff]
  %v1914 = vld [vmem:[%s1 + $0x80] sm:$0xff]
  %v1915 = vld [vmem:[%s1 + $0x88] sm:$0xff]
  %v1916 = vld [vmem:[%s1 + $0x90] sm:$0xff]
  %v1917 = vld [vmem:[%s1 + $0x98] sm:$0xff]
  %v1918 = vld [vmem:[%s1 + $0xa0] sm:$0xff]
  %v1919 = vld [vmem:[%s1 + $0xa8] sm:$0xff]
  %v1920 = vld [vmem:[%s1 + $0xb0] sm:$0xff]
  %v1921 = vld [vmem:[%s1 + $0xb8] sm:$0xff]
  %v1922 = vld [vmem:[%s1 + $0xc0] sm:$0xff]
  %v1923 = vld [vmem:[%s1 + $0xc8] sm:$0xff]
  %v1924 = vld [vmem:[%s1 + $0xd0] sm:$0xff]
  %v1925 = vld [vmem:[%s1 + $0xd8] sm:$0xff]
  %v1926 = vld [vmem:[%s1 + $0xe0] sm:$0xff]
  %v1927 = vld [vmem:[%s1 + $0xe8] sm:$0xff]
  %v1928 = vld [vmem:[%s1 + $0xf0] sm:$0xff]
  %v1929 = vld [vmem:[%s1 + $0xf8] sm:$0xff]
  %v1930 = vld [vmem:[%s1 + $0x100] sm:$0xff]
  %v1931 = vld [vmem:[%s1 + $0x108] sm:$0xff]
  %v1932 = vld [vmem:[%s1 + $0x110] sm:$0xff]
  %v1933 = vld [vmem:[%s1 + $0x118] sm:$0xff]
  %v1934 = vld [vmem:[%s1 + $0x120] sm:$0xff]
  %v1935 = vld [vmem:[%s1 + $0x128] sm:$0xff]
  %v1936 = vld [vmem:[%s1 + $0x130] sm:$0xff]
  %v1937 = vld [vmem:[%s1 + $0x138] sm:$0xff]
  %v1938 = vld [vmem:[%s1 + $0x140] sm:$0xff]
  %v1939 = vld [vmem:[%s1 + $0x148] sm:$0xff]
  %v1940 = vld [vmem:[%s1 + $0x150] sm:$0xff]
  %v1941 = vld [vmem:[%s1 + $0x158] sm:$0xff]
  %v1942 = vld [vmem:[%s1 + $0x160] sm:$0xff]
  %v1943 = vld [vmem:[%s1 + $0x168] sm:$0xff]
  %v1944 = vld [vmem:[%s1 + $0x170] sm:$0xff]
  %v1945 = vld [vmem:[%s1 + $0x178] sm:$0xff]
  %v1946 = vld [vmem:[%s1 + $0x180] sm:$0xff]
  %v1947 = vld [vmem:[%s1 + $0x188] sm:$0xff]
  %v1948 = vld [vmem:[%s1 + $0x190] sm:$0xff]
  %v1949 = vld [vmem:[%s1 + $0x198] sm:$0xff]
  %v1950 = vld [vmem:[%s1 + $0x1a0] sm:$0xff]
  %v1951 = vld [vmem:[%s1 + $0x1a8] sm:$0xff]
  %v1952 = vld [vmem:[%s1 + $0x1b0] sm:$0xff]
  %v1953 = vld [vmem:[%s1 + $0x1b8] sm:$0xff]
  %v1954 = vld [vmem:[%s1 + $0x1c0] sm:$0xff]
  %v1955 = vld [vmem:[%s1 + $0x1c8] sm:$0xff]
  %v1956 = vld [vmem:[%s1 + $0x1d0] sm:$0xff]
  %v1957 = vld [vmem:[%s1 + $0x1d8] sm:$0xff]
  %v1958 = vld [vmem:[%s1 + $0x1e0] sm:$0xff]
  %v1959 = vld [vmem:[%s1 + $0x1e8] sm:$0xff]
  %v1960 = vld [vmem:[%s1 + $0x1f0] sm:$0xff]
  %v1961 = vld [vmem:[%s1 + $0x1f8] sm:$0xff]
  %v1962 = vld [vmem:[%s1 + $0x200] sm:$0xff]
  %v1963 = vld [vmem:[%s1 + $0x208] sm:$0xff]
  %v1964 = vld [vmem:[%s1 + $0x210] sm:$0xff]
  %v1965 = vld [vmem:[%s1 + $0x218] sm:$0xff]
  %v1966 = vld [vmem:[%s1 + $0x220] sm:$0xff]
  %v1967 = vld [vmem:[%s1 + $0x228] sm:$0xff]
  %v1968 = vld [vmem:[%s1 + $0x230] sm:$0xff]
  %v1969 = vld [vmem:[%s1 + $0x238] sm:$0xff]
  %v1970 = vld [vmem:[%s1 + $0x240] sm:$0xff]
  %v1971 = vld [vmem:[%s1 + $0x248] sm:$0xff]
  %v1972 = vld [vmem:[%s1 + $0x250] sm:$0xff]
  %v1973 = vld [vmem:[%s1 + $0x258] sm:$0xff]
  %v1974 = vld [vmem:[%s1 + $0x260] sm:$0xff]
  %v1975 = vld [vmem:[%s1 + $0x268] sm:$0xff]
  %v1976 = vld [vmem:[%s1 + $0x270] sm:$0xff]
  %v1977 = vld [vmem:[%s1 + $0x278] sm:$0xff]
  %v1978 = vld [vmem:[%s1 + $0x280] sm:$0xff]
  %v1979 = vld [vmem:[%s1 + $0x288] sm:$0xff]
  %v1980 = vld [vmem:[%s1 + $0x290] sm:$0xff]
  %v1981 = vld [vmem:[%s1 + $0x298] sm:$0xff]
  %v1982 = vld [vmem:[%s1 + $0x2a0] sm:$0xff]
  %v1983 = vld [vmem:[%s1 + $0x2a8] sm:$0xff]
  %v1984 = vld [vmem:[%s1 + $0x2b0] sm:$0xff]
  %v1985 = vld [vmem:[%s1 + $0x2b8] sm:$0xff]
  %v1986 = vld [vmem:[%s1 + $0x2c0] sm:$0xff]
  %v1987 = vld [vmem:[%s1 + $0x2c8] sm:$0xff]
  %v1988 = vld [vmem:[%s1 + $0x2d0] sm:$0xff]
  %v1989 = vld [vmem:[%s1 + $0x2d8] sm:$0xff]
  %v1990 = vld [vmem:[%s1 + $0x2e0] sm:$0xff]
  %v1991 = vld [vmem:[%s1 + $0x2e8] sm:$0xff]
  %v1992 = vld [vmem:[%s1 + $0x2f0] sm:$0xff]
  %v1993 = vld [vmem:[%s1 + $0x2f8] sm:$0xff]
  %v1994 = vld [vmem:[%s1 + $0x300] sm:$0xff]
  %v1995 = vld [vmem:[%s1 + $0x308] sm:$0xff]
  %v1996 = vld [vmem:[%s1 + $0x310] sm:$0xff]
  %v1997 = vld [vmem:[%s1 + $0x318] sm:$0xff]
  %v1998 = vld [vmem:[%s1 + $0x320] sm:$0xff]
  %v1999 = vld [vmem:[%s1 + $0x328] sm:$0xff]
  %v2000 = vld [vmem:[%s1 + $0x330] sm:$0xff]
  %v2001 = vld [vmem:[%s1 + $0x338] sm:$0xff]
  %v2002 = vld [vmem:[%s1 + $0x340] sm:$0xff]
  %v2003 = vld [vmem:[%s1 + $0x348] sm:$0xff]
  %v2004 = vld [vmem:[%s1 + $0x350] sm:$0xff]
  %v2005 = vld [vmem:[%s1 + $0x358] sm:$0xff]
  %v2006 = vld [vmem:[%s1 + $0x360] sm:$0xff]
  %v2007 = vld [vmem:[%s1 + $0x368] sm:$0xff]
  %v2008 = vld [vmem:[%s1 + $0x370] sm:$0xff]
  %v2009 = vld [vmem:[%s1 + $0x378] sm:$0xff]
  %v2010 = vld [vmem:[%s1 + $0x380] sm:$0xff]
  %v2011 = vld [vmem:[%s1 + $0x388] sm:$0xff]
  %v2012 = vld [vmem:[%s1 + $0x390] sm:$0xff]
  %v2013 = vld [vmem:[%s1 + $0x398] sm:$0xff]
  %v2014 = vld [vmem:[%s1 + $0x3a0] sm:$0xff]
  %v2015 = vld [vmem:[%s1 + $0x3a8] sm:$0xff]
  %v2016 = vld [vmem:[%s1 + $0x3b0] sm:$0xff]
  %v2017 = vld [vmem:[%s1 + $0x3b8] sm:$0xff]
  %v2018 = vld [vmem:[%s1 + $0x3c0] sm:$0xff]
  %v2019 = vld [vmem:[%s1 + $0x3c8] sm:$0xff]
  %v2020 = vld [vmem:[%s1 + $0x3d0] sm:$0xff]
  %v2021 = vld [vmem:[%s1 + $0x3d8] sm:$0xff]
  %v2022 = vld [vmem:[%s1 + $0x3e0] sm:$0xff]
  %v2023 = vld [vmem:[%s1 + $0x3e8] sm:$0xff]
  %v2024 = vld [vmem:[%s1 + $0x3f0] sm:$0xff]
  %v2025 = vld [vmem:[%s1 + $0x3f8] sm:$0xff]
  %v2026 = vld [vmem:[%s1 + $0x400] sm:$0xff]
  %v2027 = vld [vmem:[%s1 + $0x408] sm:$0xff]
  %v2028 = vld [vmem:[%s1 + $0x410] sm:$0xff]
  %v2029 = vld [vmem:[%s1 + $0x418] sm:$0xff]
  %v2030 = vld [vmem:[%s1 + $0x420] sm:$0xff]
  %v2031 = vld [vmem:[%s1 + $0x428] sm:$0xff]
  %v2032 = vld [vmem:[%s1 + $0x430] sm:$0xff]
  %v2033 = vld [vmem:[%s1 + $0x438] sm:$0xff]
  %v2034 = vld [vmem:[%s1 + $0x440] sm:$0xff]
  %v2035 = vld [vmem:[%s1 + $0x448] sm:$0xff]
  %v2036 = vld [vmem:[%s1 + $0x450] sm:$0xff]
  %v2037 = vld [vmem:[%s1 + $0x458] sm:$0xff]
  %v2038 = vld [vmem:[%s1 + $0x460] sm:$0xff]
  %v2039 = vld [vmem:[%s1 + $0x468] sm:$0xff]
  %v2040 = vld [vmem:[%s1 + $0x470] sm:$0xff]
  %v2041 = vld [vmem:[%s1 + $0x478] sm:$0xff]
  %v2042 = vld [vmem:[%s1 + $0x480] sm:$0xff]
  %v2043 = vld [vmem:[%s1 + $0x488] sm:$0xff]
  %v2044 = vld [vmem:[%s1 + $0x490] sm:$0xff]
  %v2045 = vld [vmem:[%s1 + $0x498] sm:$0xff]
  %v2046 = vld [vmem:[%s1 + $0x4a0] sm:$0xff]
  %v2047 = vld [vmem:[%s1 + $0x4a8] sm:$0xff]
  %v2048 = vld [vmem:[%s1 + $0x4b0] sm:$0xff]
  %v2049 = vld [vmem:[%s1 + $0x4b8] sm:$0xff]
  %v2050 = vld [vmem:[%s1 + $0x4c0] sm:$0xff]
  %v2051 = vld [vmem:[%s1 + $0x4c8] sm:$0xff]
  %v2052 = vld [vmem:[%s1 + $0x4d0] sm:$0xff]
  %v2053 = vld [vmem:[%s1 + $0x4d8] sm:$0xff]
  %v2054 = vld [vmem:[%s1 + $0x4e0] sm:$0xff]
  %v2055 = vld [vmem:[%s1 + $0x4e8] sm:$0xff]
  %v2056 = vld [vmem:[%s1 + $0x4f0] sm:$0xff]
  %v2057 = vld [vmem:[%s1 + $0x4f8] sm:$0xff]
  %v2058 = vld [vmem:[%s1 + $0x500] sm:$0xff]
  %v2059 = vld [vmem:[%s1 + $0x508] sm:$0xff]
  %v2060 = vld [vmem:[%s1 + $0x510] sm:$0xff]
  %v2061 = vld [vmem:[%s1 + $0x518] sm:$0xff]
  %v2062 = vld [vmem:[%s1 + $0x520] sm:$0xff]
  %v2063 = vld [vmem:[%s1 + $0x528] sm:$0xff]
  %v2064 = vld [vmem:[%s1 + $0x530] sm:$0xff]
  %v2065 = vld [vmem:[%s1 + $0x538] sm:$0xff]
  %v2066 = vld [vmem:[%s1 + $0x540] sm:$0xff]
  %v2067 = vld [vmem:[%s1 + $0x548] sm:$0xff]
  %v2068 = vld [vmem:[%s1 + $0x550] sm:$0xff]
  %v2069 = vld [vmem:[%s1 + $0x558] sm:$0xff]
  %v2070 = vld [vmem:[%s1 + $0x560] sm:$0xff]
  %v2071 = vld [vmem:[%s1 + $0x568] sm:$0xff]
  %v2072 = vld [vmem:[%s1 + $0x570] sm:$0xff]
  %2073 = vmatprep.subr.mxu0 0.0
  %2074 = vmatpush1.msra.mxu0 %v23
  %2075 = vmatprep.subr.mxu0 0.0
  %2076 = vmatpush1.msra.mxu0 %v24
  %2077 = vmatprep.subr.mxu0 0.0
  %2078 = vmatpush1.msra.mxu0 %v25
  %2079 = vmatprep.subr.mxu0 0.0
  %2080 = vmatpush1.msra.mxu0 %v26
  %2081 = vmatprep.subr.mxu0 0.0
  %2082 = vmatpush1.msra.mxu0 %v27
  %2083 = vmatprep.subr.mxu0 0.0
  %2084 = vmatpush1.msra.mxu0 %v28
  %2085 = vmatprep.subr.mxu0 0.0
  %2086 = vmatpush1.msra.mxu0 %v29
  %2087 = vmatprep.subr.mxu0 0.0
  %2088 = vmatpush1.msra.mxu0 %v30
  %2089 = vmatprep.subr.mxu0 0.0
  %2090 = vmatpush1.msra.mxu0 %v31
  %2091 = vmatprep.subr.mxu0 0.0
  %2092 = vmatpush1.msra.mxu0 %v32
  %2093 = vmatprep.subr.mxu0 0.0
  %2094 = vmatpush1.msra.mxu0 %v33
  %2095 = vmatprep.subr.mxu0 0.0
  %2096 = vmatpush1.msra.mxu0 %v34
  %2097 = vmatprep.subr.mxu0 0.0
  %2098 = vmatpush1.msra.mxu0 %v35
  %2099 = vmatprep.subr.mxu0 0.0
  %2100 = vmatpush1.msra.mxu0 %v36
  %2101 = vmatprep.subr.mxu0 0.0
  %2102 = vmatpush1.msra.mxu0 %v37
  %2103 = vmatprep.subr.mxu0 0.0
  %2104 = vmatpush1.msra.mxu0 %v38
  %2105 = vmatprep.subr.mxu0 0.0
  %2106 = vmatpush1.msra.mxu0 %v39
  %2107 = vmatprep.subr.mxu0 0.0
  %2108 = vmatpush1.msra.mxu0 %v40
  %2109 = vmatprep.subr.mxu0 0.0
  %2110 = vmatpush1.msra.mxu0 %v41
  %2111 = vmatprep.subr.mxu0 0.0
  %2112 = vmatpush1.msra.mxu0 %v42
  %2113 = vmatprep.subr.mxu0 0.0
  %2114 = vmatpush1.msra.mxu0 %v43
  %2115 = vmatprep.subr.mxu0 0.0
  %2116 = vmatpush1.msra.mxu0 %v44
  %2117 = vmatprep.subr.mxu0 0.0
  %2118 = vmatpush1.msra.mxu0 %v45
  %2119 = vmatprep.subr.mxu0 0.0
  %2120 = vmatpush1.msra.mxu0 %v46
  %2121 = vmatprep.subr.mxu0 0.0
  %2122 = vmatpush1.msra.mxu0 %v47
  %2123 = vmatprep.subr.mxu0 0.0
  %2124 = vmatpush1.msra.mxu0 %v48
  %2125 = vmatprep.subr.mxu0 0.0
  %2126 = vmatpush1.msra.mxu0 %v49
  %2127 = vmatprep.subr.mxu0 0.0
  %2128 = vmatpush1.msra.mxu0 %v50
  %2129 = vmatprep.subr.mxu0 0.0
  %2130 = vmatpush1.msra.mxu0 %v51
  %2131 = vmatprep.subr.mxu0 0.0
  %2132 = vmatpush1.msra.mxu0 %v52
  %2133 = vmatprep.subr.mxu0 0.0
  %2134 = vmatpush1.msra.mxu0 %v53
  %2135 = vmatprep.subr.mxu0 0.0
  %2136 = vmatpush1.msra.mxu0 %v54
  %2137 = vmatprep.mubr.f32.mxu0 %v1899
  %2138 = vmatmul.mubr.f32.gmra.mrb[0].mxu0 %v1898
  %v2139 = vpop.f32.mrb[0].mxu0
  %v2140 = vadd.f32 0.0, %v2139
  %v2141 = vpop.f32.mrb[0].mxu0
  %2142 = vmatprep.mubr.f32.mxu0 %v1924
  %2143 = vmatmul.mubr.f32.gmra.mrb[0].mxu0 %v1923
  %v2144 = vpop.f32.mrb[0].mxu0
  %v2145 = vadd.f32 0.0, %v2144
  %v2146 = vpop.f32.mrb[0].mxu0
  %2147 = vmatprep.mubr.f32.mxu0 %v1949
  %2148 = vmatmul.mubr.f32.gmra.mrb[0].mxu0 %v1948
  %v2149 = vpop.f32.mrb[0].mxu0
  %v2150 = vadd.f32 0.0, %v2149
  %v2151 = vpop.f32.mrb[0].mxu0
  %2152 = vmatprep.mubr.f32.mxu0 %v1974
  %2153 = vmatmul.mubr.f32.gmra.mrb[0].mxu0 %v1973
  %v2154 = vpop.f32.mrb[0].mxu0
  %v2155 = vadd.f32 0.0, %v2154
  %v2156 = vpop.f32.mrb[0].mxu0
  %2157 = vmatprep.mubr.f32.mxu0 %v1999
  %2158 = vmatmul.mubr.f32.gmra.mrb[0].mxu0 %v1998
  %v2159 = vpop.f32.mrb[0].mxu0
  %v2160 = vadd.f32 0.0, %v2159
  %v2161 = vpop.f32.mrb[0].mxu0
  %2162 = vmatprep.mubr.f32.mxu0 %v2024
  %2163 = vmatmul.mubr.f32.gmra.mrb[0].mxu0 %v2023
  %v2164 = vpop.f32.mrb[0].mxu0
  %v2165 = vadd.f32 0.0, %v2164
  %v2166 = vpop.f32.mrb[0].mxu0
  %2167 = vmatprep.mubr.f32.mxu0 %v2049
  %2168 = vmatmul.mubr.f32.gmra.mrb[0].mxu0 %v2048
  %v2169 = vpop.f32.mrb[0].mxu0
  %v2170 = vadd.f32 0.0, %v2169
  %v2171 = vpop.f32.mrb[0].mxu0
  %2172 = vdwg.mxu0
  %2173 = vmatprep.subr.mxu0 0.0
  %2174 = vmatpush1.msra.mxu0 %v55
  %2175 = vmatprep.subr.mxu0 0.0
  %2176 = vmatpush1.msra.mxu0 %v56
  %2177 = vmatprep.subr.mxu0 0.0
  %2178 = vmatpush1.msra.mxu0 %v57
  %2179 = vmatprep.subr.mxu0 0.0
  %2180 = vmatpush1.msra.mxu0 %v58
  %2181 = vmatprep.subr.mxu0 0.0
  %2182 = vmatpush1.msra.mxu0 %v59
  %2183 = vmatprep.subr.mxu0 0.0
  %2184 = vmatpush1.msra.mxu0 %v60
  %2185 = vmatprep.subr.mxu0 0.0
  %2186 = vmatpush1.msra.mxu0 %v61
  %2187 = vmatprep.subr.mxu0 0.0
  %2188 = vmatpush1.msra.mxu0 %v62
  %2189 = vmatprep.subr.mxu0 0.0
  %2190 = vmatpush1.msra.mxu0 %v63
  %2191 = vmatprep.subr.mxu0 0.0
  %2192 = vmatpush1.msra.mxu0 %v64
  %2193 = vmatprep.subr.mxu0 0.0
  %2194 = vmatpush1.msra.mxu0 %v65
  %2195 = vmatprep.subr.mxu0 0.0
  %2196 = vmatpush1.msra.mxu0 %v66
  %2197 = vmatprep.subr.mxu0 0.0
  %2198 = vmatpush1.msra.mxu0 %v67
  %2199 = vmatprep.subr.mxu0 0.0
  %2200 = vmatpush1.msra.mxu0 %v68
  %2201 = vmatprep.subr.mxu0 0.0
  %2202 = vmatpush1.msra.mxu0 %v69
  %2203 = vmatprep.subr.mxu0 0.0
  %2204 = vmatpush1.msra.mxu0 %v70
  %2205 = vmatprep.subr.mxu0 0.0
  %2206 = vmatpush1.msra.mxu0 %v71
  %2207 = vmatprep.subr.mxu0 0.0
  %2208 = vmatpush1.msra.mxu0 %v72
  %2209 = vmatprep.subr.mxu0 0.0
  %2210 = vmatpush1.msra.mxu0 %v73
  %2211 = vmatprep.subr.mxu0 0.0
  %2212 = vmatpush1.msra.mxu0 %v74
  %2213 = vmatprep.subr.mxu0 0.0
  %2214 = vmatpush1.msra.mxu0 %v75
  %2215 = vmatprep.subr.mxu0 0.0
  %2216 = vmatpush1.msra.mxu0 %v76
  %2217 = vmatprep.subr.mxu0 0.0
  %2218 = vmatpush1.msra.mxu0 %v77
  %2219 = vmatprep.subr.mxu0 0.0
  %2220 = vmatpush1.msra.mxu0 %v78
  %2221 = vmatprep.subr.mxu0 0.0
  %2222 = vmatpush1.msra.mxu0 %v79
  %2223 = vmatprep.subr.mxu0 0.0
  %2224 = vmatpush1.msra.mxu0 %v80
  %2225 = vmatprep.subr.mxu0 0.0
  %2226 = vmatpush1.msra.mxu0 %v81
  %2227 = vmatprep.subr.mxu0 0.0
  %2228 = vmatpush1.msra.mxu0 %v82
  %2229 = vmatprep.subr.mxu0 0.0
  %2230 = vmatpush1.msra.mxu0 %v83
  %2231 = vmatprep.subr.mxu0 0.0
  %2232 = vmatpush1.msra.mxu0 %v84
  %2233 = vmatprep.subr.mxu0 0.0
  %2234 = vmatpush1.msra.mxu0 %v85
  %2235 = vmatprep.subr.mxu0 0.0
  %2236 = vmatpush1.msra.mxu0 %v86
  %2237 = vmatprep.mubr.f32.mxu0 %v1901
  %2238 = vmatmul.mubr.f32.gmra.mrb[0].mxu0 %v1900
  %v2239 = vpop.f32.mrb[0].mxu0
  %v2240 = vadd.f32 %v2140, %v2239
  %v2241 = vpop.f32.mrb[0].mxu0
  %2242 = vmatprep.mubr.f32.mxu0 %v1926
  %2243 = vmatmul.mubr.f32.gmra.mrb[0].mxu0 %v1925
  %v2244 = vpop.f32.mrb[0].mxu0
  %v2245 = vadd.f32 %v2145, %v2244
  %v2246 = vpop.f32.mrb[0].mxu0
  %2247 = vmatprep.mubr.f32.mxu0 %v1951
  %2248 = vmatmul.mubr.f32.gmra.mrb[0].mxu0 %v1950
  %v2249 = vpop.f32.mrb[0].mxu0
  %v2250 = vadd.f32 %v2150, %v2249
  %v2251 = vpop.f32.mrb[0].mxu0
  %2252 = vmatprep.mubr.f32.mxu0 %v1976
  %2253 = vmatmul.mubr.f32.gmra.mrb[0].mxu0 %v1975
  %v2254 = vpop.f32.mrb[0].mxu0
  %v2255 = vadd.f32 %v2155, %v2254
  %v2256 = vpop.f32.mrb[0].mxu0
  %2257 = vmatprep.mubr.f32.mxu0 %v2001
  %2258 = vmatmul.mubr.f32.gmra.mrb[0].mxu0 %v2000
  %v2259 = vpop.f32.mrb[0].mxu0
  %v2260 = vadd.f32 %v2160, %v2259
  %v2261 = vpop.f32.mrb[0].mxu0
  %2262 = vmatprep.mubr.f32.mxu0 %v2026
  %2263 = vmatmul.mubr.f32.gmra.mrb[0].mxu0 %v2025
  %v2264 = vpop.f32.mrb[0].mxu0
  %v2265 = vadd.f32 %v2165, %v2264
  %v2266 = vpop.f32.mrb[0].mxu0
  %2267 = vmatprep.mubr.f32.mxu0 %v2051
  %2268 = vmatmul.mubr.f32.gmra.mrb[0].mxu0 %v2050
  %v2269 = vpop.f32.mrb[0].mxu0
  %v2270 = vadd.f32 %v2170, %v2269
  %v2271 = vpop.f32.mrb[0].mxu0
  %2272 = vdwg.mxu0
  %2273 = vmatprep.subr.mxu0 0.0
  %2274 = vmatpush1.msra.mxu0 %v87
  %2275 = vmatprep.subr.mxu0 0.0
  %2276 = vmatpush1.msra.mxu0 %v88
  %2277 = vmatprep.subr.mxu0 0.0
  %2278 = vmatpush1.msra.mxu0 %v89
  %2279 = vmatprep.subr.mxu0 0.0
  %2280 = vmatpush1.msra.mxu0 %v90
  %2281 = vmatprep.subr.mxu0 0.0
  %2282 = vmatpush1.msra.mxu0 %v91
  %2283 = vmatprep.subr.mxu0 0.0
  %2284 = vmatpush1.msra.mxu0 %v92
  %2285 = vmatprep.subr.mxu0 0.0
  %2286 = vmatpush1.msra.mxu0 %v93
  %2287 = vmatprep.subr.mxu0 0.0
  %2288 = vmatpush1.msra.mxu0 %v94
  %2289 = vmatprep.subr.mxu0 0.0
  %2290 = vmatpush1.msra.mxu0 %v95
  %2291 = vmatprep.subr.mxu0 0.0
  %2292 = vmatpush1.msra.mxu0 %v96
  %2293 = vmatprep.subr.mxu0 0.0
  %2294 = vmatpush1.msra.mxu0 %v97
  %2295 = vmatprep.subr.mxu0 0.0
  %2296 = vmatpush1.msra.mxu0 %v98
  %2297 = vmatprep.subr.mxu0 0.0
  %2298 = vmatpush1.msra.mxu0 %v99
  %2299 = vmatprep.subr.mxu0 0.0
  %2300 = vmatpush1.msra.mxu0 %v100
  %2301 = vmatprep.subr.mxu0 0.0
  %2302 = vmatpush1.msra.mxu0 %v101
  %2303 = vmatprep.subr.mxu0 0.0
  %2304 = vmatpush1.msra.mxu0 %v102
  %2305 = vmatprep.subr.mxu0 0.0
  %2306 = vmatpush1.msra.mxu0 %v103
  %2307 = vmatprep.subr.mxu0 0.0
  %2308 = vmatpush1.msra.mxu0 %v104
  %2309 = vmatprep.subr.mxu0 0.0
  %2310 = vmatpush1.msra.mxu0 %v105
  %2311 = vmatprep.subr.mxu0 0.0
  %2312 = vmatpush1.msra.mxu0 %v106
  %2313 = vmatprep.subr.mxu0 0.0
  %2314 = vmatpush1.msra.mxu0 %v107
  %2315 = vmatprep.subr.mxu0 0.0
  %2316 = vmatpush1.msra.mxu0 %v108
  %2317 = vmatprep.subr.mxu0 0.0
  %2318 = vmatpush1.msra.mxu0 %v109
  %2319 = vmatprep.subr.mxu0 0.0
  %2320 = vmatpush1.msra.mxu0 %v110
  %2321 = vmatprep.subr.mxu0 0.0
  %2322 = vmatpush1.msra.mxu0 %v111
  %2323 = vmatprep.subr.mxu0 0.0
  %2324 = vmatpush1.msra.mxu0 %v112
  %2325 = vmatprep.subr.mxu0 0.0
  %2326 = vmatpush1.msra.mxu0 %v113
  %2327 = vmatprep.subr.mxu0 0.0
  %2328 = vmatpush1.msra.mxu0 %v114
  %2329 = vmatprep.subr.mxu0 0.0
  %2330 = vmatpush1.msra.mxu0 %v115
  %2331 = vmatprep.subr.mxu0 0.0
  %2332 = vmatpush1.msra.mxu0 %v116
  %2333 = vmatprep.subr.mxu0 0.0
  %2334 = vmatpush1.msra.mxu0 %v117
  %2335 = vmatprep.subr.mxu0 0.0
  %2336 = vmatpush1.msra.mxu0 %v118
  %2337 = vmatprep.mubr.f32.mxu0 %v1903
  %2338 = vmatmul.mubr.f32.gmra.mrb[0].mxu0 %v1902
  %v2339 = vpop.f32.mrb[0].mxu0
  %v2340 = vadd.f32 %v2240, %v2339
  %v2341 = vpop.f32.mrb[0].mxu0
  %2342 = vmatprep.mubr.f32.mxu0 %v1928
  %2343 = vmatmul.mubr.f32.gmra.mrb[0].mxu0 %v1927
  %v2344 = vpop.f32.mrb[0].mxu0
  %v2345 = vadd.f32 %v2245, %v2344
  %v2346 = vpop.f32.mrb[0].mxu0
  %2347 = vmatprep.mubr.f32.mxu0 %v1953
  %2348 = vmatmul.mubr.f32.gmra.mrb[0].mxu0 %v1952
  %v2349 = vpop.f32.mrb[0].mxu0
  %v2350 = vadd.f32 %v2250, %v2349
  %v2351 = vpop.f32.mrb[0].mxu0
  %2352 = vmatprep.mubr.f32.mxu0 %v1978
  %2353 = vmatmul.mubr.f32.gmra.mrb[0].mxu0 %v1977
  %v2354 = vpop.f32.mrb[0].mxu0
  %v2355 = vadd.f32 %v2255, %v2354
  %v2356 = vpop.f32.mrb[0].mxu0
  %2357 = vmatprep.mubr.f32.mxu0 %v2003
  %2358 = vmatmul.mubr.f32.gmra.mrb[0].mxu0 %v2002
  %v2359 = vpop.f32.mrb[0].mxu0
  %v2360 = vadd.f32 %v2260, %v2359
  %v2361 = vpop.f32.mrb[0].mxu0
  %2362 = vmatprep.mubr.f32.mxu0 %v2028
  %2363 = vmatmul.mubr.f32.gmra.mrb[0].mxu0 %v2027
  %v2364 = vpop.f32.mrb[0].mxu0
  %v2365 = vadd.f32 %v2265, %v2364
  %v2366 = vpop.f32.mrb[0].mxu0
  %2367 = vmatprep.mubr.f32.mxu0 %v2053
  %2368 = vmatmul.mubr.f32.gmra.mrb[0].mxu0 %v2052
  %v2369 = vpop.f32.mrb[0].mxu0
  %v2370 = vadd.f32 %v2270, %v2369
  %v2371 = vpop.f32.mrb[0].mxu0
  %2372 = vdwg.mxu0
  %2373 = vmatprep.subr.mxu0 0.0
  %2374 = vmatpush1.msra.mxu0 %v119
  %2375 = vmatprep.subr.mxu0 0.0
  %2376 = vmatpush1.msra.mxu0 %v120
  %2377 = vmatprep.subr.mxu0 0.0
  %2378 = vmatpush1.msra.mxu0 %v121
  %2379 = vmatprep.subr.mxu0 0.0
  %2380 = vmatpush1.msra.mxu0 %v122
  %2381 = vmatprep.subr.mxu0 0.0
  %2382 = vmatpush1.msra.mxu0 %v123
  %2383 = vmatprep.subr.mxu0 0.0
  %2384 = vmatpush1.msra.mxu0 %v124
  %2385 = vmatprep.subr.mxu0 0.0
  %2386 = vmatpush1.msra.mxu0 %v125
  %2387 = vmatprep.subr.mxu0 0.0
  %2388 = vmatpush1.msra.mxu0 %v126
  %2389 = vmatprep.subr.mxu0 0.0
  %2390 = vmatpush1.msra.mxu0 %v127
  %2391 = vmatprep.subr.mxu0 0.0
  %2392 = vmatpush1.msra.mxu0 %v128
  %2393 = vmatprep.subr.mxu0 0.0
  %2394 = vmatpush1.msra.mxu0 %v129
  %2395 = vmatprep.subr.mxu0 0.0
  %2396 = vmatpush1.msra.mxu0 %v130
  %2397 = vmatprep.subr.mxu0 0.0
  %2398 = vmatpush1.msra.mxu0 %v131
  %2399 = vmatprep.subr.mxu0 0.0
  %2400 = vmatpush1.msra.mxu0 %v132
  %2401 = vmatprep.subr.mxu0 0.0
  %2402 = vmatpush1.msra.mxu0 %v133
  %2403 = vmatprep.subr.mxu0 0.0
  %2404 = vmatpush1.msra.mxu0 %v134
  %2405 = vmatprep.subr.mxu0 0.0
  %2406 = vmatpush1.msra.mxu0 %v135
  %2407 = vmatprep.subr.mxu0 0.0
  %2408 = vmatpush1.msra.mxu0 %v136
  %2409 = vmatprep.subr.mxu0 0.0
  %2410 = vmatpush1.msra.mxu0 %v137
  %2411 = vmatprep.subr.mxu0 0.0
  %2412 = vmatpush1.msra.mxu0 %v138
  %2413 = vmatprep.subr.mxu0 0.0
  %2414 = vmatpush1.msra.mxu0 %v139
  %2415 = vmatprep.subr.mxu0 0.0
  %2416 = vmatpush1.msra.mxu0 %v140
  %2417 = vmatprep.subr.mxu0 0.0
  %2418 = vmatpush1.msra.mxu0 %v141
  %2419 = vmatprep.subr.mxu0 0.0
  %2420 = vmatpush1.msra.mxu0 %v142
  %2421 = vmatprep.subr.mxu0 0.0
  %2422 = vmatpush1.msra.mxu0 %v143
  %2423 = vmatprep.subr.mxu0 0.0
  %2424 = vmatpush1.msra.mxu0 %v144
  %2425 = vmatprep.subr.mxu0 0.0
  %2426 = vmatpush1.msra.mxu0 %v145
  %2427 = vmatprep.subr.mxu0 0.0
  %2428 = vmatpush1.msra.mxu0 %v146
  %2429 = vmatprep.subr.mxu0 0.0
  %2430 = vmatpush1.msra.mxu0 %v147
  %2431 = vmatprep.subr.mxu0 0.0
  %2432 = vmatpush1.msra.mxu0 %v148
  %2433 = vmatprep.subr.mxu0 0.0
  %2434 = vmatpush1.msra.mxu0 %v149
  %2435 = vmatprep.subr.mxu0 0.0
  %2436 = vmatpush1.msra.mxu0 %v150
  %2437 = vmatprep.mubr.f32.mxu0 %v1905
  %2438 = vmatmul.mubr.f32.gmra.mrb[0].mxu0 %v1904
  %v2439 = vpop.f32.mrb[0].mxu0
  %v2440 = vadd.f32 %v2340, %v2439
  %v2441 = vpop.f32.mrb[0].mxu0
  %2442 = vmatprep.mubr.f32.mxu0 %v1930
  %2443 = vmatmul.mubr.f32.gmra.mrb[0].mxu0 %v1929
  %v2444 = vpop.f32.mrb[0].mxu0
  %v2445 = vadd.f32 %v2345, %v2444
  %v2446 = vpop.f32.mrb[0].mxu0
  %2447 = vmatprep.mubr.f32.mxu0 %v1955
  %2448 = vmatmul.mubr.f32.gmra.mrb[0].mxu0 %v1954
  %v2449 = vpop.f32.mrb[0].mxu0
  %v2450 = vadd.f32 %v2350, %v2449
  %v2451 = vpop.f32.mrb[0].mxu0
  %2452 = vmatprep.mubr.f32.mxu0 %v1980
  %2453 = vmatmul.mubr.f32.gmra.mrb[0].mxu0 %v1979
  %v2454 = vpop.f32.mrb[0].mxu0
  %v2455 = vadd.f32 %v2355, %v2454
  %v2456 = vpop.f32.mrb[0].mxu0
  %2457 = vmatprep.mubr.f32.mxu0 %v2005
  %2458 = vmatmul.mubr.f32.gmra.mrb[0].mxu0 %v2004
  %v2459 = vpop.f32.mrb[0].mxu0
  %v2460 = vadd.f32 %v2360, %v2459
  %v2461 = vpop.f32.mrb[0].mxu0
  %2462 = vmatprep.mubr.f32.mxu0 %v2030
  %2463 = vmatmul.mubr.f32.gmra.mrb[0].mxu0 %v2029
  %v2464 = vpop.f32.mrb[0].mxu0
  %v2465 = vadd.f32 %v2365, %v2464
  %v2466 = vpop.f32.mrb[0].mxu0
  %2467 = vmatprep.mubr.f32.mxu0 %v2055
  %2468 = vmatmul.mubr.f32.gmra.mrb[0].mxu0 %v2054
  %v2469 = vpop.f32.mrb[0].mxu0
  %v2470 = vadd.f32 %v2370, %v2469
  %v2471 = vpop.f32.mrb[0].mxu0
  %2472 = vdwg.mxu0
  %2473 = vmatprep.subr.mxu0 0.0
  %2474 = vmatpush1.msra.mxu0 %v151
  %2475 = vmatprep.subr.mxu0 0.0
  %2476 = vmatpush1.msra.mxu0 %v152
  %2477 = vmatprep.subr.mxu0 0.0
  %2478 = vmatpush1.msra.mxu0 %v153
  %2479 = vmatprep.subr.mxu0 0.0
  %2480 = vmatpush1.msra.mxu0 %v154
  %2481 = vmatprep.subr.mxu0 0.0
  %2482 = vmatpush1.msra.mxu0 %v155
  %2483 = vmatprep.subr.mxu0 0.0
  %2484 = vmatpush1.msra.mxu0 %v156
  %2485 = vmatprep.subr.mxu0 0.0
  %2486 = vmatpush1.msra.mxu0 %v157
  %2487 = vmatprep.subr.mxu0 0.0
  %2488 = vmatpush1.msra.mxu0 %v158
  %2489 = vmatprep.subr.mxu0 0.0
  %2490 = vmatpush1.msra.mxu0 %v159
  %2491 = vmatprep.subr.mxu0 0.0
  %2492 = vmatpush1.msra.mxu0 %v160
  %2493 = vmatprep.subr.mxu0 0.0
  %2494 = vmatpush1.msra.mxu0 %v161
  %2495 = vmatprep.subr.mxu0 0.0
  %2496 = vmatpush1.msra.mxu0 %v162
  %2497 = vmatprep.subr.mxu0 0.0
  %2498 = vmatpush1.msra.mxu0 %v163
  %2499 = vmatprep.subr.mxu0 0.0
  %2500 = vmatpush1.msra.mxu0 %v164
  %2501 = vmatprep.subr.mxu0 0.0
  %2502 = vmatpush1.msra.mxu0 %v165
  %2503 = vmatprep.subr.mxu0 0.0
  %2504 = vmatpush1.msra.mxu0 %v166
  %2505 = vmatprep.subr.mxu0 0.0
  %2506 = vmatpush1.msra.mxu0 %v167
  %2507 = vmatprep.subr.mxu0 0.0
  %2508 = vmatpush1.msra.mxu0 %v168
  %2509 = vmatprep.subr.mxu0 0.0
  %2510 = vmatpush1.msra.mxu0 %v169
  %2511 = vmatprep.subr.mxu0 0.0
  %2512 = vmatpush1.msra.mxu0 %v170
  %2513 = vmatprep.subr.mxu0 0.0
  %2514 = vmatpush1.msra.mxu0 %v171
  %2515 = vmatprep.subr.mxu0 0.0
  %2516 = vmatpush1.msra.mxu0 %v172
  %2517 = vmatprep.subr.mxu0 0.0
  %2518 = vmatpush1.msra.mxu0 %v173
  %2519 = vmatprep.subr.mxu0 0.0
  %2520 = vmatpush1.msra.mxu0 %v174
  %2521 = vmatprep.subr.mxu0 0.0
  %2522 = vmatpush1.msra.mxu0 %v175
  %2523 = vmatprep.subr.mxu0 0.0
  %2524 = vmatpush1.msra.mxu0 %v176
  %2525 = vmatprep.subr.mxu0 0.0
  %2526 = vmatpush1.msra.mxu0 %v177
  %2527 = vmatprep.subr.mxu0 0.0
  %2528 = vmatpush1.msra.mxu0 %v178
  %2529 = vmatprep.subr.mxu0 0.0
  %2530 = vmatpush1.msra.mxu0 %v179
  %2531 = vmatprep.subr.mxu0 0.0
  %2532 = vmatpush1.msra.mxu0 %v180
  %2533 = vmatprep.subr.mxu0 0.0
  %2534 = vmatpush1.msra.mxu0 %v181
  %2535 = vmatprep.subr.mxu0 0.0
  %2536 = vmatpush1.msra.mxu0 %v182
  %2537 = vmatprep.mubr.f32.mxu0 %v1907
  %2538 = vmatmul.mubr.f32.gmra.mrb[0].mxu0 %v1906
  %v2539 = vpop.f32.mrb[0].mxu0
  %v2540 = vadd.f32 %v2440, %v2539
  %v2541 = vpop.f32.mrb[0].mxu0
  %2542 = vmatprep.mubr.f32.mxu0 %v1932
  %2543 = vmatmul.mubr.f32.gmra.mrb[0].mxu0 %v1931
  %v2544 = vpop.f32.mrb[0].mxu0
  %v2545 = vadd.f32 %v2445, %v2544
  %v2546 = vpop.f32.mrb[0].mxu0
  %2547 = vmatprep.mubr.f32.mxu0 %v1957
  %2548 = vmatmul.mubr.f32.gmra.mrb[0].mxu0 %v1956
  %v2549 = vpop.f32.mrb[0].mxu0
  %v2550 = vadd.f32 %v2450, %v2549
  %v2551 = vpop.f32.mrb[0].mxu0
  %2552 = vmatprep.mubr.f32.mxu0 %v1982
  %2553 = vmatmul.mubr.f32.gmra.mrb[0].mxu0 %v1981
  %v2554 = vpop.f32.mrb[0].mxu0
  %v2555 = vadd.f32 %v2455, %v2554
  %v2556 = vpop.f32.mrb[0].mxu0
  %2557 = vmatprep.mubr.f32.mxu0 %v2007
  %2558 = vmatmul.mubr.f32.gmra.mrb[0].mxu0 %v2006
  %v2559 = vpop.f32.mrb[0].mxu0
  %v2560 = vadd.f32 %v2460, %v2559
  %v2561 = vpop.f32.mrb[0].mxu0
  %2562 = vmatprep.mubr.f32.mxu0 %v2032
  %2563 = vmatmul.mubr.f32.gmra.mrb[0].mxu0 %v2031
  %v2564 = vpop.f32.mrb[0].mxu0
  %v2565 = vadd.f32 %v2465, %v2564
  %v2566 = vpop.f32.mrb[0].mxu0
  %2567 = vmatprep.mubr.f32.mxu0 %v2057
  %2568 = vmatmul.mubr.f32.gmra.mrb[0].mxu0 %v2056
  %v2569 = vpop.f32.mrb[0].mxu0
  %v2570 = vadd.f32 %v2470, %v2569
  %v2571 = vpop.f32.mrb[0].mxu0
  %2572 = vdwg.mxu0
  %2573 = vmatprep.subr.mxu0 0.0
  %2574 = vmatpush1.msra.mxu0 %v183
  %2575 = vmatprep.subr.mxu0 0.0
  %2576 = vmatpush1.msra.mxu0 %v184
  %2577 = vmatprep.subr.mxu0 0.0
  %2578 = vmatpush1.msra.mxu0 %v185
  %2579 = vmatprep.subr.mxu0 0.0
  %2580 = vmatpush1.msra.mxu0 %v186
  %2581 = vmatprep.subr.mxu0 0.0
  %2582 = vmatpush1.msra.mxu0 %v187
  %2583 = vmatprep.subr.mxu0 0.0
  %2584 = vmatpush1.msra.mxu0 %v188
  %2585 = vmatprep.subr.mxu0 0.0
  %2586 = vmatpush1.msra.mxu0 %v189
  %2587 = vmatprep.subr.mxu0 0.0
  %2588 = vmatpush1.msra.mxu0 %v190
  %2589 = vmatprep.subr.mxu0 0.0
  %2590 = vmatpush1.msra.mxu0 %v191
  %2591 = vmatprep.subr.mxu0 0.0
  %2592 = vmatpush1.msra.mxu0 %v192
  %2593 = vmatprep.subr.mxu0 0.0
  %2594 = vmatpush1.msra.mxu0 %v193
  %2595 = vmatprep.subr.mxu0 0.0
  %2596 = vmatpush1.msra.mxu0 %v194
  %2597 = vmatprep.subr.mxu0 0.0
  %2598 = vmatpush1.msra.mxu0 %v195
  %2599 = vmatprep.subr.mxu0 0.0
  %2600 = vmatpush1.msra.mxu0 %v196
  %2601 = vmatprep.subr.mxu0 0.0
  %2602 = vmatpush1.msra.mxu0 %v197
  %2603 = vmatprep.subr.mxu0 0.0
  %2604 = vmatpush1.msra.mxu0 %v198
  %2605 = vmatprep.subr.mxu0 0.0
  %2606 = vmatpush1.msra.mxu0 %v199
  %2607 = vmatprep.subr.mxu0 0.0
  %2608 = vmatpush1.msra.mxu0 %v200
  %2609 = vmatprep.subr.mxu0 0.0
  %2610 = vmatpush1.msra.mxu0 %v201
  %2611 = vmatprep.subr.mxu0 0.0
  %2612 = vmatpush1.msra.mxu0 %v202
  %2613 = vmatprep.subr.mxu0 0.0
  %2614 = vmatpush1.msra.mxu0 %v203
  %2615 = vmatprep.subr.mxu0 0.0
  %2616 = vmatpush1.msra.mxu0 %v204
  %2617 = vmatprep.subr.mxu0 0.0
  %2618 = vmatpush1.msra.mxu0 %v205
  %2619 = vmatprep.subr.mxu0 0.0
  %2620 = vmatpush1.msra.mxu0 %v206
  %2621 = vmatprep.subr.mxu0 0.0
  %2622 = vmatpush1.msra.mxu0 %v207
  %2623 = vmatprep.subr.mxu0 0.0
  %2624 = vmatpush1.msra.mxu0 %v208
  %2625 = vmatprep.subr.mxu0 0.0
  %2626 = vmatpush1.msra.mxu0 %v209
  %2627 = vmatprep.subr.mxu0 0.0
  %2628 = vmatpush1.msra.mxu0 %v210
  %2629 = vmatprep.subr.mxu0 0.0
  %2630 = vmatpush1.msra.mxu0 %v211
  %2631 = vmatprep.subr.mxu0 0.0
  %2632 = vmatpush1.msra.mxu0 %v212
  %2633 = vmatprep.subr.mxu0 0.0
  %2634 = vmatpush1.msra.mxu0 %v213
  %2635 = vmatprep.subr.mxu0 0.0
  %2636 = vmatpush1.msra.mxu0 %v214
  %2637 = vmatprep.mubr.f32.mxu0 %v1909
  %2638 = vmatmul.mubr.f32.gmra.mrb[0].mxu0 %v1908
  %v2639 = vpop.f32.mrb[0].mxu0
  %v2640 = vadd.f32 %v2540, %v2639
  %v2641 = vpop.f32.mrb[0].mxu0
  %2642 = vmatprep.mubr.f32.mxu0 %v1934
  %2643 = vmatmul.mubr.f32.gmra.mrb[0].mxu0 %v1933
  %v2644 = vpop.f32.mrb[0].mxu0
  %v2645 = vadd.f32 %v2545, %v2644
  %v2646 = vpop.f32.mrb[0].mxu0
  %2647 = vmatprep.mubr.f32.mxu0 %v1959
  %2648 = vmatmul.mubr.f32.gmra.mrb[0].mxu0 %v1958
  %v2649 = vpop.f32.mrb[0].mxu0
  %v2650 = vadd.f32 %v2550, %v2649
  %v2651 = vpop.f32.mrb[0].mxu0
  %2652 = vmatprep.mubr.f32.mxu0 %v1984
  %2653 = vmatmul.mubr.f32.gmra.mrb[0].mxu0 %v1983
  %v2654 = vpop.f32.mrb[0].mxu0
  %v2655 = vadd.f32 %v2555, %v2654
  %v2656 = vpop.f32.mrb[0].mxu0
  %2657 = vmatprep.mubr.f32.mxu0 %v2009
  %2658 = vmatmul.mubr.f32.gmra.mrb[0].mxu0 %v2008
  %v2659 = vpop.f32.mrb[0].mxu0
  %v2660 = vadd.f32 %v2560, %v2659
  %v2661 = vpop.f32.mrb[0].mxu0
  %2662 = vmatprep.mubr.f32.mxu0 %v2034
  %2663 = vmatmul.mubr.f32.gmra.mrb[0].mxu0 %v2033
  %v2664 = vpop.f32.mrb[0].mxu0
  %v2665 = vadd.f32 %v2565, %v2664
  %v2666 = vpop.f32.mrb[0].mxu0
  %2667 = vmatprep.mubr.f32.mxu0 %v2059
  %2668 = vmatmul.mubr.f32.gmra.mrb[0].mxu0 %v2058
  %v2669 = vpop.f32.mrb[0].mxu0
  %v2670 = vadd.f32 %v2570, %v2669
  %v2671 = vpop.f32.mrb[0].mxu0
  %2672 = vdwg.mxu0
  %2673 = vmatprep.subr.mxu0 0.0
  %2674 = vmatpush1.msra.mxu0 %v215
  %2675 = vmatprep.subr.mxu0 0.0
  %2676 = vmatpush1.msra.mxu0 %v216
  %2677 = vmatprep.subr.mxu0 0.0
  %2678 = vmatpush1.msra.mxu0 %v217
  %2679 = vmatprep.subr.mxu0 0.0
  %2680 = vmatpush1.msra.mxu0 %v218
  %2681 = vmatprep.subr.mxu0 0.0
  %2682 = vmatpush1.msra.mxu0 %v219
  %2683 = vmatprep.subr.mxu0 0.0
  %2684 = vmatpush1.msra.mxu0 %v220
  %2685 = vmatprep.subr.mxu0 0.0
  %2686 = vmatpush1.msra.mxu0 %v221
  %2687 = vmatprep.subr.mxu0 0.0
  %2688 = vmatpush1.msra.mxu0 %v222
  %2689 = vmatprep.subr.mxu0 0.0
  %2690 = vmatpush1.msra.mxu0 %v223
  %2691 = vmatprep.subr.mxu0 0.0
  %2692 = vmatpush1.msra.mxu0 %v224
  %2693 = vmatprep.subr.mxu0 0.0
  %2694 = vmatpush1.msra.mxu0 %v225
  %2695 = vmatprep.subr.mxu0 0.0
  %2696 = vmatpush1.msra.mxu0 %v226
  %2697 = vmatprep.subr.mxu0 0.0
  %2698 = vmatpush1.msra.mxu0 %v227
  %2699 = vmatprep.subr.mxu0 0.0
  %2700 = vmatpush1.msra.mxu0 %v228
  %2701 = vmatprep.subr.mxu0 0.0
  %2702 = vmatpush1.msra.mxu0 %v229
  %2703 = vmatprep.subr.mxu0 0.0
  %2704 = vmatpush1.msra.mxu0 %v230
  %2705 = vmatprep.subr.mxu0 0.0
  %2706 = vmatpush1.msra.mxu0 %v231
  %2707 = vmatprep.subr.mxu0 0.0
  %2708 = vmatpush1.msra.mxu0 %v232
  %2709 = vmatprep.subr.mxu0 0.0
  %2710 = vmatpush1.msra.mxu0 %v233
  %2711 = vmatprep.subr.mxu0 0.0
  %2712 = vmatpush1.msra.mxu0 %v234
  %2713 = vmatprep.subr.mxu0 0.0
  %2714 = vmatpush1.msra.mxu0 %v235
  %2715 = vmatprep.subr.mxu0 0.0
  %2716 = vmatpush1.msra.mxu0 %v236
  %2717 = vmatprep.subr.mxu0 0.0
  %2718 = vmatpush1.msra.mxu0 %v237
  %2719 = vmatprep.subr.mxu0 0.0
  %2720 = vmatpush1.msra.mxu0 %v238
  %2721 = vmatprep.subr.mxu0 0.0
  %2722 = vmatpush1.msra.mxu0 %v239
  %2723 = vmatprep.subr.mxu0 0.0
  %2724 = vmatpush1.msra.mxu0 %v240
  %2725 = vmatprep.subr.mxu0 0.0
  %2726 = vmatpush1.msra.mxu0 %v241
  %2727 = vmatprep.subr.mxu0 0.0
  %2728 = vmatpush1.msra.mxu0 %v242
  %2729 = vmatprep.subr.mxu0 0.0
  %2730 = vmatpush1.msra.mxu0 %v243
  %2731 = vmatprep.subr.mxu0 0.0
  %2732 = vmatpush1.msra.mxu0 %v244
  %2733 = vmatprep.subr.mxu0 0.0
  %2734 = vmatpush1.msra.mxu0 %v245
  %2735 = vmatprep.subr.mxu0 0.0
  %2736 = vmatpush1.msra.mxu0 %v246
  %2737 = vmatprep.mubr.f32.mxu0 %v1911
  %2738 = vmatmul.mubr.f32.gmra.mrb[0].mxu0 %v1910
  %v2739 = vpop.f32.mrb[0].mxu0
  %v2740 = vadd.f32 %v2640, %v2739
  %v2741 = vpop.f32.mrb[0].mxu0
  %2742 = vmatprep.mubr.f32.mxu0 %v1936
  %2743 = vmatmul.mubr.f32.gmra.mrb[0].mxu0 %v1935
  %v2744 = vpop.f32.mrb[0].mxu0
  %v2745 = vadd.f32 %v2645, %v2744
  %v2746 = vpop.f32.mrb[0].mxu0
  %2747 = vmatprep.mubr.f32.mxu0 %v1961
  %2748 = vmatmul.mubr.f32.gmra.mrb[0].mxu0 %v1960
  %v2749 = vpop.f32.mrb[0].mxu0
  %v2750 = vadd.f32 %v2650, %v2749
  %v2751 = vpop.f32.mrb[0].mxu0
  %2752 = vmatprep.mubr.f32.mxu0 %v1986
  %2753 = vmatmul.mubr.f32.gmra.mrb[0].mxu0 %v1985
  %v2754 = vpop.f32.mrb[0].mxu0
  %v2755 = vadd.f32 %v2655, %v2754
  %v2756 = vpop.f32.mrb[0].mxu0
  %2757 = vmatprep.mubr.f32.mxu0 %v2011
  %2758 = vmatmul.mubr.f32.gmra.mrb[0].mxu0 %v2010
  %v2759 = vpop.f32.mrb[0].mxu0
  %v2760 = vadd.f32 %v2660, %v2759
  %v2761 = vpop.f32.mrb[0].mxu0
  %2762 = vmatprep.mubr.f32.mxu0 %v2036
  %2763 = vmatmul.mubr.f32.gmra.mrb[0].mxu0 %v2035
  %v2764 = vpop.f32.mrb[0].mxu0
  %v2765 = vadd.f32 %v2665, %v2764
  %v2766 = vpop.f32.mrb[0].mxu0
  %2767 = vmatprep.mubr.f32.mxu0 %v2061
  %2768 = vmatmul.mubr.f32.gmra.mrb[0].mxu0 %v2060
  %v2769 = vpop.f32.mrb[0].mxu0
  %v2770 = vadd.f32 %v2670, %v2769
  %v2771 = vpop.f32.mrb[0].mxu0
  %2772 = vdwg.mxu0
  %2773 = vmatprep.subr.mxu0 0.0
  %2774 = vmatpush1.msra.mxu0 %v247
  %2775 = vmatprep.subr.mxu0 0.0
  %2776 = vmatpush1.msra.mxu0 %v248
  %2777 = vmatprep.subr.mxu0 0.0
  %2778 = vmatpush1.msra.mxu0 %v249
  %2779 = vmatprep.subr.mxu0 0.0
  %2780 = vmatpush1.msra.mxu0 %v250
  %2781 = vmatprep.subr.mxu0 0.0
  %2782 = vmatpush1.msra.mxu0 %v251
  %2783 = vmatprep.subr.mxu0 0.0
  %2784 = vmatpush1.msra.mxu0 %v252
  %2785 = vmatprep.subr.mxu0 0.0
  %2786 = vmatpush1.msra.mxu0 %v253
  %2787 = vmatprep.subr.mxu0 0.0
  %2788 = vmatpush1.msra.mxu0 %v254
  %2789 = vmatprep.subr.mxu0 0.0
  %2790 = vmatpush1.msra.mxu0 %v255
  %2791 = vmatprep.subr.mxu0 0.0
  %2792 = vmatpush1.msra.mxu0 %v256
  %2793 = vmatprep.subr.mxu0 0.0
  %2794 = vmatpush1.msra.mxu0 %v257
  %2795 = vmatprep.subr.mxu0 0.0
  %2796 = vmatpush1.msra.mxu0 %v258
  %2797 = vmatprep.subr.mxu0 0.0
  %2798 = vmatpush1.msra.mxu0 %v259
  %2799 = vmatprep.subr.mxu0 0.0
  %2800 = vmatpush1.msra.mxu0 %v260
  %2801 = vmatprep.subr.mxu0 0.0
  %2802 = vmatpush1.msra.mxu0 %v261
  %2803 = vmatprep.subr.mxu0 0.0
  %2804 = vmatpush1.msra.mxu0 %v262
  %2805 = vmatprep.subr.mxu0 0.0
  %2806 = vmatpush1.msra.mxu0 %v263
  %2807 = vmatprep.subr.mxu0 0.0
  %2808 = vmatpush1.msra.mxu0 %v264
  %2809 = vmatprep.subr.mxu0 0.0
  %2810 = vmatpush1.msra.mxu0 %v265
  %2811 = vmatprep.subr.mxu0 0.0
  %2812 = vmatpush1.msra.mxu0 %v266
  %2813 = vmatprep.subr.mxu0 0.0
  %2814 = vmatpush1.msra.mxu0 %v267
  %2815 = vmatprep.subr.mxu0 0.0
  %2816 = vmatpush1.msra.mxu0 %v268
  %2817 = vmatprep.subr.mxu0 0.0
  %2818 = vmatpush1.msra.mxu0 %v269
  %2819 = vmatprep.subr.mxu0 0.0
  %2820 = vmatpush1.msra.mxu0 %v270
  %2821 = vmatprep.subr.mxu0 0.0
  %2822 = vmatpush1.msra.mxu0 %v271
  %2823 = vmatprep.subr.mxu0 0.0
  %2824 = vmatpush1.msra.mxu0 %v272
  %2825 = vmatprep.subr.mxu0 0.0
  %2826 = vmatpush1.msra.mxu0 %v273
  %2827 = vmatprep.subr.mxu0 0.0
  %2828 = vmatpush1.msra.mxu0 %v274
  %2829 = vmatprep.subr.mxu0 0.0
  %2830 = vmatpush1.msra.mxu0 %v275
  %2831 = vmatprep.subr.mxu0 0.0
  %2832 = vmatpush1.msra.mxu0 %v276
  %2833 = vmatprep.subr.mxu0 0.0
  %2834 = vmatpush1.msra.mxu0 %v277
  %2835 = vmatprep.subr.mxu0 0.0
  %2836 = vmatpush1.msra.mxu0 %v278
  %2837 = vmatprep.mubr.f32.mxu0 %v1913
  %2838 = vmatmul.mubr.f32.gmra.mrb[0].mxu0 %v1912
  %v2839 = vpop.f32.mrb[0].mxu0
  %v2840 = vadd.f32 %v2740, %v2839
  %v2841 = vpop.f32.mrb[0].mxu0
  %2842 = vmatprep.mubr.f32.mxu0 %v1938
  %2843 = vmatmul.mubr.f32.gmra.mrb[0].mxu0 %v1937
  %v2844 = vpop.f32.mrb[0].mxu0
  %v2845 = vadd.f32 %v2745, %v2844
  %v2846 = vpop.f32.mrb[0].mxu0
  %2847 = vmatprep.mubr.f32.mxu0 %v1963
  %2848 = vmatmul.mubr.f32.gmra.mrb[0].mxu0 %v1962
  %v2849 = vpop.f32.mrb[0].mxu0
  %v2850 = vadd.f32 %v2750, %v2849
  %v2851 = vpop.f32.mrb[0].mxu0
  %2852 = vmatprep.mubr.f32.mxu0 %v1988
  %2853 = vmatmul.mubr.f32.gmra.mrb[0].mxu0 %v1987
  %v2854 = vpop.f32.mrb[0].mxu0
  %v2855 = vadd.f32 %v2755, %v2854
  %v2856 = vpop.f32.mrb[0].mxu0
  %2857 = vmatprep.mubr.f32.mxu0 %v2013
  %2858 = vmatmul.mubr.f32.gmra.mrb[0].mxu0 %v2012
  %v2859 = vpop.f32.mrb[0].mxu0
  %v2860 = vadd.f32 %v2760, %v2859
  %v2861 = vpop.f32.mrb[0].mxu0
  %2862 = vmatprep.mubr.f32.mxu0 %v2038
  %2863 = vmatmul.mubr.f32.gmra.mrb[0].mxu0 %v2037
  %v2864 = vpop.f32.mrb[0].mxu0
  %v2865 = vadd.f32 %v2765, %v2864
  %v2866 = vpop.f32.mrb[0].mxu0
  %2867 = vmatprep.mubr.f32.mxu0 %v2063
  %2868 = vmatmul.mubr.f32.gmra.mrb[0].mxu0 %v2062
  %v2869 = vpop.f32.mrb[0].mxu0
  %v2870 = vadd.f32 %v2770, %v2869
  %v2871 = vpop.f32.mrb[0].mxu0
  %2872 = vdwg.mxu0
  %2873 = vmatprep.subr.mxu0 0.0
  %2874 = vmatpush1.msra.mxu0 %v279
  %2875 = vmatprep.subr.mxu0 0.0
  %2876 = vmatpush1.msra.mxu0 %v280
  %2877 = vmatprep.subr.mxu0 0.0
  %2878 = vmatpush1.msra.mxu0 %v281
  %2879 = vmatprep.subr.mxu0 0.0
  %2880 = vmatpush1.msra.mxu0 %v282
  %2881 = vmatprep.subr.mxu0 0.0
  %2882 = vmatpush1.msra.mxu0 %v283
  %2883 = vmatprep.subr.mxu0 0.0
  %2884 = vmatpush1.msra.mxu0 %v284
  %2885 = vmatprep.subr.mxu0 0.0
  %2886 = vmatpush1.msra.mxu0 %v285
  %2887 = vmatprep.subr.mxu0 0.0
  %2888 = vmatpush1.msra.mxu0 %v286
  %2889 = vmatprep.subr.mxu0 0.0
  %2890 = vmatpush1.msra.mxu0 %v287
  %2891 = vmatprep.subr.mxu0 0.0
  %2892 = vmatpush1.msra.mxu0 %v288
  %2893 = vmatprep.subr.mxu0 0.0
  %2894 = vmatpush1.msra.mxu0 %v289
  %2895 = vmatprep.subr.mxu0 0.0
  %2896 = vmatpush1.msra.mxu0 %v290
  %2897 = vmatprep.subr.mxu0 0.0
  %2898 = vmatpush1.msra.mxu0 %v291
  %2899 = vmatprep.subr.mxu0 0.0
  %2900 = vmatpush1.msra.mxu0 %v292
  %2901 = vmatprep.subr.mxu0 0.0
  %2902 = vmatpush1.msra.mxu0 %v293
  %2903 = vmatprep.subr.mxu0 0.0
  %2904 = vmatpush1.msra.mxu0 %v294
  %2905 = vmatprep.subr.mxu0 0.0
  %2906 = vmatpush1.msra.mxu0 %v295
  %2907 = vmatprep.subr.mxu0 0.0
  %2908 = vmatpush1.msra.mxu0 %v296
  %2909 = vmatprep.subr.mxu0 0.0
  %2910 = vmatpush1.msra.mxu0 %v297
  %2911 = vmatprep.subr.mxu0 0.0
  %2912 = vmatpush1.msra.mxu0 %v298
  %2913 = vmatprep.subr.mxu0 0.0
  %2914 = vmatpush1.msra.mxu0 %v299
  %2915 = vmatprep.subr.mxu0 0.0
  %2916 = vmatpush1.msra.mxu0 %v300
  %2917 = vmatprep.subr.mxu0 0.0
  %2918 = vmatpush1.msra.mxu0 %v301
  %2919 = vmatprep.subr.mxu0 0.0
  %2920 = vmatpush1.msra.mxu0 %v302
  %2921 = vmatprep.subr.mxu0 0.0
  %2922 = vmatpush1.msra.mxu0 %v303
  %2923 = vmatprep.subr.mxu0 0.0
  %2924 = vmatpush1.msra.mxu0 %v304
  %2925 = vmatprep.subr.mxu0 0.0
  %2926 = vmatpush1.msra.mxu0 %v305
  %2927 = vmatprep.subr.mxu0 0.0
  %2928 = vmatpush1.msra.mxu0 %v306
  %2929 = vmatprep.subr.mxu0 0.0
  %2930 = vmatpush1.msra.mxu0 %v307
  %2931 = vmatprep.subr.mxu0 0.0
  %2932 = vmatpush1.msra.mxu0 %v308
  %2933 = vmatprep.subr.mxu0 0.0
  %2934 = vmatpush1.msra.mxu0 %v309
  %2935 = vmatprep.subr.mxu0 0.0
  %2936 = vmatpush1.msra.mxu0 %v310
  %2937 = vmatprep.mubr.f32.mxu0 %v1915
  %2938 = vmatmul.mubr.f32.gmra.mrb[0].mxu0 %v1914
  %v2939 = vpop.f32.mrb[0].mxu0
  %v2940 = vadd.f32 %v2840, %v2939
  %v2941 = vpop.f32.mrb[0].mxu0
  %2942 = vmatprep.mubr.f32.mxu0 %v1940
  %2943 = vmatmul.mubr.f32.gmra.mrb[0].mxu0 %v1939
  %v2944 = vpop.f32.mrb[0].mxu0
  %v2945 = vadd.f32 %v2845, %v2944
  %v2946 = vpop.f32.mrb[0].mxu0
  %2947 = vmatprep.mubr.f32.mxu0 %v1965
  %2948 = vmatmul.mubr.f32.gmra.mrb[0].mxu0 %v1964
  %v2949 = vpop.f32.mrb[0].mxu0
  %v2950 = vadd.f32 %v2850, %v2949
  %v2951 = vpop.f32.mrb[0].mxu0
  %2952 = vmatprep.mubr.f32.mxu0 %v1990
  %2953 = vmatmul.mubr.f32.gmra.mrb[0].mxu0 %v1989
  %v2954 = vpop.f32.mrb[0].mxu0
  %v2955 = vadd.f32 %v2855, %v2954
  %v2956 = vpop.f32.mrb[0].mxu0
  %2957 = vmatprep.mubr.f32.mxu0 %v2015
  %2958 = vmatmul.mubr.f32.gmra.mrb[0].mxu0 %v2014
  %v2959 = vpop.f32.mrb[0].mxu0
  %v2960 = vadd.f32 %v2860, %v2959
  %v2961 = vpop.f32.mrb[0].mxu0
  %2962 = vmatprep.mubr.f32.mxu0 %v2040
  %2963 = vmatmul.mubr.f32.gmra.mrb[0].mxu0 %v2039
  %v2964 = vpop.f32.mrb[0].mxu0
  %v2965 = vadd.f32 %v2865, %v2964
  %v2966 = vpop.f32.mrb[0].mxu0
  %2967 = vmatprep.mubr.f32.mxu0 %v2065
  %2968 = vmatmul.mubr.f32.gmra.mrb[0].mxu0 %v2064
  %v2969 = vpop.f32.mrb[0].mxu0
  %v2970 = vadd.f32 %v2870, %v2969
  %v2971 = vpop.f32.mrb[0].mxu0
  %2972 = vdwg.mxu0
  %2973 = vmatprep.subr.mxu0 0.0
  %2974 = vmatpush1.msra.mxu0 %v311
  %2975 = vmatprep.subr.mxu0 0.0
  %2976 = vmatpush1.msra.mxu0 %v312
  %2977 = vmatprep.subr.mxu0 0.0
  %2978 = vmatpush1.msra.mxu0 %v313
  %2979 = vmatprep.subr.mxu0 0.0
  %2980 = vmatpush1.msra.mxu0 %v314
  %2981 = vmatprep.subr.mxu0 0.0
  %2982 = vmatpush1.msra.mxu0 %v315
  %2983 = vmatprep.subr.mxu0 0.0
  %2984 = vmatpush1.msra.mxu0 %v316
  %2985 = vmatprep.subr.mxu0 0.0
  %2986 = vmatpush1.msra.mxu0 %v317
  %2987 = vmatprep.subr.mxu0 0.0
  %2988 = vmatpush1.msra.mxu0 %v318
  %2989 = vmatprep.subr.mxu0 0.0
  %2990 = vmatpush1.msra.mxu0 %v319
  %2991 = vmatprep.subr.mxu0 0.0
  %2992 = vmatpush1.msra.mxu0 %v320
  %2993 = vmatprep.subr.mxu0 0.0
  %2994 = vmatpush1.msra.mxu0 %v321
  %2995 = vmatprep.subr.mxu0 0.0
  %2996 = vmatpush1.msra.mxu0 %v322
  %2997 = vmatprep.subr.mxu0 0.0
  %2998 = vmatpush1.msra.mxu0 %v323
  %2999 = vmatprep.subr.mxu0 0.0
  %3000 = vmatpush1.msra.mxu0 %v324
  %3001 = vmatprep.subr.mxu0 0.0
  %3002 = vmatpush1.msra.mxu0 %v325
  %3003 = vmatprep.subr.mxu0 0.0
  %3004 = vmatpush1.msra.mxu0 %v326
  %3005 = vmatprep.subr.mxu0 0.0
  %3006 = vmatpush1.msra.mxu0 %v327
  %3007 = vmatprep.subr.mxu0 0.0
  %3008 = vmatpush1.msra.mxu0 %v328
  %3009 = vmatprep.subr.mxu0 0.0
  %3010 = vmatpush1.msra.mxu0 %v329
  %3011 = vmatprep.subr.mxu0 0.0
  %3012 = vmatpush1.msra.mxu0 %v330
  %3013 = vmatprep.subr.mxu0 0.0
  %3014 = vmatpush1.msra.mxu0 %v331
  %3015 = vmatprep.subr.mxu0 0.0
  %3016 = vmatpush1.msra.mxu0 %v332
  %3017 = vmatprep.subr.mxu0 0.0
  %3018 = vmatpush1.msra.mxu0 %v333
  %3019 = vmatprep.subr.mxu0 0.0
  %3020 = vmatpush1.msra.mxu0 %v334
  %3021 = vmatprep.subr.mxu0 0.0
  %3022 = vmatpush1.msra.mxu0 %v335
  %3023 = vmatprep.subr.mxu0 0.0
  %3024 = vmatpush1.msra.mxu0 %v336
  %3025 = vmatprep.subr.mxu0 0.0
  %3026 = vmatpush1.msra.mxu0 %v337
  %3027 = vmatprep.subr.mxu0 0.0
  %3028 = vmatpush1.msra.mxu0 %v338
  %3029 = vmatprep.subr.mxu0 0.0
  %3030 = vmatpush1.msra.mxu0 %v339
  %3031 = vmatprep.subr.mxu0 0.0
  %3032 = vmatpush1.msra.mxu0 %v340
  %3033 = vmatprep.subr.mxu0 0.0
  %3034 = vmatpush1.msra.mxu0 %v341
  %3035 = vmatprep.subr.mxu0 0.0
  %3036 = vmatpush1.msra.mxu0 %v342
  %3037 = vmatprep.mubr.f32.mxu0 %v1917
  %3038 = vmatmul.mubr.f32.gmra.mrb[0].mxu0 %v1916
  %v3039 = vpop.f32.mrb[0].mxu0
  %v3040 = vadd.f32 %v2940, %v3039
  %v3041 = vpop.f32.mrb[0].mxu0
  %3042 = vmatprep.mubr.f32.mxu0 %v1942
  %3043 = vmatmul.mubr.f32.gmra.mrb[0].mxu0 %v1941
  %v3044 = vpop.f32.mrb[0].mxu0
  %v3045 = vadd.f32 %v2945, %v3044
  %v3046 = vpop.f32.mrb[0].mxu0
  %3047 = vmatprep.mubr.f32.mxu0 %v1967
  %3048 = vmatmul.mubr.f32.gmra.mrb[0].mxu0 %v1966
  %v3049 = vpop.f32.mrb[0].mxu0
  %v3050 = vadd.f32 %v2950, %v3049
  %v3051 = vpop.f32.mrb[0].mxu0
  %3052 = vmatprep.mubr.f32.mxu0 %v1992
  %3053 = vmatmul.mubr.f32.gmra.mrb[0].mxu0 %v1991
  %v3054 = vpop.f32.mrb[0].mxu0
  %v3055 = vadd.f32 %v2955, %v3054
  %v3056 = vpop.f32.mrb[0].mxu0
  %3057 = vmatprep.mubr.f32.mxu0 %v2017
  %3058 = vmatmul.mubr.f32.gmra.mrb[0].mxu0 %v2016
  %v3059 = vpop.f32.mrb[0].mxu0
  %v3060 = vadd.f32 %v2960, %v3059
  %v3061 = vpop.f32.mrb[0].mxu0
  %3062 = vmatprep.mubr.f32.mxu0 %v2042
  %3063 = vmatmul.mubr.f32.gmra.mrb[0].mxu0 %v2041
  %v3064 = vpop.f32.mrb[0].mxu0
  %v3065 = vadd.f32 %v2965, %v3064
  %v3066 = vpop.f32.mrb[0].mxu0
  %3067 = vmatprep.mubr.f32.mxu0 %v2067
  %3068 = vmatmul.mubr.f32.gmra.mrb[0].mxu0 %v2066
  %v3069 = vpop.f32.mrb[0].mxu0
  %v3070 = vadd.f32 %v2970, %v3069
  %v3071 = vpop.f32.mrb[0].mxu0
  %3072 = vdwg.mxu0
  %3073 = vmatprep.subr.mxu0 0.0
  %3074 = vmatpush1.msra.mxu0 %v343
  %3075 = vmatprep.subr.mxu0 0.0
  %3076 = vmatpush1.msra.mxu0 %v344
  %3077 = vmatprep.subr.mxu0 0.0
  %3078 = vmatpush1.msra.mxu0 %v345
  %3079 = vmatprep.subr.mxu0 0.0
  %3080 = vmatpush1.msra.mxu0 %v346
  %3081 = vmatprep.subr.mxu0 0.0
  %3082 = vmatpush1.msra.mxu0 %v347
  %3083 = vmatprep.subr.mxu0 0.0
  %3084 = vmatpush1.msra.mxu0 %v348
  %3085 = vmatprep.subr.mxu0 0.0
  %3086 = vmatpush1.msra.mxu0 %v349
  %3087 = vmatprep.subr.mxu0 0.0
  %3088 = vmatpush1.msra.mxu0 %v350
  %3089 = vmatprep.subr.mxu0 0.0
  %3090 = vmatpush1.msra.mxu0 %v351
  %3091 = vmatprep.subr.mxu0 0.0
  %3092 = vmatpush1.msra.mxu0 %v352
  %3093 = vmatprep.subr.mxu0 0.0
  %3094 = vmatpush1.msra.mxu0 %v353
  %3095 = vmatprep.subr.mxu0 0.0
  %3096 = vmatpush1.msra.mxu0 %v354
  %3097 = vmatprep.subr.mxu0 0.0
  %3098 = vmatpush1.msra.mxu0 %v355
  %3099 = vmatprep.subr.mxu0 0.0
  %3100 = vmatpush1.msra.mxu0 %v356
  %3101 = vmatprep.subr.mxu0 0.0
  %3102 = vmatpush1.msra.mxu0 %v357
  %3103 = vmatprep.subr.mxu0 0.0
  %3104 = vmatpush1.msra.mxu0 %v358
  %3105 = vmatprep.subr.mxu0 0.0
  %3106 = vmatpush1.msra.mxu0 %v359
  %3107 = vmatprep.subr.mxu0 0.0
  %3108 = vmatpush1.msra.mxu0 %v360
  %3109 = vmatprep.subr.mxu0 0.0
  %3110 = vmatpush1.msra.mxu0 %v361
  %3111 = vmatprep.subr.mxu0 0.0
  %3112 = vmatpush1.msra.mxu0 %v362
  %3113 = vmatprep.subr.mxu0 0.0
  %3114 = vmatpush1.msra.mxu0 %v363
  %3115 = vmatprep.subr.mxu0 0.0
  %3116 = vmatpush1.msra.mxu0 %v364
  %3117 = vmatprep.subr.mxu0 0.0
  %3118 = vmatpush1.msra.mxu0 %v365
  %3119 = vmatprep.subr.mxu0 0.0
  %3120 = vmatpush1.msra.mxu0 %v366
  %3121 = vmatprep.subr.mxu0 0.0
  %3122 = vmatpush1.msra.mxu0 %v367
  %3123 = vmatprep.subr.mxu0 0.0
  %3124 = vmatpush1.msra.mxu0 %v368
  %3125 = vmatprep.subr.mxu0 0.0
  %3126 = vmatpush1.msra.mxu0 %v369
  %3127 = vmatprep.subr.mxu0 0.0
  %3128 = vmatpush1.msra.mxu0 %v370
  %3129 = vmatprep.subr.mxu0 0.0
  %3130 = vmatpush1.msra.mxu0 %v371
  %3131 = vmatprep.subr.mxu0 0.0
  %3132 = vmatpush1.msra.mxu0 %v372
  %3133 = vmatprep.subr.mxu0 0.0
  %3134 = vmatpush1.msra.mxu0 %v373
  %3135 = vmatprep.subr.mxu0 0.0
  %3136 = vmatpush1.msra.mxu0 %v374
  %3137 = vmatprep.mubr.f32.mxu0 %v1919
  %3138 = vmatmul.mubr.f32.gmra.mrb[0].mxu0 %v1918
  %v3139 = vpop.f32.mrb[0].mxu0
  %v3140 = vadd.f32 %v3040, %v3139
  %v3141 = vpop.f32.mrb[0].mxu0
  %3142 = vmatprep.mubr.f32.mxu0 %v1944
  %3143 = vmatmul.mubr.f32.gmra.mrb[0].mxu0 %v1943
  %v3144 = vpop.f32.mrb[0].mxu0
  %v3145 = vadd.f32 %v3045, %v3144
  %v3146 = vpop.f32.mrb[0].mxu0
  %3147 = vmatprep.mubr.f32.mxu0 %v1969
  %3148 = vmatmul.mubr.f32.gmra.mrb[0].mxu0 %v1968
  %v3149 = vpop.f32.mrb[0].mxu0
  %v3150 = vadd.f32 %v3050, %v3149
  %v3151 = vpop.f32.mrb[0].mxu0
  %3152 = vmatprep.mubr.f32.mxu0 %v1994
  %3153 = vmatmul.mubr.f32.gmra.mrb[0].mxu0 %v1993
  %v3154 = vpop.f32.mrb[0].mxu0
  %v3155 = vadd.f32 %v3055, %v3154
  %v3156 = vpop.f32.mrb[0].mxu0
  %3157 = vmatprep.mubr.f32.mxu0 %v2019
  %3158 = vmatmul.mubr.f32.gmra.mrb[0].mxu0 %v2018
  %v3159 = vpop.f32.mrb[0].mxu0
  %v3160 = vadd.f32 %v3060, %v3159
  %v3161 = vpop.f32.mrb[0].mxu0
  %3162 = vmatprep.mubr.f32.mxu0 %v2044
  %3163 = vmatmul.mubr.f32.gmra.mrb[0].mxu0 %v2043
  %v3164 = vpop.f32.mrb[0].mxu0
  %v3165 = vadd.f32 %v3065, %v3164
  %v3166 = vpop.f32.mrb[0].mxu0
  %3167 = vmatprep.mubr.f32.mxu0 %v2069
  %3168 = vmatmul.mubr.f32.gmra.mrb[0].mxu0 %v2068
  %v3169 = vpop.f32.mrb[0].mxu0
  %v3170 = vadd.f32 %v3070, %v3169
  %v3171 = vpop.f32.mrb[0].mxu0
  %3172 = vdwg.mxu0
  %3173 = vmatprep.subr.mxu0 0.0
  %3174 = vmatpush1.msra.mxu0 %v375
  %3175 = vmatprep.subr.mxu0 0.0
  %3176 = vmatpush1.msra.mxu0 %v376
  %3177 = vmatprep.subr.mxu0 0.0
  %3178 = vmatpush1.msra.mxu0 %v377
  %3179 = vmatprep.subr.mxu0 0.0
  %3180 = vmatpush1.msra.mxu0 %v378
  %3181 = vmatprep.subr.mxu0 0.0
  %3182 = vmatpush1.msra.mxu0 %v379
  %3183 = vmatprep.subr.mxu0 0.0
  %3184 = vmatpush1.msra.mxu0 %v380
  %3185 = vmatprep.subr.mxu0 0.0
  %3186 = vmatpush1.msra.mxu0 %v381
  %3187 = vmatprep.subr.mxu0 0.0
  %3188 = vmatpush1.msra.mxu0 %v382
  %3189 = vmatprep.subr.mxu0 0.0
  %3190 = vmatpush1.msra.mxu0 %v383
  %3191 = vmatprep.subr.mxu0 0.0
  %3192 = vmatpush1.msra.mxu0 %v384
  %3193 = vmatprep.subr.mxu0 0.0
  %3194 = vmatpush1.msra.mxu0 %v385
  %3195 = vmatprep.subr.mxu0 0.0
  %3196 = vmatpush1.msra.mxu0 %v386
  %3197 = vmatprep.subr.mxu0 0.0
  %3198 = vmatpush1.msra.mxu0 %v387
  %3199 = vmatprep.subr.mxu0 0.0
  %3200 = vmatpush1.msra.mxu0 %v388
  %3201 = vmatprep.subr.mxu0 0.0
  %3202 = vmatpush1.msra.mxu0 %v389
  %3203 = vmatprep.subr.mxu0 0.0
  %3204 = vmatpush1.msra.mxu0 %v390
  %3205 = vmatprep.subr.mxu0 0.0
  %3206 = vmatpush1.msra.mxu0 %v391
  %3207 = vmatprep.subr.mxu0 0.0
  %3208 = vmatpush1.msra.mxu0 %v392
  %3209 = vmatprep.subr.mxu0 0.0
  %3210 = vmatpush1.msra.mxu0 %v393
  %3211 = vmatprep.subr.mxu0 0.0
  %3212 = vmatpush1.msra.mxu0 %v394
  %3213 = vmatprep.subr.mxu0 0.0
  %3214 = vmatpush1.msra.mxu0 %v395
  %3215 = vmatprep.subr.mxu0 0.0
  %3216 = vmatpush1.msra.mxu0 %v396
  %3217 = vmatprep.subr.mxu0 0.0
  %3218 = vmatpush1.msra.mxu0 %v397
  %3219 = vmatprep.subr.mxu0 0.0
  %3220 = vmatpush1.msra.mxu0 %v398
  %3221 = vmatprep.subr.mxu0 0.0
  %3222 = vmatpush1.msra.mxu0 %v399
  %3223 = vmatprep.subr.mxu0 0.0
  %3224 = vmatpush1.msra.mxu0 %v400
  %3225 = vmatprep.subr.mxu0 0.0
  %3226 = vmatpush1.msra.mxu0 %v401
  %3227 = vmatprep.subr.mxu0 0.0
  %3228 = vmatpush1.msra.mxu0 %v402
  %3229 = vmatprep.subr.mxu0 0.0
  %3230 = vmatpush1.msra.mxu0 %v403
  %3231 = vmatprep.subr.mxu0 0.0
  %3232 = vmatpush1.msra.mxu0 %v404
  %3233 = vmatprep.subr.mxu0 0.0
  %3234 = vmatpush1.msra.mxu0 %v405
  %3235 = vmatprep.subr.mxu0 0.0
  %3236 = vmatpush1.msra.mxu0 %v406
  %3237 = vmatprep.mubr.f32.mxu0 %v1921
  %3238 = vmatmul.mubr.f32.gmra.mrb[0].mxu0 %v1920
  %v3239 = vpop.f32.mrb[0].mxu0
  %v3240 = vadd.f32 %v3140, %v3239
  %v3241 = vpop.f32.mrb[0].mxu0
  %3242 = vmatprep.mubr.f32.mxu0 %v1946
  %3243 = vmatmul.mubr.f32.gmra.mrb[0].mxu0 %v1945
  %v3244 = vpop.f32.mrb[0].mxu0
  %v3245 = vadd.f32 %v3145, %v3244
  %v3246 = vpop.f32.mrb[0].mxu0
  %3247 = vmatprep.mubr.f32.mxu0 %v1971
  %3248 = vmatmul.mubr.f32.gmra.mrb[0].mxu0 %v1970
  %v3249 = vpop.f32.mrb[0].mxu0
  %v3250 = vadd.f32 %v3150, %v3249
  %v3251 = vpop.f32.mrb[0].mxu0
  %3252 = vmatprep.mubr.f32.mxu0 %v1996
  %3253 = vmatmul.mubr.f32.gmra.mrb[0].mxu0 %v1995
  %v3254 = vpop.f32.mrb[0].mxu0
  %v3255 = vadd.f32 %v3155, %v3254
  %v3256 = vpop.f32.mrb[0].mxu0
  %3257 = vmatprep.mubr.f32.mxu0 %v2021
  %3258 = vmatmul.mubr.f32.gmra.mrb[0].mxu0 %v2020
  %v3259 = vpop.f32.mrb[0].mxu0
  %v3260 = vadd.f32 %v3160, %v3259
  %v3261 = vpop.f32.mrb[0].mxu0
  %3262 = vmatprep.mubr.f32.mxu0 %v2046
  %3263 = vmatmul.mubr.f32.gmra.mrb[0].mxu0 %v2045
  %v3264 = vpop.f32.mrb[0].mxu0
  %v3265 = vadd.f32 %v3165, %v3264
  %v3266 = vpop.f32.mrb[0].mxu0
  %3267 = vmatprep.mubr.f32.mxu0 %v2071
  %3268 = vmatmul.mubr.f32.gmra.mrb[0].mxu0 %v2070
  %v3269 = vpop.f32.mrb[0].mxu0
  %v3270 = vadd.f32 %v3170, %v3269
  %v3271 = vpop.f32.mrb[0].mxu0
  %3272 = vdwg.mxu0
  %3273 = vmatprep.subr.mxu0 0.0
  %3274 = vmatpush1.msra.mxu0 %v407
  %3275 = vmatprep.subr.mxu0 0.0
  %3276 = vmatpush1.msra.mxu0 %v408
  %3277 = vmatprep.subr.mxu0 0.0
  %3278 = vmatpush1.msra.mxu0 %v409
  %3279 = vmatprep.subr.mxu0 0.0
  %3280 = vmatpush1.msra.mxu0 %v410
  %3281 = vmatprep.subr.mxu0 0.0
  %3282 = vmatpush1.msra.mxu0 %v411
  %3283 = vmatprep.subr.mxu0 0.0
  %3284 = vmatpush1.msra.mxu0 %v412
  %3285 = vmatprep.subr.mxu0 0.0
  %3286 = vmatpush1.msra.mxu0 %v413
  %3287 = vmatprep.subr.mxu0 0.0
  %3288 = vmatpush1.msra.mxu0 %v414
  %3289 = vmatprep.subr.mxu0 0.0
  %3290 = vmatpush1.msra.mxu0 %v415
  %3291 = vmatprep.subr.mxu0 0.0
  %3292 = vmatpush1.msra.mxu0 %v416
  %3293 = vmatprep.subr.mxu0 0.0
  %3294 = vmatpush1.msra.mxu0 %v417
  %3295 = vmatprep.subr.mxu0 0.0
  %3296 = vmatpush1.msra.mxu0 %v418
  %3297 = vmatprep.subr.mxu0 0.0
  %3298 = vmatpush1.msra.mxu0 %v419
  %3299 = vmatprep.subr.mxu0 0.0
  %3300 = vmatpush1.msra.mxu0 %v420
  %3301 = vmatprep.subr.mxu0 0.0
  %3302 = vmatpush1.msra.mxu0 %v421
  %3303 = vmatprep.subr.mxu0 0.0
  %3304 = vmatpush1.msra.mxu0 %v422
  %3305 = vmatprep.subr.mxu0 0.0
  %3306 = vmatpush1.msra.mxu0 0.0
  %3307 = vmatprep.subr.mxu0 0.0
  %3308 = vmatpush1.msra.mxu0 0.0
  %3309 = vmatprep.subr.mxu0 0.0
  %3310 = vmatpush1.msra.mxu0 0.0
  %3311 = vmatprep.subr.mxu0 0.0
  %3312 = vmatpush1.msra.mxu0 0.0
  %3313 = vmatprep.subr.mxu0 0.0
  %3314 = vmatpush1.msra.mxu0 0.0
  %3315 = vmatprep.subr.mxu0 0.0
  %3316 = vmatpush1.msra.mxu0 0.0
  %3317 = vmatprep.subr.mxu0 0.0
  %3318 = vmatpush1.msra.mxu0 0.0
  %3319 = vmatprep.subr.mxu0 0.0
  %3320 = vmatpush1.msra.mxu0 0.0
  %3321 = vmatprep.subr.mxu0 0.0
  %3322 = vmatpush1.msra.mxu0 0.0
  %3323 = vmatprep.subr.mxu0 0.0
  %3324 = vmatpush1.msra.mxu0 0.0
  %3325 = vmatprep.subr.mxu0 0.0
  %3326 = vmatpush1.msra.mxu0 0.0
  %3327 = vmatprep.subr.mxu0 0.0
  %3328 = vmatpush1.msra.mxu0 0.0
  %3329 = vmatprep.subr.mxu0 0.0
  %3330 = vmatpush1.msra.mxu0 0.0
  %3331 = vmatprep.subr.mxu0 0.0
  %3332 = vmatpush1.msra.mxu0 0.0
  %3333 = vmatprep.subr.mxu0 0.0
  %3334 = vmatpush1.msra.mxu0 0.0
  %3335 = vmatprep.subr.mxu0 0.0
  %3336 = vmatpush1.msra.mxu0 0.0
  %3337 = vmatprep.mubr.f32.mxu0 0.0
  %3338 = vmatmul.mubr.f32.gmra.mrb[0].mxu0 %v1922
  %v3339 = vpop.f32.mrb[0].mxu0
  %v3340 = vadd.f32 %v3240, %v3339
  %v3341 = vpop.f32.mrb[0].mxu0
  %3342 = vmatprep.mubr.f32.mxu0 0.0
  %3343 = vmatmul.mubr.f32.gmra.mrb[0].mxu0 %v1947
  %v3344 = vpop.f32.mrb[0].mxu0
  %v3345 = vadd.f32 %v3245, %v3344
  %v3346 = vpop.f32.mrb[0].mxu0
  %3347 = vmatprep.mubr.f32.mxu0 0.0
  %3348 = vmatmul.mubr.f32.gmra.mrb[0].mxu0 %v1972
  %v3349 = vpop.f32.mrb[0].mxu0
  %v3350 = vadd.f32 %v3250, %v3349
  %v3351 = vpop.f32.mrb[0].mxu0
  %3352 = vmatprep.mubr.f32.mxu0 0.0
  %3353 = vmatmul.mubr.f32.gmra.mrb[0].mxu0 %v1997
  %v3354 = vpop.f32.mrb[0].mxu0
  %v3355 = vadd.f32 %v3255, %v3354
  %v3356 = vpop.f32.mrb[0].mxu0
  %3357 = vmatprep.mubr.f32.mxu0 0.0
  %3358 = vmatmul.mubr.f32.gmra.mrb[0].mxu0 %v2022
  %v3359 = vpop.f32.mrb[0].mxu0
  %v3360 = vadd.f32 %v3260, %v3359
  %v3361 = vpop.f32.mrb[0].mxu0
  %3362 = vmatprep.mubr.f32.mxu0 0.0
  %3363 = vmatmul.mubr.f32.gmra.mrb[0].mxu0 %v2047
  %v3364 = vpop.f32.mrb[0].mxu0
  %v3365 = vadd.f32 %v3265, %v3364
  %v3366 = vpop.f32.mrb[0].mxu0
  %3367 = vmatprep.mubr.f32.mxu0 0.0
  %3368 = vmatmul.mubr.f32.gmra.mrb[0].mxu0 %v2072
  %v3369 = vpop.f32.mrb[0].mxu0
  %v3370 = vadd.f32 %v3270, %v3369
  %v3371 = vpop.f32.mrb[0].mxu0
  %3372 = vdwg.mxu0
  %v3373 = vmax.f32 %v1865, %v3340
  %v3374 = vmax.f32 %v1870, %v3345
  %v3375 = vmax.f32 %v1875, %v3350
  %v3376 = vmax.f32 %v1880, %v3355
  %v3377 = vmax.f32 %v1885, %v3360
  %v3378 = vmax.f32 %v1890, %v3365
  %v3379 = vmax.f32 %v1895, %v3370
  %v3380 = vld [vmem:[%s2] sm:$0xff]
  %v3381 = vld [vmem:[%s2 + $0x8] sm:$0xff]
  %v3382 = vld [vmem:[%s2 + $0x10] sm:$0xff]
  %v3383 = vld [vmem:[%s2 + $0x18] sm:$0xff]
  %v3384 = vld [vmem:[%s2 + $0x20] sm:$0xff]
  %v3385 = vld [vmem:[%s2 + $0x28] sm:$0xff]
  %v3386 = vld [vmem:[%s2 + $0x30] sm:$0xff]
  %v3387 = vld [vmem:[%s2 + $0x38] sm:$0xff]
  %v3388 = vld [vmem:[%s2 + $0x40] sm:$0xff]
  %v3389 = vld [vmem:[%s2 + $0x48] sm:$0xff]
  %v3390 = vld [vmem:[%s2 + $0x50] sm:$0xff]
  %v3391 = vld [vmem:[%s2 + $0x58] sm:$0xff]
  %v3392 = vld [vmem:[%s2 + $0x60] sm:$0xff]
  %v3393 = vld [vmem:[%s2 + $0x68] sm:$0xff]
  %v3394 = vld [vmem:[%s2 + $0x70] sm:$0xff]
  %v3395 = vld [vmem:[%s2 + $0x78] sm:$0xff]
  %v3396 = vld [vmem:[%s2 + $0x80] sm:$0xff]
  %v3397 = vld [vmem:[%s2 + $0x88] sm:$0xff]
  %v3398 = vld [vmem:[%s2 + $0x90] sm:$0xff]
  %v3399 = vld [vmem:[%s2 + $0x98] sm:$0xff]
  %v3400 = vld [vmem:[%s2 + $0xa0] sm:$0xff]
  %v3401 = vld [vmem:[%s2 + $0xa8] sm:$0xff]
  %v3402 = vld [vmem:[%s2 + $0xb0] sm:$0xff]
  %v3403 = vld [vmem:[%s2 + $0xb8] sm:$0xff]
  %v3404 = vld [vmem:[%s2 + $0xc0] sm:$0xff]
  %v3405 = vld [vmem:[%s2 + $0xc8] sm:$0xff]
  %v3406 = vld [vmem:[%s2 + $0xd0] sm:$0xff]
  %v3407 = vld [vmem:[%s2 + $0xd8] sm:$0xff]
  %v3408 = vld [vmem:[%s2 + $0xe0] sm:$0xff]
  %v3409 = vld [vmem:[%s2 + $0xe8] sm:$0xff]
  %v3410 = vld [vmem:[%s2 + $0xf0] sm:$0xff]
  %v3411 = vld [vmem:[%s2 + $0xf8] sm:$0xff]
  %v3412 = vld [vmem:[%s2 + $0x100] sm:$0xff]
  %v3413 = vld [vmem:[%s2 + $0x108] sm:$0xff]
  %v3414 = vld [vmem:[%s2 + $0x110] sm:$0xff]
  %v3415 = vld [vmem:[%s2 + $0x118] sm:$0xff]
  %v3416 = vld [vmem:[%s2 + $0x120] sm:$0xff]
  %v3417 = vld [vmem:[%s2 + $0x128] sm:$0xff]
  %v3418 = vld [vmem:[%s2 + $0x130] sm:$0xff]
  %v3419 = vld [vmem:[%s2 + $0x138] sm:$0xff]
  %v3420 = vld [vmem:[%s2 + $0x140] sm:$0xff]
  %v3421 = vld [vmem:[%s2 + $0x148] sm:$0xff]
  %v3422 = vld [vmem:[%s2 + $0x150] sm:$0xff]
  %v3423 = vld [vmem:[%s2 + $0x158] sm:$0xff]
  %v3424 = vld [vmem:[%s2 + $0x160] sm:$0xff]
  %v3425 = vld [vmem:[%s2 + $0x168] sm:$0xff]
  %v3426 = vld [vmem:[%s2 + $0x170] sm:$0xff]
  %v3427 = vld [vmem:[%s2 + $0x178] sm:$0xff]
  %v3428 = vld [vmem:[%s2 + $0x180] sm:$0xff]
  %v3429 = vld [vmem:[%s2 + $0x188] sm:$0xff]
  %v3430 = vld [vmem:[%s2 + $0x190] sm:$0xff]
  %v3431 = vld [vmem:[%s2 + $0x198] sm:$0xff]
  %v3432 = vld [vmem:[%s2 + $0x1a0] sm:$0xff]
  %v3433 = vld [vmem:[%s2 + $0x1a8] sm:$0xff]
  %v3434 = vld [vmem:[%s2 + $0x1b0] sm:$0xff]
  %v3435 = vld [vmem:[%s2 + $0x1b8] sm:$0xff]
  %v3436 = vld [vmem:[%s2 + $0x1c0] sm:$0xff]
  %v3437 = vld [vmem:[%s2 + $0x1c8] sm:$0xff]
  %v3438 = vld [vmem:[%s2 + $0x1d0] sm:$0xff]
  %v3439 = vld [vmem:[%s2 + $0x1d8] sm:$0xff]
  %v3440 = vld [vmem:[%s2 + $0x1e0] sm:$0xff]
  %v3441 = vld [vmem:[%s2 + $0x1e8] sm:$0xff]
  %v3442 = vld [vmem:[%s2 + $0x1f0] sm:$0xff]
  %v3443 = vld [vmem:[%s2 + $0x1f8] sm:$0xff]
  %v3444 = vld [vmem:[%s2 + $0x200] sm:$0xff]
  %v3445 = vld [vmem:[%s2 + $0x208] sm:$0xff]
  %v3446 = vld [vmem:[%s2 + $0x210] sm:$0xff]
  %v3447 = vld [vmem:[%s2 + $0x218] sm:$0xff]
  %v3448 = vld [vmem:[%s2 + $0x220] sm:$0xff]
  %v3449 = vld [vmem:[%s2 + $0x228] sm:$0xff]
  %v3450 = vld [vmem:[%s2 + $0x230] sm:$0xff]
  %v3451 = vld [vmem:[%s2 + $0x238] sm:$0xff]
  %v3452 = vld [vmem:[%s2 + $0x240] sm:$0xff]
  %v3453 = vld [vmem:[%s2 + $0x248] sm:$0xff]
  %v3454 = vld [vmem:[%s2 + $0x250] sm:$0xff]
  %v3455 = vld [vmem:[%s2 + $0x258] sm:$0xff]
  %v3456 = vld [vmem:[%s2 + $0x260] sm:$0xff]
  %v3457 = vld [vmem:[%s2 + $0x268] sm:$0xff]
  %v3458 = vld [vmem:[%s2 + $0x270] sm:$0xff]
  %v3459 = vld [vmem:[%s2 + $0x278] sm:$0xff]
  %v3460 = vld [vmem:[%s2 + $0x280] sm:$0xff]
  %v3461 = vld [vmem:[%s2 + $0x288] sm:$0xff]
  %v3462 = vld [vmem:[%s2 + $0x290] sm:$0xff]
  %v3463 = vld [vmem:[%s2 + $0x298] sm:$0xff]
  %v3464 = vld [vmem:[%s2 + $0x2a0] sm:$0xff]
  %v3465 = vld [vmem:[%s2 + $0x2a8] sm:$0xff]
  %v3466 = vld [vmem:[%s2 + $0x2b0] sm:$0xff]
  %v3467 = vld [vmem:[%s2 + $0x2b8] sm:$0xff]
  %v3468 = vld [vmem:[%s2 + $0x2c0] sm:$0xff]
  %v3469 = vld [vmem:[%s2 + $0x2c8] sm:$0xff]
  %v3470 = vld [vmem:[%s2 + $0x2d0] sm:$0xff]
  %v3471 = vld [vmem:[%s2 + $0x2d8] sm:$0xff]
  %v3472 = vld [vmem:[%s2 + $0x2e0] sm:$0xff]
  %v3473 = vld [vmem:[%s2 + $0x2e8] sm:$0xff]
  %v3474 = vld [vmem:[%s2 + $0x2f0] sm:$0xff]
  %v3475 = vld [vmem:[%s2 + $0x2f8] sm:$0xff]
  %v3476 = vld [vmem:[%s2 + $0x300] sm:$0xff]
  %v3477 = vld [vmem:[%s2 + $0x308] sm:$0xff]
  %v3478 = vld [vmem:[%s2 + $0x310] sm:$0xff]
  %v3479 = vld [vmem:[%s2 + $0x318] sm:$0xff]
  %v3480 = vld [vmem:[%s2 + $0x320] sm:$0xff]
  %v3481 = vld [vmem:[%s2 + $0x328] sm:$0xff]
  %v3482 = vld [vmem:[%s2 + $0x330] sm:$0xff]
  %v3483 = vld [vmem:[%s2 + $0x338] sm:$0xff]
  %v3484 = vld [vmem:[%s2 + $0x340] sm:$0xff]
  %v3485 = vld [vmem:[%s2 + $0x348] sm:$0xff]
  %v3486 = vld [vmem:[%s2 + $0x350] sm:$0xff]
  %v3487 = vld [vmem:[%s2 + $0x358] sm:$0xff]
  %v3488 = vld [vmem:[%s2 + $0x360] sm:$0xff]
  %v3489 = vld [vmem:[%s2 + $0x368] sm:$0xff]
  %v3490 = vld [vmem:[%s2 + $0x370] sm:$0xff]
  %v3491 = vld [vmem:[%s2 + $0x378] sm:$0xff]
  %v3492 = vld [vmem:[%s2 + $0x380] sm:$0xff]
  %v3493 = vld [vmem:[%s2 + $0x388] sm:$0xff]
  %v3494 = vld [vmem:[%s2 + $0x390] sm:$0xff]
  %v3495 = vld [vmem:[%s2 + $0x398] sm:$0xff]
  %v3496 = vld [vmem:[%s2 + $0x3a0] sm:$0xff]
  %v3497 = vld [vmem:[%s2 + $0x3a8] sm:$0xff]
  %v3498 = vld [vmem:[%s2 + $0x3b0] sm:$0xff]
  %v3499 = vld [vmem:[%s2 + $0x3b8] sm:$0xff]
  %v3500 = vld [vmem:[%s2 + $0x3c0] sm:$0xff]
  %v3501 = vld [vmem:[%s2 + $0x3c8] sm:$0xff]
  %v3502 = vld [vmem:[%s2 + $0x3d0] sm:$0xff]
  %v3503 = vld [vmem:[%s2 + $0x3d8] sm:$0xff]
  %v3504 = vld [vmem:[%s2 + $0x3e0] sm:$0xff]
  %v3505 = vld [vmem:[%s2 + $0x3e8] sm:$0xff]
  %v3506 = vld [vmem:[%s2 + $0x3f0] sm:$0xff]
  %v3507 = vld [vmem:[%s2 + $0x3f8] sm:$0xff]
  %v3508 = vld [vmem:[%s2 + $0x400] sm:$0xff]
  %v3509 = vld [vmem:[%s2 + $0x408] sm:$0xff]
  %v3510 = vld [vmem:[%s2 + $0x410] sm:$0xff]
  %v3511 = vld [vmem:[%s2 + $0x418] sm:$0xff]
  %v3512 = vld [vmem:[%s2 + $0x420] sm:$0xff]
  %v3513 = vld [vmem:[%s2 + $0x428] sm:$0xff]
  %v3514 = vld [vmem:[%s2 + $0x430] sm:$0xff]
  %v3515 = vld [vmem:[%s2 + $0x438] sm:$0xff]
  %v3516 = vld [vmem:[%s2 + $0x440] sm:$0xff]
  %v3517 = vld [vmem:[%s2 + $0x448] sm:$0xff]
  %v3518 = vld [vmem:[%s2 + $0x450] sm:$0xff]
  %v3519 = vld [vmem:[%s2 + $0x458] sm:$0xff]
  %v3520 = vld [vmem:[%s2 + $0x460] sm:$0xff]
  %v3521 = vld [vmem:[%s2 + $0x468] sm:$0xff]
  %v3522 = vld [vmem:[%s2 + $0x470] sm:$0xff]
  %v3523 = vld [vmem:[%s2 + $0x478] sm:$0xff]
  %v3524 = vld [vmem:[%s2 + $0x480] sm:$0xff]
  %v3525 = vld [vmem:[%s2 + $0x488] sm:$0xff]
  %v3526 = vld [vmem:[%s2 + $0x490] sm:$0xff]
  %v3527 = vld [vmem:[%s2 + $0x498] sm:$0xff]
  %v3528 = vld [vmem:[%s2 + $0x4a0] sm:$0xff]
  %v3529 = vld [vmem:[%s2 + $0x4a8] sm:$0xff]
  %v3530 = vld [vmem:[%s2 + $0x4b0] sm:$0xff]
  %v3531 = vld [vmem:[%s2 + $0x4b8] sm:$0xff]
  %v3532 = vld [vmem:[%s2 + $0x4c0] sm:$0xff]
  %v3533 = vld [vmem:[%s2 + $0x4c8] sm:$0xff]
  %v3534 = vld [vmem:[%s2 + $0x4d0] sm:$0xff]
  %v3535 = vld [vmem:[%s2 + $0x4d8] sm:$0xff]
  %v3536 = vld [vmem:[%s2 + $0x4e0] sm:$0xff]
  %v3537 = vld [vmem:[%s2 + $0x4e8] sm:$0xff]
  %v3538 = vld [vmem:[%s2 + $0x4f0] sm:$0xff]
  %v3539 = vld [vmem:[%s2 + $0x4f8] sm:$0xff]
  %v3540 = vld [vmem:[%s2 + $0x500] sm:$0xff]
  %v3541 = vld [vmem:[%s2 + $0x508] sm:$0xff]
  %v3542 = vld [vmem:[%s2 + $0x510] sm:$0xff]
  %v3543 = vld [vmem:[%s2 + $0x518] sm:$0xff]
  %v3544 = vld [vmem:[%s2 + $0x520] sm:$0xff]
  %v3545 = vld [vmem:[%s2 + $0x528] sm:$0xff]
  %v3546 = vld [vmem:[%s2 + $0x530] sm:$0xff]
  %v3547 = vld [vmem:[%s2 + $0x538] sm:$0xff]
  %v3548 = vld [vmem:[%s2 + $0x540] sm:$0xff]
  %v3549 = vld [vmem:[%s2 + $0x548] sm:$0xff]
  %v3550 = vld [vmem:[%s2 + $0x550] sm:$0xff]
  %v3551 = vld [vmem:[%s2 + $0x558] sm:$0xff]
  %v3552 = vld [vmem:[%s2 + $0x560] sm:$0xff]
  %v3553 = vld [vmem:[%s2 + $0x568] sm:$0xff]
  %v3554 = vld [vmem:[%s2 + $0x570] sm:$0xff]
  %3555 = vmatprep.subr.mxu0 0.0
  %3556 = vmatpush1.msra.mxu0 %v23
  %3557 = vmatprep.subr.mxu0 0.0
  %3558 = vmatpush1.msra.mxu0 %v24
  %3559 = vmatprep.subr.mxu0 0.0
  %3560 = vmatpush1.msra.mxu0 %v25
  %3561 = vmatprep.subr.mxu0 0.0
  %3562 = vmatpush1.msra.mxu0 %v26
  %3563 = vmatprep.subr.mxu0 0.0
  %3564 = vmatpush1.msra.mxu0 %v27
  %3565 = vmatprep.subr.mxu0 0.0
  %3566 = vmatpush1.msra.mxu0 %v28
  %3567 = vmatprep.subr.mxu0 0.0
  %3568 = vmatpush1.msra.mxu0 %v29
  %3569 = vmatprep.subr.mxu0 0.0
  %3570 = vmatpush1.msra.mxu0 %v30
  %3571 = vmatprep.subr.mxu0 0.0
  %3572 = vmatpush1.msra.mxu0 %v31
  %3573 = vmatprep.subr.mxu0 0.0
  %3574 = vmatpush1.msra.mxu0 %v32
  %3575 = vmatprep.subr.mxu0 0.0
  %3576 = vmatpush1.msra.mxu0 %v33
  %3577 = vmatprep.subr.mxu0 0.0
  %3578 = vmatpush1.msra.mxu0 %v34
  %3579 = vmatprep.subr.mxu0 0.0
  %3580 = vmatpush1.msra.mxu0 %v35
  %3581 = vmatprep.subr.mxu0 0.0
  %3582 = vmatpush1.msra.mxu0 %v36
  %3583 = vmatprep.subr.mxu0 0.0
  %3584 = vmatpush1.msra.mxu0 %v37
  %3585 = vmatprep.subr.mxu0 0.0
  %3586 = vmatpush1.msra.mxu0 %v38
  %3587 = vmatprep.subr.mxu0 0.0
  %3588 = vmatpush1.msra.mxu0 %v39
  %3589 = vmatprep.subr.mxu0 0.0
  %3590 = vmatpush1.msra.mxu0 %v40
  %3591 = vmatprep.subr.mxu0 0.0
  %3592 = vmatpush1.msra.mxu0 %v41
  %3593 = vmatprep.subr.mxu0 0.0
  %3594 = vmatpush1.msra.mxu0 %v42
  %3595 = vmatprep.subr.mxu0 0.0
  %3596 = vmatpush1.msra.mxu0 %v43
  %3597 = vmatprep.subr.mxu0 0.0
  %3598 = vmatpush1.msra.mxu0 %v44
  %3599 = vmatprep.subr.mxu0 0.0
  %3600 = vmatpush1.msra.mxu0 %v45
  %3601 = vmatprep.subr.mxu0 0.0
  %3602 = vmatpush1.msra.mxu0 %v46
  %3603 = vmatprep.subr.mxu0 0.0
  %3604 = vmatpush1.msra.mxu0 %v47
  %3605 = vmatprep.subr.mxu0 0.0
  %3606 = vmatpush1.msra.mxu0 %v48
  %3607 = vmatprep.subr.mxu0 0.0
  %3608 = vmatpush1.msra.mxu0 %v49
  %3609 = vmatprep.subr.mxu0 0.0
  %3610 = vmatpush1.msra.mxu0 %v50
  %3611 = vmatprep.subr.mxu0 0.0
  %3612 = vmatpush1.msra.mxu0 %v51
  %3613 = vmatprep.subr.mxu0 0.0
  %3614 = vmatpush1.msra.mxu0 %v52
  %3615 = vmatprep.subr.mxu0 0.0
  %3616 = vmatpush1.msra.mxu0 %v53
  %3617 = vmatprep.subr.mxu0 0.0
  %3618 = vmatpush1.msra.mxu0 %v54
  %3619 = vmatprep.mubr.f32.mxu0 %v3381
  %3620 = vmatmul.mubr.f32.gmra.mrb[0].mxu0 %v3380
  %v3621 = vpop.f32.mrb[0].mxu0
  %v3622 = vadd.f32 0.0, %v3621
  %v3623 = vpop.f32.mrb[0].mxu0
  %3624 = vmatprep.mubr.f32.mxu0 %v3406
  %3625 = vmatmul.mubr.f32.gmra.mrb[0].mxu0 %v3405
  %v3626 = vpop.f32.mrb[0].mxu0
  %v3627 = vadd.f32 0.0, %v3626
  %v3628 = vpop.f32.mrb[0].mxu0
  %3629 = vmatprep.mubr.f32.mxu0 %v3431
  %3630 = vmatmul.mubr.f32.gmra.mrb[0].mxu0 %v3430
  %v3631 = vpop.f32.mrb[0].mxu0
  %v3632 = vadd.f32 0.0, %v3631
  %v3633 = vpop.f32.mrb[0].mxu0
  %3634 = vmatprep.mubr.f32.mxu0 %v3456
  %3635 = vmatmul.mubr.f32.gmra.mrb[0].mxu0 %v3455
  %v3636 = vpop.f32.mrb[0].mxu0
  %v3637 = vadd.f32 0.0, %v3636
  %v3638 = vpop.f32.mrb[0].mxu0
  %3639 = vmatprep.mubr.f32.mxu0 %v3481
  %3640 = vmatmul.mubr.f32.gmra.mrb[0].mxu0 %v3480
  %v3641 = vpop.f32.mrb[0].mxu0
  %v3642 = vadd.f32 0.0, %v3641
  %v3643 = vpop.f32.mrb[0].mxu0
  %3644 = vmatprep.mubr.f32.mxu0 %v3506
  %3645 = vmatmul.mubr.f32.gmra.mrb[0].mxu0 %v3505
  %v3646 = vpop.f32.mrb[0].mxu0
  %v3647 = vadd.f32 0.0, %v3646
  %v3648 = vpop.f32.mrb[0].mxu0
  %3649 = vmatprep.mubr.f32.mxu0 %v3531
  %3650 = vmatmul.mubr.f32.gmra.mrb[0].mxu0 %v3530
  %v3651 = vpop.f32.mrb[0].mxu0
  %v3652 = vadd.f32 0.0, %v3651
  %v3653 = vpop.f32.mrb[0].mxu0
  %3654 = vdwg.mxu0
  %3655 = vmatprep.subr.mxu0 0.0
  %3656 = vmatpush1.msra.mxu0 %v55
  %3657 = vmatprep.subr.mxu0 0.0
  %3658 = vmatpush1.msra.mxu0 %v56
  %3659 = vmatprep.subr.mxu0 0.0
  %3660 = vmatpush1.msra.mxu0 %v57
  %3661 = vmatprep.subr.mxu0 0.0
  %3662 = vmatpush1.msra.mxu0 %v58
  %3663 = vmatprep.subr.mxu0 0.0
  %3664 = vmatpush1.msra.mxu0 %v59
  %3665 = vmatprep.subr.mxu0 0.0
  %3666 = vmatpush1.msra.mxu0 %v60
  %3667 = vmatprep.subr.mxu0 0.0
  %3668 = vmatpush1.msra.mxu0 %v61
  %3669 = vmatprep.subr.mxu0 0.0
  %3670 = vmatpush1.msra.mxu0 %v62
  %3671 = vmatprep.subr.mxu0 0.0
  %3672 = vmatpush1.msra.mxu0 %v63
  %3673 = vmatprep.subr.mxu0 0.0
  %3674 = vmatpush1.msra.mxu0 %v64
  %3675 = vmatprep.subr.mxu0 0.0
  %3676 = vmatpush1.msra.mxu0 %v65
  %3677 = vmatprep.subr.mxu0 0.0
  %3678 = vmatpush1.msra.mxu0 %v66
  %3679 = vmatprep.subr.mxu0 0.0
  %3680 = vmatpush1.msra.mxu0 %v67
  %3681 = vmatprep.subr.mxu0 0.0
  %3682 = vmatpush1.msra.mxu0 %v68
  %3683 = vmatprep.subr.mxu0 0.0
  %3684 = vmatpush1.msra.mxu0 %v69
  %3685 = vmatprep.subr.mxu0 0.0
  %3686 = vmatpush1.msra.mxu0 %v70
  %3687 = vmatprep.subr.mxu0 0.0
  %3688 = vmatpush1.msra.mxu0 %v71
  %3689 = vmatprep.subr.mxu0 0.0
  %3690 = vmatpush1.msra.mxu0 %v72
  %3691 = vmatprep.subr.mxu0 0.0
  %3692 = vmatpush1.msra.mxu0 %v73
  %3693 = vmatprep.subr.mxu0 0.0
  %3694 = vmatpush1.msra.mxu0 %v74
  %3695 = vmatprep.subr.mxu0 0.0
  %3696 = vmatpush1.msra.mxu0 %v75
  %3697 = vmatprep.subr.mxu0 0.0
  %3698 = vmatpush1.msra.mxu0 %v76
  %3699 = vmatprep.subr.mxu0 0.0
  %3700 = vmatpush1.msra.mxu0 %v77
  %3701 = vmatprep.subr.mxu0 0.0
  %3702 = vmatpush1.msra.mxu0 %v78
  %3703 = vmatprep.subr.mxu0 0.0
  %3704 = vmatpush1.msra.mxu0 %v79
  %3705 = vmatprep.subr.mxu0 0.0
  %3706 = vmatpush1.msra.mxu0 %v80
  %3707 = vmatprep.subr.mxu0 0.0
  %3708 = vmatpush1.msra.mxu0 %v81
  %3709 = vmatprep.subr.mxu0 0.0
  %3710 = vmatpush1.msra.mxu0 %v82
  %3711 = vmatprep.subr.mxu0 0.0
  %3712 = vmatpush1.msra.mxu0 %v83
  %3713 = vmatprep.subr.mxu0 0.0
  %3714 = vmatpush1.msra.mxu0 %v84
  %3715 = vmatprep.subr.mxu0 0.0
  %3716 = vmatpush1.msra.mxu0 %v85
  %3717 = vmatprep.subr.mxu0 0.0
  %3718 = vmatpush1.msra.mxu0 %v86
  %3719 = vmatprep.mubr.f32.mxu0 %v3383
  %3720 = vmatmul.mubr.f32.gmra.mrb[0].mxu0 %v3382
  %v3721 = vpop.f32.mrb[0].mxu0
  %v3722 = vadd.f32 %v3622, %v3721
  %v3723 = vpop.f32.mrb[0].mxu0
  %3724 = vmatprep.mubr.f32.mxu0 %v3408
  %3725 = vmatmul.mubr.f32.gmra.mrb[0].mxu0 %v3407
  %v3726 = vpop.f32.mrb[0].mxu0
  %v3727 = vadd.f32 %v3627, %v3726
  %v3728 = vpop.f32.mrb[0].mxu0
  %3729 = vmatprep.mubr.f32.mxu0 %v3433
  %3730 = vmatmul.mubr.f32.gmra.mrb[0].mxu0 %v3432
  %v3731 = vpop.f32.mrb[0].mxu0
  %v3732 = vadd.f32 %v3632, %v3731
  %v3733 = vpop.f32.mrb[0].mxu0
  %3734 = vmatprep.mubr.f32.mxu0 %v3458
  %3735 = vmatmul.mubr.f32.gmra.mrb[0].mxu0 %v3457
  %v3736 = vpop.f32.mrb[0].mxu0
  %v3737 = vadd.f32 %v3637, %v3736
  %v3738 = vpop.f32.mrb[0].mxu0
  %3739 = vmatprep.mubr.f32.mxu0 %v3483
  %3740 = vmatmul.mubr.f32.gmra.mrb[0].mxu0 %v3482
  %v3741 = vpop.f32.mrb[0].mxu0
  %v3742 = vadd.f32 %v3642, %v3741
  %v3743 = vpop.f32.mrb[0].mxu0
  %3744 = vmatprep.mubr.f32.mxu0 %v3508
  %3745 = vmatmul.mubr.f32.gmra.mrb[0].mxu0 %v3507
  %v3746 = vpop.f32.mrb[0].mxu0
  %v3747 = vadd.f32 %v3647, %v3746
  %v3748 = vpop.f32.mrb[0].mxu0
  %3749 = vmatprep.mubr.f32.mxu0 %v3533
  %3750 = vmatmul.mubr.f32.gmra.mrb[0].mxu0 %v3532
  %v3751 = vpop.f32.mrb[0].mxu0
  %v3752 = vadd.f32 %v3652, %v3751
  %v3753 = vpop.f32.mrb[0].mxu0
  %3754 = vdwg.mxu0
  %3755 = vmatprep.subr.mxu0 0.0
  %3756 = vmatpush1.msra.mxu0 %v87
  %3757 = vmatprep.subr.mxu0 0.0
  %3758 = vmatpush1.msra.mxu0 %v88
  %3759 = vmatprep.subr.mxu0 0.0
  %3760 = vmatpush1.msra.mxu0 %v89
  %3761 = vmatprep.subr.mxu0 0.0
  %3762 = vmatpush1.msra.mxu0 %v90
  %3763 = vmatprep.subr.mxu0 0.0
  %3764 = vmatpush1.msra.mxu0 %v91
  %3765 = vmatprep.subr.mxu0 0.0
  %3766 = vmatpush1.msra.mxu0 %v92
  %3767 = vmatprep.subr.mxu0 0.0
  %3768 = vmatpush1.msra.mxu0 %v93
  %3769 = vmatprep.subr.mxu0 0.0
  %3770 = vmatpush1.msra.mxu0 %v94
  %3771 = vmatprep.subr.mxu0 0.0
  %3772 = vmatpush1.msra.mxu0 %v95
  %3773 = vmatprep.subr.mxu0 0.0
  %3774 = vmatpush1.msra.mxu0 %v96
  %3775 = vmatprep.subr.mxu0 0.0
  %3776 = vmatpush1.msra.mxu0 %v97
  %3777 = vmatprep.subr.mxu0 0.0
  %3778 = vmatpush1.msra.mxu0 %v98
  %3779 = vmatprep.subr.mxu0 0.0
  %3780 = vmatpush1.msra.mxu0 %v99
  %3781 = vmatprep.subr.mxu0 0.0
  %3782 = vmatpush1.msra.mxu0 %v100
  %3783 = vmatprep.subr.mxu0 0.0
  %3784 = vmatpush1.msra.mxu0 %v101
  %3785 = vmatprep.subr.mxu0 0.0
  %3786 = vmatpush1.msra.mxu0 %v102
  %3787 = vmatprep.subr.mxu0 0.0
  %3788 = vmatpush1.msra.mxu0 %v103
  %3789 = vmatprep.subr.mxu0 0.0
  %3790 = vmatpush1.msra.mxu0 %v104
  %3791 = vmatprep.subr.mxu0 0.0
  %3792 = vmatpush1.msra.mxu0 %v105
  %3793 = vmatprep.subr.mxu0 0.0
  %3794 = vmatpush1.msra.mxu0 %v106
  %3795 = vmatprep.subr.mxu0 0.0
  %3796 = vmatpush1.msra.mxu0 %v107
  %3797 = vmatprep.subr.mxu0 0.0
  %3798 = vmatpush1.msra.mxu0 %v108
  %3799 = vmatprep.subr.mxu0 0.0
  %3800 = vmatpush1.msra.mxu0 %v109
  %3801 = vmatprep.subr.mxu0 0.0
  %3802 = vmatpush1.msra.mxu0 %v110
  %3803 = vmatprep.subr.mxu0 0.0
  %3804 = vmatpush1.msra.mxu0 %v111
  %3805 = vmatprep.subr.mxu0 0.0
  %3806 = vmatpush1.msra.mxu0 %v112
  %3807 = vmatprep.subr.mxu0 0.0
  %3808 = vmatpush1.msra.mxu0 %v113
  %3809 = vmatprep.subr.mxu0 0.0
  %3810 = vmatpush1.msra.mxu0 %v114
  %3811 = vmatprep.subr.mxu0 0.0
  %3812 = vmatpush1.msra.mxu0 %v115
  %3813 = vmatprep.subr.mxu0 0.0
  %3814 = vmatpush1.msra.mxu0 %v116
  %3815 = vmatprep.subr.mxu0 0.0
  %3816 = vmatpush1.msra.mxu0 %v117
  %3817 = vmatprep.subr.mxu0 0.0
  %3818 = vmatpush1.msra.mxu0 %v118
  %3819 = vmatprep.mubr.f32.mxu0 %v3385
  %3820 = vmatmul.mubr.f32.gmra.mrb[0].mxu0 %v3384
  %v3821 = vpop.f32.mrb[0].mxu0
  %v3822 = vadd.f32 %v3722, %v3821
  %v3823 = vpop.f32.mrb[0].mxu0
  %3824 = vmatprep.mubr.f32.mxu0 %v3410
  %3825 = vmatmul.mubr.f32.gmra.mrb[0].mxu0 %v3409
  %v3826 = vpop.f32.mrb[0].mxu0
  %v3827 = vadd.f32 %v3727, %v3826
  %v3828 = vpop.f32.mrb[0].mxu0
  %3829 = vmatprep.mubr.f32.mxu0 %v3435
  %3830 = vmatmul.mubr.f32.gmra.mrb[0].mxu0 %v3434
  %v3831 = vpop.f32.mrb[0].mxu0
  %v3832 = vadd.f32 %v3732, %v3831
  %v3833 = vpop.f32.mrb[0].mxu0
  %3834 = vmatprep.mubr.f32.mxu0 %v3460
  %3835 = vmatmul.mubr.f32.gmra.mrb[0].mxu0 %v3459
  %v3836 = vpop.f32.mrb[0].mxu0
  %v3837 = vadd.f32 %v3737, %v3836
  %v3838 = vpop.f32.mrb[0].mxu0
  %3839 = vmatprep.mubr.f32.mxu0 %v3485
  %3840 = vmatmul.mubr.f32.gmra.mrb[0].mxu0 %v3484
  %v3841 = vpop.f32.mrb[0].mxu0
  %v3842 = vadd.f32 %v3742, %v3841
  %v3843 = vpop.f32.mrb[0].mxu0
  %3844 = vmatprep.mubr.f32.mxu0 %v3510
  %3845 = vmatmul.mubr.f32.gmra.mrb[0].mxu0 %v3509
  %v3846 = vpop.f32.mrb[0].mxu0
  %v3847 = vadd.f32 %v3747, %v3846
  %v3848 = vpop.f32.mrb[0].mxu0
  %3849 = vmatprep.mubr.f32.mxu0 %v3535
  %3850 = vmatmul.mubr.f32.gmra.mrb[0].mxu0 %v3534
  %v3851 = vpop.f32.mrb[0].mxu0
  %v3852 = vadd.f32 %v3752, %v3851
  %v3853 = vpop.f32.mrb[0].mxu0
  %3854 = vdwg.mxu0
  %3855 = vmatprep.subr.mxu0 0.0
  %3856 = vmatpush1.msra.mxu0 %v119
  %3857 = vmatprep.subr.mxu0 0.0
  %3858 = vmatpush1.msra.mxu0 %v120
  %3859 = vmatprep.subr.mxu0 0.0
  %3860 = vmatpush1.msra.mxu0 %v121
  %3861 = vmatprep.subr.mxu0 0.0
  %3862 = vmatpush1.msra.mxu0 %v122
  %3863 = vmatprep.subr.mxu0 0.0
  %3864 = vmatpush1.msra.mxu0 %v123
  %3865 = vmatprep.subr.mxu0 0.0
  %3866 = vmatpush1.msra.mxu0 %v124
  %3867 = vmatprep.subr.mxu0 0.0
  %3868 = vmatpush1.msra.mxu0 %v125
  %3869 = vmatprep.subr.mxu0 0.0
  %3870 = vmatpush1.msra.mxu0 %v126
  %3871 = vmatprep.subr.mxu0 0.0
  %3872 = vmatpush1.msra.mxu0 %v127
  %3873 = vmatprep.subr.mxu0 0.0
  %3874 = vmatpush1.msra.mxu0 %v128
  %3875 = vmatprep.subr.mxu0 0.0
  %3876 = vmatpush1.msra.mxu0 %v129
  %3877 = vmatprep.subr.mxu0 0.0
  %3878 = vmatpush1.msra.mxu0 %v130
  %3879 = vmatprep.subr.mxu0 0.0
  %3880 = vmatpush1.msra.mxu0 %v131
  %3881 = vmatprep.subr.mxu0 0.0
  %3882 = vmatpush1.msra.mxu0 %v132
  %3883 = vmatprep.subr.mxu0 0.0
  %3884 = vmatpush1.msra.mxu0 %v133
  %3885 = vmatprep.subr.mxu0 0.0
  %3886 = vmatpush1.msra.mxu0 %v134
  %3887 = vmatprep.subr.mxu0 0.0
  %3888 = vmatpush1.msra.mxu0 %v135
  %3889 = vmatprep.subr.mxu0 0.0
  %3890 = vmatpush1.msra.mxu0 %v136
  %3891 = vmatprep.subr.mxu0 0.0
  %3892 = vmatpush1.msra.mxu0 %v137
  %3893 = vmatprep.subr.mxu0 0.0
  %3894 = vmatpush1.msra.mxu0 %v138
  %3895 = vmatprep.subr.mxu0 0.0
  %3896 = vmatpush1.msra.mxu0 %v139
  %3897 = vmatprep.subr.mxu0 0.0
  %3898 = vmatpush1.msra.mxu0 %v140
  %3899 = vmatprep.subr.mxu0 0.0
  %3900 = vmatpush1.msra.mxu0 %v141
  %3901 = vmatprep.subr.mxu0 0.0
  %3902 = vmatpush1.msra.mxu0 %v142
  %3903 = vmatprep.subr.mxu0 0.0
  %3904 = vmatpush1.msra.mxu0 %v143
  %3905 = vmatprep.subr.mxu0 0.0
  %3906 = vmatpush1.msra.mxu0 %v144
  %3907 = vmatprep.subr.mxu0 0.0
  %3908 = vmatpush1.msra.mxu0 %v145
  %3909 = vmatprep.subr.mxu0 0.0
  %3910 = vmatpush1.msra.mxu0 %v146
  %3911 = vmatprep.subr.mxu0 0.0
  %3912 = vmatpush1.msra.mxu0 %v147
  %3913 = vmatprep.subr.mxu0 0.0
  %3914 = vmatpush1.msra.mxu0 %v148
  %3915 = vmatprep.subr.mxu0 0.0
  %3916 = vmatpush1.msra.mxu0 %v149
  %3917 = vmatprep.subr.mxu0 0.0
  %3918 = vmatpush1.msra.mxu0 %v150
  %3919 = vmatprep.mubr.f32.mxu0 %v3387
  %3920 = vmatmul.mubr.f32.gmra.mrb[0].mxu0 %v3386
  %v3921 = vpop.f32.mrb[0].mxu0
  %v3922 = vadd.f32 %v3822, %v3921
  %v3923 = vpop.f32.mrb[0].mxu0
  %3924 = vmatprep.mubr.f32.mxu0 %v3412
  %3925 = vmatmul.mubr.f32.gmra.mrb[0].mxu0 %v3411
  %v3926 = vpop.f32.mrb[0].mxu0
  %v3927 = vadd.f32 %v3827, %v3926
  %v3928 = vpop.f32.mrb[0].mxu0
  %3929 = vmatprep.mubr.f32.mxu0 %v3437
  %3930 = vmatmul.mubr.f32.gmra.mrb[0].mxu0 %v3436
  %v3931 = vpop.f32.mrb[0].mxu0
  %v3932 = vadd.f32 %v3832, %v3931
  %v3933 = vpop.f32.mrb[0].mxu0
  %3934 = vmatprep.mubr.f32.mxu0 %v3462
  %3935 = vmatmul.mubr.f32.gmra.mrb[0].mxu0 %v3461
  %v3936 = vpop.f32.mrb[0].mxu0
  %v3937 = vadd.f32 %v3837, %v3936
  %v3938 = vpop.f32.mrb[0].mxu0
  %3939 = vmatprep.mubr.f32.mxu0 %v3487
  %3940 = vmatmul.mubr.f32.gmra.mrb[0].mxu0 %v3486
  %v3941 = vpop.f32.mrb[0].mxu0
  %v3942 = vadd.f32 %v3842, %v3941
  %v3943 = vpop.f32.mrb[0].mxu0
  %3944 = vmatprep.mubr.f32.mxu0 %v3512
  %3945 = vmatmul.mubr.f32.gmra.mrb[0].mxu0 %v3511
  %v3946 = vpop.f32.mrb[0].mxu0
  %v3947 = vadd.f32 %v3847, %v3946
  %v3948 = vpop.f32.mrb[0].mxu0
  %3949 = vmatprep.mubr.f32.mxu0 %v3537
  %3950 = vmatmul.mubr.f32.gmra.mrb[0].mxu0 %v3536
  %v3951 = vpop.f32.mrb[0].mxu0
  %v3952 = vadd.f32 %v3852, %v3951
  %v3953 = vpop.f32.mrb[0].mxu0
  %3954 = vdwg.mxu0
  %3955 = vmatprep.subr.mxu0 0.0
  %3956 = vmatpush1.msra.mxu0 %v151
  %3957 = vmatprep.subr.mxu0 0.0
  %3958 = vmatpush1.msra.mxu0 %v152
  %3959 = vmatprep.subr.mxu0 0.0
  %3960 = vmatpush1.msra.mxu0 %v153
  %3961 = vmatprep.subr.mxu0 0.0
  %3962 = vmatpush1.msra.mxu0 %v154
  %3963 = vmatprep.subr.mxu0 0.0
  %3964 = vmatpush1.msra.mxu0 %v155
  %3965 = vmatprep.subr.mxu0 0.0
  %3966 = vmatpush1.msra.mxu0 %v156
  %3967 = vmatprep.subr.mxu0 0.0
  %3968 = vmatpush1.msra.mxu0 %v157
  %3969 = vmatprep.subr.mxu0 0.0
  %3970 = vmatpush1.msra.mxu0 %v158
  %3971 = vmatprep.subr.mxu0 0.0
  %3972 = vmatpush1.msra.mxu0 %v159
  %3973 = vmatprep.subr.mxu0 0.0
  %3974 = vmatpush1.msra.mxu0 %v160
  %3975 = vmatprep.subr.mxu0 0.0
  %3976 = vmatpush1.msra.mxu0 %v161
  %3977 = vmatprep.subr.mxu0 0.0
  %3978 = vmatpush1.msra.mxu0 %v162
  %3979 = vmatprep.subr.mxu0 0.0
  %3980 = vmatpush1.msra.mxu0 %v163
  %3981 = vmatprep.subr.mxu0 0.0
  %3982 = vmatpush1.msra.mxu0 %v164
  %3983 = vmatprep.subr.mxu0 0.0
  %3984 = vmatpush1.msra.mxu0 %v165
  %3985 = vmatprep.subr.mxu0 0.0
  %3986 = vmatpush1.msra.mxu0 %v166
  %3987 = vmatprep.subr.mxu0 0.0
  %3988 = vmatpush1.msra.mxu0 %v167
  %3989 = vmatprep.subr.mxu0 0.0
  %3990 = vmatpush1.msra.mxu0 %v168
  %3991 = vmatprep.subr.mxu0 0.0
  %3992 = vmatpush1.msra.mxu0 %v169
  %3993 = vmatprep.subr.mxu0 0.0
  %3994 = vmatpush1.msra.mxu0 %v170
  %3995 = vmatprep.subr.mxu0 0.0
  %3996 = vmatpush1.msra.mxu0 %v171
  %3997 = vmatprep.subr.mxu0 0.0
  %3998 = vmatpush1.msra.mxu0 %v172
  %3999 = vmatprep.subr.mxu0 0.0
  %4000 = vmatpush1.msra.mxu0 %v173
  %4001 = vmatprep.subr.mxu0 0.0
  %4002 = vmatpush1.msra.mxu0 %v174
  %4003 = vmatprep.subr.mxu0 0.0
  %4004 = vmatpush1.msra.mxu0 %v175
  %4005 = vmatprep.subr.mxu0 0.0
  %4006 = vmatpush1.msra.mxu0 %v176
  %4007 = vmatprep.subr.mxu0 0.0
  %4008 = vmatpush1.msra.mxu0 %v177
  %4009 = vmatprep.subr.mxu0 0.0
  %4010 = vmatpush1.msra.mxu0 %v178
  %4011 = vmatprep.subr.mxu0 0.0
  %4012 = vmatpush1.msra.mxu0 %v179
  %4013 = vmatprep.subr.mxu0 0.0
  %4014 = vmatpush1.msra.mxu0 %v180
  %4015 = vmatprep.subr.mxu0 0.0
  %4016 = vmatpush1.msra.mxu0 %v181
  %4017 = vmatprep.subr.mxu0 0.0
  %4018 = vmatpush1.msra.mxu0 %v182
  %4019 = vmatprep.mubr.f32.mxu0 %v3389
  %4020 = vmatmul.mubr.f32.gmra.mrb[0].mxu0 %v3388
  %v4021 = vpop.f32.mrb[0].mxu0
  %v4022 = vadd.f32 %v3922, %v4021
  %v4023 = vpop.f32.mrb[0].mxu0
  %4024 = vmatprep.mubr.f32.mxu0 %v3414
  %4025 = vmatmul.mubr.f32.gmra.mrb[0].mxu0 %v3413
  %v4026 = vpop.f32.mrb[0].mxu0
  %v4027 = vadd.f32 %v3927, %v4026
  %v4028 = vpop.f32.mrb[0].mxu0
  %4029 = vmatprep.mubr.f32.mxu0 %v3439
  %4030 = vmatmul.mubr.f32.gmra.mrb[0].mxu0 %v3438
  %v4031 = vpop.f32.mrb[0].mxu0
  %v4032 = vadd.f32 %v3932, %v4031
  %v4033 = vpop.f32.mrb[0].mxu0
  %4034 = vmatprep.mubr.f32.mxu0 %v3464
  %4035 = vmatmul.mubr.f32.gmra.mrb[0].mxu0 %v3463
  %v4036 = vpop.f32.mrb[0].mxu0
  %v4037 = vadd.f32 %v3937, %v4036
  %v4038 = vpop.f32.mrb[0].mxu0
  %4039 = vmatprep.mubr.f32.mxu0 %v3489
  %4040 = vmatmul.mubr.f32.gmra.mrb[0].mxu0 %v3488
  %v4041 = vpop.f32.mrb[0].mxu0
  %v4042 = vadd.f32 %v3942, %v4041
  %v4043 = vpop.f32.mrb[0].mxu0
  %4044 = vmatprep.mubr.f32.mxu0 %v3514
  %4045 = vmatmul.mubr.f32.gmra.mrb[0].mxu0 %v3513
  %v4046 = vpop.f32.mrb[0].mxu0
  %v4047 = vadd.f32 %v3947, %v4046
  %v4048 = vpop.f32.mrb[0].mxu0
  %4049 = vmatprep.mubr.f32.mxu0 %v3539
  %4050 = vmatmul.mubr.f32.gmra.mrb[0].mxu0 %v3538
  %v4051 = vpop.f32.mrb[0].mxu0
  %v4052 = vadd.f32 %v3952, %v4051
  %v4053 = vpop.f32.mrb[0].mxu0
  %4054 = vdwg.mxu0
  %4055 = vmatprep.subr.mxu0 0.0
  %4056 = vmatpush1.msra.mxu0 %v183
  %4057 = vmatprep.subr.mxu0 0.0
  %4058 = vmatpush1.msra.mxu0 %v184
  %4059 = vmatprep.subr.mxu0 0.0
  %4060 = vmatpush1.msra.mxu0 %v185
  %4061 = vmatprep.subr.mxu0 0.0
  %4062 = vmatpush1.msra.mxu0 %v186
  %4063 = vmatprep.subr.mxu0 0.0
  %4064 = vmatpush1.msra.mxu0 %v187
  %4065 = vmatprep.subr.mxu0 0.0
  %4066 = vmatpush1.msra.mxu0 %v188
  %4067 = vmatprep.subr.mxu0 0.0
  %4068 = vmatpush1.msra.mxu0 %v189
  %4069 = vmatprep.subr.mxu0 0.0
  %4070 = vmatpush1.msra.mxu0 %v190
  %4071 = vmatprep.subr.mxu0 0.0
  %4072 = vmatpush1.msra.mxu0 %v191
  %4073 = vmatprep.subr.mxu0 0.0
  %4074 = vmatpush1.msra.mxu0 %v192
  %4075 = vmatprep.subr.mxu0 0.0
  %4076 = vmatpush1.msra.mxu0 %v193
  %4077 = vmatprep.subr.mxu0 0.0
  %4078 = vmatpush1.msra.mxu0 %v194
  %4079 = vmatprep.subr.mxu0 0.0
  %4080 = vmatpush1.msra.mxu0 %v195
  %4081 = vmatprep.subr.mxu0 0.0
  %4082 = vmatpush1.msra.mxu0 %v196
  %4083 = vmatprep.subr.mxu0 0.0
  %4084 = vmatpush1.msra.mxu0 %v197
  %4085 = vmatprep.subr.mxu0 0.0
  %4086 = vmatpush1.msra.mxu0 %v198
  %4087 = vmatprep.subr.mxu0 0.0
  %4088 = vmatpush1.msra.mxu0 %v199
  %4089 = vmatprep.subr.mxu0 0.0
  %4090 = vmatpush1.msra.mxu0 %v200
  %4091 = vmatprep.subr.mxu0 0.0
  %4092 = vmatpush1.msra.mxu0 %v201
  %4093 = vmatprep.subr.mxu0 0.0
  %4094 = vmatpush1.msra.mxu0 %v202
  %4095 = vmatprep.subr.mxu0 0.0
  %4096 = vmatpush1.msra.mxu0 %v203
  %4097 = vmatprep.subr.mxu0 0.0
  %4098 = vmatpush1.msra.mxu0 %v204
  %4099 = vmatprep.subr.mxu0 0.0
  %4100 = vmatpush1.msra.mxu0 %v205
  %4101 = vmatprep.subr.mxu0 0.0
  %4102 = vmatpush1.msra.mxu0 %v206
  %4103 = vmatprep.subr.mxu0 0.0
  %4104 = vmatpush1.msra.mxu0 %v207
  %4105 = vmatprep.subr.mxu0 0.0
  %4106 = vmatpush1.msra.mxu0 %v208
  %4107 = vmatprep.subr.mxu0 0.0
  %4108 = vmatpush1.msra.mxu0 %v209
  %4109 = vmatprep.subr.mxu0 0.0
  %4110 = vmatpush1.msra.mxu0 %v210
  %4111 = vmatprep.subr.mxu0 0.0
  %4112 = vmatpush1.msra.mxu0 %v211
  %4113 = vmatprep.subr.mxu0 0.0
  %4114 = vmatpush1.msra.mxu0 %v212
  %4115 = vmatprep.subr.mxu0 0.0
  %4116 = vmatpush1.msra.mxu0 %v213
  %4117 = vmatprep.subr.mxu0 0.0
  %4118 = vmatpush1.msra.mxu0 %v214
  %4119 = vmatprep.mubr.f32.mxu0 %v3391
  %4120 = vmatmul.mubr.f32.gmra.mrb[0].mxu0 %v3390
  %v4121 = vpop.f32.mrb[0].mxu0
  %v4122 = vadd.f32 %v4022, %v4121
  %v4123 = vpop.f32.mrb[0].mxu0
  %4124 = vmatprep.mubr.f32.mxu0 %v3416
  %4125 = vmatmul.mubr.f32.gmra.mrb[0].mxu0 %v3415
  %v4126 = vpop.f32.mrb[0].mxu0
  %v4127 = vadd.f32 %v4027, %v4126
  %v4128 = vpop.f32.mrb[0].mxu0
  %4129 = vmatprep.mubr.f32.mxu0 %v3441
  %4130 = vmatmul.mubr.f32.gmra.mrb[0].mxu0 %v3440
  %v4131 = vpop.f32.mrb[0].mxu0
  %v4132 = vadd.f32 %v4032, %v4131
  %v4133 = vpop.f32.mrb[0].mxu0
  %4134 = vmatprep.mubr.f32.mxu0 %v3466
  %4135 = vmatmul.mubr.f32.gmra.mrb[0].mxu0 %v3465
  %v4136 = vpop.f32.mrb[0].mxu0
  %v4137 = vadd.f32 %v4037, %v4136
  %v4138 = vpop.f32.mrb[0].mxu0
  %4139 = vmatprep.mubr.f32.mxu0 %v3491
  %4140 = vmatmul.mubr.f32.gmra.mrb[0].mxu0 %v3490
  %v4141 = vpop.f32.mrb[0].mxu0
  %v4142 = vadd.f32 %v4042, %v4141
  %v4143 = vpop.f32.mrb[0].mxu0
  %4144 = vmatprep.mubr.f32.mxu0 %v3516
  %4145 = vmatmul.mubr.f32.gmra.mrb[0].mxu0 %v3515
  %v4146 = vpop.f32.mrb[0].mxu0
  %v4147 = vadd.f32 %v4047, %v4146
  %v4148 = vpop.f32.mrb[0].mxu0
  %4149 = vmatprep.mubr.f32.mxu0 %v3541
  %4150 = vmatmul.mubr.f32.gmra.mrb[0].mxu0 %v3540
  %v4151 = vpop.f32.mrb[0].mxu0
  %v4152 = vadd.f32 %v4052, %v4151
  %v4153 = vpop.f32.mrb[0].mxu0
  %4154 = vdwg.mxu0
  %4155 = vmatprep.subr.mxu0 0.0
  %4156 = vmatpush1.msra.mxu0 %v215
  %4157 = vmatprep.subr.mxu0 0.0
  %4158 = vmatpush1.msra.mxu0 %v216
  %4159 = vmatprep.subr.mxu0 0.0
  %4160 = vmatpush1.msra.mxu0 %v217
  %4161 = vmatprep.subr.mxu0 0.0
  %4162 = vmatpush1.msra.mxu0 %v218
  %4163 = vmatprep.subr.mxu0 0.0
  %4164 = vmatpush1.msra.mxu0 %v219
  %4165 = vmatprep.subr.mxu0 0.0
  %4166 = vmatpush1.msra.mxu0 %v220
  %4167 = vmatprep.subr.mxu0 0.0
  %4168 = vmatpush1.msra.mxu0 %v221
  %4169 = vmatprep.subr.mxu0 0.0
  %4170 = vmatpush1.msra.mxu0 %v222
  %4171 = vmatprep.subr.mxu0 0.0
  %4172 = vmatpush1.msra.mxu0 %v223
  %4173 = vmatprep.subr.mxu0 0.0
  %4174 = vmatpush1.msra.mxu0 %v224
  %4175 = vmatprep.subr.mxu0 0.0
  %4176 = vmatpush1.msra.mxu0 %v225
  %4177 = vmatprep.subr.mxu0 0.0
  %4178 = vmatpush1.msra.mxu0 %v226
  %4179 = vmatprep.subr.mxu0 0.0
  %4180 = vmatpush1.msra.mxu0 %v227
  %4181 = vmatprep.subr.mxu0 0.0
  %4182 = vmatpush1.msra.mxu0 %v228
  %4183 = vmatprep.subr.mxu0 0.0
  %4184 = vmatpush1.msra.mxu0 %v229
  %4185 = vmatprep.subr.mxu0 0.0
  %4186 = vmatpush1.msra.mxu0 %v230
  %4187 = vmatprep.subr.mxu0 0.0
  %4188 = vmatpush1.msra.mxu0 %v231
  %4189 = vmatprep.subr.mxu0 0.0
  %4190 = vmatpush1.msra.mxu0 %v232
  %4191 = vmatprep.subr.mxu0 0.0
  %4192 = vmatpush1.msra.mxu0 %v233
  %4193 = vmatprep.subr.mxu0 0.0
  %4194 = vmatpush1.msra.mxu0 %v234
  %4195 = vmatprep.subr.mxu0 0.0
  %4196 = vmatpush1.msra.mxu0 %v235
  %4197 = vmatprep.subr.mxu0 0.0
  %4198 = vmatpush1.msra.mxu0 %v236
  %4199 = vmatprep.subr.mxu0 0.0
  %4200 = vmatpush1.msra.mxu0 %v237
  %4201 = vmatprep.subr.mxu0 0.0
  %4202 = vmatpush1.msra.mxu0 %v238
  %4203 = vmatprep.subr.mxu0 0.0
  %4204 = vmatpush1.msra.mxu0 %v239
  %4205 = vmatprep.subr.mxu0 0.0
  %4206 = vmatpush1.msra.mxu0 %v240
  %4207 = vmatprep.subr.mxu0 0.0
  %4208 = vmatpush1.msra.mxu0 %v241
  %4209 = vmatprep.subr.mxu0 0.0
  %4210 = vmatpush1.msra.mxu0 %v242
  %4211 = vmatprep.subr.mxu0 0.0
  %4212 = vmatpush1.msra.mxu0 %v243
  %4213 = vmatprep.subr.mxu0 0.0
  %4214 = vmatpush1.msra.mxu0 %v244
  %4215 = vmatprep.subr.mxu0 0.0
  %4216 = vmatpush1.msra.mxu0 %v245
  %4217 = vmatprep.subr.mxu0 0.0
  %4218 = vmatpush1.msra.mxu0 %v246
  %4219 = vmatprep.mubr.f32.mxu0 %v3393
  %4220 = vmatmul.mubr.f32.gmra.mrb[0].mxu0 %v3392
  %v4221 = vpop.f32.mrb[0].mxu0
  %v4222 = vadd.f32 %v4122, %v4221
  %v4223 = vpop.f32.mrb[0].mxu0
  %4224 = vmatprep.mubr.f32.mxu0 %v3418
  %4225 = vmatmul.mubr.f32.gmra.mrb[0].mxu0 %v3417
  %v4226 = vpop.f32.mrb[0].mxu0
  %v4227 = vadd.f32 %v4127, %v4226
  %v4228 = vpop.f32.mrb[0].mxu0
  %4229 = vmatprep.mubr.f32.mxu0 %v3443
  %4230 = vmatmul.mubr.f32.gmra.mrb[0].mxu0 %v3442
  %v4231 = vpop.f32.mrb[0].mxu0
  %v4232 = vadd.f32 %v4132, %v4231
  %v4233 = vpop.f32.mrb[0].mxu0
  %4234 = vmatprep.mubr.f32.mxu0 %v3468
  %4235 = vmatmul.mubr.f32.gmra.mrb[0].mxu0 %v3467
  %v4236 = vpop.f32.mrb[0].mxu0
  %v4237 = vadd.f32 %v4137, %v4236
  %v4238 = vpop.f32.mrb[0].mxu0
  %4239 = vmatprep.mubr.f32.mxu0 %v3493
  %4240 = vmatmul.mubr.f32.gmra.mrb[0].mxu0 %v3492
  %v4241 = vpop.f32.mrb[0].mxu0
  %v4242 = vadd.f32 %v4142, %v4241
  %v4243 = vpop.f32.mrb[0].mxu0
  %4244 = vmatprep.mubr.f32.mxu0 %v3518
  %4245 = vmatmul.mubr.f32.gmra.mrb[0].mxu0 %v3517
  %v4246 = vpop.f32.mrb[0].mxu0
  %v4247 = vadd.f32 %v4147, %v4246
  %v4248 = vpop.f32.mrb[0].mxu0
  %4249 = vmatprep.mubr.f32.mxu0 %v3543
  %4250 = vmatmul.mubr.f32.gmra.mrb[0].mxu0 %v3542
  %v4251 = vpop.f32.mrb[0].mxu0
  %v4252 = vadd.f32 %v4152, %v4251
  %v4253 = vpop.f32.mrb[0].mxu0
  %4254 = vdwg.mxu0
  %4255 = vmatprep.subr.mxu0 0.0
  %4256 = vmatpush1.msra.mxu0 %v247
  %4257 = vmatprep.subr.mxu0 0.0
  %4258 = vmatpush1.msra.mxu0 %v248
  %4259 = vmatprep.subr.mxu0 0.0
  %4260 = vmatpush1.msra.mxu0 %v249
  %4261 = vmatprep.subr.mxu0 0.0
  %4262 = vmatpush1.msra.mxu0 %v250
  %4263 = vmatprep.subr.mxu0 0.0
  %4264 = vmatpush1.msra.mxu0 %v251
  %4265 = vmatprep.subr.mxu0 0.0
  %4266 = vmatpush1.msra.mxu0 %v252
  %4267 = vmatprep.subr.mxu0 0.0
  %4268 = vmatpush1.msra.mxu0 %v253
  %4269 = vmatprep.subr.mxu0 0.0
  %4270 = vmatpush1.msra.mxu0 %v254
  %4271 = vmatprep.subr.mxu0 0.0
  %4272 = vmatpush1.msra.mxu0 %v255
  %4273 = vmatprep.subr.mxu0 0.0
  %4274 = vmatpush1.msra.mxu0 %v256
  %4275 = vmatprep.subr.mxu0 0.0
  %4276 = vmatpush1.msra.mxu0 %v257
  %4277 = vmatprep.subr.mxu0 0.0
  %4278 = vmatpush1.msra.mxu0 %v258
  %4279 = vmatprep.subr.mxu0 0.0
  %4280 = vmatpush1.msra.mxu0 %v259
  %4281 = vmatprep.subr.mxu0 0.0
  %4282 = vmatpush1.msra.mxu0 %v260
  %4283 = vmatprep.subr.mxu0 0.0
  %4284 = vmatpush1.msra.mxu0 %v261
  %4285 = vmatprep.subr.mxu0 0.0
  %4286 = vmatpush1.msra.mxu0 %v262
  %4287 = vmatprep.subr.mxu0 0.0
  %4288 = vmatpush1.msra.mxu0 %v263
  %4289 = vmatprep.subr.mxu0 0.0
  %4290 = vmatpush1.msra.mxu0 %v264
  %4291 = vmatprep.subr.mxu0 0.0
  %4292 = vmatpush1.msra.mxu0 %v265
  %4293 = vmatprep.subr.mxu0 0.0
  %4294 = vmatpush1.msra.mxu0 %v266
  %4295 = vmatprep.subr.mxu0 0.0
  %4296 = vmatpush1.msra.mxu0 %v267
  %4297 = vmatprep.subr.mxu0 0.0
  %4298 = vmatpush1.msra.mxu0 %v268
  %4299 = vmatprep.subr.mxu0 0.0
  %4300 = vmatpush1.msra.mxu0 %v269
  %4301 = vmatprep.subr.mxu0 0.0
  %4302 = vmatpush1.msra.mxu0 %v270
  %4303 = vmatprep.subr.mxu0 0.0
  %4304 = vmatpush1.msra.mxu0 %v271
  %4305 = vmatprep.subr.mxu0 0.0
  %4306 = vmatpush1.msra.mxu0 %v272
  %4307 = vmatprep.subr.mxu0 0.0
  %4308 = vmatpush1.msra.mxu0 %v273
  %4309 = vmatprep.subr.mxu0 0.0
  %4310 = vmatpush1.msra.mxu0 %v274
  %4311 = vmatprep.subr.mxu0 0.0
  %4312 = vmatpush1.msra.mxu0 %v275
  %4313 = vmatprep.subr.mxu0 0.0
  %4314 = vmatpush1.msra.mxu0 %v276
  %4315 = vmatprep.subr.mxu0 0.0
  %4316 = vmatpush1.msra.mxu0 %v277
  %4317 = vmatprep.subr.mxu0 0.0
  %4318 = vmatpush1.msra.mxu0 %v278
  %4319 = vmatprep.mubr.f32.mxu0 %v3395
  %4320 = vmatmul.mubr.f32.gmra.mrb[0].mxu0 %v3394
  %v4321 = vpop.f32.mrb[0].mxu0
  %v4322 = vadd.f32 %v4222, %v4321
  %v4323 = vpop.f32.mrb[0].mxu0
  %4324 = vmatprep.mubr.f32.mxu0 %v3420
  %4325 = vmatmul.mubr.f32.gmra.mrb[0].mxu0 %v3419
  %v4326 = vpop.f32.mrb[0].mxu0
  %v4327 = vadd.f32 %v4227, %v4326
  %v4328 = vpop.f32.mrb[0].mxu0
  %4329 = vmatprep.mubr.f32.mxu0 %v3445
  %4330 = vmatmul.mubr.f32.gmra.mrb[0].mxu0 %v3444
  %v4331 = vpop.f32.mrb[0].mxu0
  %v4332 = vadd.f32 %v4232, %v4331
  %v4333 = vpop.f32.mrb[0].mxu0
  %4334 = vmatprep.mubr.f32.mxu0 %v3470
  %4335 = vmatmul.mubr.f32.gmra.mrb[0].mxu0 %v3469
  %v4336 = vpop.f32.mrb[0].mxu0
  %v4337 = vadd.f32 %v4237, %v4336
  %v4338 = vpop.f32.mrb[0].mxu0
  %4339 = vmatprep.mubr.f32.mxu0 %v3495
  %4340 = vmatmul.mubr.f32.gmra.mrb[0].mxu0 %v3494
  %v4341 = vpop.f32.mrb[0].mxu0
  %v4342 = vadd.f32 %v4242, %v4341
  %v4343 = vpop.f32.mrb[0].mxu0
  %4344 = vmatprep.mubr.f32.mxu0 %v3520
  %4345 = vmatmul.mubr.f32.gmra.mrb[0].mxu0 %v3519
  %v4346 = vpop.f32.mrb[0].mxu0
  %v4347 = vadd.f32 %v4247, %v4346
  %v4348 = vpop.f32.mrb[0].mxu0
  %4349 = vmatprep.mubr.f32.mxu0 %v3545
  %4350 = vmatmul.mubr.f32.gmra.mrb[0].mxu0 %v3544
  %v4351 = vpop.f32.mrb[0].mxu0
  %v4352 = vadd.f32 %v4252, %v4351
  %v4353 = vpop.f32.mrb[0].mxu0
  %4354 = vdwg.mxu0
  %4355 = vmatprep.subr.mxu0 0.0
  %4356 = vmatpush1.msra.mxu0 %v279
  %4357 = vmatprep.subr.mxu0 0.0
  %4358 = vmatpush1.msra.mxu0 %v280
  %4359 = vmatprep.subr.mxu0 0.0
  %4360 = vmatpush1.msra.mxu0 %v281
  %4361 = vmatprep.subr.mxu0 0.0
  %4362 = vmatpush1.msra.mxu0 %v282
  %4363 = vmatprep.subr.mxu0 0.0
  %4364 = vmatpush1.msra.mxu0 %v283
  %4365 = vmatprep.subr.mxu0 0.0
  %4366 = vmatpush1.msra.mxu0 %v284
  %4367 = vmatprep.subr.mxu0 0.0
  %4368 = vmatpush1.msra.mxu0 %v285
  %4369 = vmatprep.subr.mxu0 0.0
  %4370 = vmatpush1.msra.mxu0 %v286
  %4371 = vmatprep.subr.mxu0 0.0
  %4372 = vmatpush1.msra.mxu0 %v287
  %4373 = vmatprep.subr.mxu0 0.0
  %4374 = vmatpush1.msra.mxu0 %v288
  %4375 = vmatprep.subr.mxu0 0.0
  %4376 = vmatpush1.msra.mxu0 %v289
  %4377 = vmatprep.subr.mxu0 0.0
  %4378 = vmatpush1.msra.mxu0 %v290
  %4379 = vmatprep.subr.mxu0 0.0
  %4380 = vmatpush1.msra.mxu0 %v291
  %4381 = vmatprep.subr.mxu0 0.0
  %4382 = vmatpush1.msra.mxu0 %v292
  %4383 = vmatprep.subr.mxu0 0.0
  %4384 = vmatpush1.msra.mxu0 %v293
  %4385 = vmatprep.subr.mxu0 0.0
  %4386 = vmatpush1.msra.mxu0 %v294
  %4387 = vmatprep.subr.mxu0 0.0
  %4388 = vmatpush1.msra.mxu0 %v295
  %4389 = vmatprep.subr.mxu0 0.0
  %4390 = vmatpush1.msra.mxu0 %v296
  %4391 = vmatprep.subr.mxu0 0.0
  %4392 = vmatpush1.msra.mxu0 %v297
  %4393 = vmatprep.subr.mxu0 0.0
  %4394 = vmatpush1.msra.mxu0 %v298
  %4395 = vmatprep.subr.mxu0 0.0
  %4396 = vmatpush1.msra.mxu0 %v299
  %4397 = vmatprep.subr.mxu0 0.0
  %4398 = vmatpush1.msra.mxu0 %v300
  %4399 = vmatprep.subr.mxu0 0.0
  %4400 = vmatpush1.msra.mxu0 %v301
  %4401 = vmatprep.subr.mxu0 0.0
  %4402 = vmatpush1.msra.mxu0 %v302
  %4403 = vmatprep.subr.mxu0 0.0
  %4404 = vmatpush1.msra.mxu0 %v303
  %4405 = vmatprep.subr.mxu0 0.0
  %4406 = vmatpush1.msra.mxu0 %v304
  %4407 = vmatprep.subr.mxu0 0.0
  %4408 = vmatpush1.msra.mxu0 %v305
  %4409 = vmatprep.subr.mxu0 0.0
  %4410 = vmatpush1.msra.mxu0 %v306
  %4411 = vmatprep.subr.mxu0 0.0
  %4412 = vmatpush1.msra.mxu0 %v307
  %4413 = vmatprep.subr.mxu0 0.0
  %4414 = vmatpush1.msra.mxu0 %v308
  %4415 = vmatprep.subr.mxu0 0.0
  %4416 = vmatpush1.msra.mxu0 %v309
  %4417 = vmatprep.subr.mxu0 0.0
  %4418 = vmatpush1.msra.mxu0 %v310
  %4419 = vmatprep.mubr.f32.mxu0 %v3397
  %4420 = vmatmul.mubr.f32.gmra.mrb[0].mxu0 %v3396
  %v4421 = vpop.f32.mrb[0].mxu0
  %v4422 = vadd.f32 %v4322, %v4421
  %v4423 = vpop.f32.mrb[0].mxu0
  %4424 = vmatprep.mubr.f32.mxu0 %v3422
  %4425 = vmatmul.mubr.f32.gmra.mrb[0].mxu0 %v3421
  %v4426 = vpop.f32.mrb[0].mxu0
  %v4427 = vadd.f32 %v4327, %v4426
  %v4428 = vpop.f32.mrb[0].mxu0
  %4429 = vmatprep.mubr.f32.mxu0 %v3447
  %4430 = vmatmul.mubr.f32.gmra.mrb[0].mxu0 %v3446
  %v4431 = vpop.f32.mrb[0].mxu0
  %v4432 = vadd.f32 %v4332, %v4431
  %v4433 = vpop.f32.mrb[0].mxu0
  %4434 = vmatprep.mubr.f32.mxu0 %v3472
  %4435 = vmatmul.mubr.f32.gmra.mrb[0].mxu0 %v3471
  %v4436 = vpop.f32.mrb[0].mxu0
  %v4437 = vadd.f32 %v4337, %v4436
  %v4438 = vpop.f32.mrb[0].mxu0
  %4439 = vmatprep.mubr.f32.mxu0 %v3497
  %4440 = vmatmul.mubr.f32.gmra.mrb[0].mxu0 %v3496
  %v4441 = vpop.f32.mrb[0].mxu0
  %v4442 = vadd.f32 %v4342, %v4441
  %v4443 = vpop.f32.mrb[0].mxu0
  %4444 = vmatprep.mubr.f32.mxu0 %v3522
  %4445 = vmatmul.mubr.f32.gmra.mrb[0].mxu0 %v3521
  %v4446 = vpop.f32.mrb[0].mxu0
  %v4447 = vadd.f32 %v4347, %v4446
  %v4448 = vpop.f32.mrb[0].mxu0
  %4449 = vmatprep.mubr.f32.mxu0 %v3547
  %4450 = vmatmul.mubr.f32.gmra.mrb[0].mxu0 %v3546
  %v4451 = vpop.f32.mrb[0].mxu0
  %v4452 = vadd.f32 %v4352, %v4451
  %v4453 = vpop.f32.mrb[0].mxu0
  %4454 = vdwg.mxu0
  %4455 = vmatprep.subr.mxu0 0.0
  %4456 = vmatpush1.msra.mxu0 %v311
  %4457 = vmatprep.subr.mxu0 0.0
  %4458 = vmatpush1.msra.mxu0 %v312
  %4459 = vmatprep.subr.mxu0 0.0
  %4460 = vmatpush1.msra.mxu0 %v313
  %4461 = vmatprep.subr.mxu0 0.0
  %4462 = vmatpush1.msra.mxu0 %v314
  %4463 = vmatprep.subr.mxu0 0.0
  %4464 = vmatpush1.msra.mxu0 %v315
  %4465 = vmatprep.subr.mxu0 0.0
  %4466 = vmatpush1.msra.mxu0 %v316
  %4467 = vmatprep.subr.mxu0 0.0
  %4468 = vmatpush1.msra.mxu0 %v317
  %4469 = vmatprep.subr.mxu0 0.0
  %4470 = vmatpush1.msra.mxu0 %v318
  %4471 = vmatprep.subr.mxu0 0.0
  %4472 = vmatpush1.msra.mxu0 %v319
  %4473 = vmatprep.subr.mxu0 0.0
  %4474 = vmatpush1.msra.mxu0 %v320
  %4475 = vmatprep.subr.mxu0 0.0
  %4476 = vmatpush1.msra.mxu0 %v321
  %4477 = vmatprep.subr.mxu0 0.0
  %4478 = vmatpush1.msra.mxu0 %v322
  %4479 = vmatprep.subr.mxu0 0.0
  %4480 = vmatpush1.msra.mxu0 %v323
  %4481 = vmatprep.subr.mxu0 0.0
  %4482 = vmatpush1.msra.mxu0 %v324
  %4483 = vmatprep.subr.mxu0 0.0
  %4484 = vmatpush1.msra.mxu0 %v325
  %4485 = vmatprep.subr.mxu0 0.0
  %4486 = vmatpush1.msra.mxu0 %v326
  %4487 = vmatprep.subr.mxu0 0.0
  %4488 = vmatpush1.msra.mxu0 %v327
  %4489 = vmatprep.subr.mxu0 0.0
  %4490 = vmatpush1.msra.mxu0 %v328
  %4491 = vmatprep.subr.mxu0 0.0
  %4492 = vmatpush1.msra.mxu0 %v329
  %4493 = vmatprep.subr.mxu0 0.0
  %4494 = vmatpush1.msra.mxu0 %v330
  %4495 = vmatprep.subr.mxu0 0.0
  %4496 = vmatpush1.msra.mxu0 %v331
  %4497 = vmatprep.subr.mxu0 0.0
  %4498 = vmatpush1.msra.mxu0 %v332
  %4499 = vmatprep.subr.mxu0 0.0
  %4500 = vmatpush1.msra.mxu0 %v333
  %4501 = vmatprep.subr.mxu0 0.0
  %4502 = vmatpush1.msra.mxu0 %v334
  %4503 = vmatprep.subr.mxu0 0.0
  %4504 = vmatpush1.msra.mxu0 %v335
  %4505 = vmatprep.subr.mxu0 0.0
  %4506 = vmatpush1.msra.mxu0 %v336
  %4507 = vmatprep.subr.mxu0 0.0
  %4508 = vmatpush1.msra.mxu0 %v337
  %4509 = vmatprep.subr.mxu0 0.0
  %4510 = vmatpush1.msra.mxu0 %v338
  %4511 = vmatprep.subr.mxu0 0.0
  %4512 = vmatpush1.msra.mxu0 %v339
  %4513 = vmatprep.subr.mxu0 0.0
  %4514 = vmatpush1.msra.mxu0 %v340
  %4515 = vmatprep.subr.mxu0 0.0
  %4516 = vmatpush1.msra.mxu0 %v341
  %4517 = vmatprep.subr.mxu0 0.0
  %4518 = vmatpush1.msra.mxu0 %v342
  %4519 = vmatprep.mubr.f32.mxu0 %v3399
  %4520 = vmatmul.mubr.f32.gmra.mrb[0].mxu0 %v3398
  %v4521 = vpop.f32.mrb[0].mxu0
  %v4522 = vadd.f32 %v4422, %v4521
  %v4523 = vpop.f32.mrb[0].mxu0
  %4524 = vmatprep.mubr.f32.mxu0 %v3424
  %4525 = vmatmul.mubr.f32.gmra.mrb[0].mxu0 %v3423
  %v4526 = vpop.f32.mrb[0].mxu0
  %v4527 = vadd.f32 %v4427, %v4526
  %v4528 = vpop.f32.mrb[0].mxu0
  %4529 = vmatprep.mubr.f32.mxu0 %v3449
  %4530 = vmatmul.mubr.f32.gmra.mrb[0].mxu0 %v3448
  %v4531 = vpop.f32.mrb[0].mxu0
  %v4532 = vadd.f32 %v4432, %v4531
  %v4533 = vpop.f32.mrb[0].mxu0
  %4534 = vmatprep.mubr.f32.mxu0 %v3474
  %4535 = vmatmul.mubr.f32.gmra.mrb[0].mxu0 %v3473
  %v4536 = vpop.f32.mrb[0].mxu0
  %v4537 = vadd.f32 %v4437, %v4536
  %v4538 = vpop.f32.mrb[0].mxu0
  %4539 = vmatprep.mubr.f32.mxu0 %v3499
  %4540 = vmatmul.mubr.f32.gmra.mrb[0].mxu0 %v3498
  %v4541 = vpop.f32.mrb[0].mxu0
  %v4542 = vadd.f32 %v4442, %v4541
  %v4543 = vpop.f32.mrb[0].mxu0
  %4544 = vmatprep.mubr.f32.mxu0 %v3524
  %4545 = vmatmul.mubr.f32.gmra.mrb[0].mxu0 %v3523
  %v4546 = vpop.f32.mrb[0].mxu0
  %v4547 = vadd.f32 %v4447, %v4546
  %v4548 = vpop.f32.mrb[0].mxu0
  %4549 = vmatprep.mubr.f32.mxu0 %v3549
  %4550 = vmatmul.mubr.f32.gmra.mrb[0].mxu0 %v3548
  %v4551 = vpop.f32.mrb[0].mxu0
  %v4552 = vadd.f32 %v4452, %v4551
  %v4553 = vpop.f32.mrb[0].mxu0
  %4554 = vdwg.mxu0
  %4555 = vmatprep.subr.mxu0 0.0
  %4556 = vmatpush1.msra.mxu0 %v343
  %4557 = vmatprep.subr.mxu0 0.0
  %4558 = vmatpush1.msra.mxu0 %v344
  %4559 = vmatprep.subr.mxu0 0.0
  %4560 = vmatpush1.msra.mxu0 %v345
  %4561 = vmatprep.subr.mxu0 0.0
  %4562 = vmatpush1.msra.mxu0 %v346
  %4563 = vmatprep.subr.mxu0 0.0
  %4564 = vmatpush1.msra.mxu0 %v347
  %4565 = vmatprep.subr.mxu0 0.0
  %4566 = vmatpush1.msra.mxu0 %v348
  %4567 = vmatprep.subr.mxu0 0.0
  %4568 = vmatpush1.msra.mxu0 %v349
  %4569 = vmatprep.subr.mxu0 0.0
  %4570 = vmatpush1.msra.mxu0 %v350
  %4571 = vmatprep.subr.mxu0 0.0
  %4572 = vmatpush1.msra.mxu0 %v351
  %4573 = vmatprep.subr.mxu0 0.0
  %4574 = vmatpush1.msra.mxu0 %v352
  %4575 = vmatprep.subr.mxu0 0.0
  %4576 = vmatpush1.msra.mxu0 %v353
  %4577 = vmatprep.subr.mxu0 0.0
  %4578 = vmatpush1.msra.mxu0 %v354
  %4579 = vmatprep.subr.mxu0 0.0
  %4580 = vmatpush1.msra.mxu0 %v355
  %4581 = vmatprep.subr.mxu0 0.0
  %4582 = vmatpush1.msra.mxu0 %v356
  %4583 = vmatprep.subr.mxu0 0.0
  %4584 = vmatpush1.msra.mxu0 %v357
  %4585 = vmatprep.subr.mxu0 0.0
  %4586 = vmatpush1.msra.mxu0 %v358
  %4587 = vmatprep.subr.mxu0 0.0
  %4588 = vmatpush1.msra.mxu0 %v359
  %4589 = vmatprep.subr.mxu0 0.0
  %4590 = vmatpush1.msra.mxu0 %v360
  %4591 = vmatprep.subr.mxu0 0.0
  %4592 = vmatpush1.msra.mxu0 %v361
  %4593 = vmatprep.subr.mxu0 0.0
  %4594 = vmatpush1.msra.mxu0 %v362
  %4595 = vmatprep.subr.mxu0 0.0
  %4596 = vmatpush1.msra.mxu0 %v363
  %4597 = vmatprep.subr.mxu0 0.0
  %4598 = vmatpush1.msra.mxu0 %v364
  %4599 = vmatprep.subr.mxu0 0.0
  %4600 = vmatpush1.msra.mxu0 %v365
  %4601 = vmatprep.subr.mxu0 0.0
  %4602 = vmatpush1.msra.mxu0 %v366
  %4603 = vmatprep.subr.mxu0 0.0
  %4604 = vmatpush1.msra.mxu0 %v367
  %4605 = vmatprep.subr.mxu0 0.0
  %4606 = vmatpush1.msra.mxu0 %v368
  %4607 = vmatprep.subr.mxu0 0.0
  %4608 = vmatpush1.msra.mxu0 %v369
  %4609 = vmatprep.subr.mxu0 0.0
  %4610 = vmatpush1.msra.mxu0 %v370
  %4611 = vmatprep.subr.mxu0 0.0
  %4612 = vmatpush1.msra.mxu0 %v371
  %4613 = vmatprep.subr.mxu0 0.0
  %4614 = vmatpush1.msra.mxu0 %v372
  %4615 = vmatprep.subr.mxu0 0.0
  %4616 = vmatpush1.msra.mxu0 %v373
  %4617 = vmatprep.subr.mxu0 0.0
  %4618 = vmatpush1.msra.mxu0 %v374
  %4619 = vmatprep.mubr.f32.mxu0 %v3401
  %4620 = vmatmul.mubr.f32.gmra.mrb[0].mxu0 %v3400
  %v4621 = vpop.f32.mrb[0].mxu0
  %v4622 = vadd.f32 %v4522, %v4621
  %v4623 = vpop.f32.mrb[0].mxu0
  %4624 = vmatprep.mubr.f32.mxu0 %v3426
  %4625 = vmatmul.mubr.f32.gmra.mrb[0].mxu0 %v3425
  %v4626 = vpop.f32.mrb[0].mxu0
  %v4627 = vadd.f32 %v4527, %v4626
  %v4628 = vpop.f32.mrb[0].mxu0
  %4629 = vmatprep.mubr.f32.mxu0 %v3451
  %4630 = vmatmul.mubr.f32.gmra.mrb[0].mxu0 %v3450
  %v4631 = vpop.f32.mrb[0].mxu0
  %v4632 = vadd.f32 %v4532, %v4631
  %v4633 = vpop.f32.mrb[0].mxu0
  %4634 = vmatprep.mubr.f32.mxu0 %v3476
  %4635 = vmatmul.mubr.f32.gmra.mrb[0].mxu0 %v3475
  %v4636 = vpop.f32.mrb[0].mxu0
  %v4637 = vadd.f32 %v4537, %v4636
  %v4638 = vpop.f32.mrb[0].mxu0
  %4639 = vmatprep.mubr.f32.mxu0 %v3501
  %4640 = vmatmul.mubr.f32.gmra.mrb[0].mxu0 %v3500
  %v4641 = vpop.f32.mrb[0].mxu0
  %v4642 = vadd.f32 %v4542, %v4641
  %v4643 = vpop.f32.mrb[0].mxu0
  %4644 = vmatprep.mubr.f32.mxu0 %v3526
  %4645 = vmatmul.mubr.f32.gmra.mrb[0].mxu0 %v3525
  %v4646 = vpop.f32.mrb[0].mxu0
  %v4647 = vadd.f32 %v4547, %v4646
  %v4648 = vpop.f32.mrb[0].mxu0
  %4649 = vmatprep.mubr.f32.mxu0 %v3551
  %4650 = vmatmul.mubr.f32.gmra.mrb[0].mxu0 %v3550
  %v4651 = vpop.f32.mrb[0].mxu0
  %v4652 = vadd.f32 %v4552, %v4651
  %v4653 = vpop.f32.mrb[0].mxu0
  %4654 = vdwg.mxu0
  %4655 = vmatprep.subr.mxu0 0.0
  %4656 = vmatpush1.msra.mxu0 %v375
  %4657 = vmatprep.subr.mxu0 0.0
  %4658 = vmatpush1.msra.mxu0 %v376
  %4659 = vmatprep.subr.mxu0 0.0
  %4660 = vmatpush1.msra.mxu0 %v377
  %4661 = vmatprep.subr.mxu0 0.0
  %4662 = vmatpush1.msra.mxu0 %v378
  %4663 = vmatprep.subr.mxu0 0.0
  %4664 = vmatpush1.msra.mxu0 %v379
  %4665 = vmatprep.subr.mxu0 0.0
  %4666 = vmatpush1.msra.mxu0 %v380
  %4667 = vmatprep.subr.mxu0 0.0
  %4668 = vmatpush1.msra.mxu0 %v381
  %4669 = vmatprep.subr.mxu0 0.0
  %4670 = vmatpush1.msra.mxu0 %v382
  %4671 = vmatprep.subr.mxu0 0.0
  %4672 = vmatpush1.msra.mxu0 %v383
  %4673 = vmatprep.subr.mxu0 0.0
  %4674 = vmatpush1.msra.mxu0 %v384
  %4675 = vmatprep.subr.mxu0 0.0
  %4676 = vmatpush1.msra.mxu0 %v385
  %4677 = vmatprep.subr.mxu0 0.0
  %4678 = vmatpush1.msra.mxu0 %v386
  %4679 = vmatprep.subr.mxu0 0.0
  %4680 = vmatpush1.msra.mxu0 %v387
  %4681 = vmatprep.subr.mxu0 0.0
  %4682 = vmatpush1.msra.mxu0 %v388
  %4683 = vmatprep.subr.mxu0 0.0
  %4684 = vmatpush1.msra.mxu0 %v389
  %4685 = vmatprep.subr.mxu0 0.0
  %4686 = vmatpush1.msra.mxu0 %v390
  %4687 = vmatprep.subr.mxu0 0.0
  %4688 = vmatpush1.msra.mxu0 %v391
  %4689 = vmatprep.subr.mxu0 0.0
  %4690 = vmatpush1.msra.mxu0 %v392
  %4691 = vmatprep.subr.mxu0 0.0
  %4692 = vmatpush1.msra.mxu0 %v393
  %4693 = vmatprep.subr.mxu0 0.0
  %4694 = vmatpush1.msra.mxu0 %v394
  %4695 = vmatprep.subr.mxu0 0.0
  %4696 = vmatpush1.msra.mxu0 %v395
  %4697 = vmatprep.subr.mxu0 0.0
  %4698 = vmatpush1.msra.mxu0 %v396
  %4699 = vmatprep.subr.mxu0 0.0
  %4700 = vmatpush1.msra.mxu0 %v397
  %4701 = vmatprep.subr.mxu0 0.0
  %4702 = vmatpush1.msra.mxu0 %v398
  %4703 = vmatprep.subr.mxu0 0.0
  %4704 = vmatpush1.msra.mxu0 %v399
  %4705 = vmatprep.subr.mxu0 0.0
  %4706 = vmatpush1.msra.mxu0 %v400
  %4707 = vmatprep.subr.mxu0 0.0
  %4708 = vmatpush1.msra.mxu0 %v401
  %4709 = vmatprep.subr.mxu0 0.0
  %4710 = vmatpush1.msra.mxu0 %v402
  %4711 = vmatprep.subr.mxu0 0.0
  %4712 = vmatpush1.msra.mxu0 %v403
  %4713 = vmatprep.subr.mxu0 0.0
  %4714 = vmatpush1.msra.mxu0 %v404
  %4715 = vmatprep.subr.mxu0 0.0
  %4716 = vmatpush1.msra.mxu0 %v405
  %4717 = vmatprep.subr.mxu0 0.0
  %4718 = vmatpush1.msra.mxu0 %v406
  %4719 = vmatprep.mubr.f32.mxu0 %v3403
  %4720 = vmatmul.mubr.f32.gmra.mrb[0].mxu0 %v3402
  %v4721 = vpop.f32.mrb[0].mxu0
  %v4722 = vadd.f32 %v4622, %v4721
  %v4723 = vpop.f32.mrb[0].mxu0
  %4724 = vmatprep.mubr.f32.mxu0 %v3428
  %4725 = vmatmul.mubr.f32.gmra.mrb[0].mxu0 %v3427
  %v4726 = vpop.f32.mrb[0].mxu0
  %v4727 = vadd.f32 %v4627, %v4726
  %v4728 = vpop.f32.mrb[0].mxu0
  %4729 = vmatprep.mubr.f32.mxu0 %v3453
  %4730 = vmatmul.mubr.f32.gmra.mrb[0].mxu0 %v3452
  %v4731 = vpop.f32.mrb[0].mxu0
  %v4732 = vadd.f32 %v4632, %v4731
  %v4733 = vpop.f32.mrb[0].mxu0
  %4734 = vmatprep.mubr.f32.mxu0 %v3478
  %4735 = vmatmul.mubr.f32.gmra.mrb[0].mxu0 %v3477
  %v4736 = vpop.f32.mrb[0].mxu0
  %v4737 = vadd.f32 %v4637, %v4736
  %v4738 = vpop.f32.mrb[0].mxu0
  %4739 = vmatprep.mubr.f32.mxu0 %v3503
  %4740 = vmatmul.mubr.f32.gmra.mrb[0].mxu0 %v3502
  %v4741 = vpop.f32.mrb[0].mxu0
  %v4742 = vadd.f32 %v4642, %v4741
  %v4743 = vpop.f32.mrb[0].mxu0
  %4744 = vmatprep.mubr.f32.mxu0 %v3528
  %4745 = vmatmul.mubr.f32.gmra.mrb[0].mxu0 %v3527
  %v4746 = vpop.f32.mrb[0].mxu0
  %v4747 = vadd.f32 %v4647, %v4746
  %v4748 = vpop.f32.mrb[0].mxu0
  %4749 = vmatprep.mubr.f32.mxu0 %v3553
  %4750 = vmatmul.mubr.f32.gmra.mrb[0].mxu0 %v3552
  %v4751 = vpop.f32.mrb[0].mxu0
  %v4752 = vadd.f32 %v4652, %v4751
  %v4753 = vpop.f32.mrb[0].mxu0
  %4754 = vdwg.mxu0
  %4755 = vmatprep.subr.mxu0 0.0
  %4756 = vmatpush1.msra.mxu0 %v407
  %4757 = vmatprep.subr.mxu0 0.0
  %4758 = vmatpush1.msra.mxu0 %v408
  %4759 = vmatprep.subr.mxu0 0.0
  %4760 = vmatpush1.msra.mxu0 %v409
  %4761 = vmatprep.subr.mxu0 0.0
  %4762 = vmatpush1.msra.mxu0 %v410
  %4763 = vmatprep.subr.mxu0 0.0
  %4764 = vmatpush1.msra.mxu0 %v411
  %4765 = vmatprep.subr.mxu0 0.0
  %4766 = vmatpush1.msra.mxu0 %v412
  %4767 = vmatprep.subr.mxu0 0.0
  %4768 = vmatpush1.msra.mxu0 %v413
  %4769 = vmatprep.subr.mxu0 0.0
  %4770 = vmatpush1.msra.mxu0 %v414
  %4771 = vmatprep.subr.mxu0 0.0
  %4772 = vmatpush1.msra.mxu0 %v415
  %4773 = vmatprep.subr.mxu0 0.0
  %4774 = vmatpush1.msra.mxu0 %v416
  %4775 = vmatprep.subr.mxu0 0.0
  %4776 = vmatpush1.msra.mxu0 %v417
  %4777 = vmatprep.subr.mxu0 0.0
  %4778 = vmatpush1.msra.mxu0 %v418
  %4779 = vmatprep.subr.mxu0 0.0
  %4780 = vmatpush1.msra.mxu0 %v419
  %4781 = vmatprep.subr.mxu0 0.0
  %4782 = vmatpush1.msra.mxu0 %v420
  %4783 = vmatprep.subr.mxu0 0.0
  %4784 = vmatpush1.msra.mxu0 %v421
  %4785 = vmatprep.subr.mxu0 0.0
  %4786 = vmatpush1.msra.mxu0 %v422
  %4787 = vmatprep.subr.mxu0 0.0
  %4788 = vmatpush1.msra.mxu0 0.0
  %4789 = vmatprep.subr.mxu0 0.0
  %4790 = vmatpush1.msra.mxu0 0.0
  %4791 = vmatprep.subr.mxu0 0.0
  %4792 = vmatpush1.msra.mxu0 0.0
  %4793 = vmatprep.subr.mxu0 0.0
  %4794 = vmatpush1.msra.mxu0 0.0
  %4795 = vmatprep.subr.mxu0 0.0
  %4796 = vmatpush1.msra.mxu0 0.0
  %4797 = vmatprep.subr.mxu0 0.0
  %4798 = vmatpush1.msra.mxu0 0.0
  %4799 = vmatprep.subr.mxu0 0.0
  %4800 = vmatpush1.msra.mxu0 0.0
  %4801 = vmatprep.subr.mxu0 0.0
  %4802 = vmatpush1.msra.mxu0 0.0
  %4803 = vmatprep.subr.mxu0 0.0
  %4804 = vmatpush1.msra.mxu0 0.0
  %4805 = vmatprep.subr.mxu0 0.0
  %4806 = vmatpush1.msra.mxu0 0.0
  %4807 = vmatprep.subr.mxu0 0.0
  %4808 = vmatpush1.msra.mxu0 0.0
  %4809 = vmatprep.subr.mxu0 0.0
  %4810 = vmatpush1.msra.mxu0 0.0
  %4811 = vmatprep.subr.mxu0 0.0
  %4812 = vmatpush1.msra.mxu0 0.0
  %4813 = vmatprep.subr.mxu0 0.0
  %4814 = vmatpush1.msra.mxu0 0.0
  %4815 = vmatprep.subr.mxu0 0.0
  %4816 = vmatpush1.msra.mxu0 0.0
  %4817 = vmatprep.subr.mxu0 0.0
  %4818 = vmatpush1.msra.mxu0 0.0
  %4819 = vmatprep.mubr.f32.mxu0 0.0
  %4820 = vmatmul.mubr.f32.gmra.mrb[0].mxu0 %v3404
  %v4821 = vpop.f32.mrb[0].mxu0
  %v4822 = vadd.f32 %v4722, %v4821
  %v4823 = vpop.f32.mrb[0].mxu0
  %4824 = vmatprep.mubr.f32.mxu0 0.0
  %4825 = vmatmul.mubr.f32.gmra.mrb[0].mxu0 %v3429
  %v4826 = vpop.f32.mrb[0].mxu0
  %v4827 = vadd.f32 %v4727, %v4826
  %v4828 = vpop.f32.mrb[0].mxu0
  %4829 = vmatprep.mubr.f32.mxu0 0.0
  %4830 = vmatmul.mubr.f32.gmra.mrb[0].mxu0 %v3454
  %v4831 = vpop.f32.mrb[0].mxu0
  %v4832 = vadd.f32 %v4732, %v4831
  %v4833 = vpop.f32.mrb[0].mxu0
  %4834 = vmatprep.mubr.f32.mxu0 0.0
  %4835 = vmatmul.mubr.f32.gmra.mrb[0].mxu0 %v3479
  %v4836 = vpop.f32.mrb[0].mxu0
  %v4837 = vadd.f32 %v4737, %v4836
  %v4838 = vpop.f32.mrb[0].mxu0
  %4839 = vmatprep.mubr.f32.mxu0 0.0
  %4840 = vmatmul.mubr.f32.gmra.mrb[0].mxu0 %v3504
  %v4841 = vpop.f32.mrb[0].mxu0
  %v4842 = vadd.f32 %v4742, %v4841
  %v4843 = vpop.f32.mrb[0].mxu0
  %4844 = vmatprep.mubr.f32.mxu0 0.0
  %4845 = vmatmul.mubr.f32.gmra.mrb[0].mxu0 %v3529
  %v4846 = vpop.f32.mrb[0].mxu0
  %v4847 = vadd.f32 %v4747, %v4846
  %v4848 = vpop.f32.mrb[0].mxu0
  %4849 = vmatprep.mubr.f32.mxu0 0.0
  %4850 = vmatmul.mubr.f32.gmra.mrb[0].mxu0 %v3554
  %v4851 = vpop.f32.mrb[0].mxu0
  %v4852 = vadd.f32 %v4752, %v4851
  %v4853 = vpop.f32.mrb[0].mxu0
  %4854 = vdwg.mxu0
  %v4855 = vmax.f32 %v3373, %v4822
  %v4856 = vmax.f32 %v3374, %v4827
  %v4857 = vmax.f32 %v3375, %v4832
  %v4858 = vmax.f32 %v3376, %v4837
  %v4859 = vmax.f32 %v3377, %v4842
  %v4860 = vmax.f32 %v3378, %v4847
  %v4861 = vmax.f32 %v3379, %v4852
  %v4862 = vld [vmem:[%s3] sm:$0xff]
  %v4863 = vld [vmem:[%s3 + $0x8] sm:$0xff]
  %v4864 = vld [vmem:[%s3 + $0x10] sm:$0xff]
  %v4865 = vld [vmem:[%s3 + $0x18] sm:$0xff]
  %v4866 = vld [vmem:[%s3 + $0x20] sm:$0xff]
  %v4867 = vld [vmem:[%s3 + $0x28] sm:$0xff]
  %v4868 = vld [vmem:[%s3 + $0x30] sm:$0xff]
  %v4869 = vld [vmem:[%s3 + $0x38] sm:$0xff]
  %v4870 = vld [vmem:[%s3 + $0x40] sm:$0xff]
  %v4871 = vld [vmem:[%s3 + $0x48] sm:$0xff]
  %v4872 = vld [vmem:[%s3 + $0x50] sm:$0xff]
  %v4873 = vld [vmem:[%s3 + $0x58] sm:$0xff]
  %v4874 = vld [vmem:[%s3 + $0x60] sm:$0xff]
  %v4875 = vld [vmem:[%s3 + $0x68] sm:$0xff]
  %v4876 = vld [vmem:[%s3 + $0x70] sm:$0xff]
  %v4877 = vld [vmem:[%s3 + $0x78] sm:$0xff]
  %v4878 = vld [vmem:[%s3 + $0x80] sm:$0xff]
  %v4879 = vld [vmem:[%s3 + $0x88] sm:$0xff]
  %v4880 = vld [vmem:[%s3 + $0x90] sm:$0xff]
  %v4881 = vld [vmem:[%s3 + $0x98] sm:$0xff]
  %v4882 = vld [vmem:[%s3 + $0xa0] sm:$0xff]
  %v4883 = vld [vmem:[%s3 + $0xa8] sm:$0xff]
  %v4884 = vld [vmem:[%s3 + $0xb0] sm:$0xff]
  %v4885 = vld [vmem:[%s3 + $0xb8] sm:$0xff]
  %v4886 = vld [vmem:[%s3 + $0xc0] sm:$0xff]
  %v4887 = vld [vmem:[%s3 + $0xc8] sm:$0xff]
  %v4888 = vld [vmem:[%s3 + $0xd0] sm:$0xff]
  %v4889 = vld [vmem:[%s3 + $0xd8] sm:$0xff]
  %v4890 = vld [vmem:[%s3 + $0xe0] sm:$0xff]
  %v4891 = vld [vmem:[%s3 + $0xe8] sm:$0xff]
  %v4892 = vld [vmem:[%s3 + $0xf0] sm:$0xff]
  %v4893 = vld [vmem:[%s3 + $0xf8] sm:$0xff]
  %v4894 = vld [vmem:[%s3 + $0x100] sm:$0xff]
  %v4895 = vld [vmem:[%s3 + $0x108] sm:$0xff]
  %v4896 = vld [vmem:[%s3 + $0x110] sm:$0xff]
  %v4897 = vld [vmem:[%s3 + $0x118] sm:$0xff]
  %v4898 = vld [vmem:[%s3 + $0x120] sm:$0xff]
  %v4899 = vld [vmem:[%s3 + $0x128] sm:$0xff]
  %v4900 = vld [vmem:[%s3 + $0x130] sm:$0xff]
  %v4901 = vld [vmem:[%s3 + $0x138] sm:$0xff]
  %v4902 = vld [vmem:[%s3 + $0x140] sm:$0xff]
  %v4903 = vld [vmem:[%s3 + $0x148] sm:$0xff]
  %v4904 = vld [vmem:[%s3 + $0x150] sm:$0xff]
  %v4905 = vld [vmem:[%s3 + $0x158] sm:$0xff]
  %v4906 = vld [vmem:[%s3 + $0x160] sm:$0xff]
  %v4907 = vld [vmem:[%s3 + $0x168] sm:$0xff]
  %v4908 = vld [vmem:[%s3 + $0x170] sm:$0xff]
  %v4909 = vld [vmem:[%s3 + $0x178] sm:$0xff]
  %v4910 = vld [vmem:[%s3 + $0x180] sm:$0xff]
  %v4911 = vld [vmem:[%s3 + $0x188] sm:$0xff]
  %v4912 = vld [vmem:[%s3 + $0x190] sm:$0xff]
  %v4913 = vld [vmem:[%s3 + $0x198] sm:$0xff]
  %v4914 = vld [vmem:[%s3 + $0x1a0] sm:$0xff]
  %v4915 = vld [vmem:[%s3 + $0x1a8] sm:$0xff]
  %v4916 = vld [vmem:[%s3 + $0x1b0] sm:$0xff]
  %v4917 = vld [vmem:[%s3 + $0x1b8] sm:$0xff]
  %v4918 = vld [vmem:[%s3 + $0x1c0] sm:$0xff]
  %v4919 = vld [vmem:[%s3 + $0x1c8] sm:$0xff]
  %v4920 = vld [vmem:[%s3 + $0x1d0] sm:$0xff]
  %v4921 = vld [vmem:[%s3 + $0x1d8] sm:$0xff]
  %v4922 = vld [vmem:[%s3 + $0x1e0] sm:$0xff]
  %v4923 = vld [vmem:[%s3 + $0x1e8] sm:$0xff]
  %v4924 = vld [vmem:[%s3 + $0x1f0] sm:$0xff]
  %v4925 = vld [vmem:[%s3 + $0x1f8] sm:$0xff]
  %v4926 = vld [vmem:[%s3 + $0x200] sm:$0xff]
  %v4927 = vld [vmem:[%s3 + $0x208] sm:$0xff]
  %v4928 = vld [vmem:[%s3 + $0x210] sm:$0xff]
  %v4929 = vld [vmem:[%s3 + $0x218] sm:$0xff]
  %v4930 = vld [vmem:[%s3 + $0x220] sm:$0xff]
  %v4931 = vld [vmem:[%s3 + $0x228] sm:$0xff]
  %v4932 = vld [vmem:[%s3 + $0x230] sm:$0xff]
  %v4933 = vld [vmem:[%s3 + $0x238] sm:$0xff]
  %v4934 = vld [vmem:[%s3 + $0x240] sm:$0xff]
  %v4935 = vld [vmem:[%s3 + $0x248] sm:$0xff]
  %v4936 = vld [vmem:[%s3 + $0x250] sm:$0xff]
  %v4937 = vld [vmem:[%s3 + $0x258] sm:$0xff]
  %v4938 = vld [vmem:[%s3 + $0x260] sm:$0xff]
  %v4939 = vld [vmem:[%s3 + $0x268] sm:$0xff]
  %v4940 = vld [vmem:[%s3 + $0x270] sm:$0xff]
  %v4941 = vld [vmem:[%s3 + $0x278] sm:$0xff]
  %v4942 = vld [vmem:[%s3 + $0x280] sm:$0xff]
  %v4943 = vld [vmem:[%s3 + $0x288] sm:$0xff]
  %v4944 = vld [vmem:[%s3 + $0x290] sm:$0xff]
  %v4945 = vld [vmem:[%s3 + $0x298] sm:$0xff]
  %v4946 = vld [vmem:[%s3 + $0x2a0] sm:$0xff]
  %v4947 = vld [vmem:[%s3 + $0x2a8] sm:$0xff]
  %v4948 = vld [vmem:[%s3 + $0x2b0] sm:$0xff]
  %v4949 = vld [vmem:[%s3 + $0x2b8] sm:$0xff]
  %v4950 = vld [vmem:[%s3 + $0x2c0] sm:$0xff]
  %v4951 = vld [vmem:[%s3 + $0x2c8] sm:$0xff]
  %v4952 = vld [vmem:[%s3 + $0x2d0] sm:$0xff]
  %v4953 = vld [vmem:[%s3 + $0x2d8] sm:$0xff]
  %v4954 = vld [vmem:[%s3 + $0x2e0] sm:$0xff]
  %v4955 = vld [vmem:[%s3 + $0x2e8] sm:$0xff]
  %v4956 = vld [vmem:[%s3 + $0x2f0] sm:$0xff]
  %v4957 = vld [vmem:[%s3 + $0x2f8] sm:$0xff]
  %v4958 = vld [vmem:[%s3 + $0x300] sm:$0xff]
  %v4959 = vld [vmem:[%s3 + $0x308] sm:$0xff]
  %v4960 = vld [vmem:[%s3 + $0x310] sm:$0xff]
  %v4961 = vld [vmem:[%s3 + $0x318] sm:$0xff]
  %v4962 = vld [vmem:[%s3 + $0x320] sm:$0xff]
  %v4963 = vld [vmem:[%s3 + $0x328] sm:$0xff]
  %v4964 = vld [vmem:[%s3 + $0x330] sm:$0xff]
  %v4965 = vld [vmem:[%s3 + $0x338] sm:$0xff]
  %v4966 = vld [vmem:[%s3 + $0x340] sm:$0xff]
  %v4967 = vld [vmem:[%s3 + $0x348] sm:$0xff]
  %v4968 = vld [vmem:[%s3 + $0x350] sm:$0xff]
  %v4969 = vld [vmem:[%s3 + $0x358] sm:$0xff]
  %v4970 = vld [vmem:[%s3 + $0x360] sm:$0xff]
  %v4971 = vld [vmem:[%s3 + $0x368] sm:$0xff]
  %v4972 = vld [vmem:[%s3 + $0x370] sm:$0xff]
  %v4973 = vld [vmem:[%s3 + $0x378] sm:$0xff]
  %v4974 = vld [vmem:[%s3 + $0x380] sm:$0xff]
  %v4975 = vld [vmem:[%s3 + $0x388] sm:$0xff]
  %v4976 = vld [vmem:[%s3 + $0x390] sm:$0xff]
  %v4977 = vld [vmem:[%s3 + $0x398] sm:$0xff]
  %v4978 = vld [vmem:[%s3 + $0x3a0] sm:$0xff]
  %v4979 = vld [vmem:[%s3 + $0x3a8] sm:$0xff]
  %v4980 = vld [vmem:[%s3 + $0x3b0] sm:$0xff]
  %v4981 = vld [vmem:[%s3 + $0x3b8] sm:$0xff]
  %v4982 = vld [vmem:[%s3 + $0x3c0] sm:$0xff]
  %v4983 = vld [vmem:[%s3 + $0x3c8] sm:$0xff]
  %v4984 = vld [vmem:[%s3 + $0x3d0] sm:$0xff]
  %v4985 = vld [vmem:[%s3 + $0x3d8] sm:$0xff]
  %v4986 = vld [vmem:[%s3 + $0x3e0] sm:$0xff]
  %v4987 = vld [vmem:[%s3 + $0x3e8] sm:$0xff]
  %v4988 = vld [vmem:[%s3 + $0x3f0] sm:$0xff]
  %v4989 = vld [vmem:[%s3 + $0x3f8] sm:$0xff]
  %v4990 = vld [vmem:[%s3 + $0x400] sm:$0xff]
  %v4991 = vld [vmem:[%s3 + $0x408] sm:$0xff]
  %v4992 = vld [vmem:[%s3 + $0x410] sm:$0xff]
  %v4993 = vld [vmem:[%s3 + $0x418] sm:$0xff]
  %v4994 = vld [vmem:[%s3 + $0x420] sm:$0xff]
  %v4995 = vld [vmem:[%s3 + $0x428] sm:$0xff]
  %v4996 = vld [vmem:[%s3 + $0x430] sm:$0xff]
  %v4997 = vld [vmem:[%s3 + $0x438] sm:$0xff]
  %v4998 = vld [vmem:[%s3 + $0x440] sm:$0xff]
  %v4999 = vld [vmem:[%s3 + $0x448] sm:$0xff]
  %v5000 = vld [vmem:[%s3 + $0x450] sm:$0xff]
  %v5001 = vld [vmem:[%s3 + $0x458] sm:$0xff]
  %v5002 = vld [vmem:[%s3 + $0x460] sm:$0xff]
  %v5003 = vld [vmem:[%s3 + $0x468] sm:$0xff]
  %v5004 = vld [vmem:[%s3 + $0x470] sm:$0xff]
  %v5005 = vld [vmem:[%s3 + $0x478] sm:$0xff]
  %v5006 = vld [vmem:[%s3 + $0x480] sm:$0xff]
  %v5007 = vld [vmem:[%s3 + $0x488] sm:$0xff]
  %v5008 = vld [vmem:[%s3 + $0x490] sm:$0xff]
  %v5009 = vld [vmem:[%s3 + $0x498] sm:$0xff]
  %v5010 = vld [vmem:[%s3 + $0x4a0] sm:$0xff]
  %v5011 = vld [vmem:[%s3 + $0x4a8] sm:$0xff]
  %v5012 = vld [vmem:[%s3 + $0x4b0] sm:$0xff]
  %v5013 = vld [vmem:[%s3 + $0x4b8] sm:$0xff]
  %v5014 = vld [vmem:[%s3 + $0x4c0] sm:$0xff]
  %v5015 = vld [vmem:[%s3 + $0x4c8] sm:$0xff]
  %v5016 = vld [vmem:[%s3 + $0x4d0] sm:$0xff]
  %v5017 = vld [vmem:[%s3 + $0x4d8] sm:$0xff]
  %v5018 = vld [vmem:[%s3 + $0x4e0] sm:$0xff]
  %v5019 = vld [vmem:[%s3 + $0x4e8] sm:$0xff]
  %v5020 = vld [vmem:[%s3 + $0x4f0] sm:$0xff]
  %v5021 = vld [vmem:[%s3 + $0x4f8] sm:$0xff]
  %v5022 = vld [vmem:[%s3 + $0x500] sm:$0xff]
  %v5023 = vld [vmem:[%s3 + $0x508] sm:$0xff]
  %v5024 = vld [vmem:[%s3 + $0x510] sm:$0xff]
  %v5025 = vld [vmem:[%s3 + $0x518] sm:$0xff]
  %v5026 = vld [vmem:[%s3 + $0x520] sm:$0xff]
  %v5027 = vld [vmem:[%s3 + $0x528] sm:$0xff]
  %v5028 = vld [vmem:[%s3 + $0x530] sm:$0xff]
  %v5029 = vld [vmem:[%s3 + $0x538] sm:$0xff]
  %v5030 = vld [vmem:[%s3 + $0x540] sm:$0xff]
  %v5031 = vld [vmem:[%s3 + $0x548] sm:$0xff]
  %v5032 = vld [vmem:[%s3 + $0x550] sm:$0xff]
  %v5033 = vld [vmem:[%s3 + $0x558] sm:$0xff]
  %v5034 = vld [vmem:[%s3 + $0x560] sm:$0xff]
  %v5035 = vld [vmem:[%s3 + $0x568] sm:$0xff]
  %v5036 = vld [vmem:[%s3 + $0x570] sm:$0xff]
  %5037 = vmatprep.subr.mxu0 0.0
  %5038 = vmatpush1.msra.mxu0 %v23
  %5039 = vmatprep.subr.mxu0 0.0
  %5040 = vmatpush1.msra.mxu0 %v24
  %5041 = vmatprep.subr.mxu0 0.0
  %5042 = vmatpush1.msra.mxu0 %v25
  %5043 = vmatprep.subr.mxu0 0.0
  %5044 = vmatpush1.msra.mxu0 %v26
  %5045 = vmatprep.subr.mxu0 0.0
  %5046 = vmatpush1.msra.mxu0 %v27
  %5047 = vmatprep.subr.mxu0 0.0
  %5048 = vmatpush1.msra.mxu0 %v28
  %5049 = vmatprep.subr.mxu0 0.0
  %5050 = vmatpush1.msra.mxu0 %v29
  %5051 = vmatprep.subr.mxu0 0.0
  %5052 = vmatpush1.msra.mxu0 %v30
  %5053 = vmatprep.subr.mxu0 0.0
  %5054 = vmatpush1.msra.mxu0 %v31
  %5055 = vmatprep.subr.mxu0 0.0
  %5056 = vmatpush1.msra.mxu0 %v32
  %5057 = vmatprep.subr.mxu0 0.0
  %5058 = vmatpush1.msra.mxu0 %v33
  %5059 = vmatprep.subr.mxu0 0.0
  %5060 = vmatpush1.msra.mxu0 %v34
  %5061 = vmatprep.subr.mxu0 0.0
  %5062 = vmatpush1.msra.mxu0 %v35
  %5063 = vmatprep.subr.mxu0 0.0
  %5064 = vmatpush1.msra.mxu0 %v36
  %5065 = vmatprep.subr.mxu0 0.0
  %5066 = vmatpush1.msra.mxu0 %v37
  %5067 = vmatprep.subr.mxu0 0.0
  %5068 = vmatpush1.msra.mxu0 %v38
  %5069 = vmatprep.subr.mxu0 0.0
  %5070 = vmatpush1.msra.mxu0 %v39
  %5071 = vmatprep.subr.mxu0 0.0
  %5072 = vmatpush1.msra.mxu0 %v40
  %5073 = vmatprep.subr.mxu0 0.0
  %5074 = vmatpush1.msra.mxu0 %v41
  %5075 = vmatprep.subr.mxu0 0.0
  %5076 = vmatpush1.msra.mxu0 %v42
  %5077 = vmatprep.subr.mxu0 0.0
  %5078 = vmatpush1.msra.mxu0 %v43
  %5079 = vmatprep.subr.mxu0 0.0
  %5080 = vmatpush1.msra.mxu0 %v44
  %5081 = vmatprep.subr.mxu0 0.0
  %5082 = vmatpush1.msra.mxu0 %v45
  %5083 = vmatprep.subr.mxu0 0.0
  %5084 = vmatpush1.msra.mxu0 %v46
  %5085 = vmatprep.subr.mxu0 0.0
  %5086 = vmatpush1.msra.mxu0 %v47
  %5087 = vmatprep.subr.mxu0 0.0
  %5088 = vmatpush1.msra.mxu0 %v48
  %5089 = vmatprep.subr.mxu0 0.0
  %5090 = vmatpush1.msra.mxu0 %v49
  %5091 = vmatprep.subr.mxu0 0.0
  %5092 = vmatpush1.msra.mxu0 %v50
  %5093 = vmatprep.subr.mxu0 0.0
  %5094 = vmatpush1.msra.mxu0 %v51
  %5095 = vmatprep.subr.mxu0 0.0
  %5096 = vmatpush1.msra.mxu0 %v52
  %5097 = vmatprep.subr.mxu0 0.0
  %5098 = vmatpush1.msra.mxu0 %v53
  %5099 = vmatprep.subr.mxu0 0.0
  %5100 = vmatpush1.msra.mxu0 %v54
  %5101 = vmatprep.mubr.f32.mxu0 %v4863
  %5102 = vmatmul.mubr.f32.gmra.mrb[0].mxu0 %v4862
  %v5103 = vpop.f32.mrb[0].mxu0
  %v5104 = vadd.f32 0.0, %v5103
  %v5105 = vpop.f32.mrb[0].mxu0
  %5106 = vmatprep.mubr.f32.mxu0 %v4888
  %5107 = vmatmul.mubr.f32.gmra.mrb[0].mxu0 %v4887
  %v5108 = vpop.f32.mrb[0].mxu0
  %v5109 = vadd.f32 0.0, %v5108
  %v5110 = vpop.f32.mrb[0].mxu0
  %5111 = vmatprep.mubr.f32.mxu0 %v4913
  %5112 = vmatmul.mubr.f32.gmra.mrb[0].mxu0 %v4912
  %v5113 = vpop.f32.mrb[0].mxu0
  %v5114 = vadd.f32 0.0, %v5113
  %v5115 = vpop.f32.mrb[0].mxu0
  %5116 = vmatprep.mubr.f32.mxu0 %v4938
  %5117 = vmatmul.mubr.f32.gmra.mrb[0].mxu0 %v4937
  %v5118 = vpop.f32.mrb[0].mxu0
  %v5119 = vadd.f32 0.0, %v5118
  %v5120 = vpop.f32.mrb[0].mxu0
  %5121 = vmatprep.mubr.f32.mxu0 %v4963
  %5122 = vmatmul.mubr.f32.gmra.mrb[0].mxu0 %v4962
  %v5123 = vpop.f32.mrb[0].mxu0
  %v5124 = vadd.f32 0.0, %v5123
  %v5125 = vpop.f32.mrb[0].mxu0
  %5126 = vmatprep.mubr.f32.mxu0 %v4988
  %5127 = vmatmul.mubr.f32.gmra.mrb[0].mxu0 %v4987
  %v5128 = vpop.f32.mrb[0].mxu0
  %v5129 = vadd.f32 0.0, %v5128
  %v5130 = vpop.f32.mrb[0].mxu0
  %5131 = vmatprep.mubr.f32.mxu0 %v5013
  %5132 = vmatmul.mubr.f32.gmra.mrb[0].mxu0 %v5012
  %v5133 = vpop.f32.mrb[0].mxu0
  %v5134 = vadd.f32 0.0, %v5133
  %v5135 = vpop.f32.mrb[0].mxu0
  %5136 = vdwg.mxu0
  %5137 = vmatprep.subr.mxu0 0.0
  %5138 = vmatpush1.msra.mxu0 %v55
  %5139 = vmatprep.subr.mxu0 0.0
  %5140 = vmatpush1.msra.mxu0 %v56
  %5141 = vmatprep.subr.mxu0 0.0
  %5142 = vmatpush1.msra.mxu0 %v57
  %5143 = vmatprep.subr.mxu0 0.0
  %5144 = vmatpush1.msra.mxu0 %v58
  %5145 = vmatprep.subr.mxu0 0.0
  %5146 = vmatpush1.msra.mxu0 %v59
  %5147 = vmatprep.subr.mxu0 0.0
  %5148 = vmatpush1.msra.mxu0 %v60
  %5149 = vmatprep.subr.mxu0 0.0
  %5150 = vmatpush1.msra.mxu0 %v61
  %5151 = vmatprep.subr.mxu0 0.0
  %5152 = vmatpush1.msra.mxu0 %v62
  %5153 = vmatprep.subr.mxu0 0.0
  %5154 = vmatpush1.msra.mxu0 %v63
  %5155 = vmatprep.subr.mxu0 0.0
  %5156 = vmatpush1.msra.mxu0 %v64
  %5157 = vmatprep.subr.mxu0 0.0
  %5158 = vmatpush1.msra.mxu0 %v65
  %5159 = vmatprep.subr.mxu0 0.0
  %5160 = vmatpush1.msra.mxu0 %v66
  %5161 = vmatprep.subr.mxu0 0.0
  %5162 = vmatpush1.msra.mxu0 %v67
  %5163 = vmatprep.subr.mxu0 0.0
  %5164 = vmatpush1.msra.mxu0 %v68
  %5165 = vmatprep.subr.mxu0 0.0
  %5166 = vmatpush1.msra.mxu0 %v69
  %5167 = vmatprep.subr.mxu0 0.0
  %5168 = vmatpush1.msra.mxu0 %v70
  %5169 = vmatprep.subr.mxu0 0.0
  %5170 = vmatpush1.msra.mxu0 %v71
  %5171 = vmatprep.subr.mxu0 0.0
  %5172 = vmatpush1.msra.mxu0 %v72
  %5173 = vmatprep.subr.mxu0 0.0
  %5174 = vmatpush1.msra.mxu0 %v73
  %5175 = vmatprep.subr.mxu0 0.0
  %5176 = vmatpush1.msra.mxu0 %v74
  %5177 = vmatprep.subr.mxu0 0.0
  %5178 = vmatpush1.msra.mxu0 %v75
  %5179 = vmatprep.subr.mxu0 0.0
  %5180 = vmatpush1.msra.mxu0 %v76
  %5181 = vmatprep.subr.mxu0 0.0
  %5182 = vmatpush1.msra.mxu0 %v77
  %5183 = vmatprep.subr.mxu0 0.0
  %5184 = vmatpush1.msra.mxu0 %v78
  %5185 = vmatprep.subr.mxu0 0.0
  %5186 = vmatpush1.msra.mxu0 %v79
  %5187 = vmatprep.subr.mxu0 0.0
  %5188 = vmatpush1.msra.mxu0 %v80
  %5189 = vmatprep.subr.mxu0 0.0
  %5190 = vmatpush1.msra.mxu0 %v81
  %5191 = vmatprep.subr.mxu0 0.0
  %5192 = vmatpush1.msra.mxu0 %v82
  %5193 = vmatprep.subr.mxu0 0.0
  %5194 = vmatpush1.msra.mxu0 %v83
  %5195 = vmatprep.subr.mxu0 0.0
  %5196 = vmatpush1.msra.mxu0 %v84
  %5197 = vmatprep.subr.mxu0 0.0
  %5198 = vmatpush1.msra.mxu0 %v85
  %5199 = vmatprep.subr.mxu0 0.0
  %5200 = vmatpush1.msra.mxu0 %v86
  %5201 = vmatprep.mubr.f32.mxu0 %v4865
  %5202 = vmatmul.mubr.f32.gmra.mrb[0].mxu0 %v4864
  %v5203 = vpop.f32.mrb[0].mxu0
  %v5204 = vadd.f32 %v5104, %v5203
  %v5205 = vpop.f32.mrb[0].mxu0
  %5206 = vmatprep.mubr.f32.mxu0 %v4890
  %5207 = vmatmul.mubr.f32.gmra.mrb[0].mxu0 %v4889
  %v5208 = vpop.f32.mrb[0].mxu0
  %v5209 = vadd.f32 %v5109, %v5208
  %v5210 = vpop.f32.mrb[0].mxu0
  %5211 = vmatprep.mubr.f32.mxu0 %v4915
  %5212 = vmatmul.mubr.f32.gmra.mrb[0].mxu0 %v4914
  %v5213 = vpop.f32.mrb[0].mxu0
  %v5214 = vadd.f32 %v5114, %v5213
  %v5215 = vpop.f32.mrb[0].mxu0
  %5216 = vmatprep.mubr.f32.mxu0 %v4940
  %5217 = vmatmul.mubr.f32.gmra.mrb[0].mxu0 %v4939
  %v5218 = vpop.f32.mrb[0].mxu0
  %v5219 = vadd.f32 %v5119, %v5218
  %v5220 = vpop.f32.mrb[0].mxu0
  %5221 = vmatprep.mubr.f32.mxu0 %v4965
  %5222 = vmatmul.mubr.f32.gmra.mrb[0].mxu0 %v4964
  %v5223 = vpop.f32.mrb[0].mxu0
  %v5224 = vadd.f32 %v5124, %v5223
  %v5225 = vpop.f32.mrb[0].mxu0
  %5226 = vmatprep.mubr.f32.mxu0 %v4990
  %5227 = vmatmul.mubr.f32.gmra.mrb[0].mxu0 %v4989
  %v5228 = vpop.f32.mrb[0].mxu0
  %v5229 = vadd.f32 %v5129, %v5228
  %v5230 = vpop.f32.mrb[0].mxu0
  %5231 = vmatprep.mubr.f32.mxu0 %v5015
  %5232 = vmatmul.mubr.f32.gmra.mrb[0].mxu0 %v5014
  %v5233 = vpop.f32.mrb[0].mxu0
  %v5234 = vadd.f32 %v5134, %v5233
  %v5235 = vpop.f32.mrb[0].mxu0
  %5236 = vdwg.mxu0
  %5237 = vmatprep.subr.mxu0 0.0
  %5238 = vmatpush1.msra.mxu0 %v87
  %5239 = vmatprep.subr.mxu0 0.0
  %5240 = vmatpush1.msra.mxu0 %v88
  %5241 = vmatprep.subr.mxu0 0.0
  %5242 = vmatpush1.msra.mxu0 %v89
  %5243 = vmatprep.subr.mxu0 0.0
  %5244 = vmatpush1.msra.mxu0 %v90
  %5245 = vmatprep.subr.mxu0 0.0
  %5246 = vmatpush1.msra.mxu0 %v91
  %5247 = vmatprep.subr.mxu0 0.0
  %5248 = vmatpush1.msra.mxu0 %v92
  %5249 = vmatprep.subr.mxu0 0.0
  %5250 = vmatpush1.msra.mxu0 %v93
  %5251 = vmatprep.subr.mxu0 0.0
  %5252 = vmatpush1.msra.mxu0 %v94
  %5253 = vmatprep.subr.mxu0 0.0
  %5254 = vmatpush1.msra.mxu0 %v95
  %5255 = vmatprep.subr.mxu0 0.0
  %5256 = vmatpush1.msra.mxu0 %v96
  %5257 = vmatprep.subr.mxu0 0.0
  %5258 = vmatpush1.msra.mxu0 %v97
  %5259 = vmatprep.subr.mxu0 0.0
  %5260 = vmatpush1.msra.mxu0 %v98
  %5261 = vmatprep.subr.mxu0 0.0
  %5262 = vmatpush1.msra.mxu0 %v99
  %5263 = vmatprep.subr.mxu0 0.0
  %5264 = vmatpush1.msra.mxu0 %v100
  %5265 = vmatprep.subr.mxu0 0.0
  %5266 = vmatpush1.msra.mxu0 %v101
  %5267 = vmatprep.subr.mxu0 0.0
  %5268 = vmatpush1.msra.mxu0 %v102
  %5269 = vmatprep.subr.mxu0 0.0
  %5270 = vmatpush1.msra.mxu0 %v103
  %5271 = vmatprep.subr.mxu0 0.0
  %5272 = vmatpush1.msra.mxu0 %v104
  %5273 = vmatprep.subr.mxu0 0.0
  %5274 = vmatpush1.msra.mxu0 %v105
  %5275 = vmatprep.subr.mxu0 0.0
  %5276 = vmatpush1.msra.mxu0 %v106
  %5277 = vmatprep.subr.mxu0 0.0
  %5278 = vmatpush1.msra.mxu0 %v107
  %5279 = vmatprep.subr.mxu0 0.0
  %5280 = vmatpush1.msra.mxu0 %v108
  %5281 = vmatprep.subr.mxu0 0.0
  %5282 = vmatpush1.msra.mxu0 %v109
  %5283 = vmatprep.subr.mxu0 0.0
  %5284 = vmatpush1.msra.mxu0 %v110
  %5285 = vmatprep.subr.mxu0 0.0
  %5286 = vmatpush1.msra.mxu0 %v111
  %5287 = vmatprep.subr.mxu0 0.0
  %5288 = vmatpush1.msra.mxu0 %v112
  %5289 = vmatprep.subr.mxu0 0.0
  %5290 = vmatpush1.msra.mxu0 %v113
  %5291 = vmatprep.subr.mxu0 0.0
  %5292 = vmatpush1.msra.mxu0 %v114
  %5293 = vmatprep.subr.mxu0 0.0
  %5294 = vmatpush1.msra.mxu0 %v115
  %5295 = vmatprep.subr.mxu0 0.0
  %5296 = vmatpush1.msra.mxu0 %v116
  %5297 = vmatprep.subr.mxu0 0.0
  %5298 = vmatpush1.msra.mxu0 %v117
  %5299 = vmatprep.subr.mxu0 0.0
  %5300 = vmatpush1.msra.mxu0 %v118
  %5301 = vmatprep.mubr.f32.mxu0 %v4867
  %5302 = vmatmul.mubr.f32.gmra.mrb[0].mxu0 %v4866
  %v5303 = vpop.f32.mrb[0].mxu0
  %v5304 = vadd.f32 %v5204, %v5303
  %v5305 = vpop.f32.mrb[0].mxu0
  %5306 = vmatprep.mubr.f32.mxu0 %v4892
  %5307 = vmatmul.mubr.f32.gmra.mrb[0].mxu0 %v4891
  %v5308 = vpop.f32.mrb[0].mxu0
  %v5309 = vadd.f32 %v5209, %v5308
  %v5310 = vpop.f32.mrb[0].mxu0
  %5311 = vmatprep.mubr.f32.mxu0 %v4917
  %5312 = vmatmul.mubr.f32.gmra.mrb[0].mxu0 %v4916
  %v5313 = vpop.f32.mrb[0].mxu0
  %v5314 = vadd.f32 %v5214, %v5313
  %v5315 = vpop.f32.mrb[0].mxu0
  %5316 = vmatprep.mubr.f32.mxu0 %v4942
  %5317 = vmatmul.mubr.f32.gmra.mrb[0].mxu0 %v4941
  %v5318 = vpop.f32.mrb[0].mxu0
  %v5319 = vadd.f32 %v5219, %v5318
  %v5320 = vpop.f32.mrb[0].mxu0
  %5321 = vmatprep.mubr.f32.mxu0 %v4967
  %5322 = vmatmul.mubr.f32.gmra.mrb[0].mxu0 %v4966
  %v5323 = vpop.f32.mrb[0].mxu0
  %v5324 = vadd.f32 %v5224, %v5323
  %v5325 = vpop.f32.mrb[0].mxu0
  %5326 = vmatprep.mubr.f32.mxu0 %v4992
  %5327 = vmatmul.mubr.f32.gmra.mrb[0].mxu0 %v4991
  %v5328 = vpop.f32.mrb[0].mxu0
  %v5329 = vadd.f32 %v5229, %v5328
  %v5330 = vpop.f32.mrb[0].mxu0
  %5331 = vmatprep.mubr.f32.mxu0 %v5017
  %5332 = vmatmul.mubr.f32.gmra.mrb[0].mxu0 %v5016
  %v5333 = vpop.f32.mrb[0].mxu0
  %v5334 = vadd.f32 %v5234, %v5333
  %v5335 = vpop.f32.mrb[0].mxu0
  %5336 = vdwg.mxu0
  %5337 = vmatprep.subr.mxu0 0.0
  %5338 = vmatpush1.msra.mxu0 %v119
  %5339 = vmatprep.subr.mxu0 0.0
  %5340 = vmatpush1.msra.mxu0 %v120
  %5341 = vmatprep.subr.mxu0 0.0
  %5342 = vmatpush1.msra.mxu0 %v121
  %5343 = vmatprep.subr.mxu0 0.0
  %5344 = vmatpush1.msra.mxu0 %v122
  %5345 = vmatprep.subr.mxu0 0.0
  %5346 = vmatpush1.msra.mxu0 %v123
  %5347 = vmatprep.subr.mxu0 0.0
  %5348 = vmatpush1.msra.mxu0 %v124
  %5349 = vmatprep.subr.mxu0 0.0
  %5350 = vmatpush1.msra.mxu0 %v125
  %5351 = vmatprep.subr.mxu0 0.0
  %5352 = vmatpush1.msra.mxu0 %v126
  %5353 = vmatprep.subr.mxu0 0.0
  %5354 = vmatpush1.msra.mxu0 %v127
  %5355 = vmatprep.subr.mxu0 0.0
  %5356 = vmatpush1.msra.mxu0 %v128
  %5357 = vmatprep.subr.mxu0 0.0
  %5358 = vmatpush1.msra.mxu0 %v129
  %5359 = vmatprep.subr.mxu0 0.0
  %5360 = vmatpush1.msra.mxu0 %v130
  %5361 = vmatprep.subr.mxu0 0.0
  %5362 = vmatpush1.msra.mxu0 %v131
  %5363 = vmatprep.subr.mxu0 0.0
  %5364 = vmatpush1.msra.mxu0 %v132
  %5365 = vmatprep.subr.mxu0 0.0
  %5366 = vmatpush1.msra.mxu0 %v133
  %5367 = vmatprep.subr.mxu0 0.0
  %5368 = vmatpush1.msra.mxu0 %v134
  %5369 = vmatprep.subr.mxu0 0.0
  %5370 = vmatpush1.msra.mxu0 %v135
  %5371 = vmatprep.subr.mxu0 0.0
  %5372 = vmatpush1.msra.mxu0 %v136
  %5373 = vmatprep.subr.mxu0 0.0
  %5374 = vmatpush1.msra.mxu0 %v137
  %5375 = vmatprep.subr.mxu0 0.0
  %5376 = vmatpush1.msra.mxu0 %v138
  %5377 = vmatprep.subr.mxu0 0.0
  %5378 = vmatpush1.msra.mxu0 %v139
  %5379 = vmatprep.subr.mxu0 0.0
  %5380 = vmatpush1.msra.mxu0 %v140
  %5381 = vmatprep.subr.mxu0 0.0
  %5382 = vmatpush1.msra.mxu0 %v141
  %5383 = vmatprep.subr.mxu0 0.0
  %5384 = vmatpush1.msra.mxu0 %v142
  %5385 = vmatprep.subr.mxu0 0.0
  %5386 = vmatpush1.msra.mxu0 %v143
  %5387 = vmatprep.subr.mxu0 0.0
  %5388 = vmatpush1.msra.mxu0 %v144
  %5389 = vmatprep.subr.mxu0 0.0
  %5390 = vmatpush1.msra.mxu0 %v145
  %5391 = vmatprep.subr.mxu0 0.0
  %5392 = vmatpush1.msra.mxu0 %v146
  %5393 = vmatprep.subr.mxu0 0.0
  %5394 = vmatpush1.msra.mxu0 %v147
  %5395 = vmatprep.subr.mxu0 0.0
  %5396 = vmatpush1.msra.mxu0 %v148
  %5397 = vmatprep.subr.mxu0 0.0
  %5398 = vmatpush1.msra.mxu0 %v149
  %5399 = vmatprep.subr.mxu0 0.0
  %5400 = vmatpush1.msra.mxu0 %v150
  %5401 = vmatprep.mubr.f32.mxu0 %v4869
  %5402 = vmatmul.mubr.f32.gmra.mrb[0].mxu0 %v4868
  %v5403 = vpop.f32.mrb[0].mxu0
  %v5404 = vadd.f32 %v5304, %v5403
  %v5405 = vpop.f32.mrb[0].mxu0
  %5406 = vmatprep.mubr.f32.mxu0 %v4894
  %5407 = vmatmul.mubr.f32.gmra.mrb[0].mxu0 %v4893
  %v5408 = vpop.f32.mrb[0].mxu0
  %v5409 = vadd.f32 %v5309, %v5408
  %v5410 = vpop.f32.mrb[0].mxu0
  %5411 = vmatprep.mubr.f32.mxu0 %v4919
  %5412 = vmatmul.mubr.f32.gmra.mrb[0].mxu0 %v4918
  %v5413 = vpop.f32.mrb[0].mxu0
  %v5414 = vadd.f32 %v5314, %v5413
  %v5415 = vpop.f32.mrb[0].mxu0
  %5416 = vmatprep.mubr.f32.mxu0 %v4944
  %5417 = vmatmul.mubr.f32.gmra.mrb[0].mxu0 %v4943
  %v5418 = vpop.f32.mrb[0].mxu0
  %v5419 = vadd.f32 %v5319, %v5418
  %v5420 = vpop.f32.mrb[0].mxu0
  %5421 = vmatprep.mubr.f32.mxu0 %v4969
  %5422 = vmatmul.mubr.f32.gmra.mrb[0].mxu0 %v4968
  %v5423 = vpop.f32.mrb[0].mxu0
  %v5424 = vadd.f32 %v5324, %v5423
  %v5425 = vpop.f32.mrb[0].mxu0
  %5426 = vmatprep.mubr.f32.mxu0 %v4994
  %5427 = vmatmul.mubr.f32.gmra.mrb[0].mxu0 %v4993
  %v5428 = vpop.f32.mrb[0].mxu0
  %v5429 = vadd.f32 %v5329, %v5428
  %v5430 = vpop.f32.mrb[0].mxu0
  %5431 = vmatprep.mubr.f32.mxu0 %v5019
  %5432 = vmatmul.mubr.f32.gmra.mrb[0].mxu0 %v5018
  %v5433 = vpop.f32.mrb[0].mxu0
  %v5434 = vadd.f32 %v5334, %v5433
  %v5435 = vpop.f32.mrb[0].mxu0
  %5436 = vdwg.mxu0
  %5437 = vmatprep.subr.mxu0 0.0
  %5438 = vmatpush1.msra.mxu0 %v151
  %5439 = vmatprep.subr.mxu0 0.0
  %5440 = vmatpush1.msra.mxu0 %v152
  %5441 = vmatprep.subr.mxu0 0.0
  %5442 = vmatpush1.msra.mxu0 %v153
  %5443 = vmatprep.subr.mxu0 0.0
  %5444 = vmatpush1.msra.mxu0 %v154
  %5445 = vmatprep.subr.mxu0 0.0
  %5446 = vmatpush1.msra.mxu0 %v155
  %5447 = vmatprep.subr.mxu0 0.0
  %5448 = vmatpush1.msra.mxu0 %v156
  %5449 = vmatprep.subr.mxu0 0.0
  %5450 = vmatpush1.msra.mxu0 %v157
  %5451 = vmatprep.subr.mxu0 0.0
  %5452 = vmatpush1.msra.mxu0 %v158
  %5453 = vmatprep.subr.mxu0 0.0
  %5454 = vmatpush1.msra.mxu0 %v159
  %5455 = vmatprep.subr.mxu0 0.0
  %5456 = vmatpush1.msra.mxu0 %v160
  %5457 = vmatprep.subr.mxu0 0.0
  %5458 = vmatpush1.msra.mxu0 %v161
  %5459 = vmatprep.subr.mxu0 0.0
  %5460 = vmatpush1.msra.mxu0 %v162
  %5461 = vmatprep.subr.mxu0 0.0
  %5462 = vmatpush1.msra.mxu0 %v163
  %5463 = vmatprep.subr.mxu0 0.0
  %5464 = vmatpush1.msra.mxu0 %v164
  %5465 = vmatprep.subr.mxu0 0.0
  %5466 = vmatpush1.msra.mxu0 %v165
  %5467 = vmatprep.subr.mxu0 0.0
  %5468 = vmatpush1.msra.mxu0 %v166
  %5469 = vmatprep.subr.mxu0 0.0
  %5470 = vmatpush1.msra.mxu0 %v167
  %5471 = vmatprep.subr.mxu0 0.0
  %5472 = vmatpush1.msra.mxu0 %v168
  %5473 = vmatprep.subr.mxu0 0.0
  %5474 = vmatpush1.msra.mxu0 %v169
  %5475 = vmatprep.subr.mxu0 0.0
  %5476 = vmatpush1.msra.mxu0 %v170
  %5477 = vmatprep.subr.mxu0 0.0
  %5478 = vmatpush1.msra.mxu0 %v171
  %5479 = vmatprep.subr.mxu0 0.0
  %5480 = vmatpush1.msra.mxu0 %v172
  %5481 = vmatprep.subr.mxu0 0.0
  %5482 = vmatpush1.msra.mxu0 %v173
  %5483 = vmatprep.subr.mxu0 0.0
  %5484 = vmatpush1.msra.mxu0 %v174
  %5485 = vmatprep.subr.mxu0 0.0
  %5486 = vmatpush1.msra.mxu0 %v175
  %5487 = vmatprep.subr.mxu0 0.0
  %5488 = vmatpush1.msra.mxu0 %v176
  %5489 = vmatprep.subr.mxu0 0.0
  %5490 = vmatpush1.msra.mxu0 %v177
  %5491 = vmatprep.subr.mxu0 0.0
  %5492 = vmatpush1.msra.mxu0 %v178
  %5493 = vmatprep.subr.mxu0 0.0
  %5494 = vmatpush1.msra.mxu0 %v179
  %5495 = vmatprep.subr.mxu0 0.0
  %5496 = vmatpush1.msra.mxu0 %v180
  %5497 = vmatprep.subr.mxu0 0.0
  %5498 = vmatpush1.msra.mxu0 %v181
  %5499 = vmatprep.subr.mxu0 0.0
  %5500 = vmatpush1.msra.mxu0 %v182
  %5501 = vmatprep.mubr.f32.mxu0 %v4871
  %5502 = vmatmul.mubr.f32.gmra.mrb[0].mxu0 %v4870
  %v5503 = vpop.f32.mrb[0].mxu0
  %v5504 = vadd.f32 %v5404, %v5503
  %v5505 = vpop.f32.mrb[0].mxu0
  %5506 = vmatprep.mubr.f32.mxu0 %v4896
  %5507 = vmatmul.mubr.f32.gmra.mrb[0].mxu0 %v4895
  %v5508 = vpop.f32.mrb[0].mxu0
  %v5509 = vadd.f32 %v5409, %v5508
  %v5510 = vpop.f32.mrb[0].mxu0
  %5511 = vmatprep.mubr.f32.mxu0 %v4921
  %5512 = vmatmul.mubr.f32.gmra.mrb[0].mxu0 %v4920
  %v5513 = vpop.f32.mrb[0].mxu0
  %v5514 = vadd.f32 %v5414, %v5513
  %v5515 = vpop.f32.mrb[0].mxu0
  %5516 = vmatprep.mubr.f32.mxu0 %v4946
  %5517 = vmatmul.mubr.f32.gmra.mrb[0].mxu0 %v4945
  %v5518 = vpop.f32.mrb[0].mxu0
  %v5519 = vadd.f32 %v5419, %v5518
  %v5520 = vpop.f32.mrb[0].mxu0
  %5521 = vmatprep.mubr.f32.mxu0 %v4971
  %5522 = vmatmul.mubr.f32.gmra.mrb[0].mxu0 %v4970
  %v5523 = vpop.f32.mrb[0].mxu0
  %v5524 = vadd.f32 %v5424, %v5523
  %v5525 = vpop.f32.mrb[0].mxu0
  %5526 = vmatprep.mubr.f32.mxu0 %v4996
  %5527 = vmatmul.mubr.f32.gmra.mrb[0].mxu0 %v4995
  %v5528 = vpop.f32.mrb[0].mxu0
  %v5529 = vadd.f32 %v5429, %v5528
  %v5530 = vpop.f32.mrb[0].mxu0
  %5531 = vmatprep.mubr.f32.mxu0 %v5021
  %5532 = vmatmul.mubr.f32.gmra.mrb[0].mxu0 %v5020
  %v5533 = vpop.f32.mrb[0].mxu0
  %v5534 = vadd.f32 %v5434, %v5533
  %v5535 = vpop.f32.mrb[0].mxu0
  %5536 = vdwg.mxu0
  %5537 = vmatprep.subr.mxu0 0.0
  %5538 = vmatpush1.msra.mxu0 %v183
  %5539 = vmatprep.subr.mxu0 0.0
  %5540 = vmatpush1.msra.mxu0 %v184
  %5541 = vmatprep.subr.mxu0 0.0
  %5542 = vmatpush1.msra.mxu0 %v185
  %5543 = vmatprep.subr.mxu0 0.0
  %5544 = vmatpush1.msra.mxu0 %v186
  %5545 = vmatprep.subr.mxu0 0.0
  %5546 = vmatpush1.msra.mxu0 %v187
  %5547 = vmatprep.subr.mxu0 0.0
  %5548 = vmatpush1.msra.mxu0 %v188
  %5549 = vmatprep.subr.mxu0 0.0
  %5550 = vmatpush1.msra.mxu0 %v189
  %5551 = vmatprep.subr.mxu0 0.0
  %5552 = vmatpush1.msra.mxu0 %v190
  %5553 = vmatprep.subr.mxu0 0.0
  %5554 = vmatpush1.msra.mxu0 %v191
  %5555 = vmatprep.subr.mxu0 0.0
  %5556 = vmatpush1.msra.mxu0 %v192
  %5557 = vmatprep.subr.mxu0 0.0
  %5558 = vmatpush1.msra.mxu0 %v193
  %5559 = vmatprep.subr.mxu0 0.0
  %5560 = vmatpush1.msra.mxu0 %v194
  %5561 = vmatprep.subr.mxu0 0.0
  %5562 = vmatpush1.msra.mxu0 %v195
  %5563 = vmatprep.subr.mxu0 0.0
  %5564 = vmatpush1.msra.mxu0 %v196
  %5565 = vmatprep.subr.mxu0 0.0
  %5566 = vmatpush1.msra.mxu0 %v197
  %5567 = vmatprep.subr.mxu0 0.0
  %5568 = vmatpush1.msra.mxu0 %v198
  %5569 = vmatprep.subr.mxu0 0.0
  %5570 = vmatpush1.msra.mxu0 %v199
  %5571 = vmatprep.subr.mxu0 0.0
  %5572 = vmatpush1.msra.mxu0 %v200
  %5573 = vmatprep.subr.mxu0 0.0
  %5574 = vmatpush1.msra.mxu0 %v201
  %5575 = vmatprep.subr.mxu0 0.0
  %5576 = vmatpush1.msra.mxu0 %v202
  %5577 = vmatprep.subr.mxu0 0.0
  %5578 = vmatpush1.msra.mxu0 %v203
  %5579 = vmatprep.subr.mxu0 0.0
  %5580 = vmatpush1.msra.mxu0 %v204
  %5581 = vmatprep.subr.mxu0 0.0
  %5582 = vmatpush1.msra.mxu0 %v205
  %5583 = vmatprep.subr.mxu0 0.0
  %5584 = vmatpush1.msra.mxu0 %v206
  %5585 = vmatprep.subr.mxu0 0.0
  %5586 = vmatpush1.msra.mxu0 %v207
  %5587 = vmatprep.subr.mxu0 0.0
  %5588 = vmatpush1.msra.mxu0 %v208
  %5589 = vmatprep.subr.mxu0 0.0
  %5590 = vmatpush1.msra.mxu0 %v209
  %5591 = vmatprep.subr.mxu0 0.0
  %5592 = vmatpush1.msra.mxu0 %v210
  %5593 = vmatprep.subr.mxu0 0.0
  %5594 = vmatpush1.msra.mxu0 %v211
  %5595 = vmatprep.subr.mxu0 0.0
  %5596 = vmatpush1.msra.mxu0 %v212
  %5597 = vmatprep.subr.mxu0 0.0
  %5598 = vmatpush1.msra.mxu0 %v213
  %5599 = vmatprep.subr.mxu0 0.0
  %5600 = vmatpush1.msra.mxu0 %v214
  %5601 = vmatprep.mubr.f32.mxu0 %v4873
  %5602 = vmatmul.mubr.f32.gmra.mrb[0].mxu0 %v4872
  %v5603 = vpop.f32.mrb[0].mxu0
  %v5604 = vadd.f32 %v5504, %v5603
  %v5605 = vpop.f32.mrb[0].mxu0
  %5606 = vmatprep.mubr.f32.mxu0 %v4898
  %5607 = vmatmul.mubr.f32.gmra.mrb[0].mxu0 %v4897
  %v5608 = vpop.f32.mrb[0].mxu0
  %v5609 = vadd.f32 %v5509, %v5608
  %v5610 = vpop.f32.mrb[0].mxu0
  %5611 = vmatprep.mubr.f32.mxu0 %v4923
  %5612 = vmatmul.mubr.f32.gmra.mrb[0].mxu0 %v4922
  %v5613 = vpop.f32.mrb[0].mxu0
  %v5614 = vadd.f32 %v5514, %v5613
  %v5615 = vpop.f32.mrb[0].mxu0
  %5616 = vmatprep.mubr.f32.mxu0 %v4948
  %5617 = vmatmul.mubr.f32.gmra.mrb[0].mxu0 %v4947
  %v5618 = vpop.f32.mrb[0].mxu0
  %v5619 = vadd.f32 %v5519, %v5618
  %v5620 = vpop.f32.mrb[0].mxu0
  %5621 = vmatprep.mubr.f32.mxu0 %v4973
  %5622 = vmatmul.mubr.f32.gmra.mrb[0].mxu0 %v4972
  %v5623 = vpop.f32.mrb[0].mxu0
  %v5624 = vadd.f32 %v5524, %v5623
  %v5625 = vpop.f32.mrb[0].mxu0
  %5626 = vmatprep.mubr.f32.mxu0 %v4998
  %5627 = vmatmul.mubr.f32.gmra.mrb[0].mxu0 %v4997
  %v5628 = vpop.f32.mrb[0].mxu0
  %v5629 = vadd.f32 %v5529, %v5628
  %v5630 = vpop.f32.mrb[0].mxu0
  %5631 = vmatprep.mubr.f32.mxu0 %v5023
  %5632 = vmatmul.mubr.f32.gmra.mrb[0].mxu0 %v5022
  %v5633 = vpop.f32.mrb[0].mxu0
  %v5634 = vadd.f32 %v5534, %v5633
  %v5635 = vpop.f32.mrb[0].mxu0
  %5636 = vdwg.mxu0
  %5637 = vmatprep.subr.mxu0 0.0
  %5638 = vmatpush1.msra.mxu0 %v215
  %5639 = vmatprep.subr.mxu0 0.0
  %5640 = vmatpush1.msra.mxu0 %v216
  %5641 = vmatprep.subr.mxu0 0.0
  %5642 = vmatpush1.msra.mxu0 %v217
  %5643 = vmatprep.subr.mxu0 0.0
  %5644 = vmatpush1.msra.mxu0 %v218
  %5645 = vmatprep.subr.mxu0 0.0
  %5646 = vmatpush1.msra.mxu0 %v219
  %5647 = vmatprep.subr.mxu0 0.0
  %5648 = vmatpush1.msra.mxu0 %v220
  %5649 = vmatprep.subr.mxu0 0.0
  %5650 = vmatpush1.msra.mxu0 %v221
  %5651 = vmatprep.subr.mxu0 0.0
  %5652 = vmatpush1.msra.mxu0 %v222
  %5653 = vmatprep.subr.mxu0 0.0
  %5654 = vmatpush1.msra.mxu0 %v223
  %5655 = vmatprep.subr.mxu0 0.0
  %5656 = vmatpush1.msra.mxu0 %v224
  %5657 = vmatprep.subr.mxu0 0.0
  %5658 = vmatpush1.msra.mxu0 %v225
  %5659 = vmatprep.subr.mxu0 0.0
  %5660 = vmatpush1.msra.mxu0 %v226
  %5661 = vmatprep.subr.mxu0 0.0
  %5662 = vmatpush1.msra.mxu0 %v227
  %5663 = vmatprep.subr.mxu0 0.0
  %5664 = vmatpush1.msra.mxu0 %v228
  %5665 = vmatprep.subr.mxu0 0.0
  %5666 = vmatpush1.msra.mxu0 %v229
  %5667 = vmatprep.subr.mxu0 0.0
  %5668 = vmatpush1.msra.mxu0 %v230
  %5669 = vmatprep.subr.mxu0 0.0
  %5670 = vmatpush1.msra.mxu0 %v231
  %5671 = vmatprep.subr.mxu0 0.0
  %5672 = vmatpush1.msra.mxu0 %v232
  %5673 = vmatprep.subr.mxu0 0.0
  %5674 = vmatpush1.msra.mxu0 %v233
  %5675 = vmatprep.subr.mxu0 0.0
  %5676 = vmatpush1.msra.mxu0 %v234
  %5677 = vmatprep.subr.mxu0 0.0
  %5678 = vmatpush1.msra.mxu0 %v235
  %5679 = vmatprep.subr.mxu0 0.0
  %5680 = vmatpush1.msra.mxu0 %v236
  %5681 = vmatprep.subr.mxu0 0.0
  %5682 = vmatpush1.msra.mxu0 %v237
  %5683 = vmatprep.subr.mxu0 0.0
  %5684 = vmatpush1.msra.mxu0 %v238
  %5685 = vmatprep.subr.mxu0 0.0
  %5686 = vmatpush1.msra.mxu0 %v239
  %5687 = vmatprep.subr.mxu0 0.0
  %5688 = vmatpush1.msra.mxu0 %v240
  %5689 = vmatprep.subr.mxu0 0.0
  %5690 = vmatpush1.msra.mxu0 %v241
  %5691 = vmatprep.subr.mxu0 0.0
  %5692 = vmatpush1.msra.mxu0 %v242
  %5693 = vmatprep.subr.mxu0 0.0
  %5694 = vmatpush1.msra.mxu0 %v243
  %5695 = vmatprep.subr.mxu0 0.0
  %5696 = vmatpush1.msra.mxu0 %v244
  %5697 = vmatprep.subr.mxu0 0.0
  %5698 = vmatpush1.msra.mxu0 %v245
  %5699 = vmatprep.subr.mxu0 0.0
  %5700 = vmatpush1.msra.mxu0 %v246
  %5701 = vmatprep.mubr.f32.mxu0 %v4875
  %5702 = vmatmul.mubr.f32.gmra.mrb[0].mxu0 %v4874
  %v5703 = vpop.f32.mrb[0].mxu0
  %v5704 = vadd.f32 %v5604, %v5703
  %v5705 = vpop.f32.mrb[0].mxu0
  %5706 = vmatprep.mubr.f32.mxu0 %v4900
  %5707 = vmatmul.mubr.f32.gmra.mrb[0].mxu0 %v4899
  %v5708 = vpop.f32.mrb[0].mxu0
  %v5709 = vadd.f32 %v5609, %v5708
  %v5710 = vpop.f32.mrb[0].mxu0
  %5711 = vmatprep.mubr.f32.mxu0 %v4925
  %5712 = vmatmul.mubr.f32.gmra.mrb[0].mxu0 %v4924
  %v5713 = vpop.f32.mrb[0].mxu0
  %v5714 = vadd.f32 %v5614, %v5713
  %v5715 = vpop.f32.mrb[0].mxu0
  %5716 = vmatprep.mubr.f32.mxu0 %v4950
  %5717 = vmatmul.mubr.f32.gmra.mrb[0].mxu0 %v4949
  %v5718 = vpop.f32.mrb[0].mxu0
  %v5719 = vadd.f32 %v5619, %v5718
  %v5720 = vpop.f32.mrb[0].mxu0
  %5721 = vmatprep.mubr.f32.mxu0 %v4975
  %5722 = vmatmul.mubr.f32.gmra.mrb[0].mxu0 %v4974
  %v5723 = vpop.f32.mrb[0].mxu0
  %v5724 = vadd.f32 %v5624, %v5723
  %v5725 = vpop.f32.mrb[0].mxu0
  %5726 = vmatprep.mubr.f32.mxu0 %v5000
  %5727 = vmatmul.mubr.f32.gmra.mrb[0].mxu0 %v4999
  %v5728 = vpop.f32.mrb[0].mxu0
  %v5729 = vadd.f32 %v5629, %v5728
  %v5730 = vpop.f32.mrb[0].mxu0
  %5731 = vmatprep.mubr.f32.mxu0 %v5025
  %5732 = vmatmul.mubr.f32.gmra.mrb[0].mxu0 %v5024
  %v5733 = vpop.f32.mrb[0].mxu0
  %v5734 = vadd.f32 %v5634, %v5733
  %v5735 = vpop.f32.mrb[0].mxu0
  %5736 = vdwg.mxu0
  %5737 = vmatprep.subr.mxu0 0.0
  %5738 = vmatpush1.msra.mxu0 %v247
  %5739 = vmatprep.subr.mxu0 0.0
  %5740 = vmatpush1.msra.mxu0 %v248
  %5741 = vmatprep.subr.mxu0 0.0
  %5742 = vmatpush1.msra.mxu0 %v249
  %5743 = vmatprep.subr.mxu0 0.0
  %5744 = vmatpush1.msra.mxu0 %v250
  %5745 = vmatprep.subr.mxu0 0.0
  %5746 = vmatpush1.msra.mxu0 %v251
  %5747 = vmatprep.subr.mxu0 0.0
  %5748 = vmatpush1.msra.mxu0 %v252
  %5749 = vmatprep.subr.mxu0 0.0
  %5750 = vmatpush1.msra.mxu0 %v253
  %5751 = vmatprep.subr.mxu0 0.0
  %5752 = vmatpush1.msra.mxu0 %v254
  %5753 = vmatprep.subr.mxu0 0.0
  %5754 = vmatpush1.msra.mxu0 %v255
  %5755 = vmatprep.subr.mxu0 0.0
  %5756 = vmatpush1.msra.mxu0 %v256
  %5757 = vmatprep.subr.mxu0 0.0
  %5758 = vmatpush1.msra.mxu0 %v257
  %5759 = vmatprep.subr.mxu0 0.0
  %5760 = vmatpush1.msra.mxu0 %v258
  %5761 = vmatprep.subr.mxu0 0.0
  %5762 = vmatpush1.msra.mxu0 %v259
  %5763 = vmatprep.subr.mxu0 0.0
  %5764 = vmatpush1.msra.mxu0 %v260
  %5765 = vmatprep.subr.mxu0 0.0
  %5766 = vmatpush1.msra.mxu0 %v261
  %5767 = vmatprep.subr.mxu0 0.0
  %5768 = vmatpush1.msra.mxu0 %v262
  %5769 = vmatprep.subr.mxu0 0.0
  %5770 = vmatpush1.msra.mxu0 %v263
  %5771 = vmatprep.subr.mxu0 0.0
  %5772 = vmatpush1.msra.mxu0 %v264
  %5773 = vmatprep.subr.mxu0 0.0
  %5774 = vmatpush1.msra.mxu0 %v265
  %5775 = vmatprep.subr.mxu0 0.0
  %5776 = vmatpush1.msra.mxu0 %v266
  %5777 = vmatprep.subr.mxu0 0.0
  %5778 = vmatpush1.msra.mxu0 %v267
  %5779 = vmatprep.subr.mxu0 0.0
  %5780 = vmatpush1.msra.mxu0 %v268
  %5781 = vmatprep.subr.mxu0 0.0
  %5782 = vmatpush1.msra.mxu0 %v269
  %5783 = vmatprep.subr.mxu0 0.0
  %5784 = vmatpush1.msra.mxu0 %v270
  %5785 = vmatprep.subr.mxu0 0.0
  %5786 = vmatpush1.msra.mxu0 %v271
  %5787 = vmatprep.subr.mxu0 0.0
  %5788 = vmatpush1.msra.mxu0 %v272
  %5789 = vmatprep.subr.mxu0 0.0
  %5790 = vmatpush1.msra.mxu0 %v273
  %5791 = vmatprep.subr.mxu0 0.0
  %5792 = vmatpush1.msra.mxu0 %v274
  %5793 = vmatprep.subr.mxu0 0.0
  %5794 = vmatpush1.msra.mxu0 %v275
  %5795 = vmatprep.subr.mxu0 0.0
  %5796 = vmatpush1.msra.mxu0 %v276
  %5797 = vmatprep.subr.mxu0 0.0
  %5798 = vmatpush1.msra.mxu0 %v277
  %5799 = vmatprep.subr.mxu0 0.0
  %5800 = vmatpush1.msra.mxu0 %v278
  %5801 = vmatprep.mubr.f32.mxu0 %v4877
  %5802 = vmatmul.mubr.f32.gmra.mrb[0].mxu0 %v4876
  %v5803 = vpop.f32.mrb[0].mxu0
  %v5804 = vadd.f32 %v5704, %v5803
  %v5805 = vpop.f32.mrb[0].mxu0
  %5806 = vmatprep.mubr.f32.mxu0 %v4902
  %5807 = vmatmul.mubr.f32.gmra.mrb[0].mxu0 %v4901
  %v5808 = vpop.f32.mrb[0].mxu0
  %v5809 = vadd.f32 %v5709, %v5808
  %v5810 = vpop.f32.mrb[0].mxu0
  %5811 = vmatprep.mubr.f32.mxu0 %v4927
  %5812 = vmatmul.mubr.f32.gmra.mrb[0].mxu0 %v4926
  %v5813 = vpop.f32.mrb[0].mxu0
  %v5814 = vadd.f32 %v5714, %v5813
  %v5815 = vpop.f32.mrb[0].mxu0
  %5816 = vmatprep.mubr.f32.mxu0 %v4952
  %5817 = vmatmul.mubr.f32.gmra.mrb[0].mxu0 %v4951
  %v5818 = vpop.f32.mrb[0].mxu0
  %v5819 = vadd.f32 %v5719, %v5818
  %v5820 = vpop.f32.mrb[0].mxu0
  %5821 = vmatprep.mubr.f32.mxu0 %v4977
  %5822 = vmatmul.mubr.f32.gmra.mrb[0].mxu0 %v4976
  %v5823 = vpop.f32.mrb[0].mxu0
  %v5824 = vadd.f32 %v5724, %v5823
  %v5825 = vpop.f32.mrb[0].mxu0
  %5826 = vmatprep.mubr.f32.mxu0 %v5002
  %5827 = vmatmul.mubr.f32.gmra.mrb[0].mxu0 %v5001
  %v5828 = vpop.f32.mrb[0].mxu0
  %v5829 = vadd.f32 %v5729, %v5828
  %v5830 = vpop.f32.mrb[0].mxu0
  %5831 = vmatprep.mubr.f32.mxu0 %v5027
  %5832 = vmatmul.mubr.f32.gmra.mrb[0].mxu0 %v5026
  %v5833 = vpop.f32.mrb[0].mxu0
  %v5834 = vadd.f32 %v5734, %v5833
  %v5835 = vpop.f32.mrb[0].mxu0
  %5836 = vdwg.mxu0
  %5837 = vmatprep.subr.mxu0 0.0
  %5838 = vmatpush1.msra.mxu0 %v279
  %5839 = vmatprep.subr.mxu0 0.0
  %5840 = vmatpush1.msra.mxu0 %v280
  %5841 = vmatprep.subr.mxu0 0.0
  %5842 = vmatpush1.msra.mxu0 %v281
  %5843 = vmatprep.subr.mxu0 0.0
  %5844 = vmatpush1.msra.mxu0 %v282
  %5845 = vmatprep.subr.mxu0 0.0
  %5846 = vmatpush1.msra.mxu0 %v283
  %5847 = vmatprep.subr.mxu0 0.0
  %5848 = vmatpush1.msra.mxu0 %v284
  %5849 = vmatprep.subr.mxu0 0.0
  %5850 = vmatpush1.msra.mxu0 %v285
  %5851 = vmatprep.subr.mxu0 0.0
  %5852 = vmatpush1.msra.mxu0 %v286
  %5853 = vmatprep.subr.mxu0 0.0
  %5854 = vmatpush1.msra.mxu0 %v287
  %5855 = vmatprep.subr.mxu0 0.0
  %5856 = vmatpush1.msra.mxu0 %v288
  %5857 = vmatprep.subr.mxu0 0.0
  %5858 = vmatpush1.msra.mxu0 %v289
  %5859 = vmatprep.subr.mxu0 0.0
  %5860 = vmatpush1.msra.mxu0 %v290
  %5861 = vmatprep.subr.mxu0 0.0
  %5862 = vmatpush1.msra.mxu0 %v291
  %5863 = vmatprep.subr.mxu0 0.0
  %5864 = vmatpush1.msra.mxu0 %v292
  %5865 = vmatprep.subr.mxu0 0.0
  %5866 = vmatpush1.msra.mxu0 %v293
  %5867 = vmatprep.subr.mxu0 0.0
  %5868 = vmatpush1.msra.mxu0 %v294
  %5869 = vmatprep.subr.mxu0 0.0
  %5870 = vmatpush1.msra.mxu0 %v295
  %5871 = vmatprep.subr.mxu0 0.0
  %5872 = vmatpush1.msra.mxu0 %v296
  %5873 = vmatprep.subr.mxu0 0.0
  %5874 = vmatpush1.msra.mxu0 %v297
  %5875 = vmatprep.subr.mxu0 0.0
  %5876 = vmatpush1.msra.mxu0 %v298
  %5877 = vmatprep.subr.mxu0 0.0
  %5878 = vmatpush1.msra.mxu0 %v299
  %5879 = vmatprep.subr.mxu0 0.0
  %5880 = vmatpush1.msra.mxu0 %v300
  %5881 = vmatprep.subr.mxu0 0.0
  %5882 = vmatpush1.msra.mxu0 %v301
  %5883 = vmatprep.subr.mxu0 0.0
  %5884 = vmatpush1.msra.mxu0 %v302
  %5885 = vmatprep.subr.mxu0 0.0
  %5886 = vmatpush1.msra.mxu0 %v303
  %5887 = vmatprep.subr.mxu0 0.0
  %5888 = vmatpush1.msra.mxu0 %v304
  %5889 = vmatprep.subr.mxu0 0.0
  %5890 = vmatpush1.msra.mxu0 %v305
  %5891 = vmatprep.subr.mxu0 0.0
  %5892 = vmatpush1.msra.mxu0 %v306
  %5893 = vmatprep.subr.mxu0 0.0
  %5894 = vmatpush1.msra.mxu0 %v307
  %5895 = vmatprep.subr.mxu0 0.0
  %5896 = vmatpush1.msra.mxu0 %v308
  %5897 = vmatprep.subr.mxu0 0.0
  %5898 = vmatpush1.msra.mxu0 %v309
  %5899 = vmatprep.subr.mxu0 0.0
  %5900 = vmatpush1.msra.mxu0 %v310
  %5901 = vmatprep.mubr.f32.mxu0 %v4879
  %5902 = vmatmul.mubr.f32.gmra.mrb[0].mxu0 %v4878
  %v5903 = vpop.f32.mrb[0].mxu0
  %v5904 = vadd.f32 %v5804, %v5903
  %v5905 = vpop.f32.mrb[0].mxu0
  %5906 = vmatprep.mubr.f32.mxu0 %v4904
  %5907 = vmatmul.mubr.f32.gmra.mrb[0].mxu0 %v4903
  %v5908 = vpop.f32.mrb[0].mxu0
  %v5909 = vadd.f32 %v5809, %v5908
  %v5910 = vpop.f32.mrb[0].mxu0
  %5911 = vmatprep.mubr.f32.mxu0 %v4929
  %5912 = vmatmul.mubr.f32.gmra.mrb[0].mxu0 %v4928
  %v5913 = vpop.f32.mrb[0].mxu0
  %v5914 = vadd.f32 %v5814, %v5913
  %v5915 = vpop.f32.mrb[0].mxu0
  %5916 = vmatprep.mubr.f32.mxu0 %v4954
  %5917 = vmatmul.mubr.f32.gmra.mrb[0].mxu0 %v4953
  %v5918 = vpop.f32.mrb[0].mxu0
  %v5919 = vadd.f32 %v5819, %v5918
  %v5920 = vpop.f32.mrb[0].mxu0
  %5921 = vmatprep.mubr.f32.mxu0 %v4979
  %5922 = vmatmul.mubr.f32.gmra.mrb[0].mxu0 %v4978
  %v5923 = vpop.f32.mrb[0].mxu0
  %v5924 = vadd.f32 %v5824, %v5923
  %v5925 = vpop.f32.mrb[0].mxu0
  %5926 = vmatprep.mubr.f32.mxu0 %v5004
  %5927 = vmatmul.mubr.f32.gmra.mrb[0].mxu0 %v5003
  %v5928 = vpop.f32.mrb[0].mxu0
  %v5929 = vadd.f32 %v5829, %v5928
  %v5930 = vpop.f32.mrb[0].mxu0
  %5931 = vmatprep.mubr.f32.mxu0 %v5029
  %5932 = vmatmul.mubr.f32.gmra.mrb[0].mxu0 %v5028
  %v5933 = vpop.f32.mrb[0].mxu0
  %v5934 = vadd.f32 %v5834, %v5933
  %v5935 = vpop.f32.mrb[0].mxu0
  %5936 = vdwg.mxu0
  %5937 = vmatprep.subr.mxu0 0.0
  %5938 = vmatpush1.msra.mxu0 %v311
  %5939 = vmatprep.subr.mxu0 0.0
  %5940 = vmatpush1.msra.mxu0 %v312
  %5941 = vmatprep.subr.mxu0 0.0
  %5942 = vmatpush1.msra.mxu0 %v313
  %5943 = vmatprep.subr.mxu0 0.0
  %5944 = vmatpush1.msra.mxu0 %v314
  %5945 = vmatprep.subr.mxu0 0.0
  %5946 = vmatpush1.msra.mxu0 %v315
  %5947 = vmatprep.subr.mxu0 0.0
  %5948 = vmatpush1.msra.mxu0 %v316
  %5949 = vmatprep.subr.mxu0 0.0
  %5950 = vmatpush1.msra.mxu0 %v317
  %5951 = vmatprep.subr.mxu0 0.0
  %5952 = vmatpush1.msra.mxu0 %v318
  %5953 = vmatprep.subr.mxu0 0.0
  %5954 = vmatpush1.msra.mxu0 %v319
  %5955 = vmatprep.subr.mxu0 0.0
  %5956 = vmatpush1.msra.mxu0 %v320
  %5957 = vmatprep.subr.mxu0 0.0
  %5958 = vmatpush1.msra.mxu0 %v321
  %5959 = vmatprep.subr.mxu0 0.0
  %5960 = vmatpush1.msra.mxu0 %v322
  %5961 = vmatprep.subr.mxu0 0.0
  %5962 = vmatpush1.msra.mxu0 %v323
  %5963 = vmatprep.subr.mxu0 0.0
  %5964 = vmatpush1.msra.mxu0 %v324
  %5965 = vmatprep.subr.mxu0 0.0
  %5966 = vmatpush1.msra.mxu0 %v325
  %5967 = vmatprep.subr.mxu0 0.0
  %5968 = vmatpush1.msra.mxu0 %v326
  %5969 = vmatprep.subr.mxu0 0.0
  %5970 = vmatpush1.msra.mxu0 %v327
  %5971 = vmatprep.subr.mxu0 0.0
  %5972 = vmatpush1.msra.mxu0 %v328
  %5973 = vmatprep.subr.mxu0 0.0
  %5974 = vmatpush1.msra.mxu0 %v329
  %5975 = vmatprep.subr.mxu0 0.0
  %5976 = vmatpush1.msra.mxu0 %v330
  %5977 = vmatprep.subr.mxu0 0.0
  %5978 = vmatpush1.msra.mxu0 %v331
  %5979 = vmatprep.subr.mxu0 0.0
  %5980 = vmatpush1.msra.mxu0 %v332
  %5981 = vmatprep.subr.mxu0 0.0
  %5982 = vmatpush1.msra.mxu0 %v333
  %5983 = vmatprep.subr.mxu0 0.0
  %5984 = vmatpush1.msra.mxu0 %v334
  %5985 = vmatprep.subr.mxu0 0.0
  %5986 = vmatpush1.msra.mxu0 %v335
  %5987 = vmatprep.subr.mxu0 0.0
  %5988 = vmatpush1.msra.mxu0 %v336
  %5989 = vmatprep.subr.mxu0 0.0
  %5990 = vmatpush1.msra.mxu0 %v337
  %5991 = vmatprep.subr.mxu0 0.0
  %5992 = vmatpush1.msra.mxu0 %v338
  %5993 = vmatprep.subr.mxu0 0.0
  %5994 = vmatpush1.msra.mxu0 %v339
  %5995 = vmatprep.subr.mxu0 0.0
  %5996 = vmatpush1.msra.mxu0 %v340
  %5997 = vmatprep.subr.mxu0 0.0
  %5998 = vmatpush1.msra.mxu0 %v341
  %5999 = vmatprep.subr.mxu0 0.0
  %6000 = vmatpush1.msra.mxu0 %v342
  %6001 = vmatprep.mubr.f32.mxu0 %v4881
  %6002 = vmatmul.mubr.f32.gmra.mrb[0].mxu0 %v4880
  %v6003 = vpop.f32.mrb[0].mxu0
  %v6004 = vadd.f32 %v5904, %v6003
  %v6005 = vpop.f32.mrb[0].mxu0
  %6006 = vmatprep.mubr.f32.mxu0 %v4906
  %6007 = vmatmul.mubr.f32.gmra.mrb[0].mxu0 %v4905
  %v6008 = vpop.f32.mrb[0].mxu0
  %v6009 = vadd.f32 %v5909, %v6008
  %v6010 = vpop.f32.mrb[0].mxu0
  %6011 = vmatprep.mubr.f32.mxu0 %v4931
  %6012 = vmatmul.mubr.f32.gmra.mrb[0].mxu0 %v4930
  %v6013 = vpop.f32.mrb[0].mxu0
  %v6014 = vadd.f32 %v5914, %v6013
  %v6015 = vpop.f32.mrb[0].mxu0
  %6016 = vmatprep.mubr.f32.mxu0 %v4956
  %6017 = vmatmul.mubr.f32.gmra.mrb[0].mxu0 %v4955
  %v6018 = vpop.f32.mrb[0].mxu0
  %v6019 = vadd.f32 %v5919, %v6018
  %v6020 = vpop.f32.mrb[0].mxu0
  %6021 = vmatprep.mubr.f32.mxu0 %v4981
  %6022 = vmatmul.mubr.f32.gmra.mrb[0].mxu0 %v4980
  %v6023 = vpop.f32.mrb[0].mxu0
  %v6024 = vadd.f32 %v5924, %v6023
  %v6025 = vpop.f32.mrb[0].mxu0
  %6026 = vmatprep.mubr.f32.mxu0 %v5006
  %6027 = vmatmul.mubr.f32.gmra.mrb[0].mxu0 %v5005
  %v6028 = vpop.f32.mrb[0].mxu0
  %v6029 = vadd.f32 %v5929, %v6028
  %v6030 = vpop.f32.mrb[0].mxu0
  %6031 = vmatprep.mubr.f32.mxu0 %v5031
  %6032 = vmatmul.mubr.f32.gmra.mrb[0].mxu0 %v5030
  %v6033 = vpop.f32.mrb[0].mxu0
  %v6034 = vadd.f32 %v5934, %v6033
  %v6035 = vpop.f32.mrb[0].mxu0
  %6036 = vdwg.mxu0
  %6037 = vmatprep.subr.mxu0 0.0
  %6038 = vmatpush1.msra.mxu0 %v343
  %6039 = vmatprep.subr.mxu0 0.0
  %6040 = vmatpush1.msra.mxu0 %v344
  %6041 = vmatprep.subr.mxu0 0.0
  %6042 = vmatpush1.msra.mxu0 %v345
  %6043 = vmatprep.subr.mxu0 0.0
  %6044 = vmatpush1.msra.mxu0 %v346
  %6045 = vmatprep.subr.mxu0 0.0
  %6046 = vmatpush1.msra.mxu0 %v347
  %6047 = vmatprep.subr.mxu0 0.0
  %6048 = vmatpush1.msra.mxu0 %v348
  %6049 = vmatprep.subr.mxu0 0.0
  %6050 = vmatpush1.msra.mxu0 %v349
  %6051 = vmatprep.subr.mxu0 0.0
  %6052 = vmatpush1.msra.mxu0 %v350
  %6053 = vmatprep.subr.mxu0 0.0
  %6054 = vmatpush1.msra.mxu0 %v351
  %6055 = vmatprep.subr.mxu0 0.0
  %6056 = vmatpush1.msra.mxu0 %v352
  %6057 = vmatprep.subr.mxu0 0.0
  %6058 = vmatpush1.msra.mxu0 %v353
  %6059 = vmatprep.subr.mxu0 0.0
  %6060 = vmatpush1.msra.mxu0 %v354
  %6061 = vmatprep.subr.mxu0 0.0
  %6062 = vmatpush1.msra.mxu0 %v355
  %6063 = vmatprep.subr.mxu0 0.0
  %6064 = vmatpush1.msra.mxu0 %v356
  %6065 = vmatprep.subr.mxu0 0.0
  %6066 = vmatpush1.msra.mxu0 %v357
  %6067 = vmatprep.subr.mxu0 0.0
  %6068 = vmatpush1.msra.mxu0 %v358
  %6069 = vmatprep.subr.mxu0 0.0
  %6070 = vmatpush1.msra.mxu0 %v359
  %6071 = vmatprep.subr.mxu0 0.0
  %6072 = vmatpush1.msra.mxu0 %v360
  %6073 = vmatprep.subr.mxu0 0.0
  %6074 = vmatpush1.msra.mxu0 %v361
  %6075 = vmatprep.subr.mxu0 0.0
  %6076 = vmatpush1.msra.mxu0 %v362
  %6077 = vmatprep.subr.mxu0 0.0
  %6078 = vmatpush1.msra.mxu0 %v363
  %6079 = vmatprep.subr.mxu0 0.0
  %6080 = vmatpush1.msra.mxu0 %v364
  %6081 = vmatprep.subr.mxu0 0.0
  %6082 = vmatpush1.msra.mxu0 %v365
  %6083 = vmatprep.subr.mxu0 0.0
  %6084 = vmatpush1.msra.mxu0 %v366
  %6085 = vmatprep.subr.mxu0 0.0
  %6086 = vmatpush1.msra.mxu0 %v367
  %6087 = vmatprep.subr.mxu0 0.0
  %6088 = vmatpush1.msra.mxu0 %v368
  %6089 = vmatprep.subr.mxu0 0.0
  %6090 = vmatpush1.msra.mxu0 %v369
  %6091 = vmatprep.subr.mxu0 0.0
  %6092 = vmatpush1.msra.mxu0 %v370
  %6093 = vmatprep.subr.mxu0 0.0
  %6094 = vmatpush1.msra.mxu0 %v371
  %6095 = vmatprep.subr.mxu0 0.0
  %6096 = vmatpush1.msra.mxu0 %v372
  %6097 = vmatprep.subr.mxu0 0.0
  %6098 = vmatpush1.msra.mxu0 %v373
  %6099 = vmatprep.subr.mxu0 0.0
  %6100 = vmatpush1.msra.mxu0 %v374
  %6101 = vmatprep.mubr.f32.mxu0 %v4883
  %6102 = vmatmul.mubr.f32.gmra.mrb[0].mxu0 %v4882
  %v6103 = vpop.f32.mrb[0].mxu0
  %v6104 = vadd.f32 %v6004, %v6103
  %v6105 = vpop.f32.mrb[0].mxu0
  %6106 = vmatprep.mubr.f32.mxu0 %v4908
  %6107 = vmatmul.mubr.f32.gmra.mrb[0].mxu0 %v4907
  %v6108 = vpop.f32.mrb[0].mxu0
  %v6109 = vadd.f32 %v6009, %v6108
  %v6110 = vpop.f32.mrb[0].mxu0
  %6111 = vmatprep.mubr.f32.mxu0 %v4933
  %6112 = vmatmul.mubr.f32.gmra.mrb[0].mxu0 %v4932
  %v6113 = vpop.f32.mrb[0].mxu0
  %v6114 = vadd.f32 %v6014, %v6113
  %v6115 = vpop.f32.mrb[0].mxu0
  %6116 = vmatprep.mubr.f32.mxu0 %v4958
  %6117 = vmatmul.mubr.f32.gmra.mrb[0].mxu0 %v4957
  %v6118 = vpop.f32.mrb[0].mxu0
  %v6119 = vadd.f32 %v6019, %v6118
  %v6120 = vpop.f32.mrb[0].mxu0
  %6121 = vmatprep.mubr.f32.mxu0 %v4983
  %6122 = vmatmul.mubr.f32.gmra.mrb[0].mxu0 %v4982
  %v6123 = vpop.f32.mrb[0].mxu0
  %v6124 = vadd.f32 %v6024, %v6123
  %v6125 = vpop.f32.mrb[0].mxu0
  %6126 = vmatprep.mubr.f32.mxu0 %v5008
  %6127 = vmatmul.mubr.f32.gmra.mrb[0].mxu0 %v5007
  %v6128 = vpop.f32.mrb[0].mxu0
  %v6129 = vadd.f32 %v6029, %v6128
  %v6130 = vpop.f32.mrb[0].mxu0
  %6131 = vmatprep.mubr.f32.mxu0 %v5033
  %6132 = vmatmul.mubr.f32.gmra.mrb[0].mxu0 %v5032
  %v6133 = vpop.f32.mrb[0].mxu0
  %v6134 = vadd.f32 %v6034, %v6133
  %v6135 = vpop.f32.mrb[0].mxu0
  %6136 = vdwg.mxu0
  %6137 = vmatprep.subr.mxu0 0.0
  %6138 = vmatpush1.msra.mxu0 %v375
  %6139 = vmatprep.subr.mxu0 0.0
  %6140 = vmatpush1.msra.mxu0 %v376
  %6141 = vmatprep.subr.mxu0 0.0
  %6142 = vmatpush1.msra.mxu0 %v377
  %6143 = vmatprep.subr.mxu0 0.0
  %6144 = vmatpush1.msra.mxu0 %v378
  %6145 = vmatprep.subr.mxu0 0.0
  %6146 = vmatpush1.msra.mxu0 %v379
  %6147 = vmatprep.subr.mxu0 0.0
  %6148 = vmatpush1.msra.mxu0 %v380
  %6149 = vmatprep.subr.mxu0 0.0
  %6150 = vmatpush1.msra.mxu0 %v381
  %6151 = vmatprep.subr.mxu0 0.0
  %6152 = vmatpush1.msra.mxu0 %v382
  %6153 = vmatprep.subr.mxu0 0.0
  %6154 = vmatpush1.msra.mxu0 %v383
  %6155 = vmatprep.subr.mxu0 0.0
  %6156 = vmatpush1.msra.mxu0 %v384
  %6157 = vmatprep.subr.mxu0 0.0
  %6158 = vmatpush1.msra.mxu0 %v385
  %6159 = vmatprep.subr.mxu0 0.0
  %6160 = vmatpush1.msra.mxu0 %v386
  %6161 = vmatprep.subr.mxu0 0.0
  %6162 = vmatpush1.msra.mxu0 %v387
  %6163 = vmatprep.subr.mxu0 0.0
  %6164 = vmatpush1.msra.mxu0 %v388
  %6165 = vmatprep.subr.mxu0 0.0
  %6166 = vmatpush1.msra.mxu0 %v389
  %6167 = vmatprep.subr.mxu0 0.0
  %6168 = vmatpush1.msra.mxu0 %v390
  %6169 = vmatprep.subr.mxu0 0.0
  %6170 = vmatpush1.msra.mxu0 %v391
  %6171 = vmatprep.subr.mxu0 0.0
  %6172 = vmatpush1.msra.mxu0 %v392
  %6173 = vmatprep.subr.mxu0 0.0
  %6174 = vmatpush1.msra.mxu0 %v393
  %6175 = vmatprep.subr.mxu0 0.0
  %6176 = vmatpush1.msra.mxu0 %v394
  %6177 = vmatprep.subr.mxu0 0.0
  %6178 = vmatpush1.msra.mxu0 %v395
  %6179 = vmatprep.subr.mxu0 0.0
  %6180 = vmatpush1.msra.mxu0 %v396
  %6181 = vmatprep.subr.mxu0 0.0
  %6182 = vmatpush1.msra.mxu0 %v397
  %6183 = vmatprep.subr.mxu0 0.0
  %6184 = vmatpush1.msra.mxu0 %v398
  %6185 = vmatprep.subr.mxu0 0.0
  %6186 = vmatpush1.msra.mxu0 %v399
  %6187 = vmatprep.subr.mxu0 0.0
  %6188 = vmatpush1.msra.mxu0 %v400
  %6189 = vmatprep.subr.mxu0 0.0
  %6190 = vmatpush1.msra.mxu0 %v401
  %6191 = vmatprep.subr.mxu0 0.0
  %6192 = vmatpush1.msra.mxu0 %v402
  %6193 = vmatprep.subr.mxu0 0.0
  %6194 = vmatpush1.msra.mxu0 %v403
  %6195 = vmatprep.subr.mxu0 0.0
  %6196 = vmatpush1.msra.mxu0 %v404
  %6197 = vmatprep.subr.mxu0 0.0
  %6198 = vmatpush1.msra.mxu0 %v405
  %6199 = vmatprep.subr.mxu0 0.0
  %6200 = vmatpush1.msra.mxu0 %v406
  %6201 = vmatprep.mubr.f32.mxu0 %v4885
  %6202 = vmatmul.mubr.f32.gmra.mrb[0].mxu0 %v4884
  %v6203 = vpop.f32.mrb[0].mxu0
  %v6204 = vadd.f32 %v6104, %v6203
  %v6205 = vpop.f32.mrb[0].mxu0
  %6206 = vmatprep.mubr.f32.mxu0 %v4910
  %6207 = vmatmul.mubr.f32.gmra.mrb[0].mxu0 %v4909
  %v6208 = vpop.f32.mrb[0].mxu0
  %v6209 = vadd.f32 %v6109, %v6208
  %v6210 = vpop.f32.mrb[0].mxu0
  %6211 = vmatprep.mubr.f32.mxu0 %v4935
  %6212 = vmatmul.mubr.f32.gmra.mrb[0].mxu0 %v4934
  %v6213 = vpop.f32.mrb[0].mxu0
  %v6214 = vadd.f32 %v6114, %v6213
  %v6215 = vpop.f32.mrb[0].mxu0
  %6216 = vmatprep.mubr.f32.mxu0 %v4960
  %6217 = vmatmul.mubr.f32.gmra.mrb[0].mxu0 %v4959
  %v6218 = vpop.f32.mrb[0].mxu0
  %v6219 = vadd.f32 %v6119, %v6218
  %v6220 = vpop.f32.mrb[0].mxu0
  %6221 = vmatprep.mubr.f32.mxu0 %v4985
  %6222 = vmatmul.mubr.f32.gmra.mrb[0].mxu0 %v4984
  %v6223 = vpop.f32.mrb[0].mxu0
  %v6224 = vadd.f32 %v6124, %v6223
  %v6225 = vpop.f32.mrb[0].mxu0
  %6226 = vmatprep.mubr.f32.mxu0 %v5010
  %6227 = vmatmul.mubr.f32.gmra.mrb[0].mxu0 %v5009
  %v6228 = vpop.f32.mrb[0].mxu0
  %v6229 = vadd.f32 %v6129, %v6228
  %v6230 = vpop.f32.mrb[0].mxu0
  %6231 = vmatprep.mubr.f32.mxu0 %v5035
  %6232 = vmatmul.mubr.f32.gmra.mrb[0].mxu0 %v5034
  %v6233 = vpop.f32.mrb[0].mxu0
  %v6234 = vadd.f32 %v6134, %v6233
  %v6235 = vpop.f32.mrb[0].mxu0
  %6236 = vdwg.mxu0
  %6237 = vmatprep.subr.mxu0 0.0
  %6238 = vmatpush1.msra.mxu0 %v407
  %6239 = vmatprep.subr.mxu0 0.0
  %6240 = vmatpush1.msra.mxu0 %v408
  %6241 = vmatprep.subr.mxu0 0.0
  %6242 = vmatpush1.msra.mxu0 %v409
  %6243 = vmatprep.subr.mxu0 0.0
  %6244 = vmatpush1.msra.mxu0 %v410
  %6245 = vmatprep.subr.mxu0 0.0
  %6246 = vmatpush1.msra.mxu0 %v411
  %6247 = vmatprep.subr.mxu0 0.0
  %6248 = vmatpush1.msra.mxu0 %v412
  %6249 = vmatprep.subr.mxu0 0.0
  %6250 = vmatpush1.msra.mxu0 %v413
  %6251 = vmatprep.subr.mxu0 0.0
  %6252 = vmatpush1.msra.mxu0 %v414
  %6253 = vmatprep.subr.mxu0 0.0
  %6254 = vmatpush1.msra.mxu0 %v415
  %6255 = vmatprep.subr.mxu0 0.0
  %6256 = vmatpush1.msra.mxu0 %v416
  %6257 = vmatprep.subr.mxu0 0.0
  %6258 = vmatpush1.msra.mxu0 %v417
  %6259 = vmatprep.subr.mxu0 0.0
  %6260 = vmatpush1.msra.mxu0 %v418
  %6261 = vmatprep.subr.mxu0 0.0
  %6262 = vmatpush1.msra.mxu0 %v419
  %6263 = vmatprep.subr.mxu0 0.0
  %6264 = vmatpush1.msra.mxu0 %v420
  %6265 = vmatprep.subr.mxu0 0.0
  %6266 = vmatpush1.msra.mxu0 %v421
  %6267 = vmatprep.subr.mxu0 0.0
  %6268 = vmatpush1.msra.mxu0 %v422
  %6269 = vmatprep.subr.mxu0 0.0
  %6270 = vmatpush1.msra.mxu0 0.0
  %6271 = vmatprep.subr.mxu0 0.0
  %6272 = vmatpush1.msra.mxu0 0.0
  %6273 = vmatprep.subr.mxu0 0.0
  %6274 = vmatpush1.msra.mxu0 0.0
  %6275 = vmatprep.subr.mxu0 0.0
  %6276 = vmatpush1.msra.mxu0 0.0
  %6277 = vmatprep.subr.mxu0 0.0
  %6278 = vmatpush1.msra.mxu0 0.0
  %6279 = vmatprep.subr.mxu0 0.0
  %6280 = vmatpush1.msra.mxu0 0.0
  %6281 = vmatprep.subr.mxu0 0.0
  %6282 = vmatpush1.msra.mxu0 0.0
  %6283 = vmatprep.subr.mxu0 0.0
  %6284 = vmatpush1.msra.mxu0 0.0
  %6285 = vmatprep.subr.mxu0 0.0
  %6286 = vmatpush1.msra.mxu0 0.0
  %6287 = vmatprep.subr.mxu0 0.0
  %6288 = vmatpush1.msra.mxu0 0.0
  %6289 = vmatprep.subr.mxu0 0.0
  %6290 = vmatpush1.msra.mxu0 0.0
  %6291 = vmatprep.subr.mxu0 0.0
  %6292 = vmatpush1.msra.mxu0 0.0
  %6293 = vmatprep.subr.mxu0 0.0
  %6294 = vmatpush1.msra.mxu0 0.0
  %6295 = vmatprep.subr.mxu0 0.0
  %6296 = vmatpush1.msra.mxu0 0.0
  %6297 = vmatprep.subr.mxu0 0.0
  %6298 = vmatpush1.msra.mxu0 0.0
  %6299 = vmatprep.subr.mxu0 0.0
  %6300 = vmatpush1.msra.mxu0 0.0
  %6301 = vmatprep.mubr.f32.mxu0 0.0
  %6302 = vmatmul.mubr.f32.gmra.mrb[0].mxu0 %v4886
  %v6303 = vpop.f32.mrb[0].mxu0
  %v6304 = vadd.f32 %v6204, %v6303
  %v6305 = vpop.f32.mrb[0].mxu0
  %6306 = vmatprep.mubr.f32.mxu0 0.0
  %6307 = vmatmul.mubr.f32.gmra.mrb[0].mxu0 %v4911
  %v6308 = vpop.f32.mrb[0].mxu0
  %v6309 = vadd.f32 %v6209, %v6308
  %v6310 = vpop.f32.mrb[0].mxu0
  %6311 = vmatprep.mubr.f32.mxu0 0.0
  %6312 = vmatmul.mubr.f32.gmra.mrb[0].mxu0 %v4936
  %v6313 = vpop.f32.mrb[0].mxu0
  %v6314 = vadd.f32 %v6214, %v6313
  %v6315 = vpop.f32.mrb[0].mxu0
  %6316 = vmatprep.mubr.f32.mxu0 0.0
  %6317 = vmatmul.mubr.f32.gmra.mrb[0].mxu0 %v4961
  %v6318 = vpop.f32.mrb[0].mxu0
  %v6319 = vadd.f32 %v6219, %v6318
  %v6320 = vpop.f32.mrb[0].mxu0
  %6321 = vmatprep.mubr.f32.mxu0 0.0
  %6322 = vmatmul.mubr.f32.gmra.mrb[0].mxu0 %v4986
  %v6323 = vpop.f32.mrb[0].mxu0
  %v6324 = vadd.f32 %v6224, %v6323
  %v6325 = vpop.f32.mrb[0].mxu0
  %6326 = vmatprep.mubr.f32.mxu0 0.0
  %6327 = vmatmul.mubr.f32.gmra.mrb[0].mxu0 %v5011
  %v6328 = vpop.f32.mrb[0].mxu0
  %v6329 = vadd.f32 %v6229, %v6328
  %v6330 = vpop.f32.mrb[0].mxu0
  %6331 = vmatprep.mubr.f32.mxu0 0.0
  %6332 = vmatmul.mubr.f32.gmra.mrb[0].mxu0 %v5036
  %v6333 = vpop.f32.mrb[0].mxu0
  %v6334 = vadd.f32 %v6234, %v6333
  %v6335 = vpop.f32.mrb[0].mxu0
  %6336 = vdwg.mxu0
  %v6337 = vmax.f32 %v4855, %v6304
  %v6338 = vmax.f32 %v4856, %v6309
  %v6339 = vmax.f32 %v4857, %v6314
  %v6340 = vmax.f32 %v4858, %v6319
  %v6341 = vmax.f32 %v4859, %v6324
  %v6342 = vmax.f32 %v4860, %v6329
  %v6343 = vmax.f32 %v4861, %v6334
  %v6344 = vld [vmem:[%s5] sm:$0x1]
  %v6346 = vlaneseq
  %v6347 = vshrl.u32 %v6346, 7
  %v6348 = vsub.s32 0, %v6347
  %v6349 = vrot.slane %v6344, %v6348
  %v6351 = vadd.f32 %v6337, %v6349
  %v6352 = vadd.f32 %v6338, %v6349
  %v6353 = vadd.f32 %v6339, %v6349
  %v6354 = vadd.f32 %v6340, %v6349
  %v6355 = vadd.f32 %v6341, %v6349
  %v6356 = vadd.f32 %v6342, %v6349
  %v6357 = vadd.f32 %v6343, %v6349
  %v6358 = vmax.f32 %v6351, 0.0
  %v6359 = vmax.f32 %v6352, 0.0
  %v6360 = vmax.f32 %v6353, 0.0
  %v6361 = vmax.f32 %v6354, 0.0
  %v6362 = vmax.f32 %v6355, 0.0
  %v6363 = vmax.f32 %v6356, 0.0
  %v6364 = vmax.f32 %v6357, 0.0
  %6365 = vst [vmem:[%s6] sm:$0xff] %v6358
  %6366 = vst [vmem:[%s6 + $0x8] sm:$0xff] %v6359
  %6367 = vst [vmem:[%s6 + $0x10] sm:$0xff] %v6360
  %6368 = vst [vmem:[%s6 + $0x18] sm:$0xff] %v6361
  %6369 = vst [vmem:[%s6 + $0x20] sm:$0xff] %v6362
  %6370 = vst [vmem:[%s6 + $0x28] sm:$0xff] %v6363
  %6371 = vst [vmem:[%s6 + $0x30] sm:$0xff] %v6364
  // Predicated region
  $region26: #{lenet_forward.4} parent=0 // pred_check
    _
  $region27: #{lenet_forward.4} parent=0 // pred_check_branch
    %6373 = sbr.rel (0) target = $region29
  $region28: #{lenet_forward.4} parent=0 // pred_region
    _
  $region29: #{lenet_forward.4} parent=0 // pred_fallthru
    _
  // Predicated region
  $region30: #{lenet_forward.4} parent=0 // pred_check
    _
  $region31: #{lenet_forward.4} parent=0 // pred_check_branch
    %6375 = sbr.rel (0) target = $region33
  $region32: #{lenet_forward.4} parent=0 // pred_region
    _
  $region33: #{lenet_forward.4} parent=0 // pred_fallthru
    _

</llo_original>
